<compile_context>
chip_gen: v7x
topology: tpu7x:2x2x1
jax: 0.10.0
libtpu: 0.0.40
codegen_flags: <defaults>
</compile_context>

<pallas_src>
import functools
import math

import jax
import jax.numpy as jnp
from jax import lax
from jax.experimental import pallas as pl
from jax.experimental.pallas import tpu as pltpu


def _round_up(x, m):
    return (x + m - 1) // m * m


def attention6_kernel(x_ref, w_ref, b_ref, tapmask_ref, smc_ref, seg_ref,
                      o_ref, *, H, W, n_shifts):
    """One grid step = one lane-batched slab of images.

    x_ref:       (1, Cpad, L)        input slab, L = B*H*W (images lane-concatenated)
    w_ref:       (6, Cpad, 9*Cpad)   tap-stacked conv weights (column k*Cpad + c)
    b_ref:       (6, Cpad, 1)        biases (padded channels are 0)
    tapmask_ref: (9*Cpad, L)         0/1 boundary-validity mask, stacked per tap
    smc_ref:     (Spad, L)           rows 0..n_shifts-1: additive -1e30 biases for the
                                     suffix-max tree; row n_shifts: (w == 0) one-hot
    seg_ref:     (L, L)              block-diagonal ones (1 iff same softmax row of W lanes)
    o_ref:       (1, Cout, L)
    """
    L = x_ref.shape[2]
    tapmask = tapmask_ref[...]
    seg = seg_ref[...]

    def conv(i, z):
        # 9 lane-rolled copies stacked along sublanes -> a single MXU matmul.
        slabs = []
        for kh in range(3):
            for kw in range(3):
                d = (kh - 1) * W + (kw - 1)        # flat source offset
                if d == 0:
                    slabs.append(z)
                else:
                    # out[p] = z[(p + d) mod L]; out-of-image taps masked below
                    slabs.append(pltpu.roll(z, shift=(-d) % L, axis=1))
        stacked = jnp.concatenate(slabs, axis=0) * tapmask      # (9*Cpad, L)
        y = jnp.dot(w_ref[i], stacked,
                    preferred_element_type=jnp.float32,
                    precision=lax.Precision.HIGHEST)            # (Cpad, L)
        return y + b_ref[i]

    x = x_ref[0].astype(jnp.float32)

    x1 = jnp.maximum(conv(0, x), 0.0)
    z = x1
    for i in range(1, 5):
        z = jnp.maximum(conv(i, z), 0.0)
    x6 = conv(5, z)                                  # no relu on conv6

    # ---- softmax over W (rows of W consecutive lanes) ----
    # per-row max via a log2(W)-step suffix-max tree (rolls on the XLU slot)
    m = x6
    for si in range(n_shifts):
        s = 1 << si
        rolled = pltpu.roll(m, shift=(L - s) % L, axis=1)        # rolled[p] = m[p+s]
        m = jnp.maximum(m, rolled + smc_ref[si:si + 1, :])       # bias: 0 or -1e30
    w0 = smc_ref[n_shifts:n_shifts + 1, :]                       # one-hot of w == 0
    # lane w=0 of each row now holds the full row max; broadcast with one matmul
    row_max = jnp.dot(m * w0, seg,
                      preferred_element_type=jnp.float32,
                      precision=lax.Precision.HIGHEST)           # (Cpad, L)
    e = jnp.exp(x6 - row_max)
    denom = jnp.dot(e, seg,
                    preferred_element_type=jnp.float32,
                    precision=lax.Precision.HIGHEST)             # per-row sum, broadcast
    inv = pl.reciprocal(denom, approx=True)                      # EUP slot
    inv = inv * (2.0 - denom * inv)                              # Newton step -> ~f32 exact
    sm = e * inv

    out = sm * x1                                                # (Cpad, L)
    o_ref[0] = out[:o_ref.shape[1]].astype(o_ref.dtype)          # lane-dense store


def attention6_forward(x, params, *, images_per_step=None):
    """x: (N, Cin, H, W) f32. params: list of 6 (w, b), w in torch OIHW layout."""
    N, Cin, H, W = x.shape
    Cout = params[0][0].shape[0]
    HW = H * W

    if images_per_step is None:
        # single TC chips (v5e/v6e) like more images per step; keep >= 2 parallel
        # grid steps so both v7x TensorCores get work.
        images_per_step = 1
        if N > 2:
            for cand in range(2, min(8, N // 2) + 1):
                if N % cand == 0:
                    images_per_step = cand
    B = images_per_step
    assert N % B == 0, "images_per_step must divide N"
    G = N // B
    L = B * HW

    Cpad = _round_up(max(Cin, Cout), 8)

    # ---- input: pad channels, lane-concatenate B images per grid step ----
    xp = jnp.pad(x.reshape(N, Cin, HW), ((0, 0), (0, Cpad - Cin), (0, 0)))
    xg = xp.reshape(G, B, Cpad, HW).transpose(0, 2, 1, 3).reshape(G, Cpad, L)

    # ---- tap-stacked weights / biases packed into single operands ----
    w_all, b_all = [], []
    for (w, b) in params:
        ci = w.shape[1]
        wk = jnp.transpose(w, (0, 2, 3, 1))                       # (Cout, 3, 3, ci)
        wk = jnp.pad(wk, ((0, Cpad - Cout), (0, 0), (0, 0), (0, Cpad - ci)))
        w_all.append(wk.reshape(Cpad, 9 * Cpad))                  # col = (kh*3+kw)*Cpad + c
        b_all.append(jnp.pad(b, (0, Cpad - Cout)).reshape(Cpad, 1))
    w_all = jnp.stack(w_all).astype(jnp.float32)                  # (6, Cpad, 9*Cpad)
    b_all = jnp.stack(b_all).astype(jnp.float32)                  # (6, Cpad, 1)

    # ---- constants hoisted out of the kernel (stay VMEM-resident) ----
    p = jnp.arange(HW)
    hh, ww = p // W, p % W
    taps = []
    for kh in range(3):
        for kw in range(3):
            ok = ((hh + kh - 1 >= 0) & (hh + kh - 1 < H)
                  & (ww + kw - 1 >= 0) & (ww + kw - 1 < W))
            taps.append(ok)
    tap = jnp.stack(taps).astype(jnp.float32)                     # (9, HW)
    tap = jnp.tile(tap, (1, B))                                   # (9, L) per-image tiling
    tapmask = jnp.repeat(tap, Cpad, axis=0)                       # (9*Cpad, L)

    wq = jnp.arange(L) % W
    n_shifts = max(1, (W - 1).bit_length())                       # ceil(log2(W))
    rows = [jnp.where(wq + (1 << si) < W, 0.0, -1e30).astype(jnp.float32)
            for si in range(n_shifts)]
    rows.append((wq == 0).astype(jnp.float32))
    Spad = _round_up(len(rows), 8)
    smc = jnp.zeros((Spad, L), jnp.float32).at[:len(rows)].set(jnp.stack(rows))

    r = jnp.arange(L) // W
    seg = (r[:, None] == r[None, :]).astype(jnp.float32)          # (L, L) block-diag ones

    out = pl.pallas_call(
        functools.partial(attention6_kernel, H=H, W=W, n_shifts=n_shifts),
        out_shape=jax.ShapeDtypeStruct((G, Cout, L), x.dtype),
        grid_spec=pltpu.PrefetchScalarGridSpec(
            num_scalar_prefetch=0,
            grid=(G,),
            in_specs=[
                pl.BlockSpec((1, Cpad, L), lambda g: (g, 0, 0)),
                pl.BlockSpec((6, Cpad, 9 * Cpad), lambda g: (0, 0, 0)),
                pl.BlockSpec((6, Cpad, 1), lambda g: (0, 0, 0)),
                pl.BlockSpec((9 * Cpad, L), lambda g: (0, 0)),
                pl.BlockSpec((Spad, L), lambda g: (0, 0)),
                pl.BlockSpec((L, L), lambda g: (0, 0)),
            ],
            out_specs=pl.BlockSpec((1, Cout, L), lambda g: (g, 0, 0)),
        ),
        compiler_params=pltpu.CompilerParams(
            dimension_semantics=("parallel",),
            vmem_limit_bytes=32 * 1024 * 1024,                    # safe on v5e/v6e/v7x
        ),
    )(xg, w_all, b_all, tapmask, smc, seg)

    # undo lane-concat, restore NCHW (free reshapes + small transpose)
    return out.reshape(G, Cout, B, HW).transpose(0, 2, 1, 3).reshape(N, Cout, H, W)


def attention6_reference(x, params):
    """Plain-JAX reference mirroring the PyTorch Attention6 module."""
    def conv(z, w, b):
        y = lax.conv_general_dilated(
            z, w, window_strides=(1, 1), padding=((1, 1), (1, 1)),
            dimension_numbers=("NCHW", "OIHW", "NCHW"),
            precision=lax.Precision.HIGHEST)
        return y + b[None, :, None, None]

    x1 = jax.nn.relu(conv(x, *params[0]))
    x2 = jax.nn.relu(conv(x1, *params[1]))
    x3 = jax.nn.relu(conv(x2, *params[2]))
    x4 = jax.nn.relu(conv(x3, *params[3]))
    x5 = jax.nn.relu(conv(x4, *params[4]))
    x6 = conv(x5, *params[5])
    x6 = jax.nn.softmax(x6, axis=-1)                              # over W, matches torch dim=-1
    return x6 * x1


if __name__ == "__main__":
    key = jax.random.PRNGKey(0)
    N, Cin, Cout, H, W = 2, 4, 8, 16, 16

    keys = jax.random.split(key, 13)
    x = jax.random.normal(keys[0], (N, Cin, H, W), dtype=jnp.float32)

    params = []
    ci = Cin
    for i in range(6):
        w = jax.random.normal(keys[1 + 2 * i], (Cout, ci, 3, 3), dtype=jnp.float32) * 0.2
        b = jax.random.normal(keys[2 + 2 * i], (Cout,), dtype=jnp.float32) * 0.1
        params.append((w, b))
        ci = Cout

    ref = attention6_reference(x, params)

    # default: 1 image / grid step -> 2 parallel grid steps (good for v7x's 2 TCs)
    out = jax.block_until_ready(attention6_forward(x, params))
    assert out.shape == (N, Cout, H, W)
    assert jnp.allclose(out, ref, atol=2e-5, rtol=2e-5), "mismatch vs reference"

    # lane-batched variant (2 images per grid step) — exercises the batching path
    # recommended for single-TC v5e/v6e.
    out_b = jax.block_until_ready(attention6_forward(x, params, images_per_step=2))
    assert jnp.allclose(out_b, ref, atol=2e-5, rtol=2e-5), "mismatch vs reference (batched)"

    print("KERNEL_OK")
</pallas_src>

<mosaic_0001>
module attributes {stable_mosaic.version = 11 : i64} {
  func.func @attention6_kernel(%arg0: i32, %arg1: memref<1x8x256xf32, #tpu.memory_space<vmem>>, %arg2: memref<6x8x72xf32, #tpu.memory_space<vmem>>, %arg3: memref<6x8x1xf32, #tpu.memory_space<vmem>>, %arg4: memref<72x256xf32, #tpu.memory_space<vmem>>, %arg5: memref<8x256xf32, #tpu.memory_space<vmem>>, %arg6: memref<256x256xf32, #tpu.memory_space<vmem>>, %arg7: memref<1x8x256xf32, #tpu.memory_space<vmem>>) attributes {dimension_semantics = [#tpu.dimension_semantics<parallel>], iteration_bounds = array<i64: 2>, scalar_prefetch = 0 : i64, scratch_operands = 0 : i64, tpu.core_type = #tpu.core_type<tc>, window_params = [{transform_indices = @transform_0, window_bounds = array<i64: 1, 8, 256>}, {pipeline_mode = #tpu.pipeline_mode<synchronous>, transform_indices = @transform_1, window_bounds = array<i64: 6, 8, 72>}, {pipeline_mode = #tpu.pipeline_mode<synchronous>, transform_indices = @transform_2, window_bounds = array<i64: 6, 8, 1>}, {pipeline_mode = #tpu.pipeline_mode<synchronous>, transform_indices = @transform_3, window_bounds = array<i64: 72, 256>}, {pipeline_mode = #tpu.pipeline_mode<synchronous>, transform_indices = @transform_4, window_bounds = array<i64: 8, 256>}, {pipeline_mode = #tpu.pipeline_mode<synchronous>, transform_indices = @transform_5, window_bounds = array<i64: 256, 256>}, {transform_indices = @transform_6, window_bounds = array<i64: 1, 8, 256>}]} {
    %c0 = arith.constant 0 : index
    %c0_0 = arith.constant 0 : index
    %0 = vector.load %arg4[%c0, %c0_0] : memref<72x256xf32, #tpu.memory_space<vmem>>, vector<72x256xf32>
    %c0_1 = arith.constant 0 : index
    %c0_2 = arith.constant 0 : index
    %1 = vector.load %arg6[%c0_1, %c0_2] : memref<256x256xf32, #tpu.memory_space<vmem>>, vector<256x256xf32>
    %c0_3 = arith.constant 0 : index
    %c0_4 = arith.constant 0 : index
    %c0_5 = arith.constant 0 : index
    %2 = vector.load %arg1[%c0_3, %c0_4, %c0_5] : memref<1x8x256xf32, #tpu.memory_space<vmem>>, vector<1x8x256xf32>
    %3 = vector.shape_cast %2 : vector<1x8x256xf32> to vector<8x256xf32>
    %c17_i32 = arith.constant 17 : i32
    %4 = tpu.dynamic_rotate %3 by %c17_i32 dim 1 : vector<8x256xf32>, i32 -> vector<8x256xf32>
    %c16_i32 = arith.constant 16 : i32
    %5 = tpu.dynamic_rotate %3 by %c16_i32 dim 1 : vector<8x256xf32>, i32 -> vector<8x256xf32>
    %c15_i32 = arith.constant 15 : i32
    %6 = tpu.dynamic_rotate %3 by %c15_i32 dim 1 : vector<8x256xf32>, i32 -> vector<8x256xf32>
    %c1_i32 = arith.constant 1 : i32
    %7 = tpu.dynamic_rotate %3 by %c1_i32 dim 1 : vector<8x256xf32>, i32 -> vector<8x256xf32>
    %c255_i32 = arith.constant 255 : i32
    %8 = tpu.dynamic_rotate %3 by %c255_i32 dim 1 : vector<8x256xf32>, i32 -> vector<8x256xf32>
    %c241_i32 = arith.constant 241 : i32
    %9 = tpu.dynamic_rotate %3 by %c241_i32 dim 1 : vector<8x256xf32>, i32 -> vector<8x256xf32>
    %c240_i32 = arith.constant 240 : i32
    %10 = tpu.dynamic_rotate %3 by %c240_i32 dim 1 : vector<8x256xf32>, i32 -> vector<8x256xf32>
    %c239_i32 = arith.constant 239 : i32
    %11 = tpu.dynamic_rotate %3 by %c239_i32 dim 1 : vector<8x256xf32>, i32 -> vector<8x256xf32>
    %12 = tpu.concatenate %4, %5, %6, %7, %3, %8, %9, %10, %11 in 0 : vector<8x256xf32>, vector<8x256xf32>, vector<8x256xf32>, vector<8x256xf32>, vector<8x256xf32>, vector<8x256xf32>, vector<8x256xf32>, vector<8x256xf32>, vector<8x256xf32> -> vector<72x256xf32>
    %13 = arith.mulf %12, %0 : vector<72x256xf32>
    %c0_6 = arith.constant 0 : index
    %c0_7 = arith.constant 0 : index
    %c0_8 = arith.constant 0 : index
    %14 = vector.load %arg2[%c0_6, %c0_7, %c0_8] : memref<6x8x72xf32, #tpu.memory_space<vmem>>, vector<1x8x72xf32>
    %15 = vector.shape_cast %14 : vector<1x8x72xf32> to vector<8x72xf32>
    %cst = arith.constant dense<0.000000e+00> : vector<8x256xf32>
    %16 = tpu.matmul %15, %13, %cst {dimension_numbers = #tpu.dot_dimension_numbers<[1], [0], [0], [1], [0, 0, 1, 1], [], []>, precision = #tpu.contract_precision<fp32>} : vector<8x72xf32>, vector<72x256xf32>, vector<8x256xf32> -> vector<8x256xf32>
    %c0_9 = arith.constant 0 : index
    %c0_10 = arith.constant 0 : index
    %c0_11 = arith.constant 0 : index
    %17 = vector.load %arg3[%c0_9, %c0_10, %c0_11] : memref<6x8x1xf32, #tpu.memory_space<vmem>>, vector<1x8x1xf32>
    %18 = vector.shape_cast %17 : vector<1x8x1xf32> to vector<8x1xf32>
    %19 = vector.broadcast %18 : vector<8x1xf32> to vector<8x256xf32>
    %20 = arith.addf %16, %19 : vector<8x256xf32>
    %cst_12 = arith.constant 0.000000e+00 : f32
    %21 = vector.broadcast %cst_12 : f32 to vector<8x256xf32>
    %22 = arith.maximumf %20, %21 : vector<8x256xf32>
    %c17_i32_13 = arith.constant 17 : i32
    %23 = tpu.dynamic_rotate %22 by %c17_i32_13 dim 1 : vector<8x256xf32>, i32 -> vector<8x256xf32>
    %c16_i32_14 = arith.constant 16 : i32
    %24 = tpu.dynamic_rotate %22 by %c16_i32_14 dim 1 : vector<8x256xf32>, i32 -> vector<8x256xf32>
    %c15_i32_15 = arith.constant 15 : i32
    %25 = tpu.dynamic_rotate %22 by %c15_i32_15 dim 1 : vector<8x256xf32>, i32 -> vector<8x256xf32>
    %c1_i32_16 = arith.constant 1 : i32
    %26 = tpu.dynamic_rotate %22 by %c1_i32_16 dim 1 : vector<8x256xf32>, i32 -> vector<8x256xf32>
    %c255_i32_17 = arith.constant 255 : i32
    %27 = tpu.dynamic_rotate %22 by %c255_i32_17 dim 1 : vector<8x256xf32>, i32 -> vector<8x256xf32>
    %c241_i32_18 = arith.constant 241 : i32
    %28 = tpu.dynamic_rotate %22 by %c241_i32_18 dim 1 : vector<8x256xf32>, i32 -> vector<8x256xf32>
    %c240_i32_19 = arith.constant 240 : i32
    %29 = tpu.dynamic_rotate %22 by %c240_i32_19 dim 1 : vector<8x256xf32>, i32 -> vector<8x256xf32>
    %c239_i32_20 = arith.constant 239 : i32
    %30 = tpu.dynamic_rotate %22 by %c239_i32_20 dim 1 : vector<8x256xf32>, i32 -> vector<8x256xf32>
    %31 = tpu.concatenate %23, %24, %25, %26, %22, %27, %28, %29, %30 in 0 : vector<8x256xf32>, vector<8x256xf32>, vector<8x256xf32>, vector<8x256xf32>, vector<8x256xf32>, vector<8x256xf32>, vector<8x256xf32>, vector<8x256xf32>, vector<8x256xf32> -> vector<72x256xf32>
    %32 = arith.mulf %31, %0 : vector<72x256xf32>
    %c1 = arith.constant 1 : index
    %c0_21 = arith.constant 0 : index
    %c0_22 = arith.constant 0 : index
    %33 = vector.load %arg2[%c1, %c0_21, %c0_22] : memref<6x8x72xf32, #tpu.memory_space<vmem>>, vector<1x8x72xf32>
    %34 = vector.shape_cast %33 : vector<1x8x72xf32> to vector<8x72xf32>
    %cst_23 = arith.constant dense<0.000000e+00> : vector<8x256xf32>
    %35 = tpu.matmul %34, %32, %cst_23 {dimension_numbers = #tpu.dot_dimension_numbers<[1], [0], [0], [1], [0, 0, 1, 1], [], []>, precision = #tpu.contract_precision<fp32>} : vector<8x72xf32>, vector<72x256xf32>, vector<8x256xf32> -> vector<8x256xf32>
    %c1_24 = arith.constant 1 : index
    %c0_25 = arith.constant 0 : index
    %c0_26 = arith.constant 0 : index
    %36 = vector.load %arg3[%c1_24, %c0_25, %c0_26] : memref<6x8x1xf32, #tpu.memory_space<vmem>>, vector<1x8x1xf32>
    %37 = vector.shape_cast %36 : vector<1x8x1xf32> to vector<8x1xf32>
    %38 = vector.broadcast %37 : vector<8x1xf32> to vector<8x256xf32>
    %39 = arith.addf %35, %38 : vector<8x256xf32>
    %cst_27 = arith.constant 0.000000e+00 : f32
    %40 = vector.broadcast %cst_27 : f32 to vector<8x256xf32>
    %41 = arith.maximumf %39, %40 : vector<8x256xf32>
    %c17_i32_28 = arith.constant 17 : i32
    %42 = tpu.dynamic_rotate %41 by %c17_i32_28 dim 1 : vector<8x256xf32>, i32 -> vector<8x256xf32>
    %c16_i32_29 = arith.constant 16 : i32
    %43 = tpu.dynamic_rotate %41 by %c16_i32_29 dim 1 : vector<8x256xf32>, i32 -> vector<8x256xf32>
    %c15_i32_30 = arith.constant 15 : i32
    %44 = tpu.dynamic_rotate %41 by %c15_i32_30 dim 1 : vector<8x256xf32>, i32 -> vector<8x256xf32>
    %c1_i32_31 = arith.constant 1 : i32
    %45 = tpu.dynamic_rotate %41 by %c1_i32_31 dim 1 : vector<8x256xf32>, i32 -> vector<8x256xf32>
    %c255_i32_32 = arith.constant 255 : i32
    %46 = tpu.dynamic_rotate %41 by %c255_i32_32 dim 1 : vector<8x256xf32>, i32 -> vector<8x256xf32>
    %c241_i32_33 = arith.constant 241 : i32
    %47 = tpu.dynamic_rotate %41 by %c241_i32_33 dim 1 : vector<8x256xf32>, i32 -> vector<8x256xf32>
    %c240_i32_34 = arith.constant 240 : i32
    %48 = tpu.dynamic_rotate %41 by %c240_i32_34 dim 1 : vector<8x256xf32>, i32 -> vector<8x256xf32>
    %c239_i32_35 = arith.constant 239 : i32
    %49 = tpu.dynamic_rotate %41 by %c239_i32_35 dim 1 : vector<8x256xf32>, i32 -> vector<8x256xf32>
    %50 = tpu.concatenate %42, %43, %44, %45, %41, %46, %47, %48, %49 in 0 : vector<8x256xf32>, vector<8x256xf32>, vector<8x256xf32>, vector<8x256xf32>, vector<8x256xf32>, vector<8x256xf32>, vector<8x256xf32>, vector<8x256xf32>, vector<8x256xf32> -> vector<72x256xf32>
    %51 = arith.mulf %50, %0 : vector<72x256xf32>
    %c2 = arith.constant 2 : index
    %c0_36 = arith.constant 0 : index
    %c0_37 = arith.constant 0 : index
    %52 = vector.load %arg2[%c2, %c0_36, %c0_37] : memref<6x8x72xf32, #tpu.memory_space<vmem>>, vector<1x8x72xf32>
    %53 = vector.shape_cast %52 : vector<1x8x72xf32> to vector<8x72xf32>
    %cst_38 = arith.constant dense<0.000000e+00> : vector<8x256xf32>
    %54 = tpu.matmul %53, %51, %cst_38 {dimension_numbers = #tpu.dot_dimension_numbers<[1], [0], [0], [1], [0, 0, 1, 1], [], []>, precision = #tpu.contract_precision<fp32>} : vector<8x72xf32>, vector<72x256xf32>, vector<8x256xf32> -> vector<8x256xf32>
    %c2_39 = arith.constant 2 : index
    %c0_40 = arith.constant 0 : index
    %c0_41 = arith.constant 0 : index
    %55 = vector.load %arg3[%c2_39, %c0_40, %c0_41] : memref<6x8x1xf32, #tpu.memory_space<vmem>>, vector<1x8x1xf32>
    %56 = vector.shape_cast %55 : vector<1x8x1xf32> to vector<8x1xf32>
    %57 = vector.broadcast %56 : vector<8x1xf32> to vector<8x256xf32>
    %58 = arith.addf %54, %57 : vector<8x256xf32>
    %cst_42 = arith.constant 0.000000e+00 : f32
    %59 = vector.broadcast %cst_42 : f32 to vector<8x256xf32>
    %60 = arith.maximumf %58, %59 : vector<8x256xf32>
    %c17_i32_43 = arith.constant 17 : i32
    %61 = tpu.dynamic_rotate %60 by %c17_i32_43 dim 1 : vector<8x256xf32>, i32 -> vector<8x256xf32>
    %c16_i32_44 = arith.constant 16 : i32
    %62 = tpu.dynamic_rotate %60 by %c16_i32_44 dim 1 : vector<8x256xf32>, i32 -> vector<8x256xf32>
    %c15_i32_45 = arith.constant 15 : i32
    %63 = tpu.dynamic_rotate %60 by %c15_i32_45 dim 1 : vector<8x256xf32>, i32 -> vector<8x256xf32>
    %c1_i32_46 = arith.constant 1 : i32
    %64 = tpu.dynamic_rotate %60 by %c1_i32_46 dim 1 : vector<8x256xf32>, i32 -> vector<8x256xf32>
    %c255_i32_47 = arith.constant 255 : i32
    %65 = tpu.dynamic_rotate %60 by %c255_i32_47 dim 1 : vector<8x256xf32>, i32 -> vector<8x256xf32>
    %c241_i32_48 = arith.constant 241 : i32
    %66 = tpu.dynamic_rotate %60 by %c241_i32_48 dim 1 : vector<8x256xf32>, i32 -> vector<8x256xf32>
    %c240_i32_49 = arith.constant 240 : i32
    %67 = tpu.dynamic_rotate %60 by %c240_i32_49 dim 1 : vector<8x256xf32>, i32 -> vector<8x256xf32>
    %c239_i32_50 = arith.constant 239 : i32
    %68 = tpu.dynamic_rotate %60 by %c239_i32_50 dim 1 : vector<8x256xf32>, i32 -> vector<8x256xf32>
    %69 = tpu.concatenate %61, %62, %63, %64, %60, %65, %66, %67, %68 in 0 : vector<8x256xf32>, vector<8x256xf32>, vector<8x256xf32>, vector<8x256xf32>, vector<8x256xf32>, vector<8x256xf32>, vector<8x256xf32>, vector<8x256xf32>, vector<8x256xf32> -> vector<72x256xf32>
    %70 = arith.mulf %69, %0 : vector<72x256xf32>
    %c3 = arith.constant 3 : index
    %c0_51 = arith.constant 0 : index
    %c0_52 = arith.constant 0 : index
    %71 = vector.load %arg2[%c3, %c0_51, %c0_52] : memref<6x8x72xf32, #tpu.memory_space<vmem>>, vector<1x8x72xf32>
    %72 = vector.shape_cast %71 : vector<1x8x72xf32> to vector<8x72xf32>
    %cst_53 = arith.constant dense<0.000000e+00> : vector<8x256xf32>
    %73 = tpu.matmul %72, %70, %cst_53 {dimension_numbers = #tpu.dot_dimension_numbers<[1], [0], [0], [1], [0, 0, 1, 1], [], []>, precision = #tpu.contract_precision<fp32>} : vector<8x72xf32>, vector<72x256xf32>, vector<8x256xf32> -> vector<8x256xf32>
    %c3_54 = arith.constant 3 : index
    %c0_55 = arith.constant 0 : index
    %c0_56 = arith.constant 0 : index
    %74 = vector.load %arg3[%c3_54, %c0_55, %c0_56] : memref<6x8x1xf32, #tpu.memory_space<vmem>>, vector<1x8x1xf32>
    %75 = vector.shape_cast %74 : vector<1x8x1xf32> to vector<8x1xf32>
    %76 = vector.broadcast %75 : vector<8x1xf32> to vector<8x256xf32>
    %77 = arith.addf %73, %76 : vector<8x256xf32>
    %cst_57 = arith.constant 0.000000e+00 : f32
    %78 = vector.broadcast %cst_57 : f32 to vector<8x256xf32>
    %79 = arith.maximumf %77, %78 : vector<8x256xf32>
    %c17_i32_58 = arith.constant 17 : i32
    %80 = tpu.dynamic_rotate %79 by %c17_i32_58 dim 1 : vector<8x256xf32>, i32 -> vector<8x256xf32>
    %c16_i32_59 = arith.constant 16 : i32
    %81 = tpu.dynamic_rotate %79 by %c16_i32_59 dim 1 : vector<8x256xf32>, i32 -> vector<8x256xf32>
    %c15_i32_60 = arith.constant 15 : i32
    %82 = tpu.dynamic_rotate %79 by %c15_i32_60 dim 1 : vector<8x256xf32>, i32 -> vector<8x256xf32>
    %c1_i32_61 = arith.constant 1 : i32
    %83 = tpu.dynamic_rotate %79 by %c1_i32_61 dim 1 : vector<8x256xf32>, i32 -> vector<8x256xf32>
    %c255_i32_62 = arith.constant 255 : i32
    %84 = tpu.dynamic_rotate %79 by %c255_i32_62 dim 1 : vector<8x256xf32>, i32 -> vector<8x256xf32>
    %c241_i32_63 = arith.constant 241 : i32
    %85 = tpu.dynamic_rotate %79 by %c241_i32_63 dim 1 : vector<8x256xf32>, i32 -> vector<8x256xf32>
    %c240_i32_64 = arith.constant 240 : i32
    %86 = tpu.dynamic_rotate %79 by %c240_i32_64 dim 1 : vector<8x256xf32>, i32 -> vector<8x256xf32>
    %c239_i32_65 = arith.constant 239 : i32
    %87 = tpu.dynamic_rotate %79 by %c239_i32_65 dim 1 : vector<8x256xf32>, i32 -> vector<8x256xf32>
    %88 = tpu.concatenate %80, %81, %82, %83, %79, %84, %85, %86, %87 in 0 : vector<8x256xf32>, vector<8x256xf32>, vector<8x256xf32>, vector<8x256xf32>, vector<8x256xf32>, vector<8x256xf32>, vector<8x256xf32>, vector<8x256xf32>, vector<8x256xf32> -> vector<72x256xf32>
    %89 = arith.mulf %88, %0 : vector<72x256xf32>
    %c4 = arith.constant 4 : index
    %c0_66 = arith.constant 0 : index
    %c0_67 = arith.constant 0 : index
    %90 = vector.load %arg2[%c4, %c0_66, %c0_67] : memref<6x8x72xf32, #tpu.memory_space<vmem>>, vector<1x8x72xf32>
    %91 = vector.shape_cast %90 : vector<1x8x72xf32> to vector<8x72xf32>
    %cst_68 = arith.constant dense<0.000000e+00> : vector<8x256xf32>
    %92 = tpu.matmul %91, %89, %cst_68 {dimension_numbers = #tpu.dot_dimension_numbers<[1], [0], [0], [1], [0, 0, 1, 1], [], []>, precision = #tpu.contract_precision<fp32>} : vector<8x72xf32>, vector<72x256xf32>, vector<8x256xf32> -> vector<8x256xf32>
    %c4_69 = arith.constant 4 : index
    %c0_70 = arith.constant 0 : index
    %c0_71 = arith.constant 0 : index
    %93 = vector.load %arg3[%c4_69, %c0_70, %c0_71] : memref<6x8x1xf32, #tpu.memory_space<vmem>>, vector<1x8x1xf32>
    %94 = vector.shape_cast %93 : vector<1x8x1xf32> to vector<8x1xf32>
    %95 = vector.broadcast %94 : vector<8x1xf32> to vector<8x256xf32>
    %96 = arith.addf %92, %95 : vector<8x256xf32>
    %cst_72 = arith.constant 0.000000e+00 : f32
    %97 = vector.broadcast %cst_72 : f32 to vector<8x256xf32>
    %98 = arith.maximumf %96, %97 : vector<8x256xf32>
    %c17_i32_73 = arith.constant 17 : i32
    %99 = tpu.dynamic_rotate %98 by %c17_i32_73 dim 1 : vector<8x256xf32>, i32 -> vector<8x256xf32>
    %c16_i32_74 = arith.constant 16 : i32
    %100 = tpu.dynamic_rotate %98 by %c16_i32_74 dim 1 : vector<8x256xf32>, i32 -> vector<8x256xf32>
    %c15_i32_75 = arith.constant 15 : i32
    %101 = tpu.dynamic_rotate %98 by %c15_i32_75 dim 1 : vector<8x256xf32>, i32 -> vector<8x256xf32>
    %c1_i32_76 = arith.constant 1 : i32
    %102 = tpu.dynamic_rotate %98 by %c1_i32_76 dim 1 : vector<8x256xf32>, i32 -> vector<8x256xf32>
    %c255_i32_77 = arith.constant 255 : i32
    %103 = tpu.dynamic_rotate %98 by %c255_i32_77 dim 1 : vector<8x256xf32>, i32 -> vector<8x256xf32>
    %c241_i32_78 = arith.constant 241 : i32
    %104 = tpu.dynamic_rotate %98 by %c241_i32_78 dim 1 : vector<8x256xf32>, i32 -> vector<8x256xf32>
    %c240_i32_79 = arith.constant 240 : i32
    %105 = tpu.dynamic_rotate %98 by %c240_i32_79 dim 1 : vector<8x256xf32>, i32 -> vector<8x256xf32>
    %c239_i32_80 = arith.constant 239 : i32
    %106 = tpu.dynamic_rotate %98 by %c239_i32_80 dim 1 : vector<8x256xf32>, i32 -> vector<8x256xf32>
    %107 = tpu.concatenate %99, %100, %101, %102, %98, %103, %104, %105, %106 in 0 : vector<8x256xf32>, vector<8x256xf32>, vector<8x256xf32>, vector<8x256xf32>, vector<8x256xf32>, vector<8x256xf32>, vector<8x256xf32>, vector<8x256xf32>, vector<8x256xf32> -> vector<72x256xf32>
    %108 = arith.mulf %107, %0 : vector<72x256xf32>
    %c5 = arith.constant 5 : index
    %c0_81 = arith.constant 0 : index
    %c0_82 = arith.constant 0 : index
    %109 = vector.load %arg2[%c5, %c0_81, %c0_82] : memref<6x8x72xf32, #tpu.memory_space<vmem>>, vector<1x8x72xf32>
    %110 = vector.shape_cast %109 : vector<1x8x72xf32> to vector<8x72xf32>
    %cst_83 = arith.constant dense<0.000000e+00> : vector<8x256xf32>
    %111 = tpu.matmul %110, %108, %cst_83 {dimension_numbers = #tpu.dot_dimension_numbers<[1], [0], [0], [1], [0, 0, 1, 1], [], []>, precision = #tpu.contract_precision<fp32>} : vector<8x72xf32>, vector<72x256xf32>, vector<8x256xf32> -> vector<8x256xf32>
    %c5_84 = arith.constant 5 : index
    %c0_85 = arith.constant 0 : index
    %c0_86 = arith.constant 0 : index
    %112 = vector.load %arg3[%c5_84, %c0_85, %c0_86] : memref<6x8x1xf32, #tpu.memory_space<vmem>>, vector<1x8x1xf32>
    %113 = vector.shape_cast %112 : vector<1x8x1xf32> to vector<8x1xf32>
    %114 = vector.broadcast %113 : vector<8x1xf32> to vector<8x256xf32>
    %115 = arith.addf %111, %114 : vector<8x256xf32>
    %c255_i32_87 = arith.constant 255 : i32
    %116 = tpu.dynamic_rotate %115 by %c255_i32_87 dim 1 : vector<8x256xf32>, i32 -> vector<8x256xf32>
    %c0_88 = arith.constant 0 : index
    %c0_89 = arith.constant 0 : index
    %117 = vector.load %arg5[%c0_88, %c0_89] : memref<8x256xf32, #tpu.memory_space<vmem>>, vector<1x256xf32>
    %118 = vector.broadcast %117 : vector<1x256xf32> to vector<8x256xf32>
    %119 = arith.addf %116, %118 : vector<8x256xf32>
    %120 = arith.maximumf %115, %119 : vector<8x256xf32>
    %c254_i32 = arith.constant 254 : i32
    %121 = tpu.dynamic_rotate %120 by %c254_i32 dim 1 : vector<8x256xf32>, i32 -> vector<8x256xf32>
    %c1_90 = arith.constant 1 : index
    %c0_91 = arith.constant 0 : index
    %122 = vector.load %arg5[%c1_90, %c0_91] : memref<8x256xf32, #tpu.memory_space<vmem>>, vector<1x256xf32>
    %123 = vector.broadcast %122 : vector<1x256xf32> to vector<8x256xf32>
    %124 = arith.addf %121, %123 : vector<8x256xf32>
    %125 = arith.maximumf %120, %124 : vector<8x256xf32>
    %c252_i32 = arith.constant 252 : i32
    %126 = tpu.dynamic_rotate %125 by %c252_i32 dim 1 : vector<8x256xf32>, i32 -> vector<8x256xf32>
    %c2_92 = arith.constant 2 : index
    %c0_93 = arith.constant 0 : index
    %127 = vector.load %arg5[%c2_92, %c0_93] : memref<8x256xf32, #tpu.memory_space<vmem>>, vector<1x256xf32>
    %128 = vector.broadcast %127 : vector<1x256xf32> to vector<8x256xf32>
    %129 = arith.addf %126, %128 : vector<8x256xf32>
    %130 = arith.maximumf %125, %129 : vector<8x256xf32>
    %c248_i32 = arith.constant 248 : i32
    %131 = tpu.dynamic_rotate %130 by %c248_i32 dim 1 : vector<8x256xf32>, i32 -> vector<8x256xf32>
    %c3_94 = arith.constant 3 : index
    %c0_95 = arith.constant 0 : index
    %132 = vector.load %arg5[%c3_94, %c0_95] : memref<8x256xf32, #tpu.memory_space<vmem>>, vector<1x256xf32>
    %133 = vector.broadcast %132 : vector<1x256xf32> to vector<8x256xf32>
    %134 = arith.addf %131, %133 : vector<8x256xf32>
    %135 = arith.maximumf %130, %134 : vector<8x256xf32>
    %c4_96 = arith.constant 4 : index
    %c0_97 = arith.constant 0 : index
    %136 = vector.load %arg5[%c4_96, %c0_97] : memref<8x256xf32, #tpu.memory_space<vmem>>, vector<1x256xf32>
    %137 = vector.broadcast %136 : vector<1x256xf32> to vector<8x256xf32>
    %138 = arith.mulf %135, %137 : vector<8x256xf32>
    %cst_98 = arith.constant dense<0.000000e+00> : vector<8x256xf32>
    %139 = tpu.matmul %138, %1, %cst_98 {dimension_numbers = #tpu.dot_dimension_numbers<[1], [0], [0], [1], [0, 0, 1, 1], [], []>, precision = #tpu.contract_precision<fp32>} : vector<8x256xf32>, vector<256x256xf32>, vector<8x256xf32> -> vector<8x256xf32>
    %140 = arith.subf %115, %139 : vector<8x256xf32>
    %141 = math.exp %140 : vector<8x256xf32>
    %cst_99 = arith.constant dense<0.000000e+00> : vector<8x256xf32>
    %142 = tpu.matmul %141, %1, %cst_99 {dimension_numbers = #tpu.dot_dimension_numbers<[1], [0], [0], [1], [0, 0, 1, 1], [], []>, precision = #tpu.contract_precision<fp32>} : vector<8x256xf32>, vector<256x256xf32>, vector<8x256xf32> -> vector<8x256xf32>
    %143 = tpu.reciprocal %142 {approx = true} : vector<8x256xf32> -> vector<8x256xf32>
    %144 = arith.mulf %142, %143 : vector<8x256xf32>
    %cst_100 = arith.constant 2.000000e+00 : f32
    %145 = vector.broadcast %cst_100 : f32 to vector<8x256xf32>
    %146 = arith.subf %145, %144 : vector<8x256xf32>
    %147 = arith.mulf %143, %146 : vector<8x256xf32>
    %148 = arith.mulf %141, %147 : vector<8x256xf32>
    %149 = arith.mulf %148, %22 : vector<8x256xf32>
    %c0_101 = arith.constant 0 : index
    %c0_102 = arith.constant 0 : index
    %c0_103 = arith.constant 0 : index
    %150 = vector.load %arg7[%c0_101, %c0_102, %c0_103] : memref<1x8x256xf32, #tpu.memory_space<vmem>>, vector<1x8x256xf32>
    %151 = vector.shape_cast %150 : vector<1x8x256xf32> to vector<8x256xf32>
    %152 = vector.shape_cast %149 : vector<8x256xf32> to vector<1x8x256xf32>
    tpu.vector_store %arg7[%c0_101, %c0_102, %c0_103], %152 {strides = array<i32>} : memref<1x8x256xf32, #tpu.memory_space<vmem>>, vector<1x8x256xf32>,
    return
  }
  func.func @transform_0(%arg0: i32) -> (i32, i32, i32) {
    %c0_i32 = arith.constant 0 : i32
    %c0_i32_0 = arith.constant 0 : i32
    %c0_i32_1 = arith.constant 0 : i32
    return %arg0, %c0_i32, %c0_i32_0 : i32, i32, i32
  }
  func.func @transform_1(%arg0: i32) -> (i32, i32, i32) {
    %c0_i32 = arith.constant 0 : i32
    %c0_i32_0 = arith.constant 0 : i32
    %c0_i32_1 = arith.constant 0 : i32
    %c0_i32_2 = arith.constant 0 : i32
    return %c0_i32, %c0_i32_0, %c0_i32_1 : i32, i32, i32
  }
  func.func @transform_2(%arg0: i32) -> (i32, i32, i32) {
    %c0_i32 = arith.constant 0 : i32
    %c0_i32_0 = arith.constant 0 : i32
    %c0_i32_1 = arith.constant 0 : i32
    %c0_i32_2 = arith.constant 0 : i32
    return %c0_i32, %c0_i32_0, %c0_i32_1 : i32, i32, i32
  }
  func.func @transform_3(%arg0: i32) -> (i32, i32) {
    %c0_i32 = arith.constant 0 : i32
    %c0_i32_0 = arith.constant 0 : i32
    %c0_i32_1 = arith.constant 0 : i32
    return %c0_i32, %c0_i32_0 : i32, i32
  }
  func.func @transform_4(%arg0: i32) -> (i32, i32) {
    %c0_i32 = arith.constant 0 : i32
    %c0_i32_0 = arith.constant 0 : i32
    %c0_i32_1 = arith.constant 0 : i32
    return %c0_i32, %c0_i32_0 : i32, i32
  }
  func.func @transform_5(%arg0: i32) -> (i32, i32) {
    %c0_i32 = arith.constant 0 : i32
    %c0_i32_0 = arith.constant 0 : i32
    %c0_i32_1 = arith.constant 0 : i32
    return %c0_i32, %c0_i32_0 : i32, i32
  }
  func.func @transform_6(%arg0: i32) -> (i32, i32, i32) {
    %c0_i32 = arith.constant 0 : i32
    %c0_i32_0 = arith.constant 0 : i32
    %c0_i32_1 = arith.constant 0 : i32
    return %arg0, %c0_i32, %c0_i32_0 : i32, i32, i32
  }
}

</mosaic_0001>

<llo_original>
// kernel: tpu_custom_call.1
$region0: #{tpu_custom_call.1}
  #allocation0 [shape = 'u32[]', space=smem, size = 0x4, offset = 0x4, fixed_abs, tag = 'smem constant byte address 0x4 - core index']
  #allocation1 [shape = 'u32[144,128]{1,0:T(1,128)}', space=vmem, size = 0x12000, scoped, tag = 'internal scratch']
  %s0 = inlined_call_operand.hbm [shape: f32[2,8,256], index: 0, kind: input, shape index: {}]
  %s1 = inlined_call_operand.vmem [shape: f32[6,8,72], index: 1, kind: input, shape index: {}]
  %s2 = inlined_call_operand.vmem [shape: f32[6,8,1], index: 2, kind: input, shape index: {}]
  %s3 = inlined_call_operand.hbm [shape: f32[72,256], index: 3, kind: input, shape index: {}]
  %s4 = inlined_call_operand.vmem [shape: f32[8,256], index: 4, kind: input, shape index: {}]
  %s5 = inlined_call_operand.hbm [shape: f32[256,256], index: 5, kind: input, shape index: {}]
  %s6 = inlined_call_operand.hbm [shape: f32[2,8,256], index: 6, kind: output, shape index: {}]
  %s7 = sld [smem:[#allocation0]]
  $region69: #{tpu_custom_call.1} parent=0
    _
  %s9 = ssub.s32 1, %s7
  %s10 = scalar_select 0, %s9, %s7
  $region1: #{tpu_custom_call.1} parent=0
    #allocation2 [shape = 'u8[16384]{0}', space=vmem, size = 0x4000, scoped, tag = 'input window, operand 0']
    #allocation3 [shape = 's32[2]{0}', space=sflag, size = 0x8, scoped, tag = 'scoped memory for tpu_custom_call.1']
    #allocation4 [shape = 's32[2]{0}', space=sflag, size = 0x8, scoped, tag = 'scoped memory for tpu_custom_call.1']
    #allocation5 [shape = 'u8[73728]{0}', space=vmem, size = 0x12000, scoped, tag = 'input window, operand 3, single buffered']
    #allocation6 [shape = 's32[1]{0}', space=sflag, size = 0x4, scoped, tag = 'scoped memory for tpu_custom_call.1']
    #allocation7 [shape = 'u8[262144]{0}', space=vmem, size = 0x40000, scoped, tag = 'input window, operand 5, single buffered']
    #allocation8 [shape = 'u8[16384]{0}', space=vmem, size = 0x4000, scoped, tag = 'output window, operand 0']
    %11 = vsyncpa [#allocation3], 0
    %s12 = scalar_lea.sflag [#allocation3], 1
    %13 = vsyncpa %s12, 0
    %14 = vsyncpa [#allocation6], 0
    %15 = vsyncpa [#allocation4], 0
    %s16 = scalar_lea.sflag [#allocation4], 1
    %17 = vsyncpa %s16, 0
    loop: start=0, step=1, limit=4
    $region2: #{tpu_custom_call.1} parent=1 // loop_pre_header
      _
    $region3: #{tpu_custom_call.1} parent=1 // loop_header
      %s19 = sphi 0, %s23
      %p20 = scmp.ge.s32.totalorder %s19, 4
      %s29 = sphi 0, %s31
      %s32 = sphi 0, %s29
      %s33 = sphi 0, %s32
      %s49 = sphi 0, %s33
      %s53 = sphi 0, %s53
      %s55 = sphi 0, %s53
      %s56 = sphi 0, %s55
      %s70 = sphi 0, %s56
      %s74 = sphi 0, %s74
      %s76 = sphi 0, %s74
      %s77 = sphi 0, %s76
      %s91 = sphi 0, %s77
      %s95 = sphi 0, %s95
      %s97 = sphi 0, %s95
      %s98 = sphi 0, %s97
      %s112 = sphi 0, %s98
      %s116 = sphi 0, %s116
      %s118 = sphi 0, %s116
      %s119 = sphi 0, %s118
      %s133 = sphi 0, %s119
      %s137 = sphi 0, %s137
      %s139 = sphi 0, %s137
      %s140 = sphi 0, %s139
      %s154 = sphi 0, %s140
      %s160 = sphi 0, %s162
      %s163 = sphi 0, %s160
      %s164 = sphi 0, %s163
      %s180 = sphi 0, %s164
    $region4: #{tpu_custom_call.1} parent=1 // loop_header_branch
      %22 = sbr.rel (%p20) target = $region8
    $region5: #{tpu_custom_call.1} parent=1 // loop_body
      %s24 = ssub.s32 %s19, 1
      %s25 = ssub.s32 %s19, 2
      %s26 = sadd.s32 %s19, 1
      %s27 = ssub.s32 %s19, %s26
      %p28 = scmp.eq.s32.totalorder %s27, 0
      %s30 = sadd.s32 %s29, 1
      %s31 = scalar_select %p28, %s29, %s30
      %p34 = pneg %p28
      %p35 = scmp.eq.s32.totalorder %s19, 1
      %p36 = por %p34, %p35
      %p37 = scmp.ne.s32.totalorder %s29, %s32
      %p38 = scmp.eq.s32.totalorder %s19, 0
      %p39 = por %p37, %p38
      %p40 = scmp.ne.s32.totalorder %s29, %s32
      %p41 = scmp.eq.s32.totalorder %s24, 1
      %p42 = por %p40, %p41
      %p43 = scmp.ne.s32.totalorder %s32, %s33
      %p44 = scmp.eq.s32.totalorder %s24, 0
      %p45 = por %p43, %p44
      %p46 = scmp.ne.s32.totalorder %s32, %s33
      %p47 = scmp.eq.s32.totalorder %s25, 1
      %p48 = por %p46, %p47
      %p50 = scmp.ne.s32.totalorder %s33, %s49
      %p51 = scmp.eq.s32.totalorder %s25, 0
      %p52 = por %p50, %p51
      %s54 = sadd.s32 %s53, 1
      %p57 = scmp.eq.s32.totalorder %s19, 1
      %p58 = scmp.ne.s32.totalorder %s53, %s55
      %p59 = scmp.eq.s32.totalorder %s19, 0
      %p60 = por %p58, %p59
      %p61 = scmp.ne.s32.totalorder %s53, %s55
      %p62 = scmp.eq.s32.totalorder %s24, 1
      %p63 = por %p61, %p62
      %p64 = scmp.ne.s32.totalorder %s55, %s56
      %p65 = scmp.eq.s32.totalorder %s24, 0
      %p66 = por %p64, %p65
      %p67 = scmp.ne.s32.totalorder %s55, %s56
      %p68 = scmp.eq.s32.totalorder %s25, 1
      %p69 = por %p67, %p68
      %p71 = scmp.ne.s32.totalorder %s56, %s70
      %p72 = scmp.eq.s32.totalorder %s25, 0
      %p73 = por %p71, %p72
      %s75 = sadd.s32 %s74, 1
      %p78 = scmp.eq.s32.totalorder %s19, 1
      %p79 = scmp.ne.s32.totalorder %s74, %s76
      %p80 = scmp.eq.s32.totalorder %s19, 0
      %p81 = por %p79, %p80
      %p82 = scmp.ne.s32.totalorder %s74, %s76
      %p83 = scmp.eq.s32.totalorder %s24, 1
      %p84 = por %p82, %p83
      %p85 = scmp.ne.s32.totalorder %s76, %s77
      %p86 = scmp.eq.s32.totalorder %s24, 0
      %p87 = por %p85, %p86
      %p88 = scmp.ne.s32.totalorder %s76, %s77
      %p89 = scmp.eq.s32.totalorder %s25, 1
      %p90 = por %p88, %p89
      %p92 = scmp.ne.s32.totalorder %s77, %s91
      %p93 = scmp.eq.s32.totalorder %s25, 0
      %p94 = por %p92, %p93
      %s96 = sadd.s32 %s95, 1
      %p99 = scmp.eq.s32.totalorder %s19, 1
      %p100 = scmp.ne.s32.totalorder %s95, %s97
      %p101 = scmp.eq.s32.totalorder %s19, 0
      %p102 = por %p100, %p101
      %p103 = scmp.ne.s32.totalorder %s95, %s97
      %p104 = scmp.eq.s32.totalorder %s24, 1
      %p105 = por %p103, %p104
      %p106 = scmp.ne.s32.totalorder %s97, %s98
      %p107 = scmp.eq.s32.totalorder %s24, 0
      %p108 = por %p106, %p107
      %p109 = scmp.ne.s32.totalorder %s97, %s98
      %p110 = scmp.eq.s32.totalorder %s25, 1
      %p111 = por %p109, %p110
      %p113 = scmp.ne.s32.totalorder %s98, %s112
      %p114 = scmp.eq.s32.totalorder %s25, 0
      %p115 = por %p113, %p114
      %s117 = sadd.s32 %s116, 1
      %p120 = scmp.eq.s32.totalorder %s19, 1
      %p121 = scmp.ne.s32.totalorder %s116, %s118
      %p122 = scmp.eq.s32.totalorder %s19, 0
      %p123 = por %p121, %p122
      %p124 = scmp.ne.s32.totalorder %s116, %s118
      %p125 = scmp.eq.s32.totalorder %s24, 1
      %p126 = por %p124, %p125
      %p127 = scmp.ne.s32.totalorder %s118, %s119
      %p128 = scmp.eq.s32.totalorder %s24, 0
      %p129 = por %p127, %p128
      %p130 = scmp.ne.s32.totalorder %s118, %s119
      %p131 = scmp.eq.s32.totalorder %s25, 1
      %p132 = por %p130, %p131
      %p134 = scmp.ne.s32.totalorder %s119, %s133
      %p135 = scmp.eq.s32.totalorder %s25, 0
      %p136 = por %p134, %p135
      %s138 = sadd.s32 %s137, 1
      %p141 = scmp.eq.s32.totalorder %s19, 1
      %p142 = scmp.ne.s32.totalorder %s137, %s139
      %p143 = scmp.eq.s32.totalorder %s19, 0
      %p144 = por %p142, %p143
      %p145 = scmp.ne.s32.totalorder %s137, %s139
      %p146 = scmp.eq.s32.totalorder %s24, 1
      %p147 = por %p145, %p146
      %p148 = scmp.ne.s32.totalorder %s139, %s140
      %p149 = scmp.eq.s32.totalorder %s24, 0
      %p150 = por %p148, %p149
      %p151 = scmp.ne.s32.totalorder %s139, %s140
      %p152 = scmp.eq.s32.totalorder %s25, 1
      %p153 = por %p151, %p152
      %p155 = scmp.ne.s32.totalorder %s140, %s154
      %p156 = scmp.eq.s32.totalorder %s25, 0
      %p157 = por %p155, %p156
      %s158 = ssub.s32 %s19, %s26
      %p159 = scmp.eq.s32.totalorder %s158, 0
      %s161 = sadd.s32 %s160, 1
      %s162 = scalar_select %p159, %s160, %s161
      %p165 = pneg %p159
      %p166 = scmp.eq.s32.totalorder %s19, 1
      %p167 = por %p165, %p166
      %p168 = scmp.ne.s32.totalorder %s160, %s163
      %p169 = scmp.eq.s32.totalorder %s19, 0
      %p170 = por %p168, %p169
      %p171 = scmp.ne.s32.totalorder %s160, %s163
      %p172 = scmp.eq.s32.totalorder %s24, 1
      %p173 = por %p171, %p172
      %p174 = scmp.ne.s32.totalorder %s163, %s164
      %p175 = scmp.eq.s32.totalorder %s24, 0
      %p176 = por %p174, %p175
      %p177 = scmp.ne.s32.totalorder %s163, %s164
      %p178 = scmp.eq.s32.totalorder %s25, 1
      %p179 = por %p177, %p178
      %p181 = scmp.ne.s32.totalorder %s164, %s180
      %p182 = scmp.eq.s32.totalorder %s25, 0
      %p183 = por %p181, %p182
      %p184 = scmp.le.s32.totalorder 1, %s19
      %p185 = scmp.lt.s32.totalorder %s19, 3
      %p186 = pnand %p184, %p185
      %p187 = pneg %p186
      // Predicated region
      $region9: #{tpu_custom_call.1} parent=5 // pred_check
        _
      $region10: #{tpu_custom_call.1} parent=5 // pred_check_branch
        %189 = sbr.rel (%p186) target = $region12
      $region11: #{tpu_custom_call.1} parent=5 // pred_region
        %s190 = ssub.s32 %s19, 1
        // Predicated region
        $region13: #{tpu_custom_call.1} parent=11 // pred_check
          %p191 = pneg %p66
        $region14: #{tpu_custom_call.1} parent=11 // pred_check_branch
          %193 = sbr.rel (%p191) target = $region16
        $region15: #{tpu_custom_call.1} parent=11 // pred_region
          _
        $region16: #{tpu_custom_call.1} parent=11 // pred_fallthru
          _
        // Predicated region
        $region17: #{tpu_custom_call.1} parent=11 // pred_check
          %p194 = pneg %p87
        $region18: #{tpu_custom_call.1} parent=11 // pred_check_branch
          %196 = sbr.rel (%p194) target = $region20
        $region19: #{tpu_custom_call.1} parent=11 // pred_region
          _
        $region20: #{tpu_custom_call.1} parent=11 // pred_fallthru
          _
        // Predicated region
        $region21: #{tpu_custom_call.1} parent=11 // pred_check
          %p197 = pneg %p108
        $region22: #{tpu_custom_call.1} parent=11 // pred_check_branch
          %199 = sbr.rel (%p197) target = $region24
        $region23: #{tpu_custom_call.1} parent=11 // pred_region
          %s201 = ssub.s32 2304, 2304
          %202 = vsyncadd [#allocation6], %s201
          %s203 = sshll.u32 [#allocation5], 4
          %s204 = int_to_ptr.vmem [resolvable:$true] %s203
          %209 = dma.hbm_to_vmem [thread:$0]  %s3, 2304, %s204, [#allocation6], 256, 256, 16
        $region24: #{tpu_custom_call.1} parent=11 // pred_fallthru
          _
        // Predicated region
        $region25: #{tpu_custom_call.1} parent=11 // pred_check
          %p210 = pneg %p129
        $region26: #{tpu_custom_call.1} parent=11 // pred_check_branch
          %212 = sbr.rel (%p210) target = $region28
        $region27: #{tpu_custom_call.1} parent=11 // pred_region
          _
        $region28: #{tpu_custom_call.1} parent=11 // pred_fallthru
          _
        // Predicated region
        $region29: #{tpu_custom_call.1} parent=11 // pred_check
          %p213 = pneg %p150
        $region30: #{tpu_custom_call.1} parent=11 // pred_check_branch
          %215 = sbr.rel (%p213) target = $region32
        $region31: #{tpu_custom_call.1} parent=11 // pred_region
          %s217 = ssub.s32 8192, 8192
          %218 = vsyncadd [#allocation6], %s217
          %s219 = sshll.u32 [#allocation7], 4
          %s220 = int_to_ptr.vmem [resolvable:$true] %s219
          %225 = dma.hbm_to_vmem [thread:$0]  %s5, 8192, %s220, [#allocation6], 256, 256, 16
        $region32: #{tpu_custom_call.1} parent=11 // pred_fallthru
          _
      $region12: #{tpu_custom_call.1} parent=5 // pred_fallthru
        _
      %p226 = scmp.lt.s32.totalorder %s19, 2
      // Predicated region
      $region33: #{tpu_custom_call.1} parent=5 // pred_check
        %p227 = pneg %p226
      $region34: #{tpu_custom_call.1} parent=5 // pred_check_branch
        %229 = sbr.rel (%p227) target = $region36
      $region35: #{tpu_custom_call.1} parent=5 // pred_region
        // Predicated region
        $region37: #{tpu_custom_call.1} parent=35 // pred_check
          %p230 = pneg %p39
        $region38: #{tpu_custom_call.1} parent=35 // pred_check_branch
          %232 = sbr.rel (%p230) target = $region40
        $region39: #{tpu_custom_call.1} parent=35 // pred_region
          %s233 = sand.u32 %s29, 1
          %s234 = scalar_lea.sflag [#allocation3], %s233
          %s235 = sand.u32 %s29, 1
          %s236 = smul.addr %s235, 16
          %s237 = scalar_lea.vmem [#allocation2], %s236
          %s239 = ssub.s32 256, 256
          %240 = vsyncadd %s234, %s239
          %s241 = smul.addr %s19, 2
          %s242 = smul.addr %s241, 128
          %s243 = scalar_lea.hbm %s0, %s242
          %s245 = sshll.u32 %s237, 4
          %s246 = int_to_ptr.vmem [resolvable:$true] %s245
          %248 = dma.hbm_to_vmem [thread:$0]  %s243, 256, %s246, %s234
        $region40: #{tpu_custom_call.1} parent=35 // pred_fallthru
          _
      $region36: #{tpu_custom_call.1} parent=5 // pred_fallthru
        _
      %p249 = scmp.le.s32.totalorder 1, %s19
      %p250 = scmp.lt.s32.totalorder %s19, 3
      %p251 = pnand %p249, %p250
      %p252 = pneg %p251
      // Predicated region
      $region41: #{tpu_custom_call.1} parent=5 // pred_check
        _
      $region42: #{tpu_custom_call.1} parent=5 // pred_check_branch
        %254 = sbr.rel (%p251) target = $region44
      $region43: #{tpu_custom_call.1} parent=5 // pred_region
        %s255 = ssub.s32 %s19, 1
        %s256 = sand.u32 %s32, 1
        %s257 = scalar_lea.sflag [#allocation3], %s256
        %s258 = sand.u32 %s32, 1
        %s259 = smul.addr %s258, 16
        %s260 = scalar_lea.vmem [#allocation2], %s259
        // Predicated region
        $region45: #{tpu_custom_call.1} parent=43 // pred_check
          %p261 = pneg %p45
        $region46: #{tpu_custom_call.1} parent=43 // pred_check_branch
          %263 = sbr.rel (%p261) target = $region48
        $region47: #{tpu_custom_call.1} parent=43 // pred_region
          %264 = dma.done %s257, 256
        $region48: #{tpu_custom_call.1} parent=43 // pred_fallthru
          _
        // Predicated region
        $region49: #{tpu_custom_call.1} parent=43 // pred_check
          %p265 = pneg %p108
        $region50: #{tpu_custom_call.1} parent=43 // pred_check_branch
          %267 = sbr.rel (%p265) target = $region52
        $region51: #{tpu_custom_call.1} parent=43 // pred_region
          %268 = dma.done [#allocation6], 2304
        $region52: #{tpu_custom_call.1} parent=43 // pred_fallthru
          _
        // Predicated region
        $region53: #{tpu_custom_call.1} parent=43 // pred_check
          %p269 = pneg %p150
        $region54: #{tpu_custom_call.1} parent=43 // pred_check_branch
          %271 = sbr.rel (%p269) target = $region56
        $region55: #{tpu_custom_call.1} parent=43 // pred_region
          %272 = dma.done [#allocation6], 8192
        $region56: #{tpu_custom_call.1} parent=43 // pred_fallthru
          _
        %s273 = sand.u32 %s32, 1
        %s274 = scalar_lea.sflag [#allocation3], %s273
        %s275 = sand.u32 %s32, 1
        %s276 = smul.addr %s275, 16
        %s277 = scalar_lea.vmem [#allocation2], %s276
        %p278 = pneg %p45
        %p279 = pneg %p42
        %p280 = pneg %p66
        %p281 = pneg %p63
        %p282 = pneg %p87
        %p283 = pneg %p84
        %p284 = pneg %p108
        %p285 = pneg %p105
        %p286 = pneg %p129
        %p287 = pneg %p126
        %p288 = pneg %p150
        %p289 = pneg %p147
        %p290 = pneg %p176
        %p291 = pneg %p173
        %s292 = sand.u32 %s163, 1
        %s293 = scalar_lea.sflag [#allocation4], %s292
        %s294 = sand.u32 %s163, 1
        %s295 = smul.addr %s294, 16
        %s296 = scalar_lea.vmem [#allocation8], %s295
        %v297 = vld [vmem:[#allocation5] sm:$0xff]
        %v298 = vld [vmem:[#allocation5 + $0x8] sm:$0xff]
        %v299 = vld [vmem:[#allocation5 + $0x10] sm:$0xff]
        %v300 = vld [vmem:[#allocation5 + $0x18] sm:$0xff]
        %v301 = vld [vmem:[#allocation5 + $0x20] sm:$0xff]
        %v302 = vld [vmem:[#allocation5 + $0x28] sm:$0xff]
        %v303 = vld [vmem:[#allocation5 + $0x30] sm:$0xff]
        %v304 = vld [vmem:[#allocation5 + $0x38] sm:$0xff]
        %v305 = vld [vmem:[#allocation5 + $0x40] sm:$0xff]
        %v306 = vld [vmem:[#allocation5 + $0x48] sm:$0xff]
        %v307 = vld [vmem:[#allocation5 + $0x50] sm:$0xff]
        %v308 = vld [vmem:[#allocation5 + $0x58] sm:$0xff]
        %v309 = vld [vmem:[#allocation5 + $0x60] sm:$0xff]
        %v310 = vld [vmem:[#allocation5 + $0x68] sm:$0xff]
        %v311 = vld [vmem:[#allocation5 + $0x70] sm:$0xff]
        %v312 = vld [vmem:[#allocation5 + $0x78] sm:$0xff]
        %v313 = vld [vmem:[#allocation5 + $0x80] sm:$0xff]
        %v314 = vld [vmem:[#allocation5 + $0x88] sm:$0xff]
        %v315 = vld [vmem:[#allocation7] sm:$0xff]
        %v316 = vld [vmem:[#allocation7 + $0x8] sm:$0xff]
        %v317 = vld [vmem:[#allocation7 + $0x10] sm:$0xff]
        %v318 = vld [vmem:[#allocation7 + $0x18] sm:$0xff]
        %v319 = vld [vmem:[#allocation7 + $0x20] sm:$0xff]
        %v320 = vld [vmem:[#allocation7 + $0x28] sm:$0xff]
        %v321 = vld [vmem:[#allocation7 + $0x30] sm:$0xff]
        %v322 = vld [vmem:[#allocation7 + $0x38] sm:$0xff]
        %v323 = vld [vmem:[#allocation7 + $0x40] sm:$0xff]
        %v324 = vld [vmem:[#allocation7 + $0x48] sm:$0xff]
        %v325 = vld [vmem:[#allocation7 + $0x50] sm:$0xff]
        %v326 = vld [vmem:[#allocation7 + $0x58] sm:$0xff]
        %v327 = vld [vmem:[#allocation7 + $0x60] sm:$0xff]
        %v328 = vld [vmem:[#allocation7 + $0x68] sm:$0xff]
        %v329 = vld [vmem:[#allocation7 + $0x70] sm:$0xff]
        %v330 = vld [vmem:[#allocation7 + $0x78] sm:$0xff]
        %v331 = vld [vmem:[#allocation7 + $0x80] sm:$0xff]
        %v332 = vld [vmem:[#allocation7 + $0x88] sm:$0xff]
        %v333 = vld [vmem:[#allocation7 + $0x90] sm:$0xff]
        %v334 = vld [vmem:[#allocation7 + $0x98] sm:$0xff]
        %v335 = vld [vmem:[#allocation7 + $0xa0] sm:$0xff]
        %v336 = vld [vmem:[#allocation7 + $0xa8] sm:$0xff]
        %v337 = vld [vmem:[#allocation7 + $0xb0] sm:$0xff]
        %v338 = vld [vmem:[#allocation7 + $0xb8] sm:$0xff]
        %v339 = vld [vmem:[#allocation7 + $0xc0] sm:$0xff]
        %v340 = vld [vmem:[#allocation7 + $0xc8] sm:$0xff]
        %v341 = vld [vmem:[#allocation7 + $0xd0] sm:$0xff]
        %v342 = vld [vmem:[#allocation7 + $0xd8] sm:$0xff]
        %v343 = vld [vmem:[#allocation7 + $0xe0] sm:$0xff]
        %v344 = vld [vmem:[#allocation7 + $0xe8] sm:$0xff]
        %v345 = vld [vmem:[#allocation7 + $0xf0] sm:$0xff]
        %v346 = vld [vmem:[#allocation7 + $0xf8] sm:$0xff]
        %v347 = vld [vmem:[#allocation7 + $0x100] sm:$0xff]
        %v348 = vld [vmem:[#allocation7 + $0x108] sm:$0xff]
        %v349 = vld [vmem:[#allocation7 + $0x110] sm:$0xff]
        %v350 = vld [vmem:[#allocation7 + $0x118] sm:$0xff]
        %v351 = vld [vmem:[#allocation7 + $0x120] sm:$0xff]
        %v352 = vld [vmem:[#allocation7 + $0x128] sm:$0xff]
        %v353 = vld [vmem:[#allocation7 + $0x130] sm:$0xff]
        %v354 = vld [vmem:[#allocation7 + $0x138] sm:$0xff]
        %v355 = vld [vmem:[#allocation7 + $0x140] sm:$0xff]
        %v356 = vld [vmem:[#allocation7 + $0x148] sm:$0xff]
        %v357 = vld [vmem:[#allocation7 + $0x150] sm:$0xff]
        %v358 = vld [vmem:[#allocation7 + $0x158] sm:$0xff]
        %v359 = vld [vmem:[#allocation7 + $0x160] sm:$0xff]
        %v360 = vld [vmem:[#allocation7 + $0x168] sm:$0xff]
        %v361 = vld [vmem:[#allocation7 + $0x170] sm:$0xff]
        %v362 = vld [vmem:[#allocation7 + $0x178] sm:$0xff]
        %v363 = vld [vmem:[#allocation7 + $0x180] sm:$0xff]
        %v364 = vld [vmem:[#allocation7 + $0x188] sm:$0xff]
        %v365 = vld [vmem:[#allocation7 + $0x190] sm:$0xff]
        %v366 = vld [vmem:[#allocation7 + $0x198] sm:$0xff]
        %v367 = vld [vmem:[#allocation7 + $0x1a0] sm:$0xff]
        %v368 = vld [vmem:[#allocation7 + $0x1a8] sm:$0xff]
        %v369 = vld [vmem:[#allocation7 + $0x1b0] sm:$0xff]
        %v370 = vld [vmem:[#allocation7 + $0x1b8] sm:$0xff]
        %v371 = vld [vmem:[#allocation7 + $0x1c0] sm:$0xff]
        %v372 = vld [vmem:[#allocation7 + $0x1c8] sm:$0xff]
        %v373 = vld [vmem:[#allocation7 + $0x1d0] sm:$0xff]
        %v374 = vld [vmem:[#allocation7 + $0x1d8] sm:$0xff]
        %v375 = vld [vmem:[#allocation7 + $0x1e0] sm:$0xff]
        %v376 = vld [vmem:[#allocation7 + $0x1e8] sm:$0xff]
        %v377 = vld [vmem:[#allocation7 + $0x1f0] sm:$0xff]
        %v378 = vld [vmem:[#allocation7 + $0x1f8] sm:$0xff]
        %v379 = vld [vmem:[%s260] sm:$0xff]
        %v380 = vld [vmem:[%s260 + $0x8] sm:$0xff]
        %381 = vrot.lane.b32.xlu0 %v379, 17
        %v382 = vpop.permute.xlu0 %381
        %383 = vrot.lane.b32.xlu0 %v380, 17
        %v384 = vpop.permute.xlu0 %383
        %v385 = vlaneseq
        %v386 = vand.u32 %v385, 127
        %vm387 = vcmp.lt.s32.totalorder %v386, 17
        %v388 = vsel %vm387, %v382, %v384
        %v389 = vsel %vm387, %v384, %v382
        %390 = vrot.lane.b32.xlu0 %v379, 16
        %v391 = vpop.permute.xlu0 %390
        %392 = vrot.lane.b32.xlu0 %v380, 16
        %v393 = vpop.permute.xlu0 %392
        %vm394 = vcmp.lt.s32.totalorder %v386, 16
        %v395 = vsel %vm394, %v391, %v393
        %v396 = vsel %vm394, %v393, %v391
        %397 = vrot.lane.b32.xlu0 %v379, 15
        %v398 = vpop.permute.xlu0 %397
        %399 = vrot.lane.b32.xlu0 %v380, 15
        %v400 = vpop.permute.xlu0 %399
        %vm401 = vcmp.lt.s32.totalorder %v386, 15
        %v402 = vsel %vm401, %v398, %v400
        %v403 = vsel %vm401, %v400, %v398
        %404 = vrot.lane.b32.xlu0 %v379, 1
        %v405 = vpop.permute.xlu0 %404
        %406 = vrot.lane.b32.xlu0 %v380, 1
        %v407 = vpop.permute.xlu0 %406
        %vm408 = vcmp.lt.s32.totalorder %v386, 1
        %v409 = vsel %vm408, %v405, %v407
        %v410 = vsel %vm408, %v407, %v405
        %411 = vrot.lane.b32.xlu0 %v379, 127
        %v412 = vpop.permute.xlu0 %411
        %413 = vrot.lane.b32.xlu0 %v380, 127
        %v414 = vpop.permute.xlu0 %413
        %vm415 = vcmp.lt.s32.totalorder %v386, 127
        %v416 = vsel %vm415, %v412, %v414
        %v417 = vsel %vm415, %v414, %v412
        %418 = vrot.lane.b32.xlu0 %v379, 113
        %v419 = vpop.permute.xlu0 %418
        %420 = vrot.lane.b32.xlu0 %v380, 113
        %v421 = vpop.permute.xlu0 %420
        %vm422 = vcmp.lt.s32.totalorder %v386, 113
        %v423 = vsel %vm422, %v419, %v421
        %v424 = vsel %vm422, %v421, %v419
        %425 = vrot.lane.b32.xlu0 %v379, 112
        %v426 = vpop.permute.xlu0 %425
        %427 = vrot.lane.b32.xlu0 %v380, 112
        %v428 = vpop.permute.xlu0 %427
        %vm429 = vcmp.lt.s32.totalorder %v386, 112
        %v430 = vsel %vm429, %v426, %v428
        %v431 = vsel %vm429, %v428, %v426
        %432 = vrot.lane.b32.xlu0 %v379, 111
        %v433 = vpop.permute.xlu0 %432
        %434 = vrot.lane.b32.xlu0 %v380, 111
        %v435 = vpop.permute.xlu0 %434
        %vm436 = vcmp.lt.s32.totalorder %v386, 111
        %v437 = vsel %vm436, %v433, %v435
        %v438 = vsel %vm436, %v435, %v433
        %v439 = vmul.f32 %v389, %v297
        %v440 = vmul.f32 %v388, %v298
        %v441 = vmul.f32 %v396, %v299
        %v442 = vmul.f32 %v395, %v300
        %v443 = vmul.f32 %v403, %v301
        %v444 = vmul.f32 %v402, %v302
        %v445 = vmul.f32 %v410, %v303
        %v446 = vmul.f32 %v409, %v304
        %v447 = vmul.f32 %v379, %v305
        %v448 = vmul.f32 %v380, %v306
        %v449 = vmul.f32 %v416, %v307
        %v450 = vmul.f32 %v417, %v308
        %v451 = vmul.f32 %v423, %v309
        %v452 = vmul.f32 %v424, %v310
        %v453 = vmul.f32 %v430, %v311
        %v454 = vmul.f32 %v431, %v312
        %v455 = vmul.f32 %v437, %v313
        %v456 = vmul.f32 %v438, %v314
        %v457 = vld [vmem:[%s1] sm:$0xff]
        %v458 = vld [vmem:[%s2] sm:$0xff]
        %460 = vset.pattern.permute.xlu0 0
        %461 = vperm.xlu0 %460, %v458
        %v462 = vpop.permute.xlu0 %461
        %vm464 = vcmask 588800
        %v466 = vsel %vm464, %v457, 0
        %v468 = vand.u32 %v440, 4294901760
        %469 = vmatprep.subr.mxu0 %v468
        %v470 = vand.u32 %v439, 4294901760
        %471 = vmatpush1.msra.mxu0 %v470
        %v472 = vand.u32 %v442, 4294901760
        %473 = vmatprep.subr.mxu0 %v472
        %v474 = vand.u32 %v441, 4294901760
        %475 = vmatpush1.msra.mxu0 %v474
        %v476 = vand.u32 %v444, 4294901760
        %477 = vmatprep.subr.mxu0 %v476
        %v478 = vand.u32 %v443, 4294901760
        %479 = vmatpush1.msra.mxu0 %v478
        %v480 = vand.u32 %v446, 4294901760
        %481 = vmatprep.subr.mxu0 %v480
        %v482 = vand.u32 %v445, 4294901760
        %483 = vmatpush1.msra.mxu0 %v482
        %v484 = vand.u32 %v448, 4294901760
        %485 = vmatprep.subr.mxu0 %v484
        %v486 = vand.u32 %v447, 4294901760
        %487 = vmatpush1.msra.mxu0 %v486
        %v488 = vand.u32 %v450, 4294901760
        %489 = vmatprep.subr.mxu0 %v488
        %v490 = vand.u32 %v449, 4294901760
        %491 = vmatpush1.msra.mxu0 %v490
        %v492 = vand.u32 %v452, 4294901760
        %493 = vmatprep.subr.mxu0 %v492
        %v494 = vand.u32 %v451, 4294901760
        %495 = vmatpush1.msra.mxu0 %v494
        %v496 = vand.u32 %v454, 4294901760
        %497 = vmatprep.subr.mxu0 %v496
        %v498 = vand.u32 %v453, 4294901760
        %499 = vmatpush1.msra.mxu0 %v498
        %v500 = vand.u32 %v456, 4294901760
        %501 = vmatprep.subr.mxu0 %v500
        %v502 = vand.u32 %v455, 4294901760
        %503 = vmatpush1.msra.mxu0 %v502
        %504 = vmatprep.subr.mxu0 0.0
        %505 = vmatpush1.msra.mxu0 0.0
        %506 = vmatprep.subr.mxu0 0.0
        %507 = vmatpush1.msra.mxu0 0.0
        %508 = vmatprep.subr.mxu0 0.0
        %509 = vmatpush1.msra.mxu0 0.0
        %510 = vmatprep.subr.mxu0 0.0
        %511 = vmatpush1.msra.mxu0 0.0
        %512 = vmatprep.subr.mxu0 0.0
        %513 = vmatpush1.msra.mxu0 0.0
        %514 = vmatprep.subr.mxu0 0.0
        %515 = vmatpush1.msra.mxu0 0.0
        %516 = vmatprep.subr.mxu0 0.0
        %517 = vmatpush1.msra.mxu0 0.0
        %518 = vmatprep.subr.mxu0 0.0
        %519 = vmatpush1.msra.mxu0 0.0
        %520 = vmatprep.subr.mxu0 0.0
        %521 = vmatpush1.msra.mxu0 0.0
        %522 = vmatprep.subr.mxu0 0.0
        %523 = vmatpush1.msra.mxu0 0.0
        %524 = vmatprep.subr.mxu0 0.0
        %525 = vmatpush1.msra.mxu0 0.0
        %526 = vmatprep.subr.mxu0 0.0
        %527 = vmatpush1.msra.mxu0 0.0
        %528 = vmatprep.subr.mxu0 0.0
        %529 = vmatpush1.msra.mxu0 0.0
        %530 = vmatprep.subr.mxu0 0.0
        %531 = vmatpush1.msra.mxu0 0.0
        %532 = vmatprep.subr.mxu0 0.0
        %533 = vmatpush1.msra.mxu0 0.0
        %534 = vmatprep.subr.mxu0 0.0
        %535 = vmatpush1.msra.mxu0 0.0
        %536 = vmatprep.subr.mxu0 0.0
        %537 = vmatpush1.msra.mxu0 0.0
        %538 = vmatprep.subr.mxu0 0.0
        %539 = vmatpush1.msra.mxu0 0.0
        %540 = vmatprep.subr.mxu0 0.0
        %541 = vmatpush1.msra.mxu0 0.0
        %542 = vmatprep.subr.mxu0 0.0
        %543 = vmatpush1.msra.mxu0 0.0
        %544 = vmatprep.subr.mxu0 0.0
        %545 = vmatpush1.msra.mxu0 0.0
        %546 = vmatprep.subr.mxu0 0.0
        %547 = vmatpush1.msra.mxu0 0.0
        %548 = vmatprep.subr.mxu0 0.0
        %549 = vmatpush1.msra.mxu0 0.0
        %550 = vmatprep.mubr.f32.mxu0 0.0
        %v551 = vand.u32 %v466, 4294901760
        %v552 = vsub.f32 %v466, %v551
        %v553 = vand.u32 %v552, 4294901760
        %v554 = vsub.f32 %v552, %v553
        %v555 = vand.u32 %v554, 4294901760
        %556 = vmatmul.mubr.f32.gmra.mrb[0].mxu0 %v555
        %v557 = vpop.f32.mrb[0].mxu0
        %v558 = vadd.f32 %v462, %v557
        %v559 = vpop.f32.mrb[0].mxu0
        %v560 = vadd.f32 %v462, %v559
        %561 = vdwg.mxu0
        %v562 = vand.u32 %v440, 4294901760
        %v563 = vsub.f32 %v440, %v562
        %v564 = vand.u32 %v563, 4294901760
        %v565 = vsub.f32 %v563, %v564
        %v566 = vand.u32 %v565, 4294901760
        %567 = vmatprep.subr.mxu0 %v566
        %v568 = vand.u32 %v439, 4294901760
        %v569 = vsub.f32 %v439, %v568
        %v570 = vand.u32 %v569, 4294901760
        %v571 = vsub.f32 %v569, %v570
        %v572 = vand.u32 %v571, 4294901760
        %573 = vmatpush1.msra.mxu0 %v572
        %v574 = vand.u32 %v442, 4294901760
        %v575 = vsub.f32 %v442, %v574
        %v576 = vand.u32 %v575, 4294901760
        %v577 = vsub.f32 %v575, %v576
        %v578 = vand.u32 %v577, 4294901760
        %579 = vmatprep.subr.mxu0 %v578
        %v580 = vand.u32 %v441, 4294901760
        %v581 = vsub.f32 %v441, %v580
        %v582 = vand.u32 %v581, 4294901760
        %v583 = vsub.f32 %v581, %v582
        %v584 = vand.u32 %v583, 4294901760
        %585 = vmatpush1.msra.mxu0 %v584
        %v586 = vand.u32 %v444, 4294901760
        %v587 = vsub.f32 %v444, %v586
        %v588 = vand.u32 %v587, 4294901760
        %v589 = vsub.f32 %v587, %v588
        %v590 = vand.u32 %v589, 4294901760
        %591 = vmatprep.subr.mxu0 %v590
        %v592 = vand.u32 %v443, 4294901760
        %v593 = vsub.f32 %v443, %v592
        %v594 = vand.u32 %v593, 4294901760
        %v595 = vsub.f32 %v593, %v594
        %v596 = vand.u32 %v595, 4294901760
        %597 = vmatpush1.msra.mxu0 %v596
        %v598 = vand.u32 %v446, 4294901760
        %v599 = vsub.f32 %v446, %v598
        %v600 = vand.u32 %v599, 4294901760
        %v601 = vsub.f32 %v599, %v600
        %v602 = vand.u32 %v601, 4294901760
        %603 = vmatprep.subr.mxu0 %v602
        %v604 = vand.u32 %v445, 4294901760
        %v605 = vsub.f32 %v445, %v604
        %v606 = vand.u32 %v605, 4294901760
        %v607 = vsub.f32 %v605, %v606
        %v608 = vand.u32 %v607, 4294901760
        %609 = vmatpush1.msra.mxu0 %v608
        %v610 = vand.u32 %v448, 4294901760
        %v611 = vsub.f32 %v448, %v610
        %v612 = vand.u32 %v611, 4294901760
        %v613 = vsub.f32 %v611, %v612
        %v614 = vand.u32 %v613, 4294901760
        %615 = vmatprep.subr.mxu0 %v614
        %v616 = vand.u32 %v447, 4294901760
        %v617 = vsub.f32 %v447, %v616
        %v618 = vand.u32 %v617, 4294901760
        %v619 = vsub.f32 %v617, %v618
        %v620 = vand.u32 %v619, 4294901760
        %621 = vmatpush1.msra.mxu0 %v620
        %v622 = vand.u32 %v450, 4294901760
        %v623 = vsub.f32 %v450, %v622
        %v624 = vand.u32 %v623, 4294901760
        %v625 = vsub.f32 %v623, %v624
        %v626 = vand.u32 %v625, 4294901760
        %627 = vmatprep.subr.mxu0 %v626
        %v628 = vand.u32 %v449, 4294901760
        %v629 = vsub.f32 %v449, %v628
        %v630 = vand.u32 %v629, 4294901760
        %v631 = vsub.f32 %v629, %v630
        %v632 = vand.u32 %v631, 4294901760
        %633 = vmatpush1.msra.mxu0 %v632
        %v634 = vand.u32 %v452, 4294901760
        %v635 = vsub.f32 %v452, %v634
        %v636 = vand.u32 %v635, 4294901760
        %v637 = vsub.f32 %v635, %v636
        %v638 = vand.u32 %v637, 4294901760
        %639 = vmatprep.subr.mxu0 %v638
        %v640 = vand.u32 %v451, 4294901760
        %v641 = vsub.f32 %v451, %v640
        %v642 = vand.u32 %v641, 4294901760
        %v643 = vsub.f32 %v641, %v642
        %v644 = vand.u32 %v643, 4294901760
        %645 = vmatpush1.msra.mxu0 %v644
        %v646 = vand.u32 %v454, 4294901760
        %v647 = vsub.f32 %v454, %v646
        %v648 = vand.u32 %v647, 4294901760
        %v649 = vsub.f32 %v647, %v648
        %v650 = vand.u32 %v649, 4294901760
        %651 = vmatprep.subr.mxu0 %v650
        %v652 = vand.u32 %v453, 4294901760
        %v653 = vsub.f32 %v453, %v652
        %v654 = vand.u32 %v653, 4294901760
        %v655 = vsub.f32 %v653, %v654
        %v656 = vand.u32 %v655, 4294901760
        %657 = vmatpush1.msra.mxu0 %v656
        %v658 = vand.u32 %v456, 4294901760
        %v659 = vsub.f32 %v456, %v658
        %v660 = vand.u32 %v659, 4294901760
        %v661 = vsub.f32 %v659, %v660
        %v662 = vand.u32 %v661, 4294901760
        %663 = vmatprep.subr.mxu0 %v662
        %v664 = vand.u32 %v455, 4294901760
        %v665 = vsub.f32 %v455, %v664
        %v666 = vand.u32 %v665, 4294901760
        %v667 = vsub.f32 %v665, %v666
        %v668 = vand.u32 %v667, 4294901760
        %669 = vmatpush1.msra.mxu0 %v668
        %670 = vmatprep.subr.mxu0 0.0
        %671 = vmatpush1.msra.mxu0 0.0
        %672 = vmatprep.subr.mxu0 0.0
        %673 = vmatpush1.msra.mxu0 0.0
        %674 = vmatprep.subr.mxu0 0.0
        %675 = vmatpush1.msra.mxu0 0.0
        %676 = vmatprep.subr.mxu0 0.0
        %677 = vmatpush1.msra.mxu0 0.0
        %678 = vmatprep.subr.mxu0 0.0
        %679 = vmatpush1.msra.mxu0 0.0
        %680 = vmatprep.subr.mxu0 0.0
        %681 = vmatpush1.msra.mxu0 0.0
        %682 = vmatprep.subr.mxu0 0.0
        %683 = vmatpush1.msra.mxu0 0.0
        %684 = vmatprep.subr.mxu0 0.0
        %685 = vmatpush1.msra.mxu0 0.0
        %686 = vmatprep.subr.mxu0 0.0
        %687 = vmatpush1.msra.mxu0 0.0
        %688 = vmatprep.subr.mxu0 0.0
        %689 = vmatpush1.msra.mxu0 0.0
        %690 = vmatprep.subr.mxu0 0.0
        %691 = vmatpush1.msra.mxu0 0.0
        %692 = vmatprep.subr.mxu0 0.0
        %693 = vmatpush1.msra.mxu0 0.0
        %694 = vmatprep.subr.mxu0 0.0
        %695 = vmatpush1.msra.mxu0 0.0
        %696 = vmatprep.subr.mxu0 0.0
        %697 = vmatpush1.msra.mxu0 0.0
        %698 = vmatprep.subr.mxu0 0.0
        %699 = vmatpush1.msra.mxu0 0.0
        %700 = vmatprep.subr.mxu0 0.0
        %701 = vmatpush1.msra.mxu0 0.0
        %702 = vmatprep.subr.mxu0 0.0
        %703 = vmatpush1.msra.mxu0 0.0
        %704 = vmatprep.subr.mxu0 0.0
        %705 = vmatpush1.msra.mxu0 0.0
        %706 = vmatprep.subr.mxu0 0.0
        %707 = vmatpush1.msra.mxu0 0.0
        %708 = vmatprep.subr.mxu0 0.0
        %709 = vmatpush1.msra.mxu0 0.0
        %710 = vmatprep.subr.mxu0 0.0
        %711 = vmatpush1.msra.mxu0 0.0
        %712 = vmatprep.subr.mxu0 0.0
        %713 = vmatpush1.msra.mxu0 0.0
        %714 = vmatprep.subr.mxu0 0.0
        %715 = vmatpush1.msra.mxu0 0.0
        %716 = vmatprep.mubr.f32.mxu0 0.0
        %v717 = vand.u32 %v466, 4294901760
        %718 = vmatmul.mubr.f32.gmra.mrb[0].mxu0 %v717
        %v719 = vpop.f32.mrb[0].mxu0
        %v720 = vadd.f32 %v558, %v719
        %v721 = vpop.f32.mrb[0].mxu0
        %v722 = vadd.f32 %v560, %v721
        %723 = vdwg.mxu0
        %v724 = vand.u32 %v440, 4294901760
        %v725 = vsub.f32 %v440, %v724
        %726 = vmatprep.subr.mxu0 %v725
        %v727 = vand.u32 %v439, 4294901760
        %v728 = vsub.f32 %v439, %v727
        %729 = vmatpush1.msra.mxu0 %v728
        %v730 = vand.u32 %v442, 4294901760
        %v731 = vsub.f32 %v442, %v730
        %732 = vmatprep.subr.mxu0 %v731
        %v733 = vand.u32 %v441, 4294901760
        %v734 = vsub.f32 %v441, %v733
        %735 = vmatpush1.msra.mxu0 %v734
        %v736 = vand.u32 %v444, 4294901760
        %v737 = vsub.f32 %v444, %v736
        %738 = vmatprep.subr.mxu0 %v737
        %v739 = vand.u32 %v443, 4294901760
        %v740 = vsub.f32 %v443, %v739
        %741 = vmatpush1.msra.mxu0 %v740
        %v742 = vand.u32 %v446, 4294901760
        %v743 = vsub.f32 %v446, %v742
        %744 = vmatprep.subr.mxu0 %v743
        %v745 = vand.u32 %v445, 4294901760
        %v746 = vsub.f32 %v445, %v745
        %747 = vmatpush1.msra.mxu0 %v746
        %v748 = vand.u32 %v448, 4294901760
        %v749 = vsub.f32 %v448, %v748
        %750 = vmatprep.subr.mxu0 %v749
        %v751 = vand.u32 %v447, 4294901760
        %v752 = vsub.f32 %v447, %v751
        %753 = vmatpush1.msra.mxu0 %v752
        %v754 = vand.u32 %v450, 4294901760
        %v755 = vsub.f32 %v450, %v754
        %756 = vmatprep.subr.mxu0 %v755
        %v757 = vand.u32 %v449, 4294901760
        %v758 = vsub.f32 %v449, %v757
        %759 = vmatpush1.msra.mxu0 %v758
        %v760 = vand.u32 %v452, 4294901760
        %v761 = vsub.f32 %v452, %v760
        %762 = vmatprep.subr.mxu0 %v761
        %v763 = vand.u32 %v451, 4294901760
        %v764 = vsub.f32 %v451, %v763
        %765 = vmatpush1.msra.mxu0 %v764
        %v766 = vand.u32 %v454, 4294901760
        %v767 = vsub.f32 %v454, %v766
        %768 = vmatprep.subr.mxu0 %v767
        %v769 = vand.u32 %v453, 4294901760
        %v770 = vsub.f32 %v453, %v769
        %771 = vmatpush1.msra.mxu0 %v770
        %v772 = vand.u32 %v456, 4294901760
        %v773 = vsub.f32 %v456, %v772
        %774 = vmatprep.subr.mxu0 %v773
        %v775 = vand.u32 %v455, 4294901760
        %v776 = vsub.f32 %v455, %v775
        %777 = vmatpush1.msra.mxu0 %v776
        %778 = vmatprep.subr.mxu0 0.0
        %779 = vmatpush1.msra.mxu0 0.0
        %780 = vmatprep.subr.mxu0 0.0
        %781 = vmatpush1.msra.mxu0 0.0
        %782 = vmatprep.subr.mxu0 0.0
        %783 = vmatpush1.msra.mxu0 0.0
        %784 = vmatprep.subr.mxu0 0.0
        %785 = vmatpush1.msra.mxu0 0.0
        %786 = vmatprep.subr.mxu0 0.0
        %787 = vmatpush1.msra.mxu0 0.0
        %788 = vmatprep.subr.mxu0 0.0
        %789 = vmatpush1.msra.mxu0 0.0
        %790 = vmatprep.subr.mxu0 0.0
        %791 = vmatpush1.msra.mxu0 0.0
        %792 = vmatprep.subr.mxu0 0.0
        %793 = vmatpush1.msra.mxu0 0.0
        %794 = vmatprep.subr.mxu0 0.0
        %795 = vmatpush1.msra.mxu0 0.0
        %796 = vmatprep.subr.mxu0 0.0
        %797 = vmatpush1.msra.mxu0 0.0
        %798 = vmatprep.subr.mxu0 0.0
        %799 = vmatpush1.msra.mxu0 0.0
        %800 = vmatprep.subr.mxu0 0.0
        %801 = vmatpush1.msra.mxu0 0.0
        %802 = vmatprep.subr.mxu0 0.0
        %803 = vmatpush1.msra.mxu0 0.0
        %804 = vmatprep.subr.mxu0 0.0
        %805 = vmatpush1.msra.mxu0 0.0
        %806 = vmatprep.subr.mxu0 0.0
        %807 = vmatpush1.msra.mxu0 0.0
        %808 = vmatprep.subr.mxu0 0.0
        %809 = vmatpush1.msra.mxu0 0.0
        %810 = vmatprep.subr.mxu0 0.0
        %811 = vmatpush1.msra.mxu0 0.0
        %812 = vmatprep.subr.mxu0 0.0
        %813 = vmatpush1.msra.mxu0 0.0
        %814 = vmatprep.subr.mxu0 0.0
        %815 = vmatpush1.msra.mxu0 0.0
        %816 = vmatprep.subr.mxu0 0.0
        %817 = vmatpush1.msra.mxu0 0.0
        %818 = vmatprep.subr.mxu0 0.0
        %819 = vmatpush1.msra.mxu0 0.0
        %820 = vmatprep.subr.mxu0 0.0
        %821 = vmatpush1.msra.mxu0 0.0
        %822 = vmatprep.subr.mxu0 0.0
        %823 = vmatpush1.msra.mxu0 0.0
        %824 = vmatprep.mubr.f32.mxu0 0.0
        %v825 = vand.u32 %v466, 4294901760
        %v826 = vsub.f32 %v466, %v825
        %827 = vmatmul.mubr.f32.gmra.mrb[0].mxu0 %v826
        %v828 = vpop.f32.mrb[0].mxu0
        %v829 = vadd.f32 %v720, %v828
        %v830 = vpop.f32.mrb[0].mxu0
        %v831 = vadd.f32 %v722, %v830
        %832 = vdwg.mxu0
        %v833 = vand.u32 %v440, 4294901760
        %834 = vmatprep.subr.mxu0 %v833
        %v835 = vand.u32 %v439, 4294901760
        %836 = vmatpush1.msra.mxu0 %v835
        %v837 = vand.u32 %v442, 4294901760
        %838 = vmatprep.subr.mxu0 %v837
        %v839 = vand.u32 %v441, 4294901760
        %840 = vmatpush1.msra.mxu0 %v839
        %v841 = vand.u32 %v444, 4294901760
        %842 = vmatprep.subr.mxu0 %v841
        %v843 = vand.u32 %v443, 4294901760
        %844 = vmatpush1.msra.mxu0 %v843
        %v845 = vand.u32 %v446, 4294901760
        %846 = vmatprep.subr.mxu0 %v845
        %v847 = vand.u32 %v445, 4294901760
        %848 = vmatpush1.msra.mxu0 %v847
        %v849 = vand.u32 %v448, 4294901760
        %850 = vmatprep.subr.mxu0 %v849
        %v851 = vand.u32 %v447, 4294901760
        %852 = vmatpush1.msra.mxu0 %v851
        %v853 = vand.u32 %v450, 4294901760
        %854 = vmatprep.subr.mxu0 %v853
        %v855 = vand.u32 %v449, 4294901760
        %856 = vmatpush1.msra.mxu0 %v855
        %v857 = vand.u32 %v452, 4294901760
        %858 = vmatprep.subr.mxu0 %v857
        %v859 = vand.u32 %v451, 4294901760
        %860 = vmatpush1.msra.mxu0 %v859
        %v861 = vand.u32 %v454, 4294901760
        %862 = vmatprep.subr.mxu0 %v861
        %v863 = vand.u32 %v453, 4294901760
        %864 = vmatpush1.msra.mxu0 %v863
        %v865 = vand.u32 %v456, 4294901760
        %866 = vmatprep.subr.mxu0 %v865
        %v867 = vand.u32 %v455, 4294901760
        %868 = vmatpush1.msra.mxu0 %v867
        %869 = vmatprep.subr.mxu0 0.0
        %870 = vmatpush1.msra.mxu0 0.0
        %871 = vmatprep.subr.mxu0 0.0
        %872 = vmatpush1.msra.mxu0 0.0
        %873 = vmatprep.subr.mxu0 0.0
        %874 = vmatpush1.msra.mxu0 0.0
        %875 = vmatprep.subr.mxu0 0.0
        %876 = vmatpush1.msra.mxu0 0.0
        %877 = vmatprep.subr.mxu0 0.0
        %878 = vmatpush1.msra.mxu0 0.0
        %879 = vmatprep.subr.mxu0 0.0
        %880 = vmatpush1.msra.mxu0 0.0
        %881 = vmatprep.subr.mxu0 0.0
        %882 = vmatpush1.msra.mxu0 0.0
        %883 = vmatprep.subr.mxu0 0.0
        %884 = vmatpush1.msra.mxu0 0.0
        %885 = vmatprep.subr.mxu0 0.0
        %886 = vmatpush1.msra.mxu0 0.0
        %887 = vmatprep.subr.mxu0 0.0
        %888 = vmatpush1.msra.mxu0 0.0
        %889 = vmatprep.subr.mxu0 0.0
        %890 = vmatpush1.msra.mxu0 0.0
        %891 = vmatprep.subr.mxu0 0.0
        %892 = vmatpush1.msra.mxu0 0.0
        %893 = vmatprep.subr.mxu0 0.0
        %894 = vmatpush1.msra.mxu0 0.0
        %895 = vmatprep.subr.mxu0 0.0
        %896 = vmatpush1.msra.mxu0 0.0
        %897 = vmatprep.subr.mxu0 0.0
        %898 = vmatpush1.msra.mxu0 0.0
        %899 = vmatprep.subr.mxu0 0.0
        %900 = vmatpush1.msra.mxu0 0.0
        %901 = vmatprep.subr.mxu0 0.0
        %902 = vmatpush1.msra.mxu0 0.0
        %903 = vmatprep.subr.mxu0 0.0
        %904 = vmatpush1.msra.mxu0 0.0
        %905 = vmatprep.subr.mxu0 0.0
        %906 = vmatpush1.msra.mxu0 0.0
        %907 = vmatprep.subr.mxu0 0.0
        %908 = vmatpush1.msra.mxu0 0.0
        %909 = vmatprep.subr.mxu0 0.0
        %910 = vmatpush1.msra.mxu0 0.0
        %911 = vmatprep.subr.mxu0 0.0
        %912 = vmatpush1.msra.mxu0 0.0
        %913 = vmatprep.subr.mxu0 0.0
        %914 = vmatpush1.msra.mxu0 0.0
        %915 = vmatprep.mubr.f32.mxu0 0.0
        %v916 = vand.u32 %v466, 4294901760
        %v917 = vsub.f32 %v466, %v916
        %v918 = vand.u32 %v917, 4294901760
        %919 = vmatmul.mubr.f32.gmra.mrb[0].mxu0 %v918
        %v920 = vpop.f32.mrb[0].mxu0
        %v921 = vadd.f32 %v829, %v920
        %v922 = vpop.f32.mrb[0].mxu0
        %v923 = vadd.f32 %v831, %v922
        %924 = vdwg.mxu0
        %v925 = vand.u32 %v440, 4294901760
        %v926 = vsub.f32 %v440, %v925
        %v927 = vand.u32 %v926, 4294901760
        %928 = vmatprep.subr.mxu0 %v927
        %v929 = vand.u32 %v439, 4294901760
        %v930 = vsub.f32 %v439, %v929
        %v931 = vand.u32 %v930, 4294901760
        %932 = vmatpush1.msra.mxu0 %v931
        %v933 = vand.u32 %v442, 4294901760
        %v934 = vsub.f32 %v442, %v933
        %v935 = vand.u32 %v934, 4294901760
        %936 = vmatprep.subr.mxu0 %v935
        %v937 = vand.u32 %v441, 4294901760
        %v938 = vsub.f32 %v441, %v937
        %v939 = vand.u32 %v938, 4294901760
        %940 = vmatpush1.msra.mxu0 %v939
        %v941 = vand.u32 %v444, 4294901760
        %v942 = vsub.f32 %v444, %v941
        %v943 = vand.u32 %v942, 4294901760
        %944 = vmatprep.subr.mxu0 %v943
        %v945 = vand.u32 %v443, 4294901760
        %v946 = vsub.f32 %v443, %v945
        %v947 = vand.u32 %v946, 4294901760
        %948 = vmatpush1.msra.mxu0 %v947
        %v949 = vand.u32 %v446, 4294901760
        %v950 = vsub.f32 %v446, %v949
        %v951 = vand.u32 %v950, 4294901760
        %952 = vmatprep.subr.mxu0 %v951
        %v953 = vand.u32 %v445, 4294901760
        %v954 = vsub.f32 %v445, %v953
        %v955 = vand.u32 %v954, 4294901760
        %956 = vmatpush1.msra.mxu0 %v955
        %v957 = vand.u32 %v448, 4294901760
        %v958 = vsub.f32 %v448, %v957
        %v959 = vand.u32 %v958, 4294901760
        %960 = vmatprep.subr.mxu0 %v959
        %v961 = vand.u32 %v447, 4294901760
        %v962 = vsub.f32 %v447, %v961
        %v963 = vand.u32 %v962, 4294901760
        %964 = vmatpush1.msra.mxu0 %v963
        %v965 = vand.u32 %v450, 4294901760
        %v966 = vsub.f32 %v450, %v965
        %v967 = vand.u32 %v966, 4294901760
        %968 = vmatprep.subr.mxu0 %v967
        %v969 = vand.u32 %v449, 4294901760
        %v970 = vsub.f32 %v449, %v969
        %v971 = vand.u32 %v970, 4294901760
        %972 = vmatpush1.msra.mxu0 %v971
        %v973 = vand.u32 %v452, 4294901760
        %v974 = vsub.f32 %v452, %v973
        %v975 = vand.u32 %v974, 4294901760
        %976 = vmatprep.subr.mxu0 %v975
        %v977 = vand.u32 %v451, 4294901760
        %v978 = vsub.f32 %v451, %v977
        %v979 = vand.u32 %v978, 4294901760
        %980 = vmatpush1.msra.mxu0 %v979
        %v981 = vand.u32 %v454, 4294901760
        %v982 = vsub.f32 %v454, %v981
        %v983 = vand.u32 %v982, 4294901760
        %984 = vmatprep.subr.mxu0 %v983
        %v985 = vand.u32 %v453, 4294901760
        %v986 = vsub.f32 %v453, %v985
        %v987 = vand.u32 %v986, 4294901760
        %988 = vmatpush1.msra.mxu0 %v987
        %v989 = vand.u32 %v456, 4294901760
        %v990 = vsub.f32 %v456, %v989
        %v991 = vand.u32 %v990, 4294901760
        %992 = vmatprep.subr.mxu0 %v991
        %v993 = vand.u32 %v455, 4294901760
        %v994 = vsub.f32 %v455, %v993
        %v995 = vand.u32 %v994, 4294901760
        %996 = vmatpush1.msra.mxu0 %v995
        %997 = vmatprep.subr.mxu0 0.0
        %998 = vmatpush1.msra.mxu0 0.0
        %999 = vmatprep.subr.mxu0 0.0
        %1000 = vmatpush1.msra.mxu0 0.0
        %1001 = vmatprep.subr.mxu0 0.0
        %1002 = vmatpush1.msra.mxu0 0.0
        %1003 = vmatprep.subr.mxu0 0.0
        %1004 = vmatpush1.msra.mxu0 0.0
        %1005 = vmatprep.subr.mxu0 0.0
        %1006 = vmatpush1.msra.mxu0 0.0
        %1007 = vmatprep.subr.mxu0 0.0
        %1008 = vmatpush1.msra.mxu0 0.0
        %1009 = vmatprep.subr.mxu0 0.0
        %1010 = vmatpush1.msra.mxu0 0.0
        %1011 = vmatprep.subr.mxu0 0.0
        %1012 = vmatpush1.msra.mxu0 0.0
        %1013 = vmatprep.subr.mxu0 0.0
        %1014 = vmatpush1.msra.mxu0 0.0
        %1015 = vmatprep.subr.mxu0 0.0
        %1016 = vmatpush1.msra.mxu0 0.0
        %1017 = vmatprep.subr.mxu0 0.0
        %1018 = vmatpush1.msra.mxu0 0.0
        %1019 = vmatprep.subr.mxu0 0.0
        %1020 = vmatpush1.msra.mxu0 0.0
        %1021 = vmatprep.subr.mxu0 0.0
        %1022 = vmatpush1.msra.mxu0 0.0
        %1023 = vmatprep.subr.mxu0 0.0
        %1024 = vmatpush1.msra.mxu0 0.0
        %1025 = vmatprep.subr.mxu0 0.0
        %1026 = vmatpush1.msra.mxu0 0.0
        %1027 = vmatprep.subr.mxu0 0.0
        %1028 = vmatpush1.msra.mxu0 0.0
        %1029 = vmatprep.subr.mxu0 0.0
        %1030 = vmatpush1.msra.mxu0 0.0
        %1031 = vmatprep.subr.mxu0 0.0
        %1032 = vmatpush1.msra.mxu0 0.0
        %1033 = vmatprep.subr.mxu0 0.0
        %1034 = vmatpush1.msra.mxu0 0.0
        %1035 = vmatprep.subr.mxu0 0.0
        %1036 = vmatpush1.msra.mxu0 0.0
        %1037 = vmatprep.subr.mxu0 0.0
        %1038 = vmatpush1.msra.mxu0 0.0
        %1039 = vmatprep.subr.mxu0 0.0
        %1040 = vmatpush1.msra.mxu0 0.0
        %1041 = vmatprep.subr.mxu0 0.0
        %1042 = vmatpush1.msra.mxu0 0.0
        %1043 = vmatprep.mubr.f32.mxu0 0.0
        %v1044 = vand.u32 %v466, 4294901760
        %1045 = vmatmul.mubr.f32.gmra.mrb[0].mxu0 %v1044
        %v1046 = vpop.f32.mrb[0].mxu0
        %v1047 = vadd.f32 %v921, %v1046
        %v1048 = vpop.f32.mrb[0].mxu0
        %v1049 = vadd.f32 %v923, %v1048
        %1050 = vdwg.mxu0
        %v1051 = vand.u32 %v440, 4294901760
        %1052 = vmatprep.subr.mxu0 %v1051
        %v1053 = vand.u32 %v439, 4294901760
        %1054 = vmatpush1.msra.mxu0 %v1053
        %v1055 = vand.u32 %v442, 4294901760
        %1056 = vmatprep.subr.mxu0 %v1055
        %v1057 = vand.u32 %v441, 4294901760
        %1058 = vmatpush1.msra.mxu0 %v1057
        %v1059 = vand.u32 %v444, 4294901760
        %1060 = vmatprep.subr.mxu0 %v1059
        %v1061 = vand.u32 %v443, 4294901760
        %1062 = vmatpush1.msra.mxu0 %v1061
        %v1063 = vand.u32 %v446, 4294901760
        %1064 = vmatprep.subr.mxu0 %v1063
        %v1065 = vand.u32 %v445, 4294901760
        %1066 = vmatpush1.msra.mxu0 %v1065
        %v1067 = vand.u32 %v448, 4294901760
        %1068 = vmatprep.subr.mxu0 %v1067
        %v1069 = vand.u32 %v447, 4294901760
        %1070 = vmatpush1.msra.mxu0 %v1069
        %v1071 = vand.u32 %v450, 4294901760
        %1072 = vmatprep.subr.mxu0 %v1071
        %v1073 = vand.u32 %v449, 4294901760
        %1074 = vmatpush1.msra.mxu0 %v1073
        %v1075 = vand.u32 %v452, 4294901760
        %1076 = vmatprep.subr.mxu0 %v1075
        %v1077 = vand.u32 %v451, 4294901760
        %1078 = vmatpush1.msra.mxu0 %v1077
        %v1079 = vand.u32 %v454, 4294901760
        %1080 = vmatprep.subr.mxu0 %v1079
        %v1081 = vand.u32 %v453, 4294901760
        %1082 = vmatpush1.msra.mxu0 %v1081
        %v1083 = vand.u32 %v456, 4294901760
        %1084 = vmatprep.subr.mxu0 %v1083
        %v1085 = vand.u32 %v455, 4294901760
        %1086 = vmatpush1.msra.mxu0 %v1085
        %1087 = vmatprep.subr.mxu0 0.0
        %1088 = vmatpush1.msra.mxu0 0.0
        %1089 = vmatprep.subr.mxu0 0.0
        %1090 = vmatpush1.msra.mxu0 0.0
        %1091 = vmatprep.subr.mxu0 0.0
        %1092 = vmatpush1.msra.mxu0 0.0
        %1093 = vmatprep.subr.mxu0 0.0
        %1094 = vmatpush1.msra.mxu0 0.0
        %1095 = vmatprep.subr.mxu0 0.0
        %1096 = vmatpush1.msra.mxu0 0.0
        %1097 = vmatprep.subr.mxu0 0.0
        %1098 = vmatpush1.msra.mxu0 0.0
        %1099 = vmatprep.subr.mxu0 0.0
        %1100 = vmatpush1.msra.mxu0 0.0
        %1101 = vmatprep.subr.mxu0 0.0
        %1102 = vmatpush1.msra.mxu0 0.0
        %1103 = vmatprep.subr.mxu0 0.0
        %1104 = vmatpush1.msra.mxu0 0.0
        %1105 = vmatprep.subr.mxu0 0.0
        %1106 = vmatpush1.msra.mxu0 0.0
        %1107 = vmatprep.subr.mxu0 0.0
        %1108 = vmatpush1.msra.mxu0 0.0
        %1109 = vmatprep.subr.mxu0 0.0
        %1110 = vmatpush1.msra.mxu0 0.0
        %1111 = vmatprep.subr.mxu0 0.0
        %1112 = vmatpush1.msra.mxu0 0.0
        %1113 = vmatprep.subr.mxu0 0.0
        %1114 = vmatpush1.msra.mxu0 0.0
        %1115 = vmatprep.subr.mxu0 0.0
        %1116 = vmatpush1.msra.mxu0 0.0
        %1117 = vmatprep.subr.mxu0 0.0
        %1118 = vmatpush1.msra.mxu0 0.0
        %1119 = vmatprep.subr.mxu0 0.0
        %1120 = vmatpush1.msra.mxu0 0.0
        %1121 = vmatprep.subr.mxu0 0.0
        %1122 = vmatpush1.msra.mxu0 0.0
        %1123 = vmatprep.subr.mxu0 0.0
        %1124 = vmatpush1.msra.mxu0 0.0
        %1125 = vmatprep.subr.mxu0 0.0
        %1126 = vmatpush1.msra.mxu0 0.0
        %1127 = vmatprep.subr.mxu0 0.0
        %1128 = vmatpush1.msra.mxu0 0.0
        %1129 = vmatprep.subr.mxu0 0.0
        %1130 = vmatpush1.msra.mxu0 0.0
        %1131 = vmatprep.subr.mxu0 0.0
        %1132 = vmatpush1.msra.mxu0 0.0
        %1133 = vmatprep.mubr.f32.mxu0 0.0
        %v1134 = vand.u32 %v466, 4294901760
        %1135 = vmatmul.mubr.f32.gmra.mrb[0].mxu0 %v1134
        %v1136 = vpop.f32.mrb[0].mxu0
        %v1137 = vadd.f32 %v1047, %v1136
        %v1138 = vpop.f32.mrb[0].mxu0
        %v1139 = vadd.f32 %v1049, %v1138
        %1140 = vdwg.mxu0
        %v1141 = vmax.f32 %v1137, 0.0
        %v1142 = vmax.f32 %v1139, 0.0
        %1143 = vrot.lane.b32.xlu0 %v1141, 17
        %v1144 = vpop.permute.xlu0 %1143
        %1145 = vrot.lane.b32.xlu0 %v1142, 17
        %v1146 = vpop.permute.xlu0 %1145
        %v1147 = vsel %vm387, %v1144, %v1146
        %v1148 = vsel %vm387, %v1146, %v1144
        %1149 = vrot.lane.b32.xlu0 %v1141, 16
        %v1150 = vpop.permute.xlu0 %1149
        %1151 = vrot.lane.b32.xlu0 %v1142, 16
        %v1152 = vpop.permute.xlu0 %1151
        %v1153 = vsel %vm394, %v1150, %v1152
        %v1154 = vsel %vm394, %v1152, %v1150
        %1155 = vrot.lane.b32.xlu0 %v1141, 15
        %v1156 = vpop.permute.xlu0 %1155
        %1157 = vrot.lane.b32.xlu0 %v1142, 15
        %v1158 = vpop.permute.xlu0 %1157
        %v1159 = vsel %vm401, %v1156, %v1158
        %v1160 = vsel %vm401, %v1158, %v1156
        %1161 = vrot.lane.b32.xlu0 %v1141, 1
        %v1162 = vpop.permute.xlu0 %1161
        %1163 = vrot.lane.b32.xlu0 %v1142, 1
        %v1164 = vpop.permute.xlu0 %1163
        %v1165 = vsel %vm408, %v1162, %v1164
        %v1166 = vsel %vm408, %v1164, %v1162
        %1167 = vrot.lane.b32.xlu0 %v1141, 127
        %v1168 = vpop.permute.xlu0 %1167
        %1169 = vrot.lane.b32.xlu0 %v1142, 127
        %v1170 = vpop.permute.xlu0 %1169
        %v1171 = vsel %vm415, %v1168, %v1170
        %v1172 = vsel %vm415, %v1170, %v1168
        %1173 = vrot.lane.b32.xlu0 %v1141, 113
        %v1174 = vpop.permute.xlu0 %1173
        %1175 = vrot.lane.b32.xlu0 %v1142, 113
        %v1176 = vpop.permute.xlu0 %1175
        %v1177 = vsel %vm422, %v1174, %v1176
        %v1178 = vsel %vm422, %v1176, %v1174
        %1179 = vrot.lane.b32.xlu0 %v1141, 112
        %v1180 = vpop.permute.xlu0 %1179
        %1181 = vrot.lane.b32.xlu0 %v1142, 112
        %v1182 = vpop.permute.xlu0 %1181
        %v1183 = vsel %vm429, %v1180, %v1182
        %v1184 = vsel %vm429, %v1182, %v1180
        %1185 = vrot.lane.b32.xlu0 %v1141, 111
        %v1186 = vpop.permute.xlu0 %1185
        %1187 = vrot.lane.b32.xlu0 %v1142, 111
        %v1188 = vpop.permute.xlu0 %1187
        %v1189 = vsel %vm436, %v1186, %v1188
        %v1190 = vsel %vm436, %v1188, %v1186
        %v1191 = vmul.f32 %v1148, %v297
        %v1192 = vmul.f32 %v1147, %v298
        %v1193 = vmul.f32 %v1154, %v299
        %v1194 = vmul.f32 %v1153, %v300
        %v1195 = vmul.f32 %v1160, %v301
        %v1196 = vmul.f32 %v1159, %v302
        %v1197 = vmul.f32 %v1166, %v303
        %v1198 = vmul.f32 %v1165, %v304
        %v1199 = vmul.f32 %v1141, %v305
        %v1200 = vmul.f32 %v1142, %v306
        %v1201 = vmul.f32 %v1171, %v307
        %v1202 = vmul.f32 %v1172, %v308
        %v1203 = vmul.f32 %v1177, %v309
        %v1204 = vmul.f32 %v1178, %v310
        %v1205 = vmul.f32 %v1183, %v311
        %v1206 = vmul.f32 %v1184, %v312
        %v1207 = vmul.f32 %v1189, %v313
        %v1208 = vmul.f32 %v1190, %v314
        %s1209 = scalar_lea.vmem %s1, 8
        %v1210 = vld [vmem:[%s1209] sm:$0xff]
        %s1211 = scalar_lea.vmem %s2, 8
        %v1212 = vld [vmem:[%s1211] sm:$0xff]
        %1214 = vset.pattern.permute.xlu0 0
        %1215 = vperm.xlu0 %1214, %v1212
        %v1216 = vpop.permute.xlu0 %1215
        %v1219 = vsel %vm464, %v1210, 0
        %v1221 = vand.u32 %v1192, 4294901760
        %1222 = vmatprep.subr.mxu0 %v1221
        %v1223 = vand.u32 %v1191, 4294901760
        %1224 = vmatpush1.msra.mxu0 %v1223
        %v1225 = vand.u32 %v1194, 4294901760
        %1226 = vmatprep.subr.mxu0 %v1225
        %v1227 = vand.u32 %v1193, 4294901760
        %1228 = vmatpush1.msra.mxu0 %v1227
        %v1229 = vand.u32 %v1196, 4294901760
        %1230 = vmatprep.subr.mxu0 %v1229
        %v1231 = vand.u32 %v1195, 4294901760
        %1232 = vmatpush1.msra.mxu0 %v1231
        %v1233 = vand.u32 %v1198, 4294901760
        %1234 = vmatprep.subr.mxu0 %v1233
        %v1235 = vand.u32 %v1197, 4294901760
        %1236 = vmatpush1.msra.mxu0 %v1235
        %v1237 = vand.u32 %v1200, 4294901760
        %1238 = vmatprep.subr.mxu0 %v1237
        %v1239 = vand.u32 %v1199, 4294901760
        %1240 = vmatpush1.msra.mxu0 %v1239
        %v1241 = vand.u32 %v1202, 4294901760
        %1242 = vmatprep.subr.mxu0 %v1241
        %v1243 = vand.u32 %v1201, 4294901760
        %1244 = vmatpush1.msra.mxu0 %v1243
        %v1245 = vand.u32 %v1204, 4294901760
        %1246 = vmatprep.subr.mxu0 %v1245
        %v1247 = vand.u32 %v1203, 4294901760
        %1248 = vmatpush1.msra.mxu0 %v1247
        %v1249 = vand.u32 %v1206, 4294901760
        %1250 = vmatprep.subr.mxu0 %v1249
        %v1251 = vand.u32 %v1205, 4294901760
        %1252 = vmatpush1.msra.mxu0 %v1251
        %v1253 = vand.u32 %v1208, 4294901760
        %1254 = vmatprep.subr.mxu0 %v1253
        %v1255 = vand.u32 %v1207, 4294901760
        %1256 = vmatpush1.msra.mxu0 %v1255
        %1257 = vmatprep.subr.mxu0 0.0
        %1258 = vmatpush1.msra.mxu0 0.0
        %1259 = vmatprep.subr.mxu0 0.0
        %1260 = vmatpush1.msra.mxu0 0.0
        %1261 = vmatprep.subr.mxu0 0.0
        %1262 = vmatpush1.msra.mxu0 0.0
        %1263 = vmatprep.subr.mxu0 0.0
        %1264 = vmatpush1.msra.mxu0 0.0
        %1265 = vmatprep.subr.mxu0 0.0
        %1266 = vmatpush1.msra.mxu0 0.0
        %1267 = vmatprep.subr.mxu0 0.0
        %1268 = vmatpush1.msra.mxu0 0.0
        %1269 = vmatprep.subr.mxu0 0.0
        %1270 = vmatpush1.msra.mxu0 0.0
        %1271 = vmatprep.subr.mxu0 0.0
        %1272 = vmatpush1.msra.mxu0 0.0
        %1273 = vmatprep.subr.mxu0 0.0
        %1274 = vmatpush1.msra.mxu0 0.0
        %1275 = vmatprep.subr.mxu0 0.0
        %1276 = vmatpush1.msra.mxu0 0.0
        %1277 = vmatprep.subr.mxu0 0.0
        %1278 = vmatpush1.msra.mxu0 0.0
        %1279 = vmatprep.subr.mxu0 0.0
        %1280 = vmatpush1.msra.mxu0 0.0
        %1281 = vmatprep.subr.mxu0 0.0
        %1282 = vmatpush1.msra.mxu0 0.0
        %1283 = vmatprep.subr.mxu0 0.0
        %1284 = vmatpush1.msra.mxu0 0.0
        %1285 = vmatprep.subr.mxu0 0.0
        %1286 = vmatpush1.msra.mxu0 0.0
        %1287 = vmatprep.subr.mxu0 0.0
        %1288 = vmatpush1.msra.mxu0 0.0
        %1289 = vmatprep.subr.mxu0 0.0
        %1290 = vmatpush1.msra.mxu0 0.0
        %1291 = vmatprep.subr.mxu0 0.0
        %1292 = vmatpush1.msra.mxu0 0.0
        %1293 = vmatprep.subr.mxu0 0.0
        %1294 = vmatpush1.msra.mxu0 0.0
        %1295 = vmatprep.subr.mxu0 0.0
        %1296 = vmatpush1.msra.mxu0 0.0
        %1297 = vmatprep.subr.mxu0 0.0
        %1298 = vmatpush1.msra.mxu0 0.0
        %1299 = vmatprep.subr.mxu0 0.0
        %1300 = vmatpush1.msra.mxu0 0.0
        %1301 = vmatprep.subr.mxu0 0.0
        %1302 = vmatpush1.msra.mxu0 0.0
        %1303 = vmatprep.mubr.f32.mxu0 0.0
        %v1304 = vand.u32 %v1219, 4294901760
        %v1305 = vsub.f32 %v1219, %v1304
        %v1306 = vand.u32 %v1305, 4294901760
        %v1307 = vsub.f32 %v1305, %v1306
        %v1308 = vand.u32 %v1307, 4294901760
        %1309 = vmatmul.mubr.f32.gmra.mrb[0].mxu0 %v1308
        %v1310 = vpop.f32.mrb[0].mxu0
        %v1311 = vadd.f32 %v1216, %v1310
        %v1312 = vpop.f32.mrb[0].mxu0
        %v1313 = vadd.f32 %v1216, %v1312
        %1314 = vdwg.mxu0
        %v1315 = vand.u32 %v1192, 4294901760
        %v1316 = vsub.f32 %v1192, %v1315
        %v1317 = vand.u32 %v1316, 4294901760
        %v1318 = vsub.f32 %v1316, %v1317
        %v1319 = vand.u32 %v1318, 4294901760
        %1320 = vmatprep.subr.mxu0 %v1319
        %v1321 = vand.u32 %v1191, 4294901760
        %v1322 = vsub.f32 %v1191, %v1321
        %v1323 = vand.u32 %v1322, 4294901760
        %v1324 = vsub.f32 %v1322, %v1323
        %v1325 = vand.u32 %v1324, 4294901760
        %1326 = vmatpush1.msra.mxu0 %v1325
        %v1327 = vand.u32 %v1194, 4294901760
        %v1328 = vsub.f32 %v1194, %v1327
        %v1329 = vand.u32 %v1328, 4294901760
        %v1330 = vsub.f32 %v1328, %v1329
        %v1331 = vand.u32 %v1330, 4294901760
        %1332 = vmatprep.subr.mxu0 %v1331
        %v1333 = vand.u32 %v1193, 4294901760
        %v1334 = vsub.f32 %v1193, %v1333
        %v1335 = vand.u32 %v1334, 4294901760
        %v1336 = vsub.f32 %v1334, %v1335
        %v1337 = vand.u32 %v1336, 4294901760
        %1338 = vmatpush1.msra.mxu0 %v1337
        %v1339 = vand.u32 %v1196, 4294901760
        %v1340 = vsub.f32 %v1196, %v1339
        %v1341 = vand.u32 %v1340, 4294901760
        %v1342 = vsub.f32 %v1340, %v1341
        %v1343 = vand.u32 %v1342, 4294901760
        %1344 = vmatprep.subr.mxu0 %v1343
        %v1345 = vand.u32 %v1195, 4294901760
        %v1346 = vsub.f32 %v1195, %v1345
        %v1347 = vand.u32 %v1346, 4294901760
        %v1348 = vsub.f32 %v1346, %v1347
        %v1349 = vand.u32 %v1348, 4294901760
        %1350 = vmatpush1.msra.mxu0 %v1349
        %v1351 = vand.u32 %v1198, 4294901760
        %v1352 = vsub.f32 %v1198, %v1351
        %v1353 = vand.u32 %v1352, 4294901760
        %v1354 = vsub.f32 %v1352, %v1353
        %v1355 = vand.u32 %v1354, 4294901760
        %1356 = vmatprep.subr.mxu0 %v1355
        %v1357 = vand.u32 %v1197, 4294901760
        %v1358 = vsub.f32 %v1197, %v1357
        %v1359 = vand.u32 %v1358, 4294901760
        %v1360 = vsub.f32 %v1358, %v1359
        %v1361 = vand.u32 %v1360, 4294901760
        %1362 = vmatpush1.msra.mxu0 %v1361
        %v1363 = vand.u32 %v1200, 4294901760
        %v1364 = vsub.f32 %v1200, %v1363
        %v1365 = vand.u32 %v1364, 4294901760
        %v1366 = vsub.f32 %v1364, %v1365
        %v1367 = vand.u32 %v1366, 4294901760
        %1368 = vmatprep.subr.mxu0 %v1367
        %v1369 = vand.u32 %v1199, 4294901760
        %v1370 = vsub.f32 %v1199, %v1369
        %v1371 = vand.u32 %v1370, 4294901760
        %v1372 = vsub.f32 %v1370, %v1371
        %v1373 = vand.u32 %v1372, 4294901760
        %1374 = vmatpush1.msra.mxu0 %v1373
        %v1375 = vand.u32 %v1202, 4294901760
        %v1376 = vsub.f32 %v1202, %v1375
        %v1377 = vand.u32 %v1376, 4294901760
        %v1378 = vsub.f32 %v1376, %v1377
        %v1379 = vand.u32 %v1378, 4294901760
        %1380 = vmatprep.subr.mxu0 %v1379
        %v1381 = vand.u32 %v1201, 4294901760
        %v1382 = vsub.f32 %v1201, %v1381
        %v1383 = vand.u32 %v1382, 4294901760
        %v1384 = vsub.f32 %v1382, %v1383
        %v1385 = vand.u32 %v1384, 4294901760
        %1386 = vmatpush1.msra.mxu0 %v1385
        %v1387 = vand.u32 %v1204, 4294901760
        %v1388 = vsub.f32 %v1204, %v1387
        %v1389 = vand.u32 %v1388, 4294901760
        %v1390 = vsub.f32 %v1388, %v1389
        %v1391 = vand.u32 %v1390, 4294901760
        %1392 = vmatprep.subr.mxu0 %v1391
        %v1393 = vand.u32 %v1203, 4294901760
        %v1394 = vsub.f32 %v1203, %v1393
        %v1395 = vand.u32 %v1394, 4294901760
        %v1396 = vsub.f32 %v1394, %v1395
        %v1397 = vand.u32 %v1396, 4294901760
        %1398 = vmatpush1.msra.mxu0 %v1397
        %v1399 = vand.u32 %v1206, 4294901760
        %v1400 = vsub.f32 %v1206, %v1399
        %v1401 = vand.u32 %v1400, 4294901760
        %v1402 = vsub.f32 %v1400, %v1401
        %v1403 = vand.u32 %v1402, 4294901760
        %1404 = vmatprep.subr.mxu0 %v1403
        %v1405 = vand.u32 %v1205, 4294901760
        %v1406 = vsub.f32 %v1205, %v1405
        %v1407 = vand.u32 %v1406, 4294901760
        %v1408 = vsub.f32 %v1406, %v1407
        %v1409 = vand.u32 %v1408, 4294901760
        %1410 = vmatpush1.msra.mxu0 %v1409
        %v1411 = vand.u32 %v1208, 4294901760
        %v1412 = vsub.f32 %v1208, %v1411
        %v1413 = vand.u32 %v1412, 4294901760
        %v1414 = vsub.f32 %v1412, %v1413
        %v1415 = vand.u32 %v1414, 4294901760
        %1416 = vmatprep.subr.mxu0 %v1415
        %v1417 = vand.u32 %v1207, 4294901760
        %v1418 = vsub.f32 %v1207, %v1417
        %v1419 = vand.u32 %v1418, 4294901760
        %v1420 = vsub.f32 %v1418, %v1419
        %v1421 = vand.u32 %v1420, 4294901760
        %1422 = vmatpush1.msra.mxu0 %v1421
        %1423 = vmatprep.subr.mxu0 0.0
        %1424 = vmatpush1.msra.mxu0 0.0
        %1425 = vmatprep.subr.mxu0 0.0
        %1426 = vmatpush1.msra.mxu0 0.0
        %1427 = vmatprep.subr.mxu0 0.0
        %1428 = vmatpush1.msra.mxu0 0.0
        %1429 = vmatprep.subr.mxu0 0.0
        %1430 = vmatpush1.msra.mxu0 0.0
        %1431 = vmatprep.subr.mxu0 0.0
        %1432 = vmatpush1.msra.mxu0 0.0
        %1433 = vmatprep.subr.mxu0 0.0
        %1434 = vmatpush1.msra.mxu0 0.0
        %1435 = vmatprep.subr.mxu0 0.0
        %1436 = vmatpush1.msra.mxu0 0.0
        %1437 = vmatprep.subr.mxu0 0.0
        %1438 = vmatpush1.msra.mxu0 0.0
        %1439 = vmatprep.subr.mxu0 0.0
        %1440 = vmatpush1.msra.mxu0 0.0
        %1441 = vmatprep.subr.mxu0 0.0
        %1442 = vmatpush1.msra.mxu0 0.0
        %1443 = vmatprep.subr.mxu0 0.0
        %1444 = vmatpush1.msra.mxu0 0.0
        %1445 = vmatprep.subr.mxu0 0.0
        %1446 = vmatpush1.msra.mxu0 0.0
        %1447 = vmatprep.subr.mxu0 0.0
        %1448 = vmatpush1.msra.mxu0 0.0
        %1449 = vmatprep.subr.mxu0 0.0
        %1450 = vmatpush1.msra.mxu0 0.0
        %1451 = vmatprep.subr.mxu0 0.0
        %1452 = vmatpush1.msra.mxu0 0.0
        %1453 = vmatprep.subr.mxu0 0.0
        %1454 = vmatpush1.msra.mxu0 0.0
        %1455 = vmatprep.subr.mxu0 0.0
        %1456 = vmatpush1.msra.mxu0 0.0
        %1457 = vmatprep.subr.mxu0 0.0
        %1458 = vmatpush1.msra.mxu0 0.0
        %1459 = vmatprep.subr.mxu0 0.0
        %1460 = vmatpush1.msra.mxu0 0.0
        %1461 = vmatprep.subr.mxu0 0.0
        %1462 = vmatpush1.msra.mxu0 0.0
        %1463 = vmatprep.subr.mxu0 0.0
        %1464 = vmatpush1.msra.mxu0 0.0
        %1465 = vmatprep.subr.mxu0 0.0
        %1466 = vmatpush1.msra.mxu0 0.0
        %1467 = vmatprep.subr.mxu0 0.0
        %1468 = vmatpush1.msra.mxu0 0.0
        %1469 = vmatprep.mubr.f32.mxu0 0.0
        %v1470 = vand.u32 %v1219, 4294901760
        %1471 = vmatmul.mubr.f32.gmra.mrb[0].mxu0 %v1470
        %v1472 = vpop.f32.mrb[0].mxu0
        %v1473 = vadd.f32 %v1311, %v1472
        %v1474 = vpop.f32.mrb[0].mxu0
        %v1475 = vadd.f32 %v1313, %v1474
        %1476 = vdwg.mxu0
        %v1477 = vand.u32 %v1192, 4294901760
        %v1478 = vsub.f32 %v1192, %v1477
        %1479 = vmatprep.subr.mxu0 %v1478
        %v1480 = vand.u32 %v1191, 4294901760
        %v1481 = vsub.f32 %v1191, %v1480
        %1482 = vmatpush1.msra.mxu0 %v1481
        %v1483 = vand.u32 %v1194, 4294901760
        %v1484 = vsub.f32 %v1194, %v1483
        %1485 = vmatprep.subr.mxu0 %v1484
        %v1486 = vand.u32 %v1193, 4294901760
        %v1487 = vsub.f32 %v1193, %v1486
        %1488 = vmatpush1.msra.mxu0 %v1487
        %v1489 = vand.u32 %v1196, 4294901760
        %v1490 = vsub.f32 %v1196, %v1489
        %1491 = vmatprep.subr.mxu0 %v1490
        %v1492 = vand.u32 %v1195, 4294901760
        %v1493 = vsub.f32 %v1195, %v1492
        %1494 = vmatpush1.msra.mxu0 %v1493
        %v1495 = vand.u32 %v1198, 4294901760
        %v1496 = vsub.f32 %v1198, %v1495
        %1497 = vmatprep.subr.mxu0 %v1496
        %v1498 = vand.u32 %v1197, 4294901760
        %v1499 = vsub.f32 %v1197, %v1498
        %1500 = vmatpush1.msra.mxu0 %v1499
        %v1501 = vand.u32 %v1200, 4294901760
        %v1502 = vsub.f32 %v1200, %v1501
        %1503 = vmatprep.subr.mxu0 %v1502
        %v1504 = vand.u32 %v1199, 4294901760
        %v1505 = vsub.f32 %v1199, %v1504
        %1506 = vmatpush1.msra.mxu0 %v1505
        %v1507 = vand.u32 %v1202, 4294901760
        %v1508 = vsub.f32 %v1202, %v1507
        %1509 = vmatprep.subr.mxu0 %v1508
        %v1510 = vand.u32 %v1201, 4294901760
        %v1511 = vsub.f32 %v1201, %v1510
        %1512 = vmatpush1.msra.mxu0 %v1511
        %v1513 = vand.u32 %v1204, 4294901760
        %v1514 = vsub.f32 %v1204, %v1513
        %1515 = vmatprep.subr.mxu0 %v1514
        %v1516 = vand.u32 %v1203, 4294901760
        %v1517 = vsub.f32 %v1203, %v1516
        %1518 = vmatpush1.msra.mxu0 %v1517
        %v1519 = vand.u32 %v1206, 4294901760
        %v1520 = vsub.f32 %v1206, %v1519
        %1521 = vmatprep.subr.mxu0 %v1520
        %v1522 = vand.u32 %v1205, 4294901760
        %v1523 = vsub.f32 %v1205, %v1522
        %1524 = vmatpush1.msra.mxu0 %v1523
        %v1525 = vand.u32 %v1208, 4294901760
        %v1526 = vsub.f32 %v1208, %v1525
        %1527 = vmatprep.subr.mxu0 %v1526
        %v1528 = vand.u32 %v1207, 4294901760
        %v1529 = vsub.f32 %v1207, %v1528
        %1530 = vmatpush1.msra.mxu0 %v1529
        %1531 = vmatprep.subr.mxu0 0.0
        %1532 = vmatpush1.msra.mxu0 0.0
        %1533 = vmatprep.subr.mxu0 0.0
        %1534 = vmatpush1.msra.mxu0 0.0
        %1535 = vmatprep.subr.mxu0 0.0
        %1536 = vmatpush1.msra.mxu0 0.0
        %1537 = vmatprep.subr.mxu0 0.0
        %1538 = vmatpush1.msra.mxu0 0.0
        %1539 = vmatprep.subr.mxu0 0.0
        %1540 = vmatpush1.msra.mxu0 0.0
        %1541 = vmatprep.subr.mxu0 0.0
        %1542 = vmatpush1.msra.mxu0 0.0
        %1543 = vmatprep.subr.mxu0 0.0
        %1544 = vmatpush1.msra.mxu0 0.0
        %1545 = vmatprep.subr.mxu0 0.0
        %1546 = vmatpush1.msra.mxu0 0.0
        %1547 = vmatprep.subr.mxu0 0.0
        %1548 = vmatpush1.msra.mxu0 0.0
        %1549 = vmatprep.subr.mxu0 0.0
        %1550 = vmatpush1.msra.mxu0 0.0
        %1551 = vmatprep.subr.mxu0 0.0
        %1552 = vmatpush1.msra.mxu0 0.0
        %1553 = vmatprep.subr.mxu0 0.0
        %1554 = vmatpush1.msra.mxu0 0.0
        %1555 = vmatprep.subr.mxu0 0.0
        %1556 = vmatpush1.msra.mxu0 0.0
        %1557 = vmatprep.subr.mxu0 0.0
        %1558 = vmatpush1.msra.mxu0 0.0
        %1559 = vmatprep.subr.mxu0 0.0
        %1560 = vmatpush1.msra.mxu0 0.0
        %1561 = vmatprep.subr.mxu0 0.0
        %1562 = vmatpush1.msra.mxu0 0.0
        %1563 = vmatprep.subr.mxu0 0.0
        %1564 = vmatpush1.msra.mxu0 0.0
        %1565 = vmatprep.subr.mxu0 0.0
        %1566 = vmatpush1.msra.mxu0 0.0
        %1567 = vmatprep.subr.mxu0 0.0
        %1568 = vmatpush1.msra.mxu0 0.0
        %1569 = vmatprep.subr.mxu0 0.0
        %1570 = vmatpush1.msra.mxu0 0.0
        %1571 = vmatprep.subr.mxu0 0.0
        %1572 = vmatpush1.msra.mxu0 0.0
        %1573 = vmatprep.subr.mxu0 0.0
        %1574 = vmatpush1.msra.mxu0 0.0
        %1575 = vmatprep.subr.mxu0 0.0
        %1576 = vmatpush1.msra.mxu0 0.0
        %1577 = vmatprep.mubr.f32.mxu0 0.0
        %v1578 = vand.u32 %v1219, 4294901760
        %v1579 = vsub.f32 %v1219, %v1578
        %1580 = vmatmul.mubr.f32.gmra.mrb[0].mxu0 %v1579
        %v1581 = vpop.f32.mrb[0].mxu0
        %v1582 = vadd.f32 %v1473, %v1581
        %v1583 = vpop.f32.mrb[0].mxu0
        %v1584 = vadd.f32 %v1475, %v1583
        %1585 = vdwg.mxu0
        %v1586 = vand.u32 %v1192, 4294901760
        %1587 = vmatprep.subr.mxu0 %v1586
        %v1588 = vand.u32 %v1191, 4294901760
        %1589 = vmatpush1.msra.mxu0 %v1588
        %v1590 = vand.u32 %v1194, 4294901760
        %1591 = vmatprep.subr.mxu0 %v1590
        %v1592 = vand.u32 %v1193, 4294901760
        %1593 = vmatpush1.msra.mxu0 %v1592
        %v1594 = vand.u32 %v1196, 4294901760
        %1595 = vmatprep.subr.mxu0 %v1594
        %v1596 = vand.u32 %v1195, 4294901760
        %1597 = vmatpush1.msra.mxu0 %v1596
        %v1598 = vand.u32 %v1198, 4294901760
        %1599 = vmatprep.subr.mxu0 %v1598
        %v1600 = vand.u32 %v1197, 4294901760
        %1601 = vmatpush1.msra.mxu0 %v1600
        %v1602 = vand.u32 %v1200, 4294901760
        %1603 = vmatprep.subr.mxu0 %v1602
        %v1604 = vand.u32 %v1199, 4294901760
        %1605 = vmatpush1.msra.mxu0 %v1604
        %v1606 = vand.u32 %v1202, 4294901760
        %1607 = vmatprep.subr.mxu0 %v1606
        %v1608 = vand.u32 %v1201, 4294901760
        %1609 = vmatpush1.msra.mxu0 %v1608
        %v1610 = vand.u32 %v1204, 4294901760
        %1611 = vmatprep.subr.mxu0 %v1610
        %v1612 = vand.u32 %v1203, 4294901760
        %1613 = vmatpush1.msra.mxu0 %v1612
        %v1614 = vand.u32 %v1206, 4294901760
        %1615 = vmatprep.subr.mxu0 %v1614
        %v1616 = vand.u32 %v1205, 4294901760
        %1617 = vmatpush1.msra.mxu0 %v1616
        %v1618 = vand.u32 %v1208, 4294901760
        %1619 = vmatprep.subr.mxu0 %v1618
        %v1620 = vand.u32 %v1207, 4294901760
        %1621 = vmatpush1.msra.mxu0 %v1620
        %1622 = vmatprep.subr.mxu0 0.0
        %1623 = vmatpush1.msra.mxu0 0.0
        %1624 = vmatprep.subr.mxu0 0.0
        %1625 = vmatpush1.msra.mxu0 0.0
        %1626 = vmatprep.subr.mxu0 0.0
        %1627 = vmatpush1.msra.mxu0 0.0
        %1628 = vmatprep.subr.mxu0 0.0
        %1629 = vmatpush1.msra.mxu0 0.0
        %1630 = vmatprep.subr.mxu0 0.0
        %1631 = vmatpush1.msra.mxu0 0.0
        %1632 = vmatprep.subr.mxu0 0.0
        %1633 = vmatpush1.msra.mxu0 0.0
        %1634 = vmatprep.subr.mxu0 0.0
        %1635 = vmatpush1.msra.mxu0 0.0
        %1636 = vmatprep.subr.mxu0 0.0
        %1637 = vmatpush1.msra.mxu0 0.0
        %1638 = vmatprep.subr.mxu0 0.0
        %1639 = vmatpush1.msra.mxu0 0.0
        %1640 = vmatprep.subr.mxu0 0.0
        %1641 = vmatpush1.msra.mxu0 0.0
        %1642 = vmatprep.subr.mxu0 0.0
        %1643 = vmatpush1.msra.mxu0 0.0
        %1644 = vmatprep.subr.mxu0 0.0
        %1645 = vmatpush1.msra.mxu0 0.0
        %1646 = vmatprep.subr.mxu0 0.0
        %1647 = vmatpush1.msra.mxu0 0.0
        %1648 = vmatprep.subr.mxu0 0.0
        %1649 = vmatpush1.msra.mxu0 0.0
        %1650 = vmatprep.subr.mxu0 0.0
        %1651 = vmatpush1.msra.mxu0 0.0
        %1652 = vmatprep.subr.mxu0 0.0
        %1653 = vmatpush1.msra.mxu0 0.0
        %1654 = vmatprep.subr.mxu0 0.0
        %1655 = vmatpush1.msra.mxu0 0.0
        %1656 = vmatprep.subr.mxu0 0.0
        %1657 = vmatpush1.msra.mxu0 0.0
        %1658 = vmatprep.subr.mxu0 0.0
        %1659 = vmatpush1.msra.mxu0 0.0
        %1660 = vmatprep.subr.mxu0 0.0
        %1661 = vmatpush1.msra.mxu0 0.0
        %1662 = vmatprep.subr.mxu0 0.0
        %1663 = vmatpush1.msra.mxu0 0.0
        %1664 = vmatprep.subr.mxu0 0.0
        %1665 = vmatpush1.msra.mxu0 0.0
        %1666 = vmatprep.subr.mxu0 0.0
        %1667 = vmatpush1.msra.mxu0 0.0
        %1668 = vmatprep.mubr.f32.mxu0 0.0
        %v1669 = vand.u32 %v1219, 4294901760
        %v1670 = vsub.f32 %v1219, %v1669
        %v1671 = vand.u32 %v1670, 4294901760
        %1672 = vmatmul.mubr.f32.gmra.mrb[0].mxu0 %v1671
        %v1673 = vpop.f32.mrb[0].mxu0
        %v1674 = vadd.f32 %v1582, %v1673
        %v1675 = vpop.f32.mrb[0].mxu0
        %v1676 = vadd.f32 %v1584, %v1675
        %1677 = vdwg.mxu0
        %v1678 = vand.u32 %v1192, 4294901760
        %v1679 = vsub.f32 %v1192, %v1678
        %v1680 = vand.u32 %v1679, 4294901760
        %1681 = vmatprep.subr.mxu0 %v1680
        %v1682 = vand.u32 %v1191, 4294901760
        %v1683 = vsub.f32 %v1191, %v1682
        %v1684 = vand.u32 %v1683, 4294901760
        %1685 = vmatpush1.msra.mxu0 %v1684
        %v1686 = vand.u32 %v1194, 4294901760
        %v1687 = vsub.f32 %v1194, %v1686
        %v1688 = vand.u32 %v1687, 4294901760
        %1689 = vmatprep.subr.mxu0 %v1688
        %v1690 = vand.u32 %v1193, 4294901760
        %v1691 = vsub.f32 %v1193, %v1690
        %v1692 = vand.u32 %v1691, 4294901760
        %1693 = vmatpush1.msra.mxu0 %v1692
        %v1694 = vand.u32 %v1196, 4294901760
        %v1695 = vsub.f32 %v1196, %v1694
        %v1696 = vand.u32 %v1695, 4294901760
        %1697 = vmatprep.subr.mxu0 %v1696
        %v1698 = vand.u32 %v1195, 4294901760
        %v1699 = vsub.f32 %v1195, %v1698
        %v1700 = vand.u32 %v1699, 4294901760
        %1701 = vmatpush1.msra.mxu0 %v1700
        %v1702 = vand.u32 %v1198, 4294901760
        %v1703 = vsub.f32 %v1198, %v1702
        %v1704 = vand.u32 %v1703, 4294901760
        %1705 = vmatprep.subr.mxu0 %v1704
        %v1706 = vand.u32 %v1197, 4294901760
        %v1707 = vsub.f32 %v1197, %v1706
        %v1708 = vand.u32 %v1707, 4294901760
        %1709 = vmatpush1.msra.mxu0 %v1708
        %v1710 = vand.u32 %v1200, 4294901760
        %v1711 = vsub.f32 %v1200, %v1710
        %v1712 = vand.u32 %v1711, 4294901760
        %1713 = vmatprep.subr.mxu0 %v1712
        %v1714 = vand.u32 %v1199, 4294901760
        %v1715 = vsub.f32 %v1199, %v1714
        %v1716 = vand.u32 %v1715, 4294901760
        %1717 = vmatpush1.msra.mxu0 %v1716
        %v1718 = vand.u32 %v1202, 4294901760
        %v1719 = vsub.f32 %v1202, %v1718
        %v1720 = vand.u32 %v1719, 4294901760
        %1721 = vmatprep.subr.mxu0 %v1720
        %v1722 = vand.u32 %v1201, 4294901760
        %v1723 = vsub.f32 %v1201, %v1722
        %v1724 = vand.u32 %v1723, 4294901760
        %1725 = vmatpush1.msra.mxu0 %v1724
        %v1726 = vand.u32 %v1204, 4294901760
        %v1727 = vsub.f32 %v1204, %v1726
        %v1728 = vand.u32 %v1727, 4294901760
        %1729 = vmatprep.subr.mxu0 %v1728
        %v1730 = vand.u32 %v1203, 4294901760
        %v1731 = vsub.f32 %v1203, %v1730
        %v1732 = vand.u32 %v1731, 4294901760
        %1733 = vmatpush1.msra.mxu0 %v1732
        %v1734 = vand.u32 %v1206, 4294901760
        %v1735 = vsub.f32 %v1206, %v1734
        %v1736 = vand.u32 %v1735, 4294901760
        %1737 = vmatprep.subr.mxu0 %v1736
        %v1738 = vand.u32 %v1205, 4294901760
        %v1739 = vsub.f32 %v1205, %v1738
        %v1740 = vand.u32 %v1739, 4294901760
        %1741 = vmatpush1.msra.mxu0 %v1740
        %v1742 = vand.u32 %v1208, 4294901760
        %v1743 = vsub.f32 %v1208, %v1742
        %v1744 = vand.u32 %v1743, 4294901760
        %1745 = vmatprep.subr.mxu0 %v1744
        %v1746 = vand.u32 %v1207, 4294901760
        %v1747 = vsub.f32 %v1207, %v1746
        %v1748 = vand.u32 %v1747, 4294901760
        %1749 = vmatpush1.msra.mxu0 %v1748
        %1750 = vmatprep.subr.mxu0 0.0
        %1751 = vmatpush1.msra.mxu0 0.0
        %1752 = vmatprep.subr.mxu0 0.0
        %1753 = vmatpush1.msra.mxu0 0.0
        %1754 = vmatprep.subr.mxu0 0.0
        %1755 = vmatpush1.msra.mxu0 0.0
        %1756 = vmatprep.subr.mxu0 0.0
        %1757 = vmatpush1.msra.mxu0 0.0
        %1758 = vmatprep.subr.mxu0 0.0
        %1759 = vmatpush1.msra.mxu0 0.0
        %1760 = vmatprep.subr.mxu0 0.0
        %1761 = vmatpush1.msra.mxu0 0.0
        %1762 = vmatprep.subr.mxu0 0.0
        %1763 = vmatpush1.msra.mxu0 0.0
        %1764 = vmatprep.subr.mxu0 0.0
        %1765 = vmatpush1.msra.mxu0 0.0
        %1766 = vmatprep.subr.mxu0 0.0
        %1767 = vmatpush1.msra.mxu0 0.0
        %1768 = vmatprep.subr.mxu0 0.0
        %1769 = vmatpush1.msra.mxu0 0.0
        %1770 = vmatprep.subr.mxu0 0.0
        %1771 = vmatpush1.msra.mxu0 0.0
        %1772 = vmatprep.subr.mxu0 0.0
        %1773 = vmatpush1.msra.mxu0 0.0
        %1774 = vmatprep.subr.mxu0 0.0
        %1775 = vmatpush1.msra.mxu0 0.0
        %1776 = vmatprep.subr.mxu0 0.0
        %1777 = vmatpush1.msra.mxu0 0.0
        %1778 = vmatprep.subr.mxu0 0.0
        %1779 = vmatpush1.msra.mxu0 0.0
        %1780 = vmatprep.subr.mxu0 0.0
        %1781 = vmatpush1.msra.mxu0 0.0
        %1782 = vmatprep.subr.mxu0 0.0
        %1783 = vmatpush1.msra.mxu0 0.0
        %1784 = vmatprep.subr.mxu0 0.0
        %1785 = vmatpush1.msra.mxu0 0.0
        %1786 = vmatprep.subr.mxu0 0.0
        %1787 = vmatpush1.msra.mxu0 0.0
        %1788 = vmatprep.subr.mxu0 0.0
        %1789 = vmatpush1.msra.mxu0 0.0
        %1790 = vmatprep.subr.mxu0 0.0
        %1791 = vmatpush1.msra.mxu0 0.0
        %1792 = vmatprep.subr.mxu0 0.0
        %1793 = vmatpush1.msra.mxu0 0.0
        %1794 = vmatprep.subr.mxu0 0.0
        %1795 = vmatpush1.msra.mxu0 0.0
        %1796 = vmatprep.mubr.f32.mxu0 0.0
        %v1797 = vand.u32 %v1219, 4294901760
        %1798 = vmatmul.mubr.f32.gmra.mrb[0].mxu0 %v1797
        %v1799 = vpop.f32.mrb[0].mxu0
        %v1800 = vadd.f32 %v1674, %v1799
        %v1801 = vpop.f32.mrb[0].mxu0
        %v1802 = vadd.f32 %v1676, %v1801
        %1803 = vdwg.mxu0
        %v1804 = vand.u32 %v1192, 4294901760
        %1805 = vmatprep.subr.mxu0 %v1804
        %v1806 = vand.u32 %v1191, 4294901760
        %1807 = vmatpush1.msra.mxu0 %v1806
        %v1808 = vand.u32 %v1194, 4294901760
        %1809 = vmatprep.subr.mxu0 %v1808
        %v1810 = vand.u32 %v1193, 4294901760
        %1811 = vmatpush1.msra.mxu0 %v1810
        %v1812 = vand.u32 %v1196, 4294901760
        %1813 = vmatprep.subr.mxu0 %v1812
        %v1814 = vand.u32 %v1195, 4294901760
        %1815 = vmatpush1.msra.mxu0 %v1814
        %v1816 = vand.u32 %v1198, 4294901760
        %1817 = vmatprep.subr.mxu0 %v1816
        %v1818 = vand.u32 %v1197, 4294901760
        %1819 = vmatpush1.msra.mxu0 %v1818
        %v1820 = vand.u32 %v1200, 4294901760
        %1821 = vmatprep.subr.mxu0 %v1820
        %v1822 = vand.u32 %v1199, 4294901760
        %1823 = vmatpush1.msra.mxu0 %v1822
        %v1824 = vand.u32 %v1202, 4294901760
        %1825 = vmatprep.subr.mxu0 %v1824
        %v1826 = vand.u32 %v1201, 4294901760
        %1827 = vmatpush1.msra.mxu0 %v1826
        %v1828 = vand.u32 %v1204, 4294901760
        %1829 = vmatprep.subr.mxu0 %v1828
        %v1830 = vand.u32 %v1203, 4294901760
        %1831 = vmatpush1.msra.mxu0 %v1830
        %v1832 = vand.u32 %v1206, 4294901760
        %1833 = vmatprep.subr.mxu0 %v1832
        %v1834 = vand.u32 %v1205, 4294901760
        %1835 = vmatpush1.msra.mxu0 %v1834
        %v1836 = vand.u32 %v1208, 4294901760
        %1837 = vmatprep.subr.mxu0 %v1836
        %v1838 = vand.u32 %v1207, 4294901760
        %1839 = vmatpush1.msra.mxu0 %v1838
        %1840 = vmatprep.subr.mxu0 0.0
        %1841 = vmatpush1.msra.mxu0 0.0
        %1842 = vmatprep.subr.mxu0 0.0
        %1843 = vmatpush1.msra.mxu0 0.0
        %1844 = vmatprep.subr.mxu0 0.0
        %1845 = vmatpush1.msra.mxu0 0.0
        %1846 = vmatprep.subr.mxu0 0.0
        %1847 = vmatpush1.msra.mxu0 0.0
        %1848 = vmatprep.subr.mxu0 0.0
        %1849 = vmatpush1.msra.mxu0 0.0
        %1850 = vmatprep.subr.mxu0 0.0
        %1851 = vmatpush1.msra.mxu0 0.0
        %1852 = vmatprep.subr.mxu0 0.0
        %1853 = vmatpush1.msra.mxu0 0.0
        %1854 = vmatprep.subr.mxu0 0.0
        %1855 = vmatpush1.msra.mxu0 0.0
        %1856 = vmatprep.subr.mxu0 0.0
        %1857 = vmatpush1.msra.mxu0 0.0
        %1858 = vmatprep.subr.mxu0 0.0
        %1859 = vmatpush1.msra.mxu0 0.0
        %1860 = vmatprep.subr.mxu0 0.0
        %1861 = vmatpush1.msra.mxu0 0.0
        %1862 = vmatprep.subr.mxu0 0.0
        %1863 = vmatpush1.msra.mxu0 0.0
        %1864 = vmatprep.subr.mxu0 0.0
        %1865 = vmatpush1.msra.mxu0 0.0
        %1866 = vmatprep.subr.mxu0 0.0
        %1867 = vmatpush1.msra.mxu0 0.0
        %1868 = vmatprep.subr.mxu0 0.0
        %1869 = vmatpush1.msra.mxu0 0.0
        %1870 = vmatprep.subr.mxu0 0.0
        %1871 = vmatpush1.msra.mxu0 0.0
        %1872 = vmatprep.subr.mxu0 0.0
        %1873 = vmatpush1.msra.mxu0 0.0
        %1874 = vmatprep.subr.mxu0 0.0
        %1875 = vmatpush1.msra.mxu0 0.0
        %1876 = vmatprep.subr.mxu0 0.0
        %1877 = vmatpush1.msra.mxu0 0.0
        %1878 = vmatprep.subr.mxu0 0.0
        %1879 = vmatpush1.msra.mxu0 0.0
        %1880 = vmatprep.subr.mxu0 0.0
        %1881 = vmatpush1.msra.mxu0 0.0
        %1882 = vmatprep.subr.mxu0 0.0
        %1883 = vmatpush1.msra.mxu0 0.0
        %1884 = vmatprep.subr.mxu0 0.0
        %1885 = vmatpush1.msra.mxu0 0.0
        %1886 = vmatprep.mubr.f32.mxu0 0.0
        %v1887 = vand.u32 %v1219, 4294901760
        %1888 = vmatmul.mubr.f32.gmra.mrb[0].mxu0 %v1887
        %v1889 = vpop.f32.mrb[0].mxu0
        %v1890 = vadd.f32 %v1800, %v1889
        %v1891 = vpop.f32.mrb[0].mxu0
        %v1892 = vadd.f32 %v1802, %v1891
        %1893 = vdwg.mxu0
        %v1894 = vmax.f32 %v1890, 0.0
        %v1895 = vmax.f32 %v1892, 0.0
        %1896 = vrot.lane.b32.xlu0 %v1894, 17
        %v1897 = vpop.permute.xlu0 %1896
        %1898 = vrot.lane.b32.xlu0 %v1895, 17
        %v1899 = vpop.permute.xlu0 %1898
        %v1900 = vsel %vm387, %v1897, %v1899
        %v1901 = vsel %vm387, %v1899, %v1897
        %1902 = vrot.lane.b32.xlu0 %v1894, 16
        %v1903 = vpop.permute.xlu0 %1902
        %1904 = vrot.lane.b32.xlu0 %v1895, 16
        %v1905 = vpop.permute.xlu0 %1904
        %v1906 = vsel %vm394, %v1903, %v1905
        %v1907 = vsel %vm394, %v1905, %v1903
        %1908 = vrot.lane.b32.xlu0 %v1894, 15
        %v1909 = vpop.permute.xlu0 %1908
        %1910 = vrot.lane.b32.xlu0 %v1895, 15
        %v1911 = vpop.permute.xlu0 %1910
        %v1912 = vsel %vm401, %v1909, %v1911
        %v1913 = vsel %vm401, %v1911, %v1909
        %1914 = vrot.lane.b32.xlu0 %v1894, 1
        %v1915 = vpop.permute.xlu0 %1914
        %1916 = vrot.lane.b32.xlu0 %v1895, 1
        %v1917 = vpop.permute.xlu0 %1916
        %v1918 = vsel %vm408, %v1915, %v1917
        %v1919 = vsel %vm408, %v1917, %v1915
        %1920 = vrot.lane.b32.xlu0 %v1894, 127
        %v1921 = vpop.permute.xlu0 %1920
        %1922 = vrot.lane.b32.xlu0 %v1895, 127
        %v1923 = vpop.permute.xlu0 %1922
        %v1924 = vsel %vm415, %v1921, %v1923
        %v1925 = vsel %vm415, %v1923, %v1921
        %1926 = vrot.lane.b32.xlu0 %v1894, 113
        %v1927 = vpop.permute.xlu0 %1926
        %1928 = vrot.lane.b32.xlu0 %v1895, 113
        %v1929 = vpop.permute.xlu0 %1928
        %v1930 = vsel %vm422, %v1927, %v1929
        %v1931 = vsel %vm422, %v1929, %v1927
        %1932 = vrot.lane.b32.xlu0 %v1894, 112
        %v1933 = vpop.permute.xlu0 %1932
        %1934 = vrot.lane.b32.xlu0 %v1895, 112
        %v1935 = vpop.permute.xlu0 %1934
        %v1936 = vsel %vm429, %v1933, %v1935
        %v1937 = vsel %vm429, %v1935, %v1933
        %1938 = vrot.lane.b32.xlu0 %v1894, 111
        %v1939 = vpop.permute.xlu0 %1938
        %1940 = vrot.lane.b32.xlu0 %v1895, 111
        %v1941 = vpop.permute.xlu0 %1940
        %v1942 = vsel %vm436, %v1939, %v1941
        %v1943 = vsel %vm436, %v1941, %v1939
        %v1944 = vmul.f32 %v1901, %v297
        %v1945 = vmul.f32 %v1900, %v298
        %v1946 = vmul.f32 %v1907, %v299
        %v1947 = vmul.f32 %v1906, %v300
        %v1948 = vmul.f32 %v1913, %v301
        %v1949 = vmul.f32 %v1912, %v302
        %v1950 = vmul.f32 %v1919, %v303
        %v1951 = vmul.f32 %v1918, %v304
        %v1952 = vmul.f32 %v1894, %v305
        %v1953 = vmul.f32 %v1895, %v306
        %v1954 = vmul.f32 %v1924, %v307
        %v1955 = vmul.f32 %v1925, %v308
        %v1956 = vmul.f32 %v1930, %v309
        %v1957 = vmul.f32 %v1931, %v310
        %v1958 = vmul.f32 %v1936, %v311
        %v1959 = vmul.f32 %v1937, %v312
        %v1960 = vmul.f32 %v1942, %v313
        %v1961 = vmul.f32 %v1943, %v314
        %s1962 = scalar_lea.vmem %s1, 16
        %v1963 = vld [vmem:[%s1962] sm:$0xff]
        %s1964 = scalar_lea.vmem %s2, 16
        %v1965 = vld [vmem:[%s1964] sm:$0xff]
        %1967 = vset.pattern.permute.xlu0 0
        %1968 = vperm.xlu0 %1967, %v1965
        %v1969 = vpop.permute.xlu0 %1968
        %v1972 = vsel %vm464, %v1963, 0
        %v1974 = vand.u32 %v1945, 4294901760
        %1975 = vmatprep.subr.mxu0 %v1974
        %v1976 = vand.u32 %v1944, 4294901760
        %1977 = vmatpush1.msra.mxu0 %v1976
        %v1978 = vand.u32 %v1947, 4294901760
        %1979 = vmatprep.subr.mxu0 %v1978
        %v1980 = vand.u32 %v1946, 4294901760
        %1981 = vmatpush1.msra.mxu0 %v1980
        %v1982 = vand.u32 %v1949, 4294901760
        %1983 = vmatprep.subr.mxu0 %v1982
        %v1984 = vand.u32 %v1948, 4294901760
        %1985 = vmatpush1.msra.mxu0 %v1984
        %v1986 = vand.u32 %v1951, 4294901760
        %1987 = vmatprep.subr.mxu0 %v1986
        %v1988 = vand.u32 %v1950, 4294901760
        %1989 = vmatpush1.msra.mxu0 %v1988
        %v1990 = vand.u32 %v1953, 4294901760
        %1991 = vmatprep.subr.mxu0 %v1990
        %v1992 = vand.u32 %v1952, 4294901760
        %1993 = vmatpush1.msra.mxu0 %v1992
        %v1994 = vand.u32 %v1955, 4294901760
        %1995 = vmatprep.subr.mxu0 %v1994
        %v1996 = vand.u32 %v1954, 4294901760
        %1997 = vmatpush1.msra.mxu0 %v1996
        %v1998 = vand.u32 %v1957, 4294901760
        %1999 = vmatprep.subr.mxu0 %v1998
        %v2000 = vand.u32 %v1956, 4294901760
        %2001 = vmatpush1.msra.mxu0 %v2000
        %v2002 = vand.u32 %v1959, 4294901760
        %2003 = vmatprep.subr.mxu0 %v2002
        %v2004 = vand.u32 %v1958, 4294901760
        %2005 = vmatpush1.msra.mxu0 %v2004
        %v2006 = vand.u32 %v1961, 4294901760
        %2007 = vmatprep.subr.mxu0 %v2006
        %v2008 = vand.u32 %v1960, 4294901760
        %2009 = vmatpush1.msra.mxu0 %v2008
        %2010 = vmatprep.subr.mxu0 0.0
        %2011 = vmatpush1.msra.mxu0 0.0
        %2012 = vmatprep.subr.mxu0 0.0
        %2013 = vmatpush1.msra.mxu0 0.0
        %2014 = vmatprep.subr.mxu0 0.0
        %2015 = vmatpush1.msra.mxu0 0.0
        %2016 = vmatprep.subr.mxu0 0.0
        %2017 = vmatpush1.msra.mxu0 0.0
        %2018 = vmatprep.subr.mxu0 0.0
        %2019 = vmatpush1.msra.mxu0 0.0
        %2020 = vmatprep.subr.mxu0 0.0
        %2021 = vmatpush1.msra.mxu0 0.0
        %2022 = vmatprep.subr.mxu0 0.0
        %2023 = vmatpush1.msra.mxu0 0.0
        %2024 = vmatprep.subr.mxu0 0.0
        %2025 = vmatpush1.msra.mxu0 0.0
        %2026 = vmatprep.subr.mxu0 0.0
        %2027 = vmatpush1.msra.mxu0 0.0
        %2028 = vmatprep.subr.mxu0 0.0
        %2029 = vmatpush1.msra.mxu0 0.0
        %2030 = vmatprep.subr.mxu0 0.0
        %2031 = vmatpush1.msra.mxu0 0.0
        %2032 = vmatprep.subr.mxu0 0.0
        %2033 = vmatpush1.msra.mxu0 0.0
        %2034 = vmatprep.subr.mxu0 0.0
        %2035 = vmatpush1.msra.mxu0 0.0
        %2036 = vmatprep.subr.mxu0 0.0
        %2037 = vmatpush1.msra.mxu0 0.0
        %2038 = vmatprep.subr.mxu0 0.0
        %2039 = vmatpush1.msra.mxu0 0.0
        %2040 = vmatprep.subr.mxu0 0.0
        %2041 = vmatpush1.msra.mxu0 0.0
        %2042 = vmatprep.subr.mxu0 0.0
        %2043 = vmatpush1.msra.mxu0 0.0
        %2044 = vmatprep.subr.mxu0 0.0
        %2045 = vmatpush1.msra.mxu0 0.0
        %2046 = vmatprep.subr.mxu0 0.0
        %2047 = vmatpush1.msra.mxu0 0.0
        %2048 = vmatprep.subr.mxu0 0.0
        %2049 = vmatpush1.msra.mxu0 0.0
        %2050 = vmatprep.subr.mxu0 0.0
        %2051 = vmatpush1.msra.mxu0 0.0
        %2052 = vmatprep.subr.mxu0 0.0
        %2053 = vmatpush1.msra.mxu0 0.0
        %2054 = vmatprep.subr.mxu0 0.0
        %2055 = vmatpush1.msra.mxu0 0.0
        %2056 = vmatprep.mubr.f32.mxu0 0.0
        %v2057 = vand.u32 %v1972, 4294901760
        %v2058 = vsub.f32 %v1972, %v2057
        %v2059 = vand.u32 %v2058, 4294901760
        %v2060 = vsub.f32 %v2058, %v2059
        %v2061 = vand.u32 %v2060, 4294901760
        %2062 = vmatmul.mubr.f32.gmra.mrb[0].mxu0 %v2061
        %v2063 = vpop.f32.mrb[0].mxu0
        %v2064 = vadd.f32 %v1969, %v2063
        %v2065 = vpop.f32.mrb[0].mxu0
        %v2066 = vadd.f32 %v1969, %v2065
        %2067 = vdwg.mxu0
        %v2068 = vand.u32 %v1945, 4294901760
        %v2069 = vsub.f32 %v1945, %v2068
        %v2070 = vand.u32 %v2069, 4294901760
        %v2071 = vsub.f32 %v2069, %v2070
        %v2072 = vand.u32 %v2071, 4294901760
        %2073 = vmatprep.subr.mxu0 %v2072
        %v2074 = vand.u32 %v1944, 4294901760
        %v2075 = vsub.f32 %v1944, %v2074
        %v2076 = vand.u32 %v2075, 4294901760
        %v2077 = vsub.f32 %v2075, %v2076
        %v2078 = vand.u32 %v2077, 4294901760
        %2079 = vmatpush1.msra.mxu0 %v2078
        %v2080 = vand.u32 %v1947, 4294901760
        %v2081 = vsub.f32 %v1947, %v2080
        %v2082 = vand.u32 %v2081, 4294901760
        %v2083 = vsub.f32 %v2081, %v2082
        %v2084 = vand.u32 %v2083, 4294901760
        %2085 = vmatprep.subr.mxu0 %v2084
        %v2086 = vand.u32 %v1946, 4294901760
        %v2087 = vsub.f32 %v1946, %v2086
        %v2088 = vand.u32 %v2087, 4294901760
        %v2089 = vsub.f32 %v2087, %v2088
        %v2090 = vand.u32 %v2089, 4294901760
        %2091 = vmatpush1.msra.mxu0 %v2090
        %v2092 = vand.u32 %v1949, 4294901760
        %v2093 = vsub.f32 %v1949, %v2092
        %v2094 = vand.u32 %v2093, 4294901760
        %v2095 = vsub.f32 %v2093, %v2094
        %v2096 = vand.u32 %v2095, 4294901760
        %2097 = vmatprep.subr.mxu0 %v2096
        %v2098 = vand.u32 %v1948, 4294901760
        %v2099 = vsub.f32 %v1948, %v2098
        %v2100 = vand.u32 %v2099, 4294901760
        %v2101 = vsub.f32 %v2099, %v2100
        %v2102 = vand.u32 %v2101, 4294901760
        %2103 = vmatpush1.msra.mxu0 %v2102
        %v2104 = vand.u32 %v1951, 4294901760
        %v2105 = vsub.f32 %v1951, %v2104
        %v2106 = vand.u32 %v2105, 4294901760
        %v2107 = vsub.f32 %v2105, %v2106
        %v2108 = vand.u32 %v2107, 4294901760
        %2109 = vmatprep.subr.mxu0 %v2108
        %v2110 = vand.u32 %v1950, 4294901760
        %v2111 = vsub.f32 %v1950, %v2110
        %v2112 = vand.u32 %v2111, 4294901760
        %v2113 = vsub.f32 %v2111, %v2112
        %v2114 = vand.u32 %v2113, 4294901760
        %2115 = vmatpush1.msra.mxu0 %v2114
        %v2116 = vand.u32 %v1953, 4294901760
        %v2117 = vsub.f32 %v1953, %v2116
        %v2118 = vand.u32 %v2117, 4294901760
        %v2119 = vsub.f32 %v2117, %v2118
        %v2120 = vand.u32 %v2119, 4294901760
        %2121 = vmatprep.subr.mxu0 %v2120
        %v2122 = vand.u32 %v1952, 4294901760
        %v2123 = vsub.f32 %v1952, %v2122
        %v2124 = vand.u32 %v2123, 4294901760
        %v2125 = vsub.f32 %v2123, %v2124
        %v2126 = vand.u32 %v2125, 4294901760
        %2127 = vmatpush1.msra.mxu0 %v2126
        %v2128 = vand.u32 %v1955, 4294901760
        %v2129 = vsub.f32 %v1955, %v2128
        %v2130 = vand.u32 %v2129, 4294901760
        %v2131 = vsub.f32 %v2129, %v2130
        %v2132 = vand.u32 %v2131, 4294901760
        %2133 = vmatprep.subr.mxu0 %v2132
        %v2134 = vand.u32 %v1954, 4294901760
        %v2135 = vsub.f32 %v1954, %v2134
        %v2136 = vand.u32 %v2135, 4294901760
        %v2137 = vsub.f32 %v2135, %v2136
        %v2138 = vand.u32 %v2137, 4294901760
        %2139 = vmatpush1.msra.mxu0 %v2138
        %v2140 = vand.u32 %v1957, 4294901760
        %v2141 = vsub.f32 %v1957, %v2140
        %v2142 = vand.u32 %v2141, 4294901760
        %v2143 = vsub.f32 %v2141, %v2142
        %v2144 = vand.u32 %v2143, 4294901760
        %2145 = vmatprep.subr.mxu0 %v2144
        %v2146 = vand.u32 %v1956, 4294901760
        %v2147 = vsub.f32 %v1956, %v2146
        %v2148 = vand.u32 %v2147, 4294901760
        %v2149 = vsub.f32 %v2147, %v2148
        %v2150 = vand.u32 %v2149, 4294901760
        %2151 = vmatpush1.msra.mxu0 %v2150
        %v2152 = vand.u32 %v1959, 4294901760
        %v2153 = vsub.f32 %v1959, %v2152
        %v2154 = vand.u32 %v2153, 4294901760
        %v2155 = vsub.f32 %v2153, %v2154
        %v2156 = vand.u32 %v2155, 4294901760
        %2157 = vmatprep.subr.mxu0 %v2156
        %v2158 = vand.u32 %v1958, 4294901760
        %v2159 = vsub.f32 %v1958, %v2158
        %v2160 = vand.u32 %v2159, 4294901760
        %v2161 = vsub.f32 %v2159, %v2160
        %v2162 = vand.u32 %v2161, 4294901760
        %2163 = vmatpush1.msra.mxu0 %v2162
        %v2164 = vand.u32 %v1961, 4294901760
        %v2165 = vsub.f32 %v1961, %v2164
        %v2166 = vand.u32 %v2165, 4294901760
        %v2167 = vsub.f32 %v2165, %v2166
        %v2168 = vand.u32 %v2167, 4294901760
        %2169 = vmatprep.subr.mxu0 %v2168
        %v2170 = vand.u32 %v1960, 4294901760
        %v2171 = vsub.f32 %v1960, %v2170
        %v2172 = vand.u32 %v2171, 4294901760
        %v2173 = vsub.f32 %v2171, %v2172
        %v2174 = vand.u32 %v2173, 4294901760
        %2175 = vmatpush1.msra.mxu0 %v2174
        %2176 = vmatprep.subr.mxu0 0.0
        %2177 = vmatpush1.msra.mxu0 0.0
        %2178 = vmatprep.subr.mxu0 0.0
        %2179 = vmatpush1.msra.mxu0 0.0
        %2180 = vmatprep.subr.mxu0 0.0
        %2181 = vmatpush1.msra.mxu0 0.0
        %2182 = vmatprep.subr.mxu0 0.0
        %2183 = vmatpush1.msra.mxu0 0.0
        %2184 = vmatprep.subr.mxu0 0.0
        %2185 = vmatpush1.msra.mxu0 0.0
        %2186 = vmatprep.subr.mxu0 0.0
        %2187 = vmatpush1.msra.mxu0 0.0
        %2188 = vmatprep.subr.mxu0 0.0
        %2189 = vmatpush1.msra.mxu0 0.0
        %2190 = vmatprep.subr.mxu0 0.0
        %2191 = vmatpush1.msra.mxu0 0.0
        %2192 = vmatprep.subr.mxu0 0.0
        %2193 = vmatpush1.msra.mxu0 0.0
        %2194 = vmatprep.subr.mxu0 0.0
        %2195 = vmatpush1.msra.mxu0 0.0
        %2196 = vmatprep.subr.mxu0 0.0
        %2197 = vmatpush1.msra.mxu0 0.0
        %2198 = vmatprep.subr.mxu0 0.0
        %2199 = vmatpush1.msra.mxu0 0.0
        %2200 = vmatprep.subr.mxu0 0.0
        %2201 = vmatpush1.msra.mxu0 0.0
        %2202 = vmatprep.subr.mxu0 0.0
        %2203 = vmatpush1.msra.mxu0 0.0
        %2204 = vmatprep.subr.mxu0 0.0
        %2205 = vmatpush1.msra.mxu0 0.0
        %2206 = vmatprep.subr.mxu0 0.0
        %2207 = vmatpush1.msra.mxu0 0.0
        %2208 = vmatprep.subr.mxu0 0.0
        %2209 = vmatpush1.msra.mxu0 0.0
        %2210 = vmatprep.subr.mxu0 0.0
        %2211 = vmatpush1.msra.mxu0 0.0
        %2212 = vmatprep.subr.mxu0 0.0
        %2213 = vmatpush1.msra.mxu0 0.0
        %2214 = vmatprep.subr.mxu0 0.0
        %2215 = vmatpush1.msra.mxu0 0.0
        %2216 = vmatprep.subr.mxu0 0.0
        %2217 = vmatpush1.msra.mxu0 0.0
        %2218 = vmatprep.subr.mxu0 0.0
        %2219 = vmatpush1.msra.mxu0 0.0
        %2220 = vmatprep.subr.mxu0 0.0
        %2221 = vmatpush1.msra.mxu0 0.0
        %2222 = vmatprep.mubr.f32.mxu0 0.0
        %v2223 = vand.u32 %v1972, 4294901760
        %2224 = vmatmul.mubr.f32.gmra.mrb[0].mxu0 %v2223
        %v2225 = vpop.f32.mrb[0].mxu0
        %v2226 = vadd.f32 %v2064, %v2225
        %v2227 = vpop.f32.mrb[0].mxu0
        %v2228 = vadd.f32 %v2066, %v2227
        %2229 = vdwg.mxu0
        %v2230 = vand.u32 %v1945, 4294901760
        %v2231 = vsub.f32 %v1945, %v2230
        %2232 = vmatprep.subr.mxu0 %v2231
        %v2233 = vand.u32 %v1944, 4294901760
        %v2234 = vsub.f32 %v1944, %v2233
        %2235 = vmatpush1.msra.mxu0 %v2234
        %v2236 = vand.u32 %v1947, 4294901760
        %v2237 = vsub.f32 %v1947, %v2236
        %2238 = vmatprep.subr.mxu0 %v2237
        %v2239 = vand.u32 %v1946, 4294901760
        %v2240 = vsub.f32 %v1946, %v2239
        %2241 = vmatpush1.msra.mxu0 %v2240
        %v2242 = vand.u32 %v1949, 4294901760
        %v2243 = vsub.f32 %v1949, %v2242
        %2244 = vmatprep.subr.mxu0 %v2243
        %v2245 = vand.u32 %v1948, 4294901760
        %v2246 = vsub.f32 %v1948, %v2245
        %2247 = vmatpush1.msra.mxu0 %v2246
        %v2248 = vand.u32 %v1951, 4294901760
        %v2249 = vsub.f32 %v1951, %v2248
        %2250 = vmatprep.subr.mxu0 %v2249
        %v2251 = vand.u32 %v1950, 4294901760
        %v2252 = vsub.f32 %v1950, %v2251
        %2253 = vmatpush1.msra.mxu0 %v2252
        %v2254 = vand.u32 %v1953, 4294901760
        %v2255 = vsub.f32 %v1953, %v2254
        %2256 = vmatprep.subr.mxu0 %v2255
        %v2257 = vand.u32 %v1952, 4294901760
        %v2258 = vsub.f32 %v1952, %v2257
        %2259 = vmatpush1.msra.mxu0 %v2258
        %v2260 = vand.u32 %v1955, 4294901760
        %v2261 = vsub.f32 %v1955, %v2260
        %2262 = vmatprep.subr.mxu0 %v2261
        %v2263 = vand.u32 %v1954, 4294901760
        %v2264 = vsub.f32 %v1954, %v2263
        %2265 = vmatpush1.msra.mxu0 %v2264
        %v2266 = vand.u32 %v1957, 4294901760
        %v2267 = vsub.f32 %v1957, %v2266
        %2268 = vmatprep.subr.mxu0 %v2267
        %v2269 = vand.u32 %v1956, 4294901760
        %v2270 = vsub.f32 %v1956, %v2269
        %2271 = vmatpush1.msra.mxu0 %v2270
        %v2272 = vand.u32 %v1959, 4294901760
        %v2273 = vsub.f32 %v1959, %v2272
        %2274 = vmatprep.subr.mxu0 %v2273
        %v2275 = vand.u32 %v1958, 4294901760
        %v2276 = vsub.f32 %v1958, %v2275
        %2277 = vmatpush1.msra.mxu0 %v2276
        %v2278 = vand.u32 %v1961, 4294901760
        %v2279 = vsub.f32 %v1961, %v2278
        %2280 = vmatprep.subr.mxu0 %v2279
        %v2281 = vand.u32 %v1960, 4294901760
        %v2282 = vsub.f32 %v1960, %v2281
        %2283 = vmatpush1.msra.mxu0 %v2282
        %2284 = vmatprep.subr.mxu0 0.0
        %2285 = vmatpush1.msra.mxu0 0.0
        %2286 = vmatprep.subr.mxu0 0.0
        %2287 = vmatpush1.msra.mxu0 0.0
        %2288 = vmatprep.subr.mxu0 0.0
        %2289 = vmatpush1.msra.mxu0 0.0
        %2290 = vmatprep.subr.mxu0 0.0
        %2291 = vmatpush1.msra.mxu0 0.0
        %2292 = vmatprep.subr.mxu0 0.0
        %2293 = vmatpush1.msra.mxu0 0.0
        %2294 = vmatprep.subr.mxu0 0.0
        %2295 = vmatpush1.msra.mxu0 0.0
        %2296 = vmatprep.subr.mxu0 0.0
        %2297 = vmatpush1.msra.mxu0 0.0
        %2298 = vmatprep.subr.mxu0 0.0
        %2299 = vmatpush1.msra.mxu0 0.0
        %2300 = vmatprep.subr.mxu0 0.0
        %2301 = vmatpush1.msra.mxu0 0.0
        %2302 = vmatprep.subr.mxu0 0.0
        %2303 = vmatpush1.msra.mxu0 0.0
        %2304 = vmatprep.subr.mxu0 0.0
        %2305 = vmatpush1.msra.mxu0 0.0
        %2306 = vmatprep.subr.mxu0 0.0
        %2307 = vmatpush1.msra.mxu0 0.0
        %2308 = vmatprep.subr.mxu0 0.0
        %2309 = vmatpush1.msra.mxu0 0.0
        %2310 = vmatprep.subr.mxu0 0.0
        %2311 = vmatpush1.msra.mxu0 0.0
        %2312 = vmatprep.subr.mxu0 0.0
        %2313 = vmatpush1.msra.mxu0 0.0
        %2314 = vmatprep.subr.mxu0 0.0
        %2315 = vmatpush1.msra.mxu0 0.0
        %2316 = vmatprep.subr.mxu0 0.0
        %2317 = vmatpush1.msra.mxu0 0.0
        %2318 = vmatprep.subr.mxu0 0.0
        %2319 = vmatpush1.msra.mxu0 0.0
        %2320 = vmatprep.subr.mxu0 0.0
        %2321 = vmatpush1.msra.mxu0 0.0
        %2322 = vmatprep.subr.mxu0 0.0
        %2323 = vmatpush1.msra.mxu0 0.0
        %2324 = vmatprep.subr.mxu0 0.0
        %2325 = vmatpush1.msra.mxu0 0.0
        %2326 = vmatprep.subr.mxu0 0.0
        %2327 = vmatpush1.msra.mxu0 0.0
        %2328 = vmatprep.subr.mxu0 0.0
        %2329 = vmatpush1.msra.mxu0 0.0
        %2330 = vmatprep.mubr.f32.mxu0 0.0
        %v2331 = vand.u32 %v1972, 4294901760
        %v2332 = vsub.f32 %v1972, %v2331
        %2333 = vmatmul.mubr.f32.gmra.mrb[0].mxu0 %v2332
        %v2334 = vpop.f32.mrb[0].mxu0
        %v2335 = vadd.f32 %v2226, %v2334
        %v2336 = vpop.f32.mrb[0].mxu0
        %v2337 = vadd.f32 %v2228, %v2336
        %2338 = vdwg.mxu0
        %v2339 = vand.u32 %v1945, 4294901760
        %2340 = vmatprep.subr.mxu0 %v2339
        %v2341 = vand.u32 %v1944, 4294901760
        %2342 = vmatpush1.msra.mxu0 %v2341
        %v2343 = vand.u32 %v1947, 4294901760
        %2344 = vmatprep.subr.mxu0 %v2343
        %v2345 = vand.u32 %v1946, 4294901760
        %2346 = vmatpush1.msra.mxu0 %v2345
        %v2347 = vand.u32 %v1949, 4294901760
        %2348 = vmatprep.subr.mxu0 %v2347
        %v2349 = vand.u32 %v1948, 4294901760
        %2350 = vmatpush1.msra.mxu0 %v2349
        %v2351 = vand.u32 %v1951, 4294901760
        %2352 = vmatprep.subr.mxu0 %v2351
        %v2353 = vand.u32 %v1950, 4294901760
        %2354 = vmatpush1.msra.mxu0 %v2353
        %v2355 = vand.u32 %v1953, 4294901760
        %2356 = vmatprep.subr.mxu0 %v2355
        %v2357 = vand.u32 %v1952, 4294901760
        %2358 = vmatpush1.msra.mxu0 %v2357
        %v2359 = vand.u32 %v1955, 4294901760
        %2360 = vmatprep.subr.mxu0 %v2359
        %v2361 = vand.u32 %v1954, 4294901760
        %2362 = vmatpush1.msra.mxu0 %v2361
        %v2363 = vand.u32 %v1957, 4294901760
        %2364 = vmatprep.subr.mxu0 %v2363
        %v2365 = vand.u32 %v1956, 4294901760
        %2366 = vmatpush1.msra.mxu0 %v2365
        %v2367 = vand.u32 %v1959, 4294901760
        %2368 = vmatprep.subr.mxu0 %v2367
        %v2369 = vand.u32 %v1958, 4294901760
        %2370 = vmatpush1.msra.mxu0 %v2369
        %v2371 = vand.u32 %v1961, 4294901760
        %2372 = vmatprep.subr.mxu0 %v2371
        %v2373 = vand.u32 %v1960, 4294901760
        %2374 = vmatpush1.msra.mxu0 %v2373
        %2375 = vmatprep.subr.mxu0 0.0
        %2376 = vmatpush1.msra.mxu0 0.0
        %2377 = vmatprep.subr.mxu0 0.0
        %2378 = vmatpush1.msra.mxu0 0.0
        %2379 = vmatprep.subr.mxu0 0.0
        %2380 = vmatpush1.msra.mxu0 0.0
        %2381 = vmatprep.subr.mxu0 0.0
        %2382 = vmatpush1.msra.mxu0 0.0
        %2383 = vmatprep.subr.mxu0 0.0
        %2384 = vmatpush1.msra.mxu0 0.0
        %2385 = vmatprep.subr.mxu0 0.0
        %2386 = vmatpush1.msra.mxu0 0.0
        %2387 = vmatprep.subr.mxu0 0.0
        %2388 = vmatpush1.msra.mxu0 0.0
        %2389 = vmatprep.subr.mxu0 0.0
        %2390 = vmatpush1.msra.mxu0 0.0
        %2391 = vmatprep.subr.mxu0 0.0
        %2392 = vmatpush1.msra.mxu0 0.0
        %2393 = vmatprep.subr.mxu0 0.0
        %2394 = vmatpush1.msra.mxu0 0.0
        %2395 = vmatprep.subr.mxu0 0.0
        %2396 = vmatpush1.msra.mxu0 0.0
        %2397 = vmatprep.subr.mxu0 0.0
        %2398 = vmatpush1.msra.mxu0 0.0
        %2399 = vmatprep.subr.mxu0 0.0
        %2400 = vmatpush1.msra.mxu0 0.0
        %2401 = vmatprep.subr.mxu0 0.0
        %2402 = vmatpush1.msra.mxu0 0.0
        %2403 = vmatprep.subr.mxu0 0.0
        %2404 = vmatpush1.msra.mxu0 0.0
        %2405 = vmatprep.subr.mxu0 0.0
        %2406 = vmatpush1.msra.mxu0 0.0
        %2407 = vmatprep.subr.mxu0 0.0
        %2408 = vmatpush1.msra.mxu0 0.0
        %2409 = vmatprep.subr.mxu0 0.0
        %2410 = vmatpush1.msra.mxu0 0.0
        %2411 = vmatprep.subr.mxu0 0.0
        %2412 = vmatpush1.msra.mxu0 0.0
        %2413 = vmatprep.subr.mxu0 0.0
        %2414 = vmatpush1.msra.mxu0 0.0
        %2415 = vmatprep.subr.mxu0 0.0
        %2416 = vmatpush1.msra.mxu0 0.0
        %2417 = vmatprep.subr.mxu0 0.0
        %2418 = vmatpush1.msra.mxu0 0.0
        %2419 = vmatprep.subr.mxu0 0.0
        %2420 = vmatpush1.msra.mxu0 0.0
        %2421 = vmatprep.mubr.f32.mxu0 0.0
        %v2422 = vand.u32 %v1972, 4294901760
        %v2423 = vsub.f32 %v1972, %v2422
        %v2424 = vand.u32 %v2423, 4294901760
        %2425 = vmatmul.mubr.f32.gmra.mrb[0].mxu0 %v2424
        %v2426 = vpop.f32.mrb[0].mxu0
        %v2427 = vadd.f32 %v2335, %v2426
        %v2428 = vpop.f32.mrb[0].mxu0
        %v2429 = vadd.f32 %v2337, %v2428
        %2430 = vdwg.mxu0
        %v2431 = vand.u32 %v1945, 4294901760
        %v2432 = vsub.f32 %v1945, %v2431
        %v2433 = vand.u32 %v2432, 4294901760
        %2434 = vmatprep.subr.mxu0 %v2433
        %v2435 = vand.u32 %v1944, 4294901760
        %v2436 = vsub.f32 %v1944, %v2435
        %v2437 = vand.u32 %v2436, 4294901760
        %2438 = vmatpush1.msra.mxu0 %v2437
        %v2439 = vand.u32 %v1947, 4294901760
        %v2440 = vsub.f32 %v1947, %v2439
        %v2441 = vand.u32 %v2440, 4294901760
        %2442 = vmatprep.subr.mxu0 %v2441
        %v2443 = vand.u32 %v1946, 4294901760
        %v2444 = vsub.f32 %v1946, %v2443
        %v2445 = vand.u32 %v2444, 4294901760
        %2446 = vmatpush1.msra.mxu0 %v2445
        %v2447 = vand.u32 %v1949, 4294901760
        %v2448 = vsub.f32 %v1949, %v2447
        %v2449 = vand.u32 %v2448, 4294901760
        %2450 = vmatprep.subr.mxu0 %v2449
        %v2451 = vand.u32 %v1948, 4294901760
        %v2452 = vsub.f32 %v1948, %v2451
        %v2453 = vand.u32 %v2452, 4294901760
        %2454 = vmatpush1.msra.mxu0 %v2453
        %v2455 = vand.u32 %v1951, 4294901760
        %v2456 = vsub.f32 %v1951, %v2455
        %v2457 = vand.u32 %v2456, 4294901760
        %2458 = vmatprep.subr.mxu0 %v2457
        %v2459 = vand.u32 %v1950, 4294901760
        %v2460 = vsub.f32 %v1950, %v2459
        %v2461 = vand.u32 %v2460, 4294901760
        %2462 = vmatpush1.msra.mxu0 %v2461
        %v2463 = vand.u32 %v1953, 4294901760
        %v2464 = vsub.f32 %v1953, %v2463
        %v2465 = vand.u32 %v2464, 4294901760
        %2466 = vmatprep.subr.mxu0 %v2465
        %v2467 = vand.u32 %v1952, 4294901760
        %v2468 = vsub.f32 %v1952, %v2467
        %v2469 = vand.u32 %v2468, 4294901760
        %2470 = vmatpush1.msra.mxu0 %v2469
        %v2471 = vand.u32 %v1955, 4294901760
        %v2472 = vsub.f32 %v1955, %v2471
        %v2473 = vand.u32 %v2472, 4294901760
        %2474 = vmatprep.subr.mxu0 %v2473
        %v2475 = vand.u32 %v1954, 4294901760
        %v2476 = vsub.f32 %v1954, %v2475
        %v2477 = vand.u32 %v2476, 4294901760
        %2478 = vmatpush1.msra.mxu0 %v2477
        %v2479 = vand.u32 %v1957, 4294901760
        %v2480 = vsub.f32 %v1957, %v2479
        %v2481 = vand.u32 %v2480, 4294901760
        %2482 = vmatprep.subr.mxu0 %v2481
        %v2483 = vand.u32 %v1956, 4294901760
        %v2484 = vsub.f32 %v1956, %v2483
        %v2485 = vand.u32 %v2484, 4294901760
        %2486 = vmatpush1.msra.mxu0 %v2485
        %v2487 = vand.u32 %v1959, 4294901760
        %v2488 = vsub.f32 %v1959, %v2487
        %v2489 = vand.u32 %v2488, 4294901760
        %2490 = vmatprep.subr.mxu0 %v2489
        %v2491 = vand.u32 %v1958, 4294901760
        %v2492 = vsub.f32 %v1958, %v2491
        %v2493 = vand.u32 %v2492, 4294901760
        %2494 = vmatpush1.msra.mxu0 %v2493
        %v2495 = vand.u32 %v1961, 4294901760
        %v2496 = vsub.f32 %v1961, %v2495
        %v2497 = vand.u32 %v2496, 4294901760
        %2498 = vmatprep.subr.mxu0 %v2497
        %v2499 = vand.u32 %v1960, 4294901760
        %v2500 = vsub.f32 %v1960, %v2499
        %v2501 = vand.u32 %v2500, 4294901760
        %2502 = vmatpush1.msra.mxu0 %v2501
        %2503 = vmatprep.subr.mxu0 0.0
        %2504 = vmatpush1.msra.mxu0 0.0
        %2505 = vmatprep.subr.mxu0 0.0
        %2506 = vmatpush1.msra.mxu0 0.0
        %2507 = vmatprep.subr.mxu0 0.0
        %2508 = vmatpush1.msra.mxu0 0.0
        %2509 = vmatprep.subr.mxu0 0.0
        %2510 = vmatpush1.msra.mxu0 0.0
        %2511 = vmatprep.subr.mxu0 0.0
        %2512 = vmatpush1.msra.mxu0 0.0
        %2513 = vmatprep.subr.mxu0 0.0
        %2514 = vmatpush1.msra.mxu0 0.0
        %2515 = vmatprep.subr.mxu0 0.0
        %2516 = vmatpush1.msra.mxu0 0.0
        %2517 = vmatprep.subr.mxu0 0.0
        %2518 = vmatpush1.msra.mxu0 0.0
        %2519 = vmatprep.subr.mxu0 0.0
        %2520 = vmatpush1.msra.mxu0 0.0
        %2521 = vmatprep.subr.mxu0 0.0
        %2522 = vmatpush1.msra.mxu0 0.0
        %2523 = vmatprep.subr.mxu0 0.0
        %2524 = vmatpush1.msra.mxu0 0.0
        %2525 = vmatprep.subr.mxu0 0.0
        %2526 = vmatpush1.msra.mxu0 0.0
        %2527 = vmatprep.subr.mxu0 0.0
        %2528 = vmatpush1.msra.mxu0 0.0
        %2529 = vmatprep.subr.mxu0 0.0
        %2530 = vmatpush1.msra.mxu0 0.0
        %2531 = vmatprep.subr.mxu0 0.0
        %2532 = vmatpush1.msra.mxu0 0.0
        %2533 = vmatprep.subr.mxu0 0.0
        %2534 = vmatpush1.msra.mxu0 0.0
        %2535 = vmatprep.subr.mxu0 0.0
        %2536 = vmatpush1.msra.mxu0 0.0
        %2537 = vmatprep.subr.mxu0 0.0
        %2538 = vmatpush1.msra.mxu0 0.0
        %2539 = vmatprep.subr.mxu0 0.0
        %2540 = vmatpush1.msra.mxu0 0.0
        %2541 = vmatprep.subr.mxu0 0.0
        %2542 = vmatpush1.msra.mxu0 0.0
        %2543 = vmatprep.subr.mxu0 0.0
        %2544 = vmatpush1.msra.mxu0 0.0
        %2545 = vmatprep.subr.mxu0 0.0
        %2546 = vmatpush1.msra.mxu0 0.0
        %2547 = vmatprep.subr.mxu0 0.0
        %2548 = vmatpush1.msra.mxu0 0.0
        %2549 = vmatprep.mubr.f32.mxu0 0.0
        %v2550 = vand.u32 %v1972, 4294901760
        %2551 = vmatmul.mubr.f32.gmra.mrb[0].mxu0 %v2550
        %v2552 = vpop.f32.mrb[0].mxu0
        %v2553 = vadd.f32 %v2427, %v2552
        %v2554 = vpop.f32.mrb[0].mxu0
        %v2555 = vadd.f32 %v2429, %v2554
        %2556 = vdwg.mxu0
        %v2557 = vand.u32 %v1945, 4294901760
        %2558 = vmatprep.subr.mxu0 %v2557
        %v2559 = vand.u32 %v1944, 4294901760
        %2560 = vmatpush1.msra.mxu0 %v2559
        %v2561 = vand.u32 %v1947, 4294901760
        %2562 = vmatprep.subr.mxu0 %v2561
        %v2563 = vand.u32 %v1946, 4294901760
        %2564 = vmatpush1.msra.mxu0 %v2563
        %v2565 = vand.u32 %v1949, 4294901760
        %2566 = vmatprep.subr.mxu0 %v2565
        %v2567 = vand.u32 %v1948, 4294901760
        %2568 = vmatpush1.msra.mxu0 %v2567
        %v2569 = vand.u32 %v1951, 4294901760
        %2570 = vmatprep.subr.mxu0 %v2569
        %v2571 = vand.u32 %v1950, 4294901760
        %2572 = vmatpush1.msra.mxu0 %v2571
        %v2573 = vand.u32 %v1953, 4294901760
        %2574 = vmatprep.subr.mxu0 %v2573
        %v2575 = vand.u32 %v1952, 4294901760
        %2576 = vmatpush1.msra.mxu0 %v2575
        %v2577 = vand.u32 %v1955, 4294901760
        %2578 = vmatprep.subr.mxu0 %v2577
        %v2579 = vand.u32 %v1954, 4294901760
        %2580 = vmatpush1.msra.mxu0 %v2579
        %v2581 = vand.u32 %v1957, 4294901760
        %2582 = vmatprep.subr.mxu0 %v2581
        %v2583 = vand.u32 %v1956, 4294901760
        %2584 = vmatpush1.msra.mxu0 %v2583
        %v2585 = vand.u32 %v1959, 4294901760
        %2586 = vmatprep.subr.mxu0 %v2585
        %v2587 = vand.u32 %v1958, 4294901760
        %2588 = vmatpush1.msra.mxu0 %v2587
        %v2589 = vand.u32 %v1961, 4294901760
        %2590 = vmatprep.subr.mxu0 %v2589
        %v2591 = vand.u32 %v1960, 4294901760
        %2592 = vmatpush1.msra.mxu0 %v2591
        %2593 = vmatprep.subr.mxu0 0.0
        %2594 = vmatpush1.msra.mxu0 0.0
        %2595 = vmatprep.subr.mxu0 0.0
        %2596 = vmatpush1.msra.mxu0 0.0
        %2597 = vmatprep.subr.mxu0 0.0
        %2598 = vmatpush1.msra.mxu0 0.0
        %2599 = vmatprep.subr.mxu0 0.0
        %2600 = vmatpush1.msra.mxu0 0.0
        %2601 = vmatprep.subr.mxu0 0.0
        %2602 = vmatpush1.msra.mxu0 0.0
        %2603 = vmatprep.subr.mxu0 0.0
        %2604 = vmatpush1.msra.mxu0 0.0
        %2605 = vmatprep.subr.mxu0 0.0
        %2606 = vmatpush1.msra.mxu0 0.0
        %2607 = vmatprep.subr.mxu0 0.0
        %2608 = vmatpush1.msra.mxu0 0.0
        %2609 = vmatprep.subr.mxu0 0.0
        %2610 = vmatpush1.msra.mxu0 0.0
        %2611 = vmatprep.subr.mxu0 0.0
        %2612 = vmatpush1.msra.mxu0 0.0
        %2613 = vmatprep.subr.mxu0 0.0
        %2614 = vmatpush1.msra.mxu0 0.0
        %2615 = vmatprep.subr.mxu0 0.0
        %2616 = vmatpush1.msra.mxu0 0.0
        %2617 = vmatprep.subr.mxu0 0.0
        %2618 = vmatpush1.msra.mxu0 0.0
        %2619 = vmatprep.subr.mxu0 0.0
        %2620 = vmatpush1.msra.mxu0 0.0
        %2621 = vmatprep.subr.mxu0 0.0
        %2622 = vmatpush1.msra.mxu0 0.0
        %2623 = vmatprep.subr.mxu0 0.0
        %2624 = vmatpush1.msra.mxu0 0.0
        %2625 = vmatprep.subr.mxu0 0.0
        %2626 = vmatpush1.msra.mxu0 0.0
        %2627 = vmatprep.subr.mxu0 0.0
        %2628 = vmatpush1.msra.mxu0 0.0
        %2629 = vmatprep.subr.mxu0 0.0
        %2630 = vmatpush1.msra.mxu0 0.0
        %2631 = vmatprep.subr.mxu0 0.0
        %2632 = vmatpush1.msra.mxu0 0.0
        %2633 = vmatprep.subr.mxu0 0.0
        %2634 = vmatpush1.msra.mxu0 0.0
        %2635 = vmatprep.subr.mxu0 0.0
        %2636 = vmatpush1.msra.mxu0 0.0
        %2637 = vmatprep.subr.mxu0 0.0
        %2638 = vmatpush1.msra.mxu0 0.0
        %2639 = vmatprep.mubr.f32.mxu0 0.0
        %v2640 = vand.u32 %v1972, 4294901760
        %2641 = vmatmul.mubr.f32.gmra.mrb[0].mxu0 %v2640
        %v2642 = vpop.f32.mrb[0].mxu0
        %v2643 = vadd.f32 %v2553, %v2642
        %v2644 = vpop.f32.mrb[0].mxu0
        %v2645 = vadd.f32 %v2555, %v2644
        %2646 = vdwg.mxu0
        %v2647 = vmax.f32 %v2643, 0.0
        %v2648 = vmax.f32 %v2645, 0.0
        %2649 = vrot.lane.b32.xlu0 %v2647, 17
        %v2650 = vpop.permute.xlu0 %2649
        %2651 = vrot.lane.b32.xlu0 %v2648, 17
        %v2652 = vpop.permute.xlu0 %2651
        %v2653 = vsel %vm387, %v2650, %v2652
        %v2654 = vsel %vm387, %v2652, %v2650
        %2655 = vrot.lane.b32.xlu0 %v2647, 16
        %v2656 = vpop.permute.xlu0 %2655
        %2657 = vrot.lane.b32.xlu0 %v2648, 16
        %v2658 = vpop.permute.xlu0 %2657
        %v2659 = vsel %vm394, %v2656, %v2658
        %v2660 = vsel %vm394, %v2658, %v2656
        %2661 = vrot.lane.b32.xlu0 %v2647, 15
        %v2662 = vpop.permute.xlu0 %2661
        %2663 = vrot.lane.b32.xlu0 %v2648, 15
        %v2664 = vpop.permute.xlu0 %2663
        %v2665 = vsel %vm401, %v2662, %v2664
        %v2666 = vsel %vm401, %v2664, %v2662
        %2667 = vrot.lane.b32.xlu0 %v2647, 1
        %v2668 = vpop.permute.xlu0 %2667
        %2669 = vrot.lane.b32.xlu0 %v2648, 1
        %v2670 = vpop.permute.xlu0 %2669
        %v2671 = vsel %vm408, %v2668, %v2670
        %v2672 = vsel %vm408, %v2670, %v2668
        %2673 = vrot.lane.b32.xlu0 %v2647, 127
        %v2674 = vpop.permute.xlu0 %2673
        %2675 = vrot.lane.b32.xlu0 %v2648, 127
        %v2676 = vpop.permute.xlu0 %2675
        %v2677 = vsel %vm415, %v2674, %v2676
        %v2678 = vsel %vm415, %v2676, %v2674
        %2679 = vrot.lane.b32.xlu0 %v2647, 113
        %v2680 = vpop.permute.xlu0 %2679
        %2681 = vrot.lane.b32.xlu0 %v2648, 113
        %v2682 = vpop.permute.xlu0 %2681
        %v2683 = vsel %vm422, %v2680, %v2682
        %v2684 = vsel %vm422, %v2682, %v2680
        %2685 = vrot.lane.b32.xlu0 %v2647, 112
        %v2686 = vpop.permute.xlu0 %2685
        %2687 = vrot.lane.b32.xlu0 %v2648, 112
        %v2688 = vpop.permute.xlu0 %2687
        %v2689 = vsel %vm429, %v2686, %v2688
        %v2690 = vsel %vm429, %v2688, %v2686
        %2691 = vrot.lane.b32.xlu0 %v2647, 111
        %v2692 = vpop.permute.xlu0 %2691
        %2693 = vrot.lane.b32.xlu0 %v2648, 111
        %v2694 = vpop.permute.xlu0 %2693
        %v2695 = vsel %vm436, %v2692, %v2694
        %v2696 = vsel %vm436, %v2694, %v2692
        %v2697 = vmul.f32 %v2654, %v297
        %v2698 = vmul.f32 %v2653, %v298
        %v2699 = vmul.f32 %v2660, %v299
        %v2700 = vmul.f32 %v2659, %v300
        %v2701 = vmul.f32 %v2666, %v301
        %v2702 = vmul.f32 %v2665, %v302
        %v2703 = vmul.f32 %v2672, %v303
        %v2704 = vmul.f32 %v2671, %v304
        %v2705 = vmul.f32 %v2647, %v305
        %v2706 = vmul.f32 %v2648, %v306
        %v2707 = vmul.f32 %v2677, %v307
        %v2708 = vmul.f32 %v2678, %v308
        %v2709 = vmul.f32 %v2683, %v309
        %v2710 = vmul.f32 %v2684, %v310
        %v2711 = vmul.f32 %v2689, %v311
        %v2712 = vmul.f32 %v2690, %v312
        %v2713 = vmul.f32 %v2695, %v313
        %v2714 = vmul.f32 %v2696, %v314
        %s2715 = scalar_lea.vmem %s1, 24
        %v2716 = vld [vmem:[%s2715] sm:$0xff]
        %s2717 = scalar_lea.vmem %s2, 24
        %v2718 = vld [vmem:[%s2717] sm:$0xff]
        %2720 = vset.pattern.permute.xlu0 0
        %2721 = vperm.xlu0 %2720, %v2718
        %v2722 = vpop.permute.xlu0 %2721
        %v2725 = vsel %vm464, %v2716, 0
        %v2727 = vand.u32 %v2698, 4294901760
        %2728 = vmatprep.subr.mxu0 %v2727
        %v2729 = vand.u32 %v2697, 4294901760
        %2730 = vmatpush1.msra.mxu0 %v2729
        %v2731 = vand.u32 %v2700, 4294901760
        %2732 = vmatprep.subr.mxu0 %v2731
        %v2733 = vand.u32 %v2699, 4294901760
        %2734 = vmatpush1.msra.mxu0 %v2733
        %v2735 = vand.u32 %v2702, 4294901760
        %2736 = vmatprep.subr.mxu0 %v2735
        %v2737 = vand.u32 %v2701, 4294901760
        %2738 = vmatpush1.msra.mxu0 %v2737
        %v2739 = vand.u32 %v2704, 4294901760
        %2740 = vmatprep.subr.mxu0 %v2739
        %v2741 = vand.u32 %v2703, 4294901760
        %2742 = vmatpush1.msra.mxu0 %v2741
        %v2743 = vand.u32 %v2706, 4294901760
        %2744 = vmatprep.subr.mxu0 %v2743
        %v2745 = vand.u32 %v2705, 4294901760
        %2746 = vmatpush1.msra.mxu0 %v2745
        %v2747 = vand.u32 %v2708, 4294901760
        %2748 = vmatprep.subr.mxu0 %v2747
        %v2749 = vand.u32 %v2707, 4294901760
        %2750 = vmatpush1.msra.mxu0 %v2749
        %v2751 = vand.u32 %v2710, 4294901760
        %2752 = vmatprep.subr.mxu0 %v2751
        %v2753 = vand.u32 %v2709, 4294901760
        %2754 = vmatpush1.msra.mxu0 %v2753
        %v2755 = vand.u32 %v2712, 4294901760
        %2756 = vmatprep.subr.mxu0 %v2755
        %v2757 = vand.u32 %v2711, 4294901760
        %2758 = vmatpush1.msra.mxu0 %v2757
        %v2759 = vand.u32 %v2714, 4294901760
        %2760 = vmatprep.subr.mxu0 %v2759
        %v2761 = vand.u32 %v2713, 4294901760
        %2762 = vmatpush1.msra.mxu0 %v2761
        %2763 = vmatprep.subr.mxu0 0.0
        %2764 = vmatpush1.msra.mxu0 0.0
        %2765 = vmatprep.subr.mxu0 0.0
        %2766 = vmatpush1.msra.mxu0 0.0
        %2767 = vmatprep.subr.mxu0 0.0
        %2768 = vmatpush1.msra.mxu0 0.0
        %2769 = vmatprep.subr.mxu0 0.0
        %2770 = vmatpush1.msra.mxu0 0.0
        %2771 = vmatprep.subr.mxu0 0.0
        %2772 = vmatpush1.msra.mxu0 0.0
        %2773 = vmatprep.subr.mxu0 0.0
        %2774 = vmatpush1.msra.mxu0 0.0
        %2775 = vmatprep.subr.mxu0 0.0
        %2776 = vmatpush1.msra.mxu0 0.0
        %2777 = vmatprep.subr.mxu0 0.0
        %2778 = vmatpush1.msra.mxu0 0.0
        %2779 = vmatprep.subr.mxu0 0.0
        %2780 = vmatpush1.msra.mxu0 0.0
        %2781 = vmatprep.subr.mxu0 0.0
        %2782 = vmatpush1.msra.mxu0 0.0
        %2783 = vmatprep.subr.mxu0 0.0
        %2784 = vmatpush1.msra.mxu0 0.0
        %2785 = vmatprep.subr.mxu0 0.0
        %2786 = vmatpush1.msra.mxu0 0.0
        %2787 = vmatprep.subr.mxu0 0.0
        %2788 = vmatpush1.msra.mxu0 0.0
        %2789 = vmatprep.subr.mxu0 0.0
        %2790 = vmatpush1.msra.mxu0 0.0
        %2791 = vmatprep.subr.mxu0 0.0
        %2792 = vmatpush1.msra.mxu0 0.0
        %2793 = vmatprep.subr.mxu0 0.0
        %2794 = vmatpush1.msra.mxu0 0.0
        %2795 = vmatprep.subr.mxu0 0.0
        %2796 = vmatpush1.msra.mxu0 0.0
        %2797 = vmatprep.subr.mxu0 0.0
        %2798 = vmatpush1.msra.mxu0 0.0
        %2799 = vmatprep.subr.mxu0 0.0
        %2800 = vmatpush1.msra.mxu0 0.0
        %2801 = vmatprep.subr.mxu0 0.0
        %2802 = vmatpush1.msra.mxu0 0.0
        %2803 = vmatprep.subr.mxu0 0.0
        %2804 = vmatpush1.msra.mxu0 0.0
        %2805 = vmatprep.subr.mxu0 0.0
        %2806 = vmatpush1.msra.mxu0 0.0
        %2807 = vmatprep.subr.mxu0 0.0
        %2808 = vmatpush1.msra.mxu0 0.0
        %2809 = vmatprep.mubr.f32.mxu0 0.0
        %v2810 = vand.u32 %v2725, 4294901760
        %v2811 = vsub.f32 %v2725, %v2810
        %v2812 = vand.u32 %v2811, 4294901760
        %v2813 = vsub.f32 %v2811, %v2812
        %v2814 = vand.u32 %v2813, 4294901760
        %2815 = vmatmul.mubr.f32.gmra.mrb[0].mxu0 %v2814
        %v2816 = vpop.f32.mrb[0].mxu0
        %v2817 = vadd.f32 %v2722, %v2816
        %v2818 = vpop.f32.mrb[0].mxu0
        %v2819 = vadd.f32 %v2722, %v2818
        %2820 = vdwg.mxu0
        %v2821 = vand.u32 %v2698, 4294901760
        %v2822 = vsub.f32 %v2698, %v2821
        %v2823 = vand.u32 %v2822, 4294901760
        %v2824 = vsub.f32 %v2822, %v2823
        %v2825 = vand.u32 %v2824, 4294901760
        %2826 = vmatprep.subr.mxu0 %v2825
        %v2827 = vand.u32 %v2697, 4294901760
        %v2828 = vsub.f32 %v2697, %v2827
        %v2829 = vand.u32 %v2828, 4294901760
        %v2830 = vsub.f32 %v2828, %v2829
        %v2831 = vand.u32 %v2830, 4294901760
        %2832 = vmatpush1.msra.mxu0 %v2831
        %v2833 = vand.u32 %v2700, 4294901760
        %v2834 = vsub.f32 %v2700, %v2833
        %v2835 = vand.u32 %v2834, 4294901760
        %v2836 = vsub.f32 %v2834, %v2835
        %v2837 = vand.u32 %v2836, 4294901760
        %2838 = vmatprep.subr.mxu0 %v2837
        %v2839 = vand.u32 %v2699, 4294901760
        %v2840 = vsub.f32 %v2699, %v2839
        %v2841 = vand.u32 %v2840, 4294901760
        %v2842 = vsub.f32 %v2840, %v2841
        %v2843 = vand.u32 %v2842, 4294901760
        %2844 = vmatpush1.msra.mxu0 %v2843
        %v2845 = vand.u32 %v2702, 4294901760
        %v2846 = vsub.f32 %v2702, %v2845
        %v2847 = vand.u32 %v2846, 4294901760
        %v2848 = vsub.f32 %v2846, %v2847
        %v2849 = vand.u32 %v2848, 4294901760
        %2850 = vmatprep.subr.mxu0 %v2849
        %v2851 = vand.u32 %v2701, 4294901760
        %v2852 = vsub.f32 %v2701, %v2851
        %v2853 = vand.u32 %v2852, 4294901760
        %v2854 = vsub.f32 %v2852, %v2853
        %v2855 = vand.u32 %v2854, 4294901760
        %2856 = vmatpush1.msra.mxu0 %v2855
        %v2857 = vand.u32 %v2704, 4294901760
        %v2858 = vsub.f32 %v2704, %v2857
        %v2859 = vand.u32 %v2858, 4294901760
        %v2860 = vsub.f32 %v2858, %v2859
        %v2861 = vand.u32 %v2860, 4294901760
        %2862 = vmatprep.subr.mxu0 %v2861
        %v2863 = vand.u32 %v2703, 4294901760
        %v2864 = vsub.f32 %v2703, %v2863
        %v2865 = vand.u32 %v2864, 4294901760
        %v2866 = vsub.f32 %v2864, %v2865
        %v2867 = vand.u32 %v2866, 4294901760
        %2868 = vmatpush1.msra.mxu0 %v2867
        %v2869 = vand.u32 %v2706, 4294901760
        %v2870 = vsub.f32 %v2706, %v2869
        %v2871 = vand.u32 %v2870, 4294901760
        %v2872 = vsub.f32 %v2870, %v2871
        %v2873 = vand.u32 %v2872, 4294901760
        %2874 = vmatprep.subr.mxu0 %v2873
        %v2875 = vand.u32 %v2705, 4294901760
        %v2876 = vsub.f32 %v2705, %v2875
        %v2877 = vand.u32 %v2876, 4294901760
        %v2878 = vsub.f32 %v2876, %v2877
        %v2879 = vand.u32 %v2878, 4294901760
        %2880 = vmatpush1.msra.mxu0 %v2879
        %v2881 = vand.u32 %v2708, 4294901760
        %v2882 = vsub.f32 %v2708, %v2881
        %v2883 = vand.u32 %v2882, 4294901760
        %v2884 = vsub.f32 %v2882, %v2883
        %v2885 = vand.u32 %v2884, 4294901760
        %2886 = vmatprep.subr.mxu0 %v2885
        %v2887 = vand.u32 %v2707, 4294901760
        %v2888 = vsub.f32 %v2707, %v2887
        %v2889 = vand.u32 %v2888, 4294901760
        %v2890 = vsub.f32 %v2888, %v2889
        %v2891 = vand.u32 %v2890, 4294901760
        %2892 = vmatpush1.msra.mxu0 %v2891
        %v2893 = vand.u32 %v2710, 4294901760
        %v2894 = vsub.f32 %v2710, %v2893
        %v2895 = vand.u32 %v2894, 4294901760
        %v2896 = vsub.f32 %v2894, %v2895
        %v2897 = vand.u32 %v2896, 4294901760
        %2898 = vmatprep.subr.mxu0 %v2897
        %v2899 = vand.u32 %v2709, 4294901760
        %v2900 = vsub.f32 %v2709, %v2899
        %v2901 = vand.u32 %v2900, 4294901760
        %v2902 = vsub.f32 %v2900, %v2901
        %v2903 = vand.u32 %v2902, 4294901760
        %2904 = vmatpush1.msra.mxu0 %v2903
        %v2905 = vand.u32 %v2712, 4294901760
        %v2906 = vsub.f32 %v2712, %v2905
        %v2907 = vand.u32 %v2906, 4294901760
        %v2908 = vsub.f32 %v2906, %v2907
        %v2909 = vand.u32 %v2908, 4294901760
        %2910 = vmatprep.subr.mxu0 %v2909
        %v2911 = vand.u32 %v2711, 4294901760
        %v2912 = vsub.f32 %v2711, %v2911
        %v2913 = vand.u32 %v2912, 4294901760
        %v2914 = vsub.f32 %v2912, %v2913
        %v2915 = vand.u32 %v2914, 4294901760
        %2916 = vmatpush1.msra.mxu0 %v2915
        %v2917 = vand.u32 %v2714, 4294901760
        %v2918 = vsub.f32 %v2714, %v2917
        %v2919 = vand.u32 %v2918, 4294901760
        %v2920 = vsub.f32 %v2918, %v2919
        %v2921 = vand.u32 %v2920, 4294901760
        %2922 = vmatprep.subr.mxu0 %v2921
        %v2923 = vand.u32 %v2713, 4294901760
        %v2924 = vsub.f32 %v2713, %v2923
        %v2925 = vand.u32 %v2924, 4294901760
        %v2926 = vsub.f32 %v2924, %v2925
        %v2927 = vand.u32 %v2926, 4294901760
        %2928 = vmatpush1.msra.mxu0 %v2927
        %2929 = vmatprep.subr.mxu0 0.0
        %2930 = vmatpush1.msra.mxu0 0.0
        %2931 = vmatprep.subr.mxu0 0.0
        %2932 = vmatpush1.msra.mxu0 0.0
        %2933 = vmatprep.subr.mxu0 0.0
        %2934 = vmatpush1.msra.mxu0 0.0
        %2935 = vmatprep.subr.mxu0 0.0
        %2936 = vmatpush1.msra.mxu0 0.0
        %2937 = vmatprep.subr.mxu0 0.0
        %2938 = vmatpush1.msra.mxu0 0.0
        %2939 = vmatprep.subr.mxu0 0.0
        %2940 = vmatpush1.msra.mxu0 0.0
        %2941 = vmatprep.subr.mxu0 0.0
        %2942 = vmatpush1.msra.mxu0 0.0
        %2943 = vmatprep.subr.mxu0 0.0
        %2944 = vmatpush1.msra.mxu0 0.0
        %2945 = vmatprep.subr.mxu0 0.0
        %2946 = vmatpush1.msra.mxu0 0.0
        %2947 = vmatprep.subr.mxu0 0.0
        %2948 = vmatpush1.msra.mxu0 0.0
        %2949 = vmatprep.subr.mxu0 0.0
        %2950 = vmatpush1.msra.mxu0 0.0
        %2951 = vmatprep.subr.mxu0 0.0
        %2952 = vmatpush1.msra.mxu0 0.0
        %2953 = vmatprep.subr.mxu0 0.0
        %2954 = vmatpush1.msra.mxu0 0.0
        %2955 = vmatprep.subr.mxu0 0.0
        %2956 = vmatpush1.msra.mxu0 0.0
        %2957 = vmatprep.subr.mxu0 0.0
        %2958 = vmatpush1.msra.mxu0 0.0
        %2959 = vmatprep.subr.mxu0 0.0
        %2960 = vmatpush1.msra.mxu0 0.0
        %2961 = vmatprep.subr.mxu0 0.0
        %2962 = vmatpush1.msra.mxu0 0.0
        %2963 = vmatprep.subr.mxu0 0.0
        %2964 = vmatpush1.msra.mxu0 0.0
        %2965 = vmatprep.subr.mxu0 0.0
        %2966 = vmatpush1.msra.mxu0 0.0
        %2967 = vmatprep.subr.mxu0 0.0
        %2968 = vmatpush1.msra.mxu0 0.0
        %2969 = vmatprep.subr.mxu0 0.0
        %2970 = vmatpush1.msra.mxu0 0.0
        %2971 = vmatprep.subr.mxu0 0.0
        %2972 = vmatpush1.msra.mxu0 0.0
        %2973 = vmatprep.subr.mxu0 0.0
        %2974 = vmatpush1.msra.mxu0 0.0
        %2975 = vmatprep.mubr.f32.mxu0 0.0
        %v2976 = vand.u32 %v2725, 4294901760
        %2977 = vmatmul.mubr.f32.gmra.mrb[0].mxu0 %v2976
        %v2978 = vpop.f32.mrb[0].mxu0
        %v2979 = vadd.f32 %v2817, %v2978
        %v2980 = vpop.f32.mrb[0].mxu0
        %v2981 = vadd.f32 %v2819, %v2980
        %2982 = vdwg.mxu0
        %v2983 = vand.u32 %v2698, 4294901760
        %v2984 = vsub.f32 %v2698, %v2983
        %2985 = vmatprep.subr.mxu0 %v2984
        %v2986 = vand.u32 %v2697, 4294901760
        %v2987 = vsub.f32 %v2697, %v2986
        %2988 = vmatpush1.msra.mxu0 %v2987
        %v2989 = vand.u32 %v2700, 4294901760
        %v2990 = vsub.f32 %v2700, %v2989
        %2991 = vmatprep.subr.mxu0 %v2990
        %v2992 = vand.u32 %v2699, 4294901760
        %v2993 = vsub.f32 %v2699, %v2992
        %2994 = vmatpush1.msra.mxu0 %v2993
        %v2995 = vand.u32 %v2702, 4294901760
        %v2996 = vsub.f32 %v2702, %v2995
        %2997 = vmatprep.subr.mxu0 %v2996
        %v2998 = vand.u32 %v2701, 4294901760
        %v2999 = vsub.f32 %v2701, %v2998
        %3000 = vmatpush1.msra.mxu0 %v2999
        %v3001 = vand.u32 %v2704, 4294901760
        %v3002 = vsub.f32 %v2704, %v3001
        %3003 = vmatprep.subr.mxu0 %v3002
        %v3004 = vand.u32 %v2703, 4294901760
        %v3005 = vsub.f32 %v2703, %v3004
        %3006 = vmatpush1.msra.mxu0 %v3005
        %v3007 = vand.u32 %v2706, 4294901760
        %v3008 = vsub.f32 %v2706, %v3007
        %3009 = vmatprep.subr.mxu0 %v3008
        %v3010 = vand.u32 %v2705, 4294901760
        %v3011 = vsub.f32 %v2705, %v3010
        %3012 = vmatpush1.msra.mxu0 %v3011
        %v3013 = vand.u32 %v2708, 4294901760
        %v3014 = vsub.f32 %v2708, %v3013
        %3015 = vmatprep.subr.mxu0 %v3014
        %v3016 = vand.u32 %v2707, 4294901760
        %v3017 = vsub.f32 %v2707, %v3016
        %3018 = vmatpush1.msra.mxu0 %v3017
        %v3019 = vand.u32 %v2710, 4294901760
        %v3020 = vsub.f32 %v2710, %v3019
        %3021 = vmatprep.subr.mxu0 %v3020
        %v3022 = vand.u32 %v2709, 4294901760
        %v3023 = vsub.f32 %v2709, %v3022
        %3024 = vmatpush1.msra.mxu0 %v3023
        %v3025 = vand.u32 %v2712, 4294901760
        %v3026 = vsub.f32 %v2712, %v3025
        %3027 = vmatprep.subr.mxu0 %v3026
        %v3028 = vand.u32 %v2711, 4294901760
        %v3029 = vsub.f32 %v2711, %v3028
        %3030 = vmatpush1.msra.mxu0 %v3029
        %v3031 = vand.u32 %v2714, 4294901760
        %v3032 = vsub.f32 %v2714, %v3031
        %3033 = vmatprep.subr.mxu0 %v3032
        %v3034 = vand.u32 %v2713, 4294901760
        %v3035 = vsub.f32 %v2713, %v3034
        %3036 = vmatpush1.msra.mxu0 %v3035
        %3037 = vmatprep.subr.mxu0 0.0
        %3038 = vmatpush1.msra.mxu0 0.0
        %3039 = vmatprep.subr.mxu0 0.0
        %3040 = vmatpush1.msra.mxu0 0.0
        %3041 = vmatprep.subr.mxu0 0.0
        %3042 = vmatpush1.msra.mxu0 0.0
        %3043 = vmatprep.subr.mxu0 0.0
        %3044 = vmatpush1.msra.mxu0 0.0
        %3045 = vmatprep.subr.mxu0 0.0
        %3046 = vmatpush1.msra.mxu0 0.0
        %3047 = vmatprep.subr.mxu0 0.0
        %3048 = vmatpush1.msra.mxu0 0.0
        %3049 = vmatprep.subr.mxu0 0.0
        %3050 = vmatpush1.msra.mxu0 0.0
        %3051 = vmatprep.subr.mxu0 0.0
        %3052 = vmatpush1.msra.mxu0 0.0
        %3053 = vmatprep.subr.mxu0 0.0
        %3054 = vmatpush1.msra.mxu0 0.0
        %3055 = vmatprep.subr.mxu0 0.0
        %3056 = vmatpush1.msra.mxu0 0.0
        %3057 = vmatprep.subr.mxu0 0.0
        %3058 = vmatpush1.msra.mxu0 0.0
        %3059 = vmatprep.subr.mxu0 0.0
        %3060 = vmatpush1.msra.mxu0 0.0
        %3061 = vmatprep.subr.mxu0 0.0
        %3062 = vmatpush1.msra.mxu0 0.0
        %3063 = vmatprep.subr.mxu0 0.0
        %3064 = vmatpush1.msra.mxu0 0.0
        %3065 = vmatprep.subr.mxu0 0.0
        %3066 = vmatpush1.msra.mxu0 0.0
        %3067 = vmatprep.subr.mxu0 0.0
        %3068 = vmatpush1.msra.mxu0 0.0
        %3069 = vmatprep.subr.mxu0 0.0
        %3070 = vmatpush1.msra.mxu0 0.0
        %3071 = vmatprep.subr.mxu0 0.0
        %3072 = vmatpush1.msra.mxu0 0.0
        %3073 = vmatprep.subr.mxu0 0.0
        %3074 = vmatpush1.msra.mxu0 0.0
        %3075 = vmatprep.subr.mxu0 0.0
        %3076 = vmatpush1.msra.mxu0 0.0
        %3077 = vmatprep.subr.mxu0 0.0
        %3078 = vmatpush1.msra.mxu0 0.0
        %3079 = vmatprep.subr.mxu0 0.0
        %3080 = vmatpush1.msra.mxu0 0.0
        %3081 = vmatprep.subr.mxu0 0.0
        %3082 = vmatpush1.msra.mxu0 0.0
        %3083 = vmatprep.mubr.f32.mxu0 0.0
        %v3084 = vand.u32 %v2725, 4294901760
        %v3085 = vsub.f32 %v2725, %v3084
        %3086 = vmatmul.mubr.f32.gmra.mrb[0].mxu0 %v3085
        %v3087 = vpop.f32.mrb[0].mxu0
        %v3088 = vadd.f32 %v2979, %v3087
        %v3089 = vpop.f32.mrb[0].mxu0
        %v3090 = vadd.f32 %v2981, %v3089
        %3091 = vdwg.mxu0
        %v3092 = vand.u32 %v2698, 4294901760
        %3093 = vmatprep.subr.mxu0 %v3092
        %v3094 = vand.u32 %v2697, 4294901760
        %3095 = vmatpush1.msra.mxu0 %v3094
        %v3096 = vand.u32 %v2700, 4294901760
        %3097 = vmatprep.subr.mxu0 %v3096
        %v3098 = vand.u32 %v2699, 4294901760
        %3099 = vmatpush1.msra.mxu0 %v3098
        %v3100 = vand.u32 %v2702, 4294901760
        %3101 = vmatprep.subr.mxu0 %v3100
        %v3102 = vand.u32 %v2701, 4294901760
        %3103 = vmatpush1.msra.mxu0 %v3102
        %v3104 = vand.u32 %v2704, 4294901760
        %3105 = vmatprep.subr.mxu0 %v3104
        %v3106 = vand.u32 %v2703, 4294901760
        %3107 = vmatpush1.msra.mxu0 %v3106
        %v3108 = vand.u32 %v2706, 4294901760
        %3109 = vmatprep.subr.mxu0 %v3108
        %v3110 = vand.u32 %v2705, 4294901760
        %3111 = vmatpush1.msra.mxu0 %v3110
        %v3112 = vand.u32 %v2708, 4294901760
        %3113 = vmatprep.subr.mxu0 %v3112
        %v3114 = vand.u32 %v2707, 4294901760
        %3115 = vmatpush1.msra.mxu0 %v3114
        %v3116 = vand.u32 %v2710, 4294901760
        %3117 = vmatprep.subr.mxu0 %v3116
        %v3118 = vand.u32 %v2709, 4294901760
        %3119 = vmatpush1.msra.mxu0 %v3118
        %v3120 = vand.u32 %v2712, 4294901760
        %3121 = vmatprep.subr.mxu0 %v3120
        %v3122 = vand.u32 %v2711, 4294901760
        %3123 = vmatpush1.msra.mxu0 %v3122
        %v3124 = vand.u32 %v2714, 4294901760
        %3125 = vmatprep.subr.mxu0 %v3124
        %v3126 = vand.u32 %v2713, 4294901760
        %3127 = vmatpush1.msra.mxu0 %v3126
        %3128 = vmatprep.subr.mxu0 0.0
        %3129 = vmatpush1.msra.mxu0 0.0
        %3130 = vmatprep.subr.mxu0 0.0
        %3131 = vmatpush1.msra.mxu0 0.0
        %3132 = vmatprep.subr.mxu0 0.0
        %3133 = vmatpush1.msra.mxu0 0.0
        %3134 = vmatprep.subr.mxu0 0.0
        %3135 = vmatpush1.msra.mxu0 0.0
        %3136 = vmatprep.subr.mxu0 0.0
        %3137 = vmatpush1.msra.mxu0 0.0
        %3138 = vmatprep.subr.mxu0 0.0
        %3139 = vmatpush1.msra.mxu0 0.0
        %3140 = vmatprep.subr.mxu0 0.0
        %3141 = vmatpush1.msra.mxu0 0.0
        %3142 = vmatprep.subr.mxu0 0.0
        %3143 = vmatpush1.msra.mxu0 0.0
        %3144 = vmatprep.subr.mxu0 0.0
        %3145 = vmatpush1.msra.mxu0 0.0
        %3146 = vmatprep.subr.mxu0 0.0
        %3147 = vmatpush1.msra.mxu0 0.0
        %3148 = vmatprep.subr.mxu0 0.0
        %3149 = vmatpush1.msra.mxu0 0.0
        %3150 = vmatprep.subr.mxu0 0.0
        %3151 = vmatpush1.msra.mxu0 0.0
        %3152 = vmatprep.subr.mxu0 0.0
        %3153 = vmatpush1.msra.mxu0 0.0
        %3154 = vmatprep.subr.mxu0 0.0
        %3155 = vmatpush1.msra.mxu0 0.0
        %3156 = vmatprep.subr.mxu0 0.0
        %3157 = vmatpush1.msra.mxu0 0.0
        %3158 = vmatprep.subr.mxu0 0.0
        %3159 = vmatpush1.msra.mxu0 0.0
        %3160 = vmatprep.subr.mxu0 0.0
        %3161 = vmatpush1.msra.mxu0 0.0
        %3162 = vmatprep.subr.mxu0 0.0
        %3163 = vmatpush1.msra.mxu0 0.0
        %3164 = vmatprep.subr.mxu0 0.0
        %3165 = vmatpush1.msra.mxu0 0.0
        %3166 = vmatprep.subr.mxu0 0.0
        %3167 = vmatpush1.msra.mxu0 0.0
        %3168 = vmatprep.subr.mxu0 0.0
        %3169 = vmatpush1.msra.mxu0 0.0
        %3170 = vmatprep.subr.mxu0 0.0
        %3171 = vmatpush1.msra.mxu0 0.0
        %3172 = vmatprep.subr.mxu0 0.0
        %3173 = vmatpush1.msra.mxu0 0.0
        %3174 = vmatprep.mubr.f32.mxu0 0.0
        %v3175 = vand.u32 %v2725, 4294901760
        %v3176 = vsub.f32 %v2725, %v3175
        %v3177 = vand.u32 %v3176, 4294901760
        %3178 = vmatmul.mubr.f32.gmra.mrb[0].mxu0 %v3177
        %v3179 = vpop.f32.mrb[0].mxu0
        %v3180 = vadd.f32 %v3088, %v3179
        %v3181 = vpop.f32.mrb[0].mxu0
        %v3182 = vadd.f32 %v3090, %v3181
        %3183 = vdwg.mxu0
        %v3184 = vand.u32 %v2698, 4294901760
        %v3185 = vsub.f32 %v2698, %v3184
        %v3186 = vand.u32 %v3185, 4294901760
        %3187 = vmatprep.subr.mxu0 %v3186
        %v3188 = vand.u32 %v2697, 4294901760
        %v3189 = vsub.f32 %v2697, %v3188
        %v3190 = vand.u32 %v3189, 4294901760
        %3191 = vmatpush1.msra.mxu0 %v3190
        %v3192 = vand.u32 %v2700, 4294901760
        %v3193 = vsub.f32 %v2700, %v3192
        %v3194 = vand.u32 %v3193, 4294901760
        %3195 = vmatprep.subr.mxu0 %v3194
        %v3196 = vand.u32 %v2699, 4294901760
        %v3197 = vsub.f32 %v2699, %v3196
        %v3198 = vand.u32 %v3197, 4294901760
        %3199 = vmatpush1.msra.mxu0 %v3198
        %v3200 = vand.u32 %v2702, 4294901760
        %v3201 = vsub.f32 %v2702, %v3200
        %v3202 = vand.u32 %v3201, 4294901760
        %3203 = vmatprep.subr.mxu0 %v3202
        %v3204 = vand.u32 %v2701, 4294901760
        %v3205 = vsub.f32 %v2701, %v3204
        %v3206 = vand.u32 %v3205, 4294901760
        %3207 = vmatpush1.msra.mxu0 %v3206
        %v3208 = vand.u32 %v2704, 4294901760
        %v3209 = vsub.f32 %v2704, %v3208
        %v3210 = vand.u32 %v3209, 4294901760
        %3211 = vmatprep.subr.mxu0 %v3210
        %v3212 = vand.u32 %v2703, 4294901760
        %v3213 = vsub.f32 %v2703, %v3212
        %v3214 = vand.u32 %v3213, 4294901760
        %3215 = vmatpush1.msra.mxu0 %v3214
        %v3216 = vand.u32 %v2706, 4294901760
        %v3217 = vsub.f32 %v2706, %v3216
        %v3218 = vand.u32 %v3217, 4294901760
        %3219 = vmatprep.subr.mxu0 %v3218
        %v3220 = vand.u32 %v2705, 4294901760
        %v3221 = vsub.f32 %v2705, %v3220
        %v3222 = vand.u32 %v3221, 4294901760
        %3223 = vmatpush1.msra.mxu0 %v3222
        %v3224 = vand.u32 %v2708, 4294901760
        %v3225 = vsub.f32 %v2708, %v3224
        %v3226 = vand.u32 %v3225, 4294901760
        %3227 = vmatprep.subr.mxu0 %v3226
        %v3228 = vand.u32 %v2707, 4294901760
        %v3229 = vsub.f32 %v2707, %v3228
        %v3230 = vand.u32 %v3229, 4294901760
        %3231 = vmatpush1.msra.mxu0 %v3230
        %v3232 = vand.u32 %v2710, 4294901760
        %v3233 = vsub.f32 %v2710, %v3232
        %v3234 = vand.u32 %v3233, 4294901760
        %3235 = vmatprep.subr.mxu0 %v3234
        %v3236 = vand.u32 %v2709, 4294901760
        %v3237 = vsub.f32 %v2709, %v3236
        %v3238 = vand.u32 %v3237, 4294901760
        %3239 = vmatpush1.msra.mxu0 %v3238
        %v3240 = vand.u32 %v2712, 4294901760
        %v3241 = vsub.f32 %v2712, %v3240
        %v3242 = vand.u32 %v3241, 4294901760
        %3243 = vmatprep.subr.mxu0 %v3242
        %v3244 = vand.u32 %v2711, 4294901760
        %v3245 = vsub.f32 %v2711, %v3244
        %v3246 = vand.u32 %v3245, 4294901760
        %3247 = vmatpush1.msra.mxu0 %v3246
        %v3248 = vand.u32 %v2714, 4294901760
        %v3249 = vsub.f32 %v2714, %v3248
        %v3250 = vand.u32 %v3249, 4294901760
        %3251 = vmatprep.subr.mxu0 %v3250
        %v3252 = vand.u32 %v2713, 4294901760
        %v3253 = vsub.f32 %v2713, %v3252
        %v3254 = vand.u32 %v3253, 4294901760
        %3255 = vmatpush1.msra.mxu0 %v3254
        %3256 = vmatprep.subr.mxu0 0.0
        %3257 = vmatpush1.msra.mxu0 0.0
        %3258 = vmatprep.subr.mxu0 0.0
        %3259 = vmatpush1.msra.mxu0 0.0
        %3260 = vmatprep.subr.mxu0 0.0
        %3261 = vmatpush1.msra.mxu0 0.0
        %3262 = vmatprep.subr.mxu0 0.0
        %3263 = vmatpush1.msra.mxu0 0.0
        %3264 = vmatprep.subr.mxu0 0.0
        %3265 = vmatpush1.msra.mxu0 0.0
        %3266 = vmatprep.subr.mxu0 0.0
        %3267 = vmatpush1.msra.mxu0 0.0
        %3268 = vmatprep.subr.mxu0 0.0
        %3269 = vmatpush1.msra.mxu0 0.0
        %3270 = vmatprep.subr.mxu0 0.0
        %3271 = vmatpush1.msra.mxu0 0.0
        %3272 = vmatprep.subr.mxu0 0.0
        %3273 = vmatpush1.msra.mxu0 0.0
        %3274 = vmatprep.subr.mxu0 0.0
        %3275 = vmatpush1.msra.mxu0 0.0
        %3276 = vmatprep.subr.mxu0 0.0
        %3277 = vmatpush1.msra.mxu0 0.0
        %3278 = vmatprep.subr.mxu0 0.0
        %3279 = vmatpush1.msra.mxu0 0.0
        %3280 = vmatprep.subr.mxu0 0.0
        %3281 = vmatpush1.msra.mxu0 0.0
        %3282 = vmatprep.subr.mxu0 0.0
        %3283 = vmatpush1.msra.mxu0 0.0
        %3284 = vmatprep.subr.mxu0 0.0
        %3285 = vmatpush1.msra.mxu0 0.0
        %3286 = vmatprep.subr.mxu0 0.0
        %3287 = vmatpush1.msra.mxu0 0.0
        %3288 = vmatprep.subr.mxu0 0.0
        %3289 = vmatpush1.msra.mxu0 0.0
        %3290 = vmatprep.subr.mxu0 0.0
        %3291 = vmatpush1.msra.mxu0 0.0
        %3292 = vmatprep.subr.mxu0 0.0
        %3293 = vmatpush1.msra.mxu0 0.0
        %3294 = vmatprep.subr.mxu0 0.0
        %3295 = vmatpush1.msra.mxu0 0.0
        %3296 = vmatprep.subr.mxu0 0.0
        %3297 = vmatpush1.msra.mxu0 0.0
        %3298 = vmatprep.subr.mxu0 0.0
        %3299 = vmatpush1.msra.mxu0 0.0
        %3300 = vmatprep.subr.mxu0 0.0
        %3301 = vmatpush1.msra.mxu0 0.0
        %3302 = vmatprep.mubr.f32.mxu0 0.0
        %v3303 = vand.u32 %v2725, 4294901760
        %3304 = vmatmul.mubr.f32.gmra.mrb[0].mxu0 %v3303
        %v3305 = vpop.f32.mrb[0].mxu0
        %v3306 = vadd.f32 %v3180, %v3305
        %v3307 = vpop.f32.mrb[0].mxu0
        %v3308 = vadd.f32 %v3182, %v3307
        %3309 = vdwg.mxu0
        %v3310 = vand.u32 %v2698, 4294901760
        %3311 = vmatprep.subr.mxu0 %v3310
        %v3312 = vand.u32 %v2697, 4294901760
        %3313 = vmatpush1.msra.mxu0 %v3312
        %v3314 = vand.u32 %v2700, 4294901760
        %3315 = vmatprep.subr.mxu0 %v3314
        %v3316 = vand.u32 %v2699, 4294901760
        %3317 = vmatpush1.msra.mxu0 %v3316
        %v3318 = vand.u32 %v2702, 4294901760
        %3319 = vmatprep.subr.mxu0 %v3318
        %v3320 = vand.u32 %v2701, 4294901760
        %3321 = vmatpush1.msra.mxu0 %v3320
        %v3322 = vand.u32 %v2704, 4294901760
        %3323 = vmatprep.subr.mxu0 %v3322
        %v3324 = vand.u32 %v2703, 4294901760
        %3325 = vmatpush1.msra.mxu0 %v3324
        %v3326 = vand.u32 %v2706, 4294901760
        %3327 = vmatprep.subr.mxu0 %v3326
        %v3328 = vand.u32 %v2705, 4294901760
        %3329 = vmatpush1.msra.mxu0 %v3328
        %v3330 = vand.u32 %v2708, 4294901760
        %3331 = vmatprep.subr.mxu0 %v3330
        %v3332 = vand.u32 %v2707, 4294901760
        %3333 = vmatpush1.msra.mxu0 %v3332
        %v3334 = vand.u32 %v2710, 4294901760
        %3335 = vmatprep.subr.mxu0 %v3334
        %v3336 = vand.u32 %v2709, 4294901760
        %3337 = vmatpush1.msra.mxu0 %v3336
        %v3338 = vand.u32 %v2712, 4294901760
        %3339 = vmatprep.subr.mxu0 %v3338
        %v3340 = vand.u32 %v2711, 4294901760
        %3341 = vmatpush1.msra.mxu0 %v3340
        %v3342 = vand.u32 %v2714, 4294901760
        %3343 = vmatprep.subr.mxu0 %v3342
        %v3344 = vand.u32 %v2713, 4294901760
        %3345 = vmatpush1.msra.mxu0 %v3344
        %3346 = vmatprep.subr.mxu0 0.0
        %3347 = vmatpush1.msra.mxu0 0.0
        %3348 = vmatprep.subr.mxu0 0.0
        %3349 = vmatpush1.msra.mxu0 0.0
        %3350 = vmatprep.subr.mxu0 0.0
        %3351 = vmatpush1.msra.mxu0 0.0
        %3352 = vmatprep.subr.mxu0 0.0
        %3353 = vmatpush1.msra.mxu0 0.0
        %3354 = vmatprep.subr.mxu0 0.0
        %3355 = vmatpush1.msra.mxu0 0.0
        %3356 = vmatprep.subr.mxu0 0.0
        %3357 = vmatpush1.msra.mxu0 0.0
        %3358 = vmatprep.subr.mxu0 0.0
        %3359 = vmatpush1.msra.mxu0 0.0
        %3360 = vmatprep.subr.mxu0 0.0
        %3361 = vmatpush1.msra.mxu0 0.0
        %3362 = vmatprep.subr.mxu0 0.0
        %3363 = vmatpush1.msra.mxu0 0.0
        %3364 = vmatprep.subr.mxu0 0.0
        %3365 = vmatpush1.msra.mxu0 0.0
        %3366 = vmatprep.subr.mxu0 0.0
        %3367 = vmatpush1.msra.mxu0 0.0
        %3368 = vmatprep.subr.mxu0 0.0
        %3369 = vmatpush1.msra.mxu0 0.0
        %3370 = vmatprep.subr.mxu0 0.0
        %3371 = vmatpush1.msra.mxu0 0.0
        %3372 = vmatprep.subr.mxu0 0.0
        %3373 = vmatpush1.msra.mxu0 0.0
        %3374 = vmatprep.subr.mxu0 0.0
        %3375 = vmatpush1.msra.mxu0 0.0
        %3376 = vmatprep.subr.mxu0 0.0
        %3377 = vmatpush1.msra.mxu0 0.0
        %3378 = vmatprep.subr.mxu0 0.0
        %3379 = vmatpush1.msra.mxu0 0.0
        %3380 = vmatprep.subr.mxu0 0.0
        %3381 = vmatpush1.msra.mxu0 0.0
        %3382 = vmatprep.subr.mxu0 0.0
        %3383 = vmatpush1.msra.mxu0 0.0
        %3384 = vmatprep.subr.mxu0 0.0
        %3385 = vmatpush1.msra.mxu0 0.0
        %3386 = vmatprep.subr.mxu0 0.0
        %3387 = vmatpush1.msra.mxu0 0.0
        %3388 = vmatprep.subr.mxu0 0.0
        %3389 = vmatpush1.msra.mxu0 0.0
        %3390 = vmatprep.subr.mxu0 0.0
        %3391 = vmatpush1.msra.mxu0 0.0
        %3392 = vmatprep.mubr.f32.mxu0 0.0
        %v3393 = vand.u32 %v2725, 4294901760
        %3394 = vmatmul.mubr.f32.gmra.mrb[0].mxu0 %v3393
        %v3395 = vpop.f32.mrb[0].mxu0
        %v3396 = vadd.f32 %v3306, %v3395
        %v3397 = vpop.f32.mrb[0].mxu0
        %v3398 = vadd.f32 %v3308, %v3397
        %3399 = vdwg.mxu0
        %v3400 = vmax.f32 %v3396, 0.0
        %v3401 = vmax.f32 %v3398, 0.0
        %3402 = vrot.lane.b32.xlu0 %v3400, 17
        %v3403 = vpop.permute.xlu0 %3402
        %3404 = vrot.lane.b32.xlu0 %v3401, 17
        %v3405 = vpop.permute.xlu0 %3404
        %v3406 = vsel %vm387, %v3403, %v3405
        %v3407 = vsel %vm387, %v3405, %v3403
        %3408 = vrot.lane.b32.xlu0 %v3400, 16
        %v3409 = vpop.permute.xlu0 %3408
        %3410 = vrot.lane.b32.xlu0 %v3401, 16
        %v3411 = vpop.permute.xlu0 %3410
        %v3412 = vsel %vm394, %v3409, %v3411
        %v3413 = vsel %vm394, %v3411, %v3409
        %3414 = vrot.lane.b32.xlu0 %v3400, 15
        %v3415 = vpop.permute.xlu0 %3414
        %3416 = vrot.lane.b32.xlu0 %v3401, 15
        %v3417 = vpop.permute.xlu0 %3416
        %v3418 = vsel %vm401, %v3415, %v3417
        %v3419 = vsel %vm401, %v3417, %v3415
        %3420 = vrot.lane.b32.xlu0 %v3400, 1
        %v3421 = vpop.permute.xlu0 %3420
        %3422 = vrot.lane.b32.xlu0 %v3401, 1
        %v3423 = vpop.permute.xlu0 %3422
        %v3424 = vsel %vm408, %v3421, %v3423
        %v3425 = vsel %vm408, %v3423, %v3421
        %3426 = vrot.lane.b32.xlu0 %v3400, 127
        %v3427 = vpop.permute.xlu0 %3426
        %3428 = vrot.lane.b32.xlu0 %v3401, 127
        %v3429 = vpop.permute.xlu0 %3428
        %v3430 = vsel %vm415, %v3427, %v3429
        %v3431 = vsel %vm415, %v3429, %v3427
        %3432 = vrot.lane.b32.xlu0 %v3400, 113
        %v3433 = vpop.permute.xlu0 %3432
        %3434 = vrot.lane.b32.xlu0 %v3401, 113
        %v3435 = vpop.permute.xlu0 %3434
        %v3436 = vsel %vm422, %v3433, %v3435
        %v3437 = vsel %vm422, %v3435, %v3433
        %3438 = vrot.lane.b32.xlu0 %v3400, 112
        %v3439 = vpop.permute.xlu0 %3438
        %3440 = vrot.lane.b32.xlu0 %v3401, 112
        %v3441 = vpop.permute.xlu0 %3440
        %v3442 = vsel %vm429, %v3439, %v3441
        %v3443 = vsel %vm429, %v3441, %v3439
        %3444 = vrot.lane.b32.xlu0 %v3400, 111
        %v3445 = vpop.permute.xlu0 %3444
        %3446 = vrot.lane.b32.xlu0 %v3401, 111
        %v3447 = vpop.permute.xlu0 %3446
        %v3448 = vsel %vm436, %v3445, %v3447
        %v3449 = vsel %vm436, %v3447, %v3445
        %v3450 = vmul.f32 %v3407, %v297
        %v3451 = vmul.f32 %v3406, %v298
        %v3452 = vmul.f32 %v3413, %v299
        %v3453 = vmul.f32 %v3412, %v300
        %v3454 = vmul.f32 %v3419, %v301
        %v3455 = vmul.f32 %v3418, %v302
        %v3456 = vmul.f32 %v3425, %v303
        %v3457 = vmul.f32 %v3424, %v304
        %v3458 = vmul.f32 %v3400, %v305
        %v3459 = vmul.f32 %v3401, %v306
        %v3460 = vmul.f32 %v3430, %v307
        %v3461 = vmul.f32 %v3431, %v308
        %v3462 = vmul.f32 %v3436, %v309
        %v3463 = vmul.f32 %v3437, %v310
        %v3464 = vmul.f32 %v3442, %v311
        %v3465 = vmul.f32 %v3443, %v312
        %v3466 = vmul.f32 %v3448, %v313
        %v3467 = vmul.f32 %v3449, %v314
        %s3468 = scalar_lea.vmem %s1, 32
        %v3469 = vld [vmem:[%s3468] sm:$0xff]
        %s3470 = scalar_lea.vmem %s2, 32
        %v3471 = vld [vmem:[%s3470] sm:$0xff]
        %3473 = vset.pattern.permute.xlu0 0
        %3474 = vperm.xlu0 %3473, %v3471
        %v3475 = vpop.permute.xlu0 %3474
        %v3478 = vsel %vm464, %v3469, 0
        %v3480 = vand.u32 %v3451, 4294901760
        %3481 = vmatprep.subr.mxu0 %v3480
        %v3482 = vand.u32 %v3450, 4294901760
        %3483 = vmatpush1.msra.mxu0 %v3482
        %v3484 = vand.u32 %v3453, 4294901760
        %3485 = vmatprep.subr.mxu0 %v3484
        %v3486 = vand.u32 %v3452, 4294901760
        %3487 = vmatpush1.msra.mxu0 %v3486
        %v3488 = vand.u32 %v3455, 4294901760
        %3489 = vmatprep.subr.mxu0 %v3488
        %v3490 = vand.u32 %v3454, 4294901760
        %3491 = vmatpush1.msra.mxu0 %v3490
        %v3492 = vand.u32 %v3457, 4294901760
        %3493 = vmatprep.subr.mxu0 %v3492
        %v3494 = vand.u32 %v3456, 4294901760
        %3495 = vmatpush1.msra.mxu0 %v3494
        %v3496 = vand.u32 %v3459, 4294901760
        %3497 = vmatprep.subr.mxu0 %v3496
        %v3498 = vand.u32 %v3458, 4294901760
        %3499 = vmatpush1.msra.mxu0 %v3498
        %v3500 = vand.u32 %v3461, 4294901760
        %3501 = vmatprep.subr.mxu0 %v3500
        %v3502 = vand.u32 %v3460, 4294901760
        %3503 = vmatpush1.msra.mxu0 %v3502
        %v3504 = vand.u32 %v3463, 4294901760
        %3505 = vmatprep.subr.mxu0 %v3504
        %v3506 = vand.u32 %v3462, 4294901760
        %3507 = vmatpush1.msra.mxu0 %v3506
        %v3508 = vand.u32 %v3465, 4294901760
        %3509 = vmatprep.subr.mxu0 %v3508
        %v3510 = vand.u32 %v3464, 4294901760
        %3511 = vmatpush1.msra.mxu0 %v3510
        %v3512 = vand.u32 %v3467, 4294901760
        %3513 = vmatprep.subr.mxu0 %v3512
        %v3514 = vand.u32 %v3466, 4294901760
        %3515 = vmatpush1.msra.mxu0 %v3514
        %3516 = vmatprep.subr.mxu0 0.0
        %3517 = vmatpush1.msra.mxu0 0.0
        %3518 = vmatprep.subr.mxu0 0.0
        %3519 = vmatpush1.msra.mxu0 0.0
        %3520 = vmatprep.subr.mxu0 0.0
        %3521 = vmatpush1.msra.mxu0 0.0
        %3522 = vmatprep.subr.mxu0 0.0
        %3523 = vmatpush1.msra.mxu0 0.0
        %3524 = vmatprep.subr.mxu0 0.0
        %3525 = vmatpush1.msra.mxu0 0.0
        %3526 = vmatprep.subr.mxu0 0.0
        %3527 = vmatpush1.msra.mxu0 0.0
        %3528 = vmatprep.subr.mxu0 0.0
        %3529 = vmatpush1.msra.mxu0 0.0
        %3530 = vmatprep.subr.mxu0 0.0
        %3531 = vmatpush1.msra.mxu0 0.0
        %3532 = vmatprep.subr.mxu0 0.0
        %3533 = vmatpush1.msra.mxu0 0.0
        %3534 = vmatprep.subr.mxu0 0.0
        %3535 = vmatpush1.msra.mxu0 0.0
        %3536 = vmatprep.subr.mxu0 0.0
        %3537 = vmatpush1.msra.mxu0 0.0
        %3538 = vmatprep.subr.mxu0 0.0
        %3539 = vmatpush1.msra.mxu0 0.0
        %3540 = vmatprep.subr.mxu0 0.0
        %3541 = vmatpush1.msra.mxu0 0.0
        %3542 = vmatprep.subr.mxu0 0.0
        %3543 = vmatpush1.msra.mxu0 0.0
        %3544 = vmatprep.subr.mxu0 0.0
        %3545 = vmatpush1.msra.mxu0 0.0
        %3546 = vmatprep.subr.mxu0 0.0
        %3547 = vmatpush1.msra.mxu0 0.0
        %3548 = vmatprep.subr.mxu0 0.0
        %3549 = vmatpush1.msra.mxu0 0.0
        %3550 = vmatprep.subr.mxu0 0.0
        %3551 = vmatpush1.msra.mxu0 0.0
        %3552 = vmatprep.subr.mxu0 0.0
        %3553 = vmatpush1.msra.mxu0 0.0
        %3554 = vmatprep.subr.mxu0 0.0
        %3555 = vmatpush1.msra.mxu0 0.0
        %3556 = vmatprep.subr.mxu0 0.0
        %3557 = vmatpush1.msra.mxu0 0.0
        %3558 = vmatprep.subr.mxu0 0.0
        %3559 = vmatpush1.msra.mxu0 0.0
        %3560 = vmatprep.subr.mxu0 0.0
        %3561 = vmatpush1.msra.mxu0 0.0
        %3562 = vmatprep.mubr.f32.mxu0 0.0
        %v3563 = vand.u32 %v3478, 4294901760
        %v3564 = vsub.f32 %v3478, %v3563
        %v3565 = vand.u32 %v3564, 4294901760
        %v3566 = vsub.f32 %v3564, %v3565
        %v3567 = vand.u32 %v3566, 4294901760
        %3568 = vmatmul.mubr.f32.gmra.mrb[0].mxu0 %v3567
        %v3569 = vpop.f32.mrb[0].mxu0
        %v3570 = vadd.f32 %v3475, %v3569
        %v3571 = vpop.f32.mrb[0].mxu0
        %v3572 = vadd.f32 %v3475, %v3571
        %3573 = vdwg.mxu0
        %v3574 = vand.u32 %v3451, 4294901760
        %v3575 = vsub.f32 %v3451, %v3574
        %v3576 = vand.u32 %v3575, 4294901760
        %v3577 = vsub.f32 %v3575, %v3576
        %v3578 = vand.u32 %v3577, 4294901760
        %3579 = vmatprep.subr.mxu0 %v3578
        %v3580 = vand.u32 %v3450, 4294901760
        %v3581 = vsub.f32 %v3450, %v3580
        %v3582 = vand.u32 %v3581, 4294901760
        %v3583 = vsub.f32 %v3581, %v3582
        %v3584 = vand.u32 %v3583, 4294901760
        %3585 = vmatpush1.msra.mxu0 %v3584
        %v3586 = vand.u32 %v3453, 4294901760
        %v3587 = vsub.f32 %v3453, %v3586
        %v3588 = vand.u32 %v3587, 4294901760
        %v3589 = vsub.f32 %v3587, %v3588
        %v3590 = vand.u32 %v3589, 4294901760
        %3591 = vmatprep.subr.mxu0 %v3590
        %v3592 = vand.u32 %v3452, 4294901760
        %v3593 = vsub.f32 %v3452, %v3592
        %v3594 = vand.u32 %v3593, 4294901760
        %v3595 = vsub.f32 %v3593, %v3594
        %v3596 = vand.u32 %v3595, 4294901760
        %3597 = vmatpush1.msra.mxu0 %v3596
        %v3598 = vand.u32 %v3455, 4294901760
        %v3599 = vsub.f32 %v3455, %v3598
        %v3600 = vand.u32 %v3599, 4294901760
        %v3601 = vsub.f32 %v3599, %v3600
        %v3602 = vand.u32 %v3601, 4294901760
        %3603 = vmatprep.subr.mxu0 %v3602
        %v3604 = vand.u32 %v3454, 4294901760
        %v3605 = vsub.f32 %v3454, %v3604
        %v3606 = vand.u32 %v3605, 4294901760
        %v3607 = vsub.f32 %v3605, %v3606
        %v3608 = vand.u32 %v3607, 4294901760
        %3609 = vmatpush1.msra.mxu0 %v3608
        %v3610 = vand.u32 %v3457, 4294901760
        %v3611 = vsub.f32 %v3457, %v3610
        %v3612 = vand.u32 %v3611, 4294901760
        %v3613 = vsub.f32 %v3611, %v3612
        %v3614 = vand.u32 %v3613, 4294901760
        %3615 = vmatprep.subr.mxu0 %v3614
        %v3616 = vand.u32 %v3456, 4294901760
        %v3617 = vsub.f32 %v3456, %v3616
        %v3618 = vand.u32 %v3617, 4294901760
        %v3619 = vsub.f32 %v3617, %v3618
        %v3620 = vand.u32 %v3619, 4294901760
        %3621 = vmatpush1.msra.mxu0 %v3620
        %v3622 = vand.u32 %v3459, 4294901760
        %v3623 = vsub.f32 %v3459, %v3622
        %v3624 = vand.u32 %v3623, 4294901760
        %v3625 = vsub.f32 %v3623, %v3624
        %v3626 = vand.u32 %v3625, 4294901760
        %3627 = vmatprep.subr.mxu0 %v3626
        %v3628 = vand.u32 %v3458, 4294901760
        %v3629 = vsub.f32 %v3458, %v3628
        %v3630 = vand.u32 %v3629, 4294901760
        %v3631 = vsub.f32 %v3629, %v3630
        %v3632 = vand.u32 %v3631, 4294901760
        %3633 = vmatpush1.msra.mxu0 %v3632
        %v3634 = vand.u32 %v3461, 4294901760
        %v3635 = vsub.f32 %v3461, %v3634
        %v3636 = vand.u32 %v3635, 4294901760
        %v3637 = vsub.f32 %v3635, %v3636
        %v3638 = vand.u32 %v3637, 4294901760
        %3639 = vmatprep.subr.mxu0 %v3638
        %v3640 = vand.u32 %v3460, 4294901760
        %v3641 = vsub.f32 %v3460, %v3640
        %v3642 = vand.u32 %v3641, 4294901760
        %v3643 = vsub.f32 %v3641, %v3642
        %v3644 = vand.u32 %v3643, 4294901760
        %3645 = vmatpush1.msra.mxu0 %v3644
        %v3646 = vand.u32 %v3463, 4294901760
        %v3647 = vsub.f32 %v3463, %v3646
        %v3648 = vand.u32 %v3647, 4294901760
        %v3649 = vsub.f32 %v3647, %v3648
        %v3650 = vand.u32 %v3649, 4294901760
        %3651 = vmatprep.subr.mxu0 %v3650
        %v3652 = vand.u32 %v3462, 4294901760
        %v3653 = vsub.f32 %v3462, %v3652
        %v3654 = vand.u32 %v3653, 4294901760
        %v3655 = vsub.f32 %v3653, %v3654
        %v3656 = vand.u32 %v3655, 4294901760
        %3657 = vmatpush1.msra.mxu0 %v3656
        %v3658 = vand.u32 %v3465, 4294901760
        %v3659 = vsub.f32 %v3465, %v3658
        %v3660 = vand.u32 %v3659, 4294901760
        %v3661 = vsub.f32 %v3659, %v3660
        %v3662 = vand.u32 %v3661, 4294901760
        %3663 = vmatprep.subr.mxu0 %v3662
        %v3664 = vand.u32 %v3464, 4294901760
        %v3665 = vsub.f32 %v3464, %v3664
        %v3666 = vand.u32 %v3665, 4294901760
        %v3667 = vsub.f32 %v3665, %v3666
        %v3668 = vand.u32 %v3667, 4294901760
        %3669 = vmatpush1.msra.mxu0 %v3668
        %v3670 = vand.u32 %v3467, 4294901760
        %v3671 = vsub.f32 %v3467, %v3670
        %v3672 = vand.u32 %v3671, 4294901760
        %v3673 = vsub.f32 %v3671, %v3672
        %v3674 = vand.u32 %v3673, 4294901760
        %3675 = vmatprep.subr.mxu0 %v3674
        %v3676 = vand.u32 %v3466, 4294901760
        %v3677 = vsub.f32 %v3466, %v3676
        %v3678 = vand.u32 %v3677, 4294901760
        %v3679 = vsub.f32 %v3677, %v3678
        %v3680 = vand.u32 %v3679, 4294901760
        %3681 = vmatpush1.msra.mxu0 %v3680
        %3682 = vmatprep.subr.mxu0 0.0
        %3683 = vmatpush1.msra.mxu0 0.0
        %3684 = vmatprep.subr.mxu0 0.0
        %3685 = vmatpush1.msra.mxu0 0.0
        %3686 = vmatprep.subr.mxu0 0.0
        %3687 = vmatpush1.msra.mxu0 0.0
        %3688 = vmatprep.subr.mxu0 0.0
        %3689 = vmatpush1.msra.mxu0 0.0
        %3690 = vmatprep.subr.mxu0 0.0
        %3691 = vmatpush1.msra.mxu0 0.0
        %3692 = vmatprep.subr.mxu0 0.0
        %3693 = vmatpush1.msra.mxu0 0.0
        %3694 = vmatprep.subr.mxu0 0.0
        %3695 = vmatpush1.msra.mxu0 0.0
        %3696 = vmatprep.subr.mxu0 0.0
        %3697 = vmatpush1.msra.mxu0 0.0
        %3698 = vmatprep.subr.mxu0 0.0
        %3699 = vmatpush1.msra.mxu0 0.0
        %3700 = vmatprep.subr.mxu0 0.0
        %3701 = vmatpush1.msra.mxu0 0.0
        %3702 = vmatprep.subr.mxu0 0.0
        %3703 = vmatpush1.msra.mxu0 0.0
        %3704 = vmatprep.subr.mxu0 0.0
        %3705 = vmatpush1.msra.mxu0 0.0
        %3706 = vmatprep.subr.mxu0 0.0
        %3707 = vmatpush1.msra.mxu0 0.0
        %3708 = vmatprep.subr.mxu0 0.0
        %3709 = vmatpush1.msra.mxu0 0.0
        %3710 = vmatprep.subr.mxu0 0.0
        %3711 = vmatpush1.msra.mxu0 0.0
        %3712 = vmatprep.subr.mxu0 0.0
        %3713 = vmatpush1.msra.mxu0 0.0
        %3714 = vmatprep.subr.mxu0 0.0
        %3715 = vmatpush1.msra.mxu0 0.0
        %3716 = vmatprep.subr.mxu0 0.0
        %3717 = vmatpush1.msra.mxu0 0.0
        %3718 = vmatprep.subr.mxu0 0.0
        %3719 = vmatpush1.msra.mxu0 0.0
        %3720 = vmatprep.subr.mxu0 0.0
        %3721 = vmatpush1.msra.mxu0 0.0
        %3722 = vmatprep.subr.mxu0 0.0
        %3723 = vmatpush1.msra.mxu0 0.0
        %3724 = vmatprep.subr.mxu0 0.0
        %3725 = vmatpush1.msra.mxu0 0.0
        %3726 = vmatprep.subr.mxu0 0.0
        %3727 = vmatpush1.msra.mxu0 0.0
        %3728 = vmatprep.mubr.f32.mxu0 0.0
        %v3729 = vand.u32 %v3478, 4294901760
        %3730 = vmatmul.mubr.f32.gmra.mrb[0].mxu0 %v3729
        %v3731 = vpop.f32.mrb[0].mxu0
        %v3732 = vadd.f32 %v3570, %v3731
        %v3733 = vpop.f32.mrb[0].mxu0
        %v3734 = vadd.f32 %v3572, %v3733
        %3735 = vdwg.mxu0
        %v3736 = vand.u32 %v3451, 4294901760
        %v3737 = vsub.f32 %v3451, %v3736
        %3738 = vmatprep.subr.mxu0 %v3737
        %v3739 = vand.u32 %v3450, 4294901760
        %v3740 = vsub.f32 %v3450, %v3739
        %3741 = vmatpush1.msra.mxu0 %v3740
        %v3742 = vand.u32 %v3453, 4294901760
        %v3743 = vsub.f32 %v3453, %v3742
        %3744 = vmatprep.subr.mxu0 %v3743
        %v3745 = vand.u32 %v3452, 4294901760
        %v3746 = vsub.f32 %v3452, %v3745
        %3747 = vmatpush1.msra.mxu0 %v3746
        %v3748 = vand.u32 %v3455, 4294901760
        %v3749 = vsub.f32 %v3455, %v3748
        %3750 = vmatprep.subr.mxu0 %v3749
        %v3751 = vand.u32 %v3454, 4294901760
        %v3752 = vsub.f32 %v3454, %v3751
        %3753 = vmatpush1.msra.mxu0 %v3752
        %v3754 = vand.u32 %v3457, 4294901760
        %v3755 = vsub.f32 %v3457, %v3754
        %3756 = vmatprep.subr.mxu0 %v3755
        %v3757 = vand.u32 %v3456, 4294901760
        %v3758 = vsub.f32 %v3456, %v3757
        %3759 = vmatpush1.msra.mxu0 %v3758
        %v3760 = vand.u32 %v3459, 4294901760
        %v3761 = vsub.f32 %v3459, %v3760
        %3762 = vmatprep.subr.mxu0 %v3761
        %v3763 = vand.u32 %v3458, 4294901760
        %v3764 = vsub.f32 %v3458, %v3763
        %3765 = vmatpush1.msra.mxu0 %v3764
        %v3766 = vand.u32 %v3461, 4294901760
        %v3767 = vsub.f32 %v3461, %v3766
        %3768 = vmatprep.subr.mxu0 %v3767
        %v3769 = vand.u32 %v3460, 4294901760
        %v3770 = vsub.f32 %v3460, %v3769
        %3771 = vmatpush1.msra.mxu0 %v3770
        %v3772 = vand.u32 %v3463, 4294901760
        %v3773 = vsub.f32 %v3463, %v3772
        %3774 = vmatprep.subr.mxu0 %v3773
        %v3775 = vand.u32 %v3462, 4294901760
        %v3776 = vsub.f32 %v3462, %v3775
        %3777 = vmatpush1.msra.mxu0 %v3776
        %v3778 = vand.u32 %v3465, 4294901760
        %v3779 = vsub.f32 %v3465, %v3778
        %3780 = vmatprep.subr.mxu0 %v3779
        %v3781 = vand.u32 %v3464, 4294901760
        %v3782 = vsub.f32 %v3464, %v3781
        %3783 = vmatpush1.msra.mxu0 %v3782
        %v3784 = vand.u32 %v3467, 4294901760
        %v3785 = vsub.f32 %v3467, %v3784
        %3786 = vmatprep.subr.mxu0 %v3785
        %v3787 = vand.u32 %v3466, 4294901760
        %v3788 = vsub.f32 %v3466, %v3787
        %3789 = vmatpush1.msra.mxu0 %v3788
        %3790 = vmatprep.subr.mxu0 0.0
        %3791 = vmatpush1.msra.mxu0 0.0
        %3792 = vmatprep.subr.mxu0 0.0
        %3793 = vmatpush1.msra.mxu0 0.0
        %3794 = vmatprep.subr.mxu0 0.0
        %3795 = vmatpush1.msra.mxu0 0.0
        %3796 = vmatprep.subr.mxu0 0.0
        %3797 = vmatpush1.msra.mxu0 0.0
        %3798 = vmatprep.subr.mxu0 0.0
        %3799 = vmatpush1.msra.mxu0 0.0
        %3800 = vmatprep.subr.mxu0 0.0
        %3801 = vmatpush1.msra.mxu0 0.0
        %3802 = vmatprep.subr.mxu0 0.0
        %3803 = vmatpush1.msra.mxu0 0.0
        %3804 = vmatprep.subr.mxu0 0.0
        %3805 = vmatpush1.msra.mxu0 0.0
        %3806 = vmatprep.subr.mxu0 0.0
        %3807 = vmatpush1.msra.mxu0 0.0
        %3808 = vmatprep.subr.mxu0 0.0
        %3809 = vmatpush1.msra.mxu0 0.0
        %3810 = vmatprep.subr.mxu0 0.0
        %3811 = vmatpush1.msra.mxu0 0.0
        %3812 = vmatprep.subr.mxu0 0.0
        %3813 = vmatpush1.msra.mxu0 0.0
        %3814 = vmatprep.subr.mxu0 0.0
        %3815 = vmatpush1.msra.mxu0 0.0
        %3816 = vmatprep.subr.mxu0 0.0
        %3817 = vmatpush1.msra.mxu0 0.0
        %3818 = vmatprep.subr.mxu0 0.0
        %3819 = vmatpush1.msra.mxu0 0.0
        %3820 = vmatprep.subr.mxu0 0.0
        %3821 = vmatpush1.msra.mxu0 0.0
        %3822 = vmatprep.subr.mxu0 0.0
        %3823 = vmatpush1.msra.mxu0 0.0
        %3824 = vmatprep.subr.mxu0 0.0
        %3825 = vmatpush1.msra.mxu0 0.0
        %3826 = vmatprep.subr.mxu0 0.0
        %3827 = vmatpush1.msra.mxu0 0.0
        %3828 = vmatprep.subr.mxu0 0.0
        %3829 = vmatpush1.msra.mxu0 0.0
        %3830 = vmatprep.subr.mxu0 0.0
        %3831 = vmatpush1.msra.mxu0 0.0
        %3832 = vmatprep.subr.mxu0 0.0
        %3833 = vmatpush1.msra.mxu0 0.0
        %3834 = vmatprep.subr.mxu0 0.0
        %3835 = vmatpush1.msra.mxu0 0.0
        %3836 = vmatprep.mubr.f32.mxu0 0.0
        %v3837 = vand.u32 %v3478, 4294901760
        %v3838 = vsub.f32 %v3478, %v3837
        %3839 = vmatmul.mubr.f32.gmra.mrb[0].mxu0 %v3838
        %v3840 = vpop.f32.mrb[0].mxu0
        %v3841 = vadd.f32 %v3732, %v3840
        %v3842 = vpop.f32.mrb[0].mxu0
        %v3843 = vadd.f32 %v3734, %v3842
        %3844 = vdwg.mxu0
        %v3845 = vand.u32 %v3451, 4294901760
        %3846 = vmatprep.subr.mxu0 %v3845
        %v3847 = vand.u32 %v3450, 4294901760
        %3848 = vmatpush1.msra.mxu0 %v3847
        %v3849 = vand.u32 %v3453, 4294901760
        %3850 = vmatprep.subr.mxu0 %v3849
        %v3851 = vand.u32 %v3452, 4294901760
        %3852 = vmatpush1.msra.mxu0 %v3851
        %v3853 = vand.u32 %v3455, 4294901760
        %3854 = vmatprep.subr.mxu0 %v3853
        %v3855 = vand.u32 %v3454, 4294901760
        %3856 = vmatpush1.msra.mxu0 %v3855
        %v3857 = vand.u32 %v3457, 4294901760
        %3858 = vmatprep.subr.mxu0 %v3857
        %v3859 = vand.u32 %v3456, 4294901760
        %3860 = vmatpush1.msra.mxu0 %v3859
        %v3861 = vand.u32 %v3459, 4294901760
        %3862 = vmatprep.subr.mxu0 %v3861
        %v3863 = vand.u32 %v3458, 4294901760
        %3864 = vmatpush1.msra.mxu0 %v3863
        %v3865 = vand.u32 %v3461, 4294901760
        %3866 = vmatprep.subr.mxu0 %v3865
        %v3867 = vand.u32 %v3460, 4294901760
        %3868 = vmatpush1.msra.mxu0 %v3867
        %v3869 = vand.u32 %v3463, 4294901760
        %3870 = vmatprep.subr.mxu0 %v3869
        %v3871 = vand.u32 %v3462, 4294901760
        %3872 = vmatpush1.msra.mxu0 %v3871
        %v3873 = vand.u32 %v3465, 4294901760
        %3874 = vmatprep.subr.mxu0 %v3873
        %v3875 = vand.u32 %v3464, 4294901760
        %3876 = vmatpush1.msra.mxu0 %v3875
        %v3877 = vand.u32 %v3467, 4294901760
        %3878 = vmatprep.subr.mxu0 %v3877
        %v3879 = vand.u32 %v3466, 4294901760
        %3880 = vmatpush1.msra.mxu0 %v3879
        %3881 = vmatprep.subr.mxu0 0.0
        %3882 = vmatpush1.msra.mxu0 0.0
        %3883 = vmatprep.subr.mxu0 0.0
        %3884 = vmatpush1.msra.mxu0 0.0
        %3885 = vmatprep.subr.mxu0 0.0
        %3886 = vmatpush1.msra.mxu0 0.0
        %3887 = vmatprep.subr.mxu0 0.0
        %3888 = vmatpush1.msra.mxu0 0.0
        %3889 = vmatprep.subr.mxu0 0.0
        %3890 = vmatpush1.msra.mxu0 0.0
        %3891 = vmatprep.subr.mxu0 0.0
        %3892 = vmatpush1.msra.mxu0 0.0
        %3893 = vmatprep.subr.mxu0 0.0
        %3894 = vmatpush1.msra.mxu0 0.0
        %3895 = vmatprep.subr.mxu0 0.0
        %3896 = vmatpush1.msra.mxu0 0.0
        %3897 = vmatprep.subr.mxu0 0.0
        %3898 = vmatpush1.msra.mxu0 0.0
        %3899 = vmatprep.subr.mxu0 0.0
        %3900 = vmatpush1.msra.mxu0 0.0
        %3901 = vmatprep.subr.mxu0 0.0
        %3902 = vmatpush1.msra.mxu0 0.0
        %3903 = vmatprep.subr.mxu0 0.0
        %3904 = vmatpush1.msra.mxu0 0.0
        %3905 = vmatprep.subr.mxu0 0.0
        %3906 = vmatpush1.msra.mxu0 0.0
        %3907 = vmatprep.subr.mxu0 0.0
        %3908 = vmatpush1.msra.mxu0 0.0
        %3909 = vmatprep.subr.mxu0 0.0
        %3910 = vmatpush1.msra.mxu0 0.0
        %3911 = vmatprep.subr.mxu0 0.0
        %3912 = vmatpush1.msra.mxu0 0.0
        %3913 = vmatprep.subr.mxu0 0.0
        %3914 = vmatpush1.msra.mxu0 0.0
        %3915 = vmatprep.subr.mxu0 0.0
        %3916 = vmatpush1.msra.mxu0 0.0
        %3917 = vmatprep.subr.mxu0 0.0
        %3918 = vmatpush1.msra.mxu0 0.0
        %3919 = vmatprep.subr.mxu0 0.0
        %3920 = vmatpush1.msra.mxu0 0.0
        %3921 = vmatprep.subr.mxu0 0.0
        %3922 = vmatpush1.msra.mxu0 0.0
        %3923 = vmatprep.subr.mxu0 0.0
        %3924 = vmatpush1.msra.mxu0 0.0
        %3925 = vmatprep.subr.mxu0 0.0
        %3926 = vmatpush1.msra.mxu0 0.0
        %3927 = vmatprep.mubr.f32.mxu0 0.0
        %v3928 = vand.u32 %v3478, 4294901760
        %v3929 = vsub.f32 %v3478, %v3928
        %v3930 = vand.u32 %v3929, 4294901760
        %3931 = vmatmul.mubr.f32.gmra.mrb[0].mxu0 %v3930
        %v3932 = vpop.f32.mrb[0].mxu0
        %v3933 = vadd.f32 %v3841, %v3932
        %v3934 = vpop.f32.mrb[0].mxu0
        %v3935 = vadd.f32 %v3843, %v3934
        %3936 = vdwg.mxu0
        %v3937 = vand.u32 %v3451, 4294901760
        %v3938 = vsub.f32 %v3451, %v3937
        %v3939 = vand.u32 %v3938, 4294901760
        %3940 = vmatprep.subr.mxu0 %v3939
        %v3941 = vand.u32 %v3450, 4294901760
        %v3942 = vsub.f32 %v3450, %v3941
        %v3943 = vand.u32 %v3942, 4294901760
        %3944 = vmatpush1.msra.mxu0 %v3943
        %v3945 = vand.u32 %v3453, 4294901760
        %v3946 = vsub.f32 %v3453, %v3945
        %v3947 = vand.u32 %v3946, 4294901760
        %3948 = vmatprep.subr.mxu0 %v3947
        %v3949 = vand.u32 %v3452, 4294901760
        %v3950 = vsub.f32 %v3452, %v3949
        %v3951 = vand.u32 %v3950, 4294901760
        %3952 = vmatpush1.msra.mxu0 %v3951
        %v3953 = vand.u32 %v3455, 4294901760
        %v3954 = vsub.f32 %v3455, %v3953
        %v3955 = vand.u32 %v3954, 4294901760
        %3956 = vmatprep.subr.mxu0 %v3955
        %v3957 = vand.u32 %v3454, 4294901760
        %v3958 = vsub.f32 %v3454, %v3957
        %v3959 = vand.u32 %v3958, 4294901760
        %3960 = vmatpush1.msra.mxu0 %v3959
        %v3961 = vand.u32 %v3457, 4294901760
        %v3962 = vsub.f32 %v3457, %v3961
        %v3963 = vand.u32 %v3962, 4294901760
        %3964 = vmatprep.subr.mxu0 %v3963
        %v3965 = vand.u32 %v3456, 4294901760
        %v3966 = vsub.f32 %v3456, %v3965
        %v3967 = vand.u32 %v3966, 4294901760
        %3968 = vmatpush1.msra.mxu0 %v3967
        %v3969 = vand.u32 %v3459, 4294901760
        %v3970 = vsub.f32 %v3459, %v3969
        %v3971 = vand.u32 %v3970, 4294901760
        %3972 = vmatprep.subr.mxu0 %v3971
        %v3973 = vand.u32 %v3458, 4294901760
        %v3974 = vsub.f32 %v3458, %v3973
        %v3975 = vand.u32 %v3974, 4294901760
        %3976 = vmatpush1.msra.mxu0 %v3975
        %v3977 = vand.u32 %v3461, 4294901760
        %v3978 = vsub.f32 %v3461, %v3977
        %v3979 = vand.u32 %v3978, 4294901760
        %3980 = vmatprep.subr.mxu0 %v3979
        %v3981 = vand.u32 %v3460, 4294901760
        %v3982 = vsub.f32 %v3460, %v3981
        %v3983 = vand.u32 %v3982, 4294901760
        %3984 = vmatpush1.msra.mxu0 %v3983
        %v3985 = vand.u32 %v3463, 4294901760
        %v3986 = vsub.f32 %v3463, %v3985
        %v3987 = vand.u32 %v3986, 4294901760
        %3988 = vmatprep.subr.mxu0 %v3987
        %v3989 = vand.u32 %v3462, 4294901760
        %v3990 = vsub.f32 %v3462, %v3989
        %v3991 = vand.u32 %v3990, 4294901760
        %3992 = vmatpush1.msra.mxu0 %v3991
        %v3993 = vand.u32 %v3465, 4294901760
        %v3994 = vsub.f32 %v3465, %v3993
        %v3995 = vand.u32 %v3994, 4294901760
        %3996 = vmatprep.subr.mxu0 %v3995
        %v3997 = vand.u32 %v3464, 4294901760
        %v3998 = vsub.f32 %v3464, %v3997
        %v3999 = vand.u32 %v3998, 4294901760
        %4000 = vmatpush1.msra.mxu0 %v3999
        %v4001 = vand.u32 %v3467, 4294901760
        %v4002 = vsub.f32 %v3467, %v4001
        %v4003 = vand.u32 %v4002, 4294901760
        %4004 = vmatprep.subr.mxu0 %v4003
        %v4005 = vand.u32 %v3466, 4294901760
        %v4006 = vsub.f32 %v3466, %v4005
        %v4007 = vand.u32 %v4006, 4294901760
        %4008 = vmatpush1.msra.mxu0 %v4007
        %4009 = vmatprep.subr.mxu0 0.0
        %4010 = vmatpush1.msra.mxu0 0.0
        %4011 = vmatprep.subr.mxu0 0.0
        %4012 = vmatpush1.msra.mxu0 0.0
        %4013 = vmatprep.subr.mxu0 0.0
        %4014 = vmatpush1.msra.mxu0 0.0
        %4015 = vmatprep.subr.mxu0 0.0
        %4016 = vmatpush1.msra.mxu0 0.0
        %4017 = vmatprep.subr.mxu0 0.0
        %4018 = vmatpush1.msra.mxu0 0.0
        %4019 = vmatprep.subr.mxu0 0.0
        %4020 = vmatpush1.msra.mxu0 0.0
        %4021 = vmatprep.subr.mxu0 0.0
        %4022 = vmatpush1.msra.mxu0 0.0
        %4023 = vmatprep.subr.mxu0 0.0
        %4024 = vmatpush1.msra.mxu0 0.0
        %4025 = vmatprep.subr.mxu0 0.0
        %4026 = vmatpush1.msra.mxu0 0.0
        %4027 = vmatprep.subr.mxu0 0.0
        %4028 = vmatpush1.msra.mxu0 0.0
        %4029 = vmatprep.subr.mxu0 0.0
        %4030 = vmatpush1.msra.mxu0 0.0
        %4031 = vmatprep.subr.mxu0 0.0
        %4032 = vmatpush1.msra.mxu0 0.0
        %4033 = vmatprep.subr.mxu0 0.0
        %4034 = vmatpush1.msra.mxu0 0.0
        %4035 = vmatprep.subr.mxu0 0.0
        %4036 = vmatpush1.msra.mxu0 0.0
        %4037 = vmatprep.subr.mxu0 0.0
        %4038 = vmatpush1.msra.mxu0 0.0
        %4039 = vmatprep.subr.mxu0 0.0
        %4040 = vmatpush1.msra.mxu0 0.0
        %4041 = vmatprep.subr.mxu0 0.0
        %4042 = vmatpush1.msra.mxu0 0.0
        %4043 = vmatprep.subr.mxu0 0.0
        %4044 = vmatpush1.msra.mxu0 0.0
        %4045 = vmatprep.subr.mxu0 0.0
        %4046 = vmatpush1.msra.mxu0 0.0
        %4047 = vmatprep.subr.mxu0 0.0
        %4048 = vmatpush1.msra.mxu0 0.0
        %4049 = vmatprep.subr.mxu0 0.0
        %4050 = vmatpush1.msra.mxu0 0.0
        %4051 = vmatprep.subr.mxu0 0.0
        %4052 = vmatpush1.msra.mxu0 0.0
        %4053 = vmatprep.subr.mxu0 0.0
        %4054 = vmatpush1.msra.mxu0 0.0
        %4055 = vmatprep.mubr.f32.mxu0 0.0
        %v4056 = vand.u32 %v3478, 4294901760
        %4057 = vmatmul.mubr.f32.gmra.mrb[0].mxu0 %v4056
        %v4058 = vpop.f32.mrb[0].mxu0
        %v4059 = vadd.f32 %v3933, %v4058
        %v4060 = vpop.f32.mrb[0].mxu0
        %v4061 = vadd.f32 %v3935, %v4060
        %4062 = vdwg.mxu0
        %v4063 = vand.u32 %v3451, 4294901760
        %4064 = vmatprep.subr.mxu0 %v4063
        %v4065 = vand.u32 %v3450, 4294901760
        %4066 = vmatpush1.msra.mxu0 %v4065
        %v4067 = vand.u32 %v3453, 4294901760
        %4068 = vmatprep.subr.mxu0 %v4067
        %v4069 = vand.u32 %v3452, 4294901760
        %4070 = vmatpush1.msra.mxu0 %v4069
        %v4071 = vand.u32 %v3455, 4294901760
        %4072 = vmatprep.subr.mxu0 %v4071
        %v4073 = vand.u32 %v3454, 4294901760
        %4074 = vmatpush1.msra.mxu0 %v4073
        %v4075 = vand.u32 %v3457, 4294901760
        %4076 = vmatprep.subr.mxu0 %v4075
        %v4077 = vand.u32 %v3456, 4294901760
        %4078 = vmatpush1.msra.mxu0 %v4077
        %v4079 = vand.u32 %v3459, 4294901760
        %4080 = vmatprep.subr.mxu0 %v4079
        %v4081 = vand.u32 %v3458, 4294901760
        %4082 = vmatpush1.msra.mxu0 %v4081
        %v4083 = vand.u32 %v3461, 4294901760
        %4084 = vmatprep.subr.mxu0 %v4083
        %v4085 = vand.u32 %v3460, 4294901760
        %4086 = vmatpush1.msra.mxu0 %v4085
        %v4087 = vand.u32 %v3463, 4294901760
        %4088 = vmatprep.subr.mxu0 %v4087
        %v4089 = vand.u32 %v3462, 4294901760
        %4090 = vmatpush1.msra.mxu0 %v4089
        %v4091 = vand.u32 %v3465, 4294901760
        %4092 = vmatprep.subr.mxu0 %v4091
        %v4093 = vand.u32 %v3464, 4294901760
        %4094 = vmatpush1.msra.mxu0 %v4093
        %v4095 = vand.u32 %v3467, 4294901760
        %4096 = vmatprep.subr.mxu0 %v4095
        %v4097 = vand.u32 %v3466, 4294901760
        %4098 = vmatpush1.msra.mxu0 %v4097
        %4099 = vmatprep.subr.mxu0 0.0
        %4100 = vmatpush1.msra.mxu0 0.0
        %4101 = vmatprep.subr.mxu0 0.0
        %4102 = vmatpush1.msra.mxu0 0.0
        %4103 = vmatprep.subr.mxu0 0.0
        %4104 = vmatpush1.msra.mxu0 0.0
        %4105 = vmatprep.subr.mxu0 0.0
        %4106 = vmatpush1.msra.mxu0 0.0
        %4107 = vmatprep.subr.mxu0 0.0
        %4108 = vmatpush1.msra.mxu0 0.0
        %4109 = vmatprep.subr.mxu0 0.0
        %4110 = vmatpush1.msra.mxu0 0.0
        %4111 = vmatprep.subr.mxu0 0.0
        %4112 = vmatpush1.msra.mxu0 0.0
        %4113 = vmatprep.subr.mxu0 0.0
        %4114 = vmatpush1.msra.mxu0 0.0
        %4115 = vmatprep.subr.mxu0 0.0
        %4116 = vmatpush1.msra.mxu0 0.0
        %4117 = vmatprep.subr.mxu0 0.0
        %4118 = vmatpush1.msra.mxu0 0.0
        %4119 = vmatprep.subr.mxu0 0.0
        %4120 = vmatpush1.msra.mxu0 0.0
        %4121 = vmatprep.subr.mxu0 0.0
        %4122 = vmatpush1.msra.mxu0 0.0
        %4123 = vmatprep.subr.mxu0 0.0
        %4124 = vmatpush1.msra.mxu0 0.0
        %4125 = vmatprep.subr.mxu0 0.0
        %4126 = vmatpush1.msra.mxu0 0.0
        %4127 = vmatprep.subr.mxu0 0.0
        %4128 = vmatpush1.msra.mxu0 0.0
        %4129 = vmatprep.subr.mxu0 0.0
        %4130 = vmatpush1.msra.mxu0 0.0
        %4131 = vmatprep.subr.mxu0 0.0
        %4132 = vmatpush1.msra.mxu0 0.0
        %4133 = vmatprep.subr.mxu0 0.0
        %4134 = vmatpush1.msra.mxu0 0.0
        %4135 = vmatprep.subr.mxu0 0.0
        %4136 = vmatpush1.msra.mxu0 0.0
        %4137 = vmatprep.subr.mxu0 0.0
        %4138 = vmatpush1.msra.mxu0 0.0
        %4139 = vmatprep.subr.mxu0 0.0
        %4140 = vmatpush1.msra.mxu0 0.0
        %4141 = vmatprep.subr.mxu0 0.0
        %4142 = vmatpush1.msra.mxu0 0.0
        %4143 = vmatprep.subr.mxu0 0.0
        %4144 = vmatpush1.msra.mxu0 0.0
        %4145 = vmatprep.mubr.f32.mxu0 0.0
        %v4146 = vand.u32 %v3478, 4294901760
        %4147 = vmatmul.mubr.f32.gmra.mrb[0].mxu0 %v4146
        %v4148 = vpop.f32.mrb[0].mxu0
        %v4149 = vadd.f32 %v4059, %v4148
        %v4150 = vpop.f32.mrb[0].mxu0
        %v4151 = vadd.f32 %v4061, %v4150
        %4152 = vdwg.mxu0
        %v4153 = vmax.f32 %v4149, 0.0
        %v4154 = vmax.f32 %v4151, 0.0
        %4155 = vrot.lane.b32.xlu0 %v4153, 17
        %v4156 = vpop.permute.xlu0 %4155
        %4157 = vrot.lane.b32.xlu0 %v4154, 17
        %v4158 = vpop.permute.xlu0 %4157
        %v4159 = vsel %vm387, %v4156, %v4158
        %v4160 = vsel %vm387, %v4158, %v4156
        %4161 = vrot.lane.b32.xlu0 %v4153, 16
        %v4162 = vpop.permute.xlu0 %4161
        %4163 = vrot.lane.b32.xlu0 %v4154, 16
        %v4164 = vpop.permute.xlu0 %4163
        %v4165 = vsel %vm394, %v4162, %v4164
        %v4166 = vsel %vm394, %v4164, %v4162
        %4167 = vrot.lane.b32.xlu0 %v4153, 15
        %v4168 = vpop.permute.xlu0 %4167
        %4169 = vrot.lane.b32.xlu0 %v4154, 15
        %v4170 = vpop.permute.xlu0 %4169
        %v4171 = vsel %vm401, %v4168, %v4170
        %v4172 = vsel %vm401, %v4170, %v4168
        %4173 = vrot.lane.b32.xlu0 %v4153, 1
        %v4174 = vpop.permute.xlu0 %4173
        %4175 = vrot.lane.b32.xlu0 %v4154, 1
        %v4176 = vpop.permute.xlu0 %4175
        %v4177 = vsel %vm408, %v4174, %v4176
        %v4178 = vsel %vm408, %v4176, %v4174
        %4179 = vrot.lane.b32.xlu0 %v4153, 127
        %v4180 = vpop.permute.xlu0 %4179
        %4181 = vrot.lane.b32.xlu0 %v4154, 127
        %v4182 = vpop.permute.xlu0 %4181
        %v4183 = vsel %vm415, %v4180, %v4182
        %v4184 = vsel %vm415, %v4182, %v4180
        %4185 = vrot.lane.b32.xlu0 %v4153, 113
        %v4186 = vpop.permute.xlu0 %4185
        %4187 = vrot.lane.b32.xlu0 %v4154, 113
        %v4188 = vpop.permute.xlu0 %4187
        %v4189 = vsel %vm422, %v4186, %v4188
        %v4190 = vsel %vm422, %v4188, %v4186
        %4191 = vrot.lane.b32.xlu0 %v4153, 112
        %v4192 = vpop.permute.xlu0 %4191
        %4193 = vrot.lane.b32.xlu0 %v4154, 112
        %v4194 = vpop.permute.xlu0 %4193
        %v4195 = vsel %vm429, %v4192, %v4194
        %v4196 = vsel %vm429, %v4194, %v4192
        %4197 = vrot.lane.b32.xlu0 %v4153, 111
        %v4198 = vpop.permute.xlu0 %4197
        %4199 = vrot.lane.b32.xlu0 %v4154, 111
        %v4200 = vpop.permute.xlu0 %4199
        %v4201 = vsel %vm436, %v4198, %v4200
        %v4202 = vsel %vm436, %v4200, %v4198
        %v4203 = vmul.f32 %v4160, %v297
        %v4204 = vmul.f32 %v4159, %v298
        %v4205 = vmul.f32 %v4166, %v299
        %v4206 = vmul.f32 %v4165, %v300
        %v4207 = vmul.f32 %v4172, %v301
        %v4208 = vmul.f32 %v4171, %v302
        %v4209 = vmul.f32 %v4178, %v303
        %v4210 = vmul.f32 %v4177, %v304
        %v4211 = vmul.f32 %v4153, %v305
        %v4212 = vmul.f32 %v4154, %v306
        %v4213 = vmul.f32 %v4183, %v307
        %v4214 = vmul.f32 %v4184, %v308
        %v4215 = vmul.f32 %v4189, %v309
        %v4216 = vmul.f32 %v4190, %v310
        %v4217 = vmul.f32 %v4195, %v311
        %v4218 = vmul.f32 %v4196, %v312
        %v4219 = vmul.f32 %v4201, %v313
        %v4220 = vmul.f32 %v4202, %v314
        %s4221 = scalar_lea.vmem %s1, 40
        %v4222 = vld [vmem:[%s4221] sm:$0xff]
        %s4223 = scalar_lea.vmem %s2, 40
        %v4224 = vld [vmem:[%s4223] sm:$0xff]
        %4226 = vset.pattern.permute.xlu0 0
        %4227 = vperm.xlu0 %4226, %v4224
        %v4228 = vpop.permute.xlu0 %4227
        %v4231 = vsel %vm464, %v4222, 0
        %v4233 = vand.u32 %v4204, 4294901760
        %4234 = vmatprep.subr.mxu0 %v4233
        %v4235 = vand.u32 %v4203, 4294901760
        %4236 = vmatpush1.msra.mxu0 %v4235
        %v4237 = vand.u32 %v4206, 4294901760
        %4238 = vmatprep.subr.mxu0 %v4237
        %v4239 = vand.u32 %v4205, 4294901760
        %4240 = vmatpush1.msra.mxu0 %v4239
        %v4241 = vand.u32 %v4208, 4294901760
        %4242 = vmatprep.subr.mxu0 %v4241
        %v4243 = vand.u32 %v4207, 4294901760
        %4244 = vmatpush1.msra.mxu0 %v4243
        %v4245 = vand.u32 %v4210, 4294901760
        %4246 = vmatprep.subr.mxu0 %v4245
        %v4247 = vand.u32 %v4209, 4294901760
        %4248 = vmatpush1.msra.mxu0 %v4247
        %v4249 = vand.u32 %v4212, 4294901760
        %4250 = vmatprep.subr.mxu0 %v4249
        %v4251 = vand.u32 %v4211, 4294901760
        %4252 = vmatpush1.msra.mxu0 %v4251
        %v4253 = vand.u32 %v4214, 4294901760
        %4254 = vmatprep.subr.mxu0 %v4253
        %v4255 = vand.u32 %v4213, 4294901760
        %4256 = vmatpush1.msra.mxu0 %v4255
        %v4257 = vand.u32 %v4216, 4294901760
        %4258 = vmatprep.subr.mxu0 %v4257
        %v4259 = vand.u32 %v4215, 4294901760
        %4260 = vmatpush1.msra.mxu0 %v4259
        %v4261 = vand.u32 %v4218, 4294901760
        %4262 = vmatprep.subr.mxu0 %v4261
        %v4263 = vand.u32 %v4217, 4294901760
        %4264 = vmatpush1.msra.mxu0 %v4263
        %v4265 = vand.u32 %v4220, 4294901760
        %4266 = vmatprep.subr.mxu0 %v4265
        %v4267 = vand.u32 %v4219, 4294901760
        %4268 = vmatpush1.msra.mxu0 %v4267
        %4269 = vmatprep.subr.mxu0 0.0
        %4270 = vmatpush1.msra.mxu0 0.0
        %4271 = vmatprep.subr.mxu0 0.0
        %4272 = vmatpush1.msra.mxu0 0.0
        %4273 = vmatprep.subr.mxu0 0.0
        %4274 = vmatpush1.msra.mxu0 0.0
        %4275 = vmatprep.subr.mxu0 0.0
        %4276 = vmatpush1.msra.mxu0 0.0
        %4277 = vmatprep.subr.mxu0 0.0
        %4278 = vmatpush1.msra.mxu0 0.0
        %4279 = vmatprep.subr.mxu0 0.0
        %4280 = vmatpush1.msra.mxu0 0.0
        %4281 = vmatprep.subr.mxu0 0.0
        %4282 = vmatpush1.msra.mxu0 0.0
        %4283 = vmatprep.subr.mxu0 0.0
        %4284 = vmatpush1.msra.mxu0 0.0
        %4285 = vmatprep.subr.mxu0 0.0
        %4286 = vmatpush1.msra.mxu0 0.0
        %4287 = vmatprep.subr.mxu0 0.0
        %4288 = vmatpush1.msra.mxu0 0.0
        %4289 = vmatprep.subr.mxu0 0.0
        %4290 = vmatpush1.msra.mxu0 0.0
        %4291 = vmatprep.subr.mxu0 0.0
        %4292 = vmatpush1.msra.mxu0 0.0
        %4293 = vmatprep.subr.mxu0 0.0
        %4294 = vmatpush1.msra.mxu0 0.0
        %4295 = vmatprep.subr.mxu0 0.0
        %4296 = vmatpush1.msra.mxu0 0.0
        %4297 = vmatprep.subr.mxu0 0.0
        %4298 = vmatpush1.msra.mxu0 0.0
        %4299 = vmatprep.subr.mxu0 0.0
        %4300 = vmatpush1.msra.mxu0 0.0
        %4301 = vmatprep.subr.mxu0 0.0
        %4302 = vmatpush1.msra.mxu0 0.0
        %4303 = vmatprep.subr.mxu0 0.0
        %4304 = vmatpush1.msra.mxu0 0.0
        %4305 = vmatprep.subr.mxu0 0.0
        %4306 = vmatpush1.msra.mxu0 0.0
        %4307 = vmatprep.subr.mxu0 0.0
        %4308 = vmatpush1.msra.mxu0 0.0
        %4309 = vmatprep.subr.mxu0 0.0
        %4310 = vmatpush1.msra.mxu0 0.0
        %4311 = vmatprep.subr.mxu0 0.0
        %4312 = vmatpush1.msra.mxu0 0.0
        %4313 = vmatprep.subr.mxu0 0.0
        %4314 = vmatpush1.msra.mxu0 0.0
        %4315 = vmatprep.mubr.f32.mxu0 0.0
        %v4316 = vand.u32 %v4231, 4294901760
        %v4317 = vsub.f32 %v4231, %v4316
        %v4318 = vand.u32 %v4317, 4294901760
        %v4319 = vsub.f32 %v4317, %v4318
        %v4320 = vand.u32 %v4319, 4294901760
        %4321 = vmatmul.mubr.f32.gmra.mrb[0].mxu0 %v4320
        %v4322 = vpop.f32.mrb[0].mxu0
        %v4323 = vadd.f32 %v4228, %v4322
        %v4324 = vpop.f32.mrb[0].mxu0
        %v4325 = vadd.f32 %v4228, %v4324
        %4326 = vdwg.mxu0
        %v4327 = vand.u32 %v4204, 4294901760
        %v4328 = vsub.f32 %v4204, %v4327
        %v4329 = vand.u32 %v4328, 4294901760
        %v4330 = vsub.f32 %v4328, %v4329
        %v4331 = vand.u32 %v4330, 4294901760
        %4332 = vmatprep.subr.mxu0 %v4331
        %v4333 = vand.u32 %v4203, 4294901760
        %v4334 = vsub.f32 %v4203, %v4333
        %v4335 = vand.u32 %v4334, 4294901760
        %v4336 = vsub.f32 %v4334, %v4335
        %v4337 = vand.u32 %v4336, 4294901760
        %4338 = vmatpush1.msra.mxu0 %v4337
        %v4339 = vand.u32 %v4206, 4294901760
        %v4340 = vsub.f32 %v4206, %v4339
        %v4341 = vand.u32 %v4340, 4294901760
        %v4342 = vsub.f32 %v4340, %v4341
        %v4343 = vand.u32 %v4342, 4294901760
        %4344 = vmatprep.subr.mxu0 %v4343
        %v4345 = vand.u32 %v4205, 4294901760
        %v4346 = vsub.f32 %v4205, %v4345
        %v4347 = vand.u32 %v4346, 4294901760
        %v4348 = vsub.f32 %v4346, %v4347
        %v4349 = vand.u32 %v4348, 4294901760
        %4350 = vmatpush1.msra.mxu0 %v4349
        %v4351 = vand.u32 %v4208, 4294901760
        %v4352 = vsub.f32 %v4208, %v4351
        %v4353 = vand.u32 %v4352, 4294901760
        %v4354 = vsub.f32 %v4352, %v4353
        %v4355 = vand.u32 %v4354, 4294901760
        %4356 = vmatprep.subr.mxu0 %v4355
        %v4357 = vand.u32 %v4207, 4294901760
        %v4358 = vsub.f32 %v4207, %v4357
        %v4359 = vand.u32 %v4358, 4294901760
        %v4360 = vsub.f32 %v4358, %v4359
        %v4361 = vand.u32 %v4360, 4294901760
        %4362 = vmatpush1.msra.mxu0 %v4361
        %v4363 = vand.u32 %v4210, 4294901760
        %v4364 = vsub.f32 %v4210, %v4363
        %v4365 = vand.u32 %v4364, 4294901760
        %v4366 = vsub.f32 %v4364, %v4365
        %v4367 = vand.u32 %v4366, 4294901760
        %4368 = vmatprep.subr.mxu0 %v4367
        %v4369 = vand.u32 %v4209, 4294901760
        %v4370 = vsub.f32 %v4209, %v4369
        %v4371 = vand.u32 %v4370, 4294901760
        %v4372 = vsub.f32 %v4370, %v4371
        %v4373 = vand.u32 %v4372, 4294901760
        %4374 = vmatpush1.msra.mxu0 %v4373
        %v4375 = vand.u32 %v4212, 4294901760
        %v4376 = vsub.f32 %v4212, %v4375
        %v4377 = vand.u32 %v4376, 4294901760
        %v4378 = vsub.f32 %v4376, %v4377
        %v4379 = vand.u32 %v4378, 4294901760
        %4380 = vmatprep.subr.mxu0 %v4379
        %v4381 = vand.u32 %v4211, 4294901760
        %v4382 = vsub.f32 %v4211, %v4381
        %v4383 = vand.u32 %v4382, 4294901760
        %v4384 = vsub.f32 %v4382, %v4383
        %v4385 = vand.u32 %v4384, 4294901760
        %4386 = vmatpush1.msra.mxu0 %v4385
        %v4387 = vand.u32 %v4214, 4294901760
        %v4388 = vsub.f32 %v4214, %v4387
        %v4389 = vand.u32 %v4388, 4294901760
        %v4390 = vsub.f32 %v4388, %v4389
        %v4391 = vand.u32 %v4390, 4294901760
        %4392 = vmatprep.subr.mxu0 %v4391
        %v4393 = vand.u32 %v4213, 4294901760
        %v4394 = vsub.f32 %v4213, %v4393
        %v4395 = vand.u32 %v4394, 4294901760
        %v4396 = vsub.f32 %v4394, %v4395
        %v4397 = vand.u32 %v4396, 4294901760
        %4398 = vmatpush1.msra.mxu0 %v4397
        %v4399 = vand.u32 %v4216, 4294901760
        %v4400 = vsub.f32 %v4216, %v4399
        %v4401 = vand.u32 %v4400, 4294901760
        %v4402 = vsub.f32 %v4400, %v4401
        %v4403 = vand.u32 %v4402, 4294901760
        %4404 = vmatprep.subr.mxu0 %v4403
        %v4405 = vand.u32 %v4215, 4294901760
        %v4406 = vsub.f32 %v4215, %v4405
        %v4407 = vand.u32 %v4406, 4294901760
        %v4408 = vsub.f32 %v4406, %v4407
        %v4409 = vand.u32 %v4408, 4294901760
        %4410 = vmatpush1.msra.mxu0 %v4409
        %v4411 = vand.u32 %v4218, 4294901760
        %v4412 = vsub.f32 %v4218, %v4411
        %v4413 = vand.u32 %v4412, 4294901760
        %v4414 = vsub.f32 %v4412, %v4413
        %v4415 = vand.u32 %v4414, 4294901760
        %4416 = vmatprep.subr.mxu0 %v4415
        %v4417 = vand.u32 %v4217, 4294901760
        %v4418 = vsub.f32 %v4217, %v4417
        %v4419 = vand.u32 %v4418, 4294901760
        %v4420 = vsub.f32 %v4418, %v4419
        %v4421 = vand.u32 %v4420, 4294901760
        %4422 = vmatpush1.msra.mxu0 %v4421
        %v4423 = vand.u32 %v4220, 4294901760
        %v4424 = vsub.f32 %v4220, %v4423
        %v4425 = vand.u32 %v4424, 4294901760
        %v4426 = vsub.f32 %v4424, %v4425
        %v4427 = vand.u32 %v4426, 4294901760
        %4428 = vmatprep.subr.mxu0 %v4427
        %v4429 = vand.u32 %v4219, 4294901760
        %v4430 = vsub.f32 %v4219, %v4429
        %v4431 = vand.u32 %v4430, 4294901760
        %v4432 = vsub.f32 %v4430, %v4431
        %v4433 = vand.u32 %v4432, 4294901760
        %4434 = vmatpush1.msra.mxu0 %v4433
        %4435 = vmatprep.subr.mxu0 0.0
        %4436 = vmatpush1.msra.mxu0 0.0
        %4437 = vmatprep.subr.mxu0 0.0
        %4438 = vmatpush1.msra.mxu0 0.0
        %4439 = vmatprep.subr.mxu0 0.0
        %4440 = vmatpush1.msra.mxu0 0.0
        %4441 = vmatprep.subr.mxu0 0.0
        %4442 = vmatpush1.msra.mxu0 0.0
        %4443 = vmatprep.subr.mxu0 0.0
        %4444 = vmatpush1.msra.mxu0 0.0
        %4445 = vmatprep.subr.mxu0 0.0
        %4446 = vmatpush1.msra.mxu0 0.0
        %4447 = vmatprep.subr.mxu0 0.0
        %4448 = vmatpush1.msra.mxu0 0.0
        %4449 = vmatprep.subr.mxu0 0.0
        %4450 = vmatpush1.msra.mxu0 0.0
        %4451 = vmatprep.subr.mxu0 0.0
        %4452 = vmatpush1.msra.mxu0 0.0
        %4453 = vmatprep.subr.mxu0 0.0
        %4454 = vmatpush1.msra.mxu0 0.0
        %4455 = vmatprep.subr.mxu0 0.0
        %4456 = vmatpush1.msra.mxu0 0.0
        %4457 = vmatprep.subr.mxu0 0.0
        %4458 = vmatpush1.msra.mxu0 0.0
        %4459 = vmatprep.subr.mxu0 0.0
        %4460 = vmatpush1.msra.mxu0 0.0
        %4461 = vmatprep.subr.mxu0 0.0
        %4462 = vmatpush1.msra.mxu0 0.0
        %4463 = vmatprep.subr.mxu0 0.0
        %4464 = vmatpush1.msra.mxu0 0.0
        %4465 = vmatprep.subr.mxu0 0.0
        %4466 = vmatpush1.msra.mxu0 0.0
        %4467 = vmatprep.subr.mxu0 0.0
        %4468 = vmatpush1.msra.mxu0 0.0
        %4469 = vmatprep.subr.mxu0 0.0
        %4470 = vmatpush1.msra.mxu0 0.0
        %4471 = vmatprep.subr.mxu0 0.0
        %4472 = vmatpush1.msra.mxu0 0.0
        %4473 = vmatprep.subr.mxu0 0.0
        %4474 = vmatpush1.msra.mxu0 0.0
        %4475 = vmatprep.subr.mxu0 0.0
        %4476 = vmatpush1.msra.mxu0 0.0
        %4477 = vmatprep.subr.mxu0 0.0
        %4478 = vmatpush1.msra.mxu0 0.0
        %4479 = vmatprep.subr.mxu0 0.0
        %4480 = vmatpush1.msra.mxu0 0.0
        %4481 = vmatprep.mubr.f32.mxu0 0.0
        %v4482 = vand.u32 %v4231, 4294901760
        %4483 = vmatmul.mubr.f32.gmra.mrb[0].mxu0 %v4482
        %v4484 = vpop.f32.mrb[0].mxu0
        %v4485 = vadd.f32 %v4323, %v4484
        %v4486 = vpop.f32.mrb[0].mxu0
        %v4487 = vadd.f32 %v4325, %v4486
        %4488 = vdwg.mxu0
        %v4489 = vand.u32 %v4204, 4294901760
        %v4490 = vsub.f32 %v4204, %v4489
        %4491 = vmatprep.subr.mxu0 %v4490
        %v4492 = vand.u32 %v4203, 4294901760
        %v4493 = vsub.f32 %v4203, %v4492
        %4494 = vmatpush1.msra.mxu0 %v4493
        %v4495 = vand.u32 %v4206, 4294901760
        %v4496 = vsub.f32 %v4206, %v4495
        %4497 = vmatprep.subr.mxu0 %v4496
        %v4498 = vand.u32 %v4205, 4294901760
        %v4499 = vsub.f32 %v4205, %v4498
        %4500 = vmatpush1.msra.mxu0 %v4499
        %v4501 = vand.u32 %v4208, 4294901760
        %v4502 = vsub.f32 %v4208, %v4501
        %4503 = vmatprep.subr.mxu0 %v4502
        %v4504 = vand.u32 %v4207, 4294901760
        %v4505 = vsub.f32 %v4207, %v4504
        %4506 = vmatpush1.msra.mxu0 %v4505
        %v4507 = vand.u32 %v4210, 4294901760
        %v4508 = vsub.f32 %v4210, %v4507
        %4509 = vmatprep.subr.mxu0 %v4508
        %v4510 = vand.u32 %v4209, 4294901760
        %v4511 = vsub.f32 %v4209, %v4510
        %4512 = vmatpush1.msra.mxu0 %v4511
        %v4513 = vand.u32 %v4212, 4294901760
        %v4514 = vsub.f32 %v4212, %v4513
        %4515 = vmatprep.subr.mxu0 %v4514
        %v4516 = vand.u32 %v4211, 4294901760
        %v4517 = vsub.f32 %v4211, %v4516
        %4518 = vmatpush1.msra.mxu0 %v4517
        %v4519 = vand.u32 %v4214, 4294901760
        %v4520 = vsub.f32 %v4214, %v4519
        %4521 = vmatprep.subr.mxu0 %v4520
        %v4522 = vand.u32 %v4213, 4294901760
        %v4523 = vsub.f32 %v4213, %v4522
        %4524 = vmatpush1.msra.mxu0 %v4523
        %v4525 = vand.u32 %v4216, 4294901760
        %v4526 = vsub.f32 %v4216, %v4525
        %4527 = vmatprep.subr.mxu0 %v4526
        %v4528 = vand.u32 %v4215, 4294901760
        %v4529 = vsub.f32 %v4215, %v4528
        %4530 = vmatpush1.msra.mxu0 %v4529
        %v4531 = vand.u32 %v4218, 4294901760
        %v4532 = vsub.f32 %v4218, %v4531
        %4533 = vmatprep.subr.mxu0 %v4532
        %v4534 = vand.u32 %v4217, 4294901760
        %v4535 = vsub.f32 %v4217, %v4534
        %4536 = vmatpush1.msra.mxu0 %v4535
        %v4537 = vand.u32 %v4220, 4294901760
        %v4538 = vsub.f32 %v4220, %v4537
        %4539 = vmatprep.subr.mxu0 %v4538
        %v4540 = vand.u32 %v4219, 4294901760
        %v4541 = vsub.f32 %v4219, %v4540
        %4542 = vmatpush1.msra.mxu0 %v4541
        %4543 = vmatprep.subr.mxu0 0.0
        %4544 = vmatpush1.msra.mxu0 0.0
        %4545 = vmatprep.subr.mxu0 0.0
        %4546 = vmatpush1.msra.mxu0 0.0
        %4547 = vmatprep.subr.mxu0 0.0
        %4548 = vmatpush1.msra.mxu0 0.0
        %4549 = vmatprep.subr.mxu0 0.0
        %4550 = vmatpush1.msra.mxu0 0.0
        %4551 = vmatprep.subr.mxu0 0.0
        %4552 = vmatpush1.msra.mxu0 0.0
        %4553 = vmatprep.subr.mxu0 0.0
        %4554 = vmatpush1.msra.mxu0 0.0
        %4555 = vmatprep.subr.mxu0 0.0
        %4556 = vmatpush1.msra.mxu0 0.0
        %4557 = vmatprep.subr.mxu0 0.0
        %4558 = vmatpush1.msra.mxu0 0.0
        %4559 = vmatprep.subr.mxu0 0.0
        %4560 = vmatpush1.msra.mxu0 0.0
        %4561 = vmatprep.subr.mxu0 0.0
        %4562 = vmatpush1.msra.mxu0 0.0
        %4563 = vmatprep.subr.mxu0 0.0
        %4564 = vmatpush1.msra.mxu0 0.0
        %4565 = vmatprep.subr.mxu0 0.0
        %4566 = vmatpush1.msra.mxu0 0.0
        %4567 = vmatprep.subr.mxu0 0.0
        %4568 = vmatpush1.msra.mxu0 0.0
        %4569 = vmatprep.subr.mxu0 0.0
        %4570 = vmatpush1.msra.mxu0 0.0
        %4571 = vmatprep.subr.mxu0 0.0
        %4572 = vmatpush1.msra.mxu0 0.0
        %4573 = vmatprep.subr.mxu0 0.0
        %4574 = vmatpush1.msra.mxu0 0.0
        %4575 = vmatprep.subr.mxu0 0.0
        %4576 = vmatpush1.msra.mxu0 0.0
        %4577 = vmatprep.subr.mxu0 0.0
        %4578 = vmatpush1.msra.mxu0 0.0
        %4579 = vmatprep.subr.mxu0 0.0
        %4580 = vmatpush1.msra.mxu0 0.0
        %4581 = vmatprep.subr.mxu0 0.0
        %4582 = vmatpush1.msra.mxu0 0.0
        %4583 = vmatprep.subr.mxu0 0.0
        %4584 = vmatpush1.msra.mxu0 0.0
        %4585 = vmatprep.subr.mxu0 0.0
        %4586 = vmatpush1.msra.mxu0 0.0
        %4587 = vmatprep.subr.mxu0 0.0
        %4588 = vmatpush1.msra.mxu0 0.0
        %4589 = vmatprep.mubr.f32.mxu0 0.0
        %v4590 = vand.u32 %v4231, 4294901760
        %v4591 = vsub.f32 %v4231, %v4590
        %4592 = vmatmul.mubr.f32.gmra.mrb[0].mxu0 %v4591
        %v4593 = vpop.f32.mrb[0].mxu0
        %v4594 = vadd.f32 %v4485, %v4593
        %v4595 = vpop.f32.mrb[0].mxu0
        %v4596 = vadd.f32 %v4487, %v4595
        %4597 = vdwg.mxu0
        %v4598 = vand.u32 %v4204, 4294901760
        %4599 = vmatprep.subr.mxu0 %v4598
        %v4600 = vand.u32 %v4203, 4294901760
        %4601 = vmatpush1.msra.mxu0 %v4600
        %v4602 = vand.u32 %v4206, 4294901760
        %4603 = vmatprep.subr.mxu0 %v4602
        %v4604 = vand.u32 %v4205, 4294901760
        %4605 = vmatpush1.msra.mxu0 %v4604
        %v4606 = vand.u32 %v4208, 4294901760
        %4607 = vmatprep.subr.mxu0 %v4606
        %v4608 = vand.u32 %v4207, 4294901760
        %4609 = vmatpush1.msra.mxu0 %v4608
        %v4610 = vand.u32 %v4210, 4294901760
        %4611 = vmatprep.subr.mxu0 %v4610
        %v4612 = vand.u32 %v4209, 4294901760
        %4613 = vmatpush1.msra.mxu0 %v4612
        %v4614 = vand.u32 %v4212, 4294901760
        %4615 = vmatprep.subr.mxu0 %v4614
        %v4616 = vand.u32 %v4211, 4294901760
        %4617 = vmatpush1.msra.mxu0 %v4616
        %v4618 = vand.u32 %v4214, 4294901760
        %4619 = vmatprep.subr.mxu0 %v4618
        %v4620 = vand.u32 %v4213, 4294901760
        %4621 = vmatpush1.msra.mxu0 %v4620
        %v4622 = vand.u32 %v4216, 4294901760
        %4623 = vmatprep.subr.mxu0 %v4622
        %v4624 = vand.u32 %v4215, 4294901760
        %4625 = vmatpush1.msra.mxu0 %v4624
        %v4626 = vand.u32 %v4218, 4294901760
        %4627 = vmatprep.subr.mxu0 %v4626
        %v4628 = vand.u32 %v4217, 4294901760
        %4629 = vmatpush1.msra.mxu0 %v4628
        %v4630 = vand.u32 %v4220, 4294901760
        %4631 = vmatprep.subr.mxu0 %v4630
        %v4632 = vand.u32 %v4219, 4294901760
        %4633 = vmatpush1.msra.mxu0 %v4632
        %4634 = vmatprep.subr.mxu0 0.0
        %4635 = vmatpush1.msra.mxu0 0.0
        %4636 = vmatprep.subr.mxu0 0.0
        %4637 = vmatpush1.msra.mxu0 0.0
        %4638 = vmatprep.subr.mxu0 0.0
        %4639 = vmatpush1.msra.mxu0 0.0
        %4640 = vmatprep.subr.mxu0 0.0
        %4641 = vmatpush1.msra.mxu0 0.0
        %4642 = vmatprep.subr.mxu0 0.0
        %4643 = vmatpush1.msra.mxu0 0.0
        %4644 = vmatprep.subr.mxu0 0.0
        %4645 = vmatpush1.msra.mxu0 0.0
        %4646 = vmatprep.subr.mxu0 0.0
        %4647 = vmatpush1.msra.mxu0 0.0
        %4648 = vmatprep.subr.mxu0 0.0
        %4649 = vmatpush1.msra.mxu0 0.0
        %4650 = vmatprep.subr.mxu0 0.0
        %4651 = vmatpush1.msra.mxu0 0.0
        %4652 = vmatprep.subr.mxu0 0.0
        %4653 = vmatpush1.msra.mxu0 0.0
        %4654 = vmatprep.subr.mxu0 0.0
        %4655 = vmatpush1.msra.mxu0 0.0
        %4656 = vmatprep.subr.mxu0 0.0
        %4657 = vmatpush1.msra.mxu0 0.0
        %4658 = vmatprep.subr.mxu0 0.0
        %4659 = vmatpush1.msra.mxu0 0.0
        %4660 = vmatprep.subr.mxu0 0.0
        %4661 = vmatpush1.msra.mxu0 0.0
        %4662 = vmatprep.subr.mxu0 0.0
        %4663 = vmatpush1.msra.mxu0 0.0
        %4664 = vmatprep.subr.mxu0 0.0
        %4665 = vmatpush1.msra.mxu0 0.0
        %4666 = vmatprep.subr.mxu0 0.0
        %4667 = vmatpush1.msra.mxu0 0.0
        %4668 = vmatprep.subr.mxu0 0.0
        %4669 = vmatpush1.msra.mxu0 0.0
        %4670 = vmatprep.subr.mxu0 0.0
        %4671 = vmatpush1.msra.mxu0 0.0
        %4672 = vmatprep.subr.mxu0 0.0
        %4673 = vmatpush1.msra.mxu0 0.0
        %4674 = vmatprep.subr.mxu0 0.0
        %4675 = vmatpush1.msra.mxu0 0.0
        %4676 = vmatprep.subr.mxu0 0.0
        %4677 = vmatpush1.msra.mxu0 0.0
        %4678 = vmatprep.subr.mxu0 0.0
        %4679 = vmatpush1.msra.mxu0 0.0
        %4680 = vmatprep.mubr.f32.mxu0 0.0
        %v4681 = vand.u32 %v4231, 4294901760
        %v4682 = vsub.f32 %v4231, %v4681
        %v4683 = vand.u32 %v4682, 4294901760
        %4684 = vmatmul.mubr.f32.gmra.mrb[0].mxu0 %v4683
        %v4685 = vpop.f32.mrb[0].mxu0
        %v4686 = vadd.f32 %v4594, %v4685
        %v4687 = vpop.f32.mrb[0].mxu0
        %v4688 = vadd.f32 %v4596, %v4687
        %4689 = vdwg.mxu0
        %v4690 = vand.u32 %v4204, 4294901760
        %v4691 = vsub.f32 %v4204, %v4690
        %v4692 = vand.u32 %v4691, 4294901760
        %4693 = vmatprep.subr.mxu0 %v4692
        %v4694 = vand.u32 %v4203, 4294901760
        %v4695 = vsub.f32 %v4203, %v4694
        %v4696 = vand.u32 %v4695, 4294901760
        %4697 = vmatpush1.msra.mxu0 %v4696
        %v4698 = vand.u32 %v4206, 4294901760
        %v4699 = vsub.f32 %v4206, %v4698
        %v4700 = vand.u32 %v4699, 4294901760
        %4701 = vmatprep.subr.mxu0 %v4700
        %v4702 = vand.u32 %v4205, 4294901760
        %v4703 = vsub.f32 %v4205, %v4702
        %v4704 = vand.u32 %v4703, 4294901760
        %4705 = vmatpush1.msra.mxu0 %v4704
        %v4706 = vand.u32 %v4208, 4294901760
        %v4707 = vsub.f32 %v4208, %v4706
        %v4708 = vand.u32 %v4707, 4294901760
        %4709 = vmatprep.subr.mxu0 %v4708
        %v4710 = vand.u32 %v4207, 4294901760
        %v4711 = vsub.f32 %v4207, %v4710
        %v4712 = vand.u32 %v4711, 4294901760
        %4713 = vmatpush1.msra.mxu0 %v4712
        %v4714 = vand.u32 %v4210, 4294901760
        %v4715 = vsub.f32 %v4210, %v4714
        %v4716 = vand.u32 %v4715, 4294901760
        %4717 = vmatprep.subr.mxu0 %v4716
        %v4718 = vand.u32 %v4209, 4294901760
        %v4719 = vsub.f32 %v4209, %v4718
        %v4720 = vand.u32 %v4719, 4294901760
        %4721 = vmatpush1.msra.mxu0 %v4720
        %v4722 = vand.u32 %v4212, 4294901760
        %v4723 = vsub.f32 %v4212, %v4722
        %v4724 = vand.u32 %v4723, 4294901760
        %4725 = vmatprep.subr.mxu0 %v4724
        %v4726 = vand.u32 %v4211, 4294901760
        %v4727 = vsub.f32 %v4211, %v4726
        %v4728 = vand.u32 %v4727, 4294901760
        %4729 = vmatpush1.msra.mxu0 %v4728
        %v4730 = vand.u32 %v4214, 4294901760
        %v4731 = vsub.f32 %v4214, %v4730
        %v4732 = vand.u32 %v4731, 4294901760
        %4733 = vmatprep.subr.mxu0 %v4732
        %v4734 = vand.u32 %v4213, 4294901760
        %v4735 = vsub.f32 %v4213, %v4734
        %v4736 = vand.u32 %v4735, 4294901760
        %4737 = vmatpush1.msra.mxu0 %v4736
        %v4738 = vand.u32 %v4216, 4294901760
        %v4739 = vsub.f32 %v4216, %v4738
        %v4740 = vand.u32 %v4739, 4294901760
        %4741 = vmatprep.subr.mxu0 %v4740
        %v4742 = vand.u32 %v4215, 4294901760
        %v4743 = vsub.f32 %v4215, %v4742
        %v4744 = vand.u32 %v4743, 4294901760
        %4745 = vmatpush1.msra.mxu0 %v4744
        %v4746 = vand.u32 %v4218, 4294901760
        %v4747 = vsub.f32 %v4218, %v4746
        %v4748 = vand.u32 %v4747, 4294901760
        %4749 = vmatprep.subr.mxu0 %v4748
        %v4750 = vand.u32 %v4217, 4294901760
        %v4751 = vsub.f32 %v4217, %v4750
        %v4752 = vand.u32 %v4751, 4294901760
        %4753 = vmatpush1.msra.mxu0 %v4752
        %v4754 = vand.u32 %v4220, 4294901760
        %v4755 = vsub.f32 %v4220, %v4754
        %v4756 = vand.u32 %v4755, 4294901760
        %4757 = vmatprep.subr.mxu0 %v4756
        %v4758 = vand.u32 %v4219, 4294901760
        %v4759 = vsub.f32 %v4219, %v4758
        %v4760 = vand.u32 %v4759, 4294901760
        %4761 = vmatpush1.msra.mxu0 %v4760
        %4762 = vmatprep.subr.mxu0 0.0
        %4763 = vmatpush1.msra.mxu0 0.0
        %4764 = vmatprep.subr.mxu0 0.0
        %4765 = vmatpush1.msra.mxu0 0.0
        %4766 = vmatprep.subr.mxu0 0.0
        %4767 = vmatpush1.msra.mxu0 0.0
        %4768 = vmatprep.subr.mxu0 0.0
        %4769 = vmatpush1.msra.mxu0 0.0
        %4770 = vmatprep.subr.mxu0 0.0
        %4771 = vmatpush1.msra.mxu0 0.0
        %4772 = vmatprep.subr.mxu0 0.0
        %4773 = vmatpush1.msra.mxu0 0.0
        %4774 = vmatprep.subr.mxu0 0.0
        %4775 = vmatpush1.msra.mxu0 0.0
        %4776 = vmatprep.subr.mxu0 0.0
        %4777 = vmatpush1.msra.mxu0 0.0
        %4778 = vmatprep.subr.mxu0 0.0
        %4779 = vmatpush1.msra.mxu0 0.0
        %4780 = vmatprep.subr.mxu0 0.0
        %4781 = vmatpush1.msra.mxu0 0.0
        %4782 = vmatprep.subr.mxu0 0.0
        %4783 = vmatpush1.msra.mxu0 0.0
        %4784 = vmatprep.subr.mxu0 0.0
        %4785 = vmatpush1.msra.mxu0 0.0
        %4786 = vmatprep.subr.mxu0 0.0
        %4787 = vmatpush1.msra.mxu0 0.0
        %4788 = vmatprep.subr.mxu0 0.0
        %4789 = vmatpush1.msra.mxu0 0.0
        %4790 = vmatprep.subr.mxu0 0.0
        %4791 = vmatpush1.msra.mxu0 0.0
        %4792 = vmatprep.subr.mxu0 0.0
        %4793 = vmatpush1.msra.mxu0 0.0
        %4794 = vmatprep.subr.mxu0 0.0
        %4795 = vmatpush1.msra.mxu0 0.0
        %4796 = vmatprep.subr.mxu0 0.0
        %4797 = vmatpush1.msra.mxu0 0.0
        %4798 = vmatprep.subr.mxu0 0.0
        %4799 = vmatpush1.msra.mxu0 0.0
        %4800 = vmatprep.subr.mxu0 0.0
        %4801 = vmatpush1.msra.mxu0 0.0
        %4802 = vmatprep.subr.mxu0 0.0
        %4803 = vmatpush1.msra.mxu0 0.0
        %4804 = vmatprep.subr.mxu0 0.0
        %4805 = vmatpush1.msra.mxu0 0.0
        %4806 = vmatprep.subr.mxu0 0.0
        %4807 = vmatpush1.msra.mxu0 0.0
        %4808 = vmatprep.mubr.f32.mxu0 0.0
        %v4809 = vand.u32 %v4231, 4294901760
        %4810 = vmatmul.mubr.f32.gmra.mrb[0].mxu0 %v4809
        %v4811 = vpop.f32.mrb[0].mxu0
        %v4812 = vadd.f32 %v4686, %v4811
        %v4813 = vpop.f32.mrb[0].mxu0
        %v4814 = vadd.f32 %v4688, %v4813
        %4815 = vdwg.mxu0
        %v4816 = vand.u32 %v4204, 4294901760
        %4817 = vmatprep.subr.mxu0 %v4816
        %v4818 = vand.u32 %v4203, 4294901760
        %4819 = vmatpush1.msra.mxu0 %v4818
        %v4820 = vand.u32 %v4206, 4294901760
        %4821 = vmatprep.subr.mxu0 %v4820
        %v4822 = vand.u32 %v4205, 4294901760
        %4823 = vmatpush1.msra.mxu0 %v4822
        %v4824 = vand.u32 %v4208, 4294901760
        %4825 = vmatprep.subr.mxu0 %v4824
        %v4826 = vand.u32 %v4207, 4294901760
        %4827 = vmatpush1.msra.mxu0 %v4826
        %v4828 = vand.u32 %v4210, 4294901760
        %4829 = vmatprep.subr.mxu0 %v4828
        %v4830 = vand.u32 %v4209, 4294901760
        %4831 = vmatpush1.msra.mxu0 %v4830
        %v4832 = vand.u32 %v4212, 4294901760
        %4833 = vmatprep.subr.mxu0 %v4832
        %v4834 = vand.u32 %v4211, 4294901760
        %4835 = vmatpush1.msra.mxu0 %v4834
        %v4836 = vand.u32 %v4214, 4294901760
        %4837 = vmatprep.subr.mxu0 %v4836
        %v4838 = vand.u32 %v4213, 4294901760
        %4839 = vmatpush1.msra.mxu0 %v4838
        %v4840 = vand.u32 %v4216, 4294901760
        %4841 = vmatprep.subr.mxu0 %v4840
        %v4842 = vand.u32 %v4215, 4294901760
        %4843 = vmatpush1.msra.mxu0 %v4842
        %v4844 = vand.u32 %v4218, 4294901760
        %4845 = vmatprep.subr.mxu0 %v4844
        %v4846 = vand.u32 %v4217, 4294901760
        %4847 = vmatpush1.msra.mxu0 %v4846
        %v4848 = vand.u32 %v4220, 4294901760
        %4849 = vmatprep.subr.mxu0 %v4848
        %v4850 = vand.u32 %v4219, 4294901760
        %4851 = vmatpush1.msra.mxu0 %v4850
        %4852 = vmatprep.subr.mxu0 0.0
        %4853 = vmatpush1.msra.mxu0 0.0
        %4854 = vmatprep.subr.mxu0 0.0
        %4855 = vmatpush1.msra.mxu0 0.0
        %4856 = vmatprep.subr.mxu0 0.0
        %4857 = vmatpush1.msra.mxu0 0.0
        %4858 = vmatprep.subr.mxu0 0.0
        %4859 = vmatpush1.msra.mxu0 0.0
        %4860 = vmatprep.subr.mxu0 0.0
        %4861 = vmatpush1.msra.mxu0 0.0
        %4862 = vmatprep.subr.mxu0 0.0
        %4863 = vmatpush1.msra.mxu0 0.0
        %4864 = vmatprep.subr.mxu0 0.0
        %4865 = vmatpush1.msra.mxu0 0.0
        %4866 = vmatprep.subr.mxu0 0.0
        %4867 = vmatpush1.msra.mxu0 0.0
        %4868 = vmatprep.subr.mxu0 0.0
        %4869 = vmatpush1.msra.mxu0 0.0
        %4870 = vmatprep.subr.mxu0 0.0
        %4871 = vmatpush1.msra.mxu0 0.0
        %4872 = vmatprep.subr.mxu0 0.0
        %4873 = vmatpush1.msra.mxu0 0.0
        %4874 = vmatprep.subr.mxu0 0.0
        %4875 = vmatpush1.msra.mxu0 0.0
        %4876 = vmatprep.subr.mxu0 0.0
        %4877 = vmatpush1.msra.mxu0 0.0
        %4878 = vmatprep.subr.mxu0 0.0
        %4879 = vmatpush1.msra.mxu0 0.0
        %4880 = vmatprep.subr.mxu0 0.0
        %4881 = vmatpush1.msra.mxu0 0.0
        %4882 = vmatprep.subr.mxu0 0.0
        %4883 = vmatpush1.msra.mxu0 0.0
        %4884 = vmatprep.subr.mxu0 0.0
        %4885 = vmatpush1.msra.mxu0 0.0
        %4886 = vmatprep.subr.mxu0 0.0
        %4887 = vmatpush1.msra.mxu0 0.0
        %4888 = vmatprep.subr.mxu0 0.0
        %4889 = vmatpush1.msra.mxu0 0.0
        %4890 = vmatprep.subr.mxu0 0.0
        %4891 = vmatpush1.msra.mxu0 0.0
        %4892 = vmatprep.subr.mxu0 0.0
        %4893 = vmatpush1.msra.mxu0 0.0
        %4894 = vmatprep.subr.mxu0 0.0
        %4895 = vmatpush1.msra.mxu0 0.0
        %4896 = vmatprep.subr.mxu0 0.0
        %4897 = vmatpush1.msra.mxu0 0.0
        %4898 = vmatprep.mubr.f32.mxu0 0.0
        %v4899 = vand.u32 %v4231, 4294901760
        %4900 = vmatmul.mubr.f32.gmra.mrb[0].mxu0 %v4899
        %v4901 = vpop.f32.mrb[0].mxu0
        %v4902 = vadd.f32 %v4812, %v4901
        %v4903 = vpop.f32.mrb[0].mxu0
        %v4904 = vadd.f32 %v4814, %v4903
        %4905 = vdwg.mxu0
        %4906 = vrot.lane.b32.xlu0 %v4902, 127
        %v4907 = vpop.permute.xlu0 %4906
        %4908 = vrot.lane.b32.xlu0 %v4904, 127
        %v4909 = vpop.permute.xlu0 %4908
        %v4910 = vsel %vm415, %v4907, %v4909
        %v4911 = vsel %vm415, %v4909, %v4907
        %v4912 = vld [vmem:[%s4] ss:$8 sm:$0x3]
        %v4914 = vlaneseq
        %v4915 = vshrl.u32 %v4914, 7
        %v4916 = vsub.s32 0, %v4915
        %v4917 = vrot.slane %v4912, %v4916
        %v4918 = vlaneseq
        %v4919 = vshrl.u32 %v4918, 7
        %v4920 = vsub.s32 1, %v4919
        %v4921 = vrot.slane %v4912, %v4920
        %v4924 = vadd.f32 %v4910, %v4917
        %v4925 = vadd.f32 %v4911, %v4921
        %v4926 = vmax.f32 %v4902, %v4924
        %v4927 = vmax.f32 %v4904, %v4925
        %4928 = vrot.lane.b32.xlu0 %v4926, 126
        %v4929 = vpop.permute.xlu0 %4928
        %4930 = vrot.lane.b32.xlu0 %v4927, 126
        %v4931 = vpop.permute.xlu0 %4930
        %vm4932 = vcmp.lt.s32.totalorder %v386, 126
        %v4933 = vsel %vm4932, %v4929, %v4931
        %v4934 = vsel %vm4932, %v4931, %v4929
        %s4935 = scalar_lea.vmem %s4, 1
        %v4936 = vld [vmem:[%s4935] ss:$8 sm:$0x3]
        %v4938 = vlaneseq
        %v4939 = vshrl.u32 %v4938, 7
        %v4940 = vsub.s32 0, %v4939
        %v4941 = vrot.slane %v4936, %v4940
        %v4942 = vlaneseq
        %v4943 = vshrl.u32 %v4942, 7
        %v4944 = vsub.s32 1, %v4943
        %v4945 = vrot.slane %v4936, %v4944
        %v4948 = vadd.f32 %v4933, %v4941
        %v4949 = vadd.f32 %v4934, %v4945
        %v4950 = vmax.f32 %v4926, %v4948
        %v4951 = vmax.f32 %v4927, %v4949
        %4952 = vrot.lane.b32.xlu0 %v4950, 124
        %v4953 = vpop.permute.xlu0 %4952
        %4954 = vrot.lane.b32.xlu0 %v4951, 124
        %v4955 = vpop.permute.xlu0 %4954
        %vm4956 = vcmp.lt.s32.totalorder %v386, 124
        %v4957 = vsel %vm4956, %v4953, %v4955
        %v4958 = vsel %vm4956, %v4955, %v4953
        %s4959 = scalar_lea.vmem %s4, 2
        %v4960 = vld [vmem:[%s4959] ss:$8 sm:$0x3]
        %v4962 = vlaneseq
        %v4963 = vshrl.u32 %v4962, 7
        %v4964 = vsub.s32 0, %v4963
        %v4965 = vrot.slane %v4960, %v4964
        %v4966 = vlaneseq
        %v4967 = vshrl.u32 %v4966, 7
        %v4968 = vsub.s32 1, %v4967
        %v4969 = vrot.slane %v4960, %v4968
        %v4972 = vadd.f32 %v4957, %v4965
        %v4973 = vadd.f32 %v4958, %v4969
        %v4974 = vmax.f32 %v4950, %v4972
        %v4975 = vmax.f32 %v4951, %v4973
        %4976 = vrot.lane.b32.xlu0 %v4974, 120
        %v4977 = vpop.permute.xlu0 %4976
        %4978 = vrot.lane.b32.xlu0 %v4975, 120
        %v4979 = vpop.permute.xlu0 %4978
        %vm4980 = vcmp.lt.s32.totalorder %v386, 120
        %v4981 = vsel %vm4980, %v4977, %v4979
        %v4982 = vsel %vm4980, %v4979, %v4977
        %s4983 = scalar_lea.vmem %s4, 3
        %v4984 = vld [vmem:[%s4983] ss:$8 sm:$0x3]
        %v4986 = vlaneseq
        %v4987 = vshrl.u32 %v4986, 7
        %v4988 = vsub.s32 0, %v4987
        %v4989 = vrot.slane %v4984, %v4988
        %v4990 = vlaneseq
        %v4991 = vshrl.u32 %v4990, 7
        %v4992 = vsub.s32 1, %v4991
        %v4993 = vrot.slane %v4984, %v4992
        %v4996 = vadd.f32 %v4981, %v4989
        %v4997 = vadd.f32 %v4982, %v4993
        %v4998 = vmax.f32 %v4974, %v4996
        %v4999 = vmax.f32 %v4975, %v4997
        %s5000 = scalar_lea.vmem %s4, 4
        %v5001 = vld [vmem:[%s5000] ss:$8 sm:$0x3]
        %v5003 = vlaneseq
        %v5004 = vshrl.u32 %v5003, 7
        %v5005 = vsub.s32 0, %v5004
        %v5006 = vrot.slane %v5001, %v5005
        %v5007 = vlaneseq
        %v5008 = vshrl.u32 %v5007, 7
        %v5009 = vsub.s32 1, %v5008
        %v5010 = vrot.slane %v5001, %v5009
        %v5013 = vmul.f32 %v4998, %v5006
        %v5014 = vmul.f32 %v4999, %v5010
        %v5015 = vand.u32 %v316, 4294901760
        %5016 = vmatprep.subr.mxu0 %v5015
        %v5017 = vand.u32 %v315, 4294901760
        %5018 = vmatpush1.msra.mxu0 %v5017
        %v5019 = vand.u32 %v318, 4294901760
        %5020 = vmatprep.subr.mxu0 %v5019
        %v5021 = vand.u32 %v317, 4294901760
        %5022 = vmatpush1.msra.mxu0 %v5021
        %v5023 = vand.u32 %v320, 4294901760
        %5024 = vmatprep.subr.mxu0 %v5023
        %v5025 = vand.u32 %v319, 4294901760
        %5026 = vmatpush1.msra.mxu0 %v5025
        %v5027 = vand.u32 %v322, 4294901760
        %5028 = vmatprep.subr.mxu0 %v5027
        %v5029 = vand.u32 %v321, 4294901760
        %5030 = vmatpush1.msra.mxu0 %v5029
        %v5031 = vand.u32 %v324, 4294901760
        %5032 = vmatprep.subr.mxu0 %v5031
        %v5033 = vand.u32 %v323, 4294901760
        %5034 = vmatpush1.msra.mxu0 %v5033
        %v5035 = vand.u32 %v326, 4294901760
        %5036 = vmatprep.subr.mxu0 %v5035
        %v5037 = vand.u32 %v325, 4294901760
        %5038 = vmatpush1.msra.mxu0 %v5037
        %v5039 = vand.u32 %v328, 4294901760
        %5040 = vmatprep.subr.mxu0 %v5039
        %v5041 = vand.u32 %v327, 4294901760
        %5042 = vmatpush1.msra.mxu0 %v5041
        %v5043 = vand.u32 %v330, 4294901760
        %5044 = vmatprep.subr.mxu0 %v5043
        %v5045 = vand.u32 %v329, 4294901760
        %5046 = vmatpush1.msra.mxu0 %v5045
        %v5047 = vand.u32 %v332, 4294901760
        %5048 = vmatprep.subr.mxu0 %v5047
        %v5049 = vand.u32 %v331, 4294901760
        %5050 = vmatpush1.msra.mxu0 %v5049
        %v5051 = vand.u32 %v334, 4294901760
        %5052 = vmatprep.subr.mxu0 %v5051
        %v5053 = vand.u32 %v333, 4294901760
        %5054 = vmatpush1.msra.mxu0 %v5053
        %v5055 = vand.u32 %v336, 4294901760
        %5056 = vmatprep.subr.mxu0 %v5055
        %v5057 = vand.u32 %v335, 4294901760
        %5058 = vmatpush1.msra.mxu0 %v5057
        %v5059 = vand.u32 %v338, 4294901760
        %5060 = vmatprep.subr.mxu0 %v5059
        %v5061 = vand.u32 %v337, 4294901760
        %5062 = vmatpush1.msra.mxu0 %v5061
        %v5063 = vand.u32 %v340, 4294901760
        %5064 = vmatprep.subr.mxu0 %v5063
        %v5065 = vand.u32 %v339, 4294901760
        %5066 = vmatpush1.msra.mxu0 %v5065
        %v5067 = vand.u32 %v342, 4294901760
        %5068 = vmatprep.subr.mxu0 %v5067
        %v5069 = vand.u32 %v341, 4294901760
        %5070 = vmatpush1.msra.mxu0 %v5069
        %v5071 = vand.u32 %v344, 4294901760
        %5072 = vmatprep.subr.mxu0 %v5071
        %v5073 = vand.u32 %v343, 4294901760
        %5074 = vmatpush1.msra.mxu0 %v5073
        %v5075 = vand.u32 %v346, 4294901760
        %5076 = vmatprep.subr.mxu0 %v5075
        %v5077 = vand.u32 %v345, 4294901760
        %5078 = vmatpush1.msra.mxu0 %v5077
        %v5079 = vand.u32 %v348, 4294901760
        %5080 = vmatprep.subr.mxu0 %v5079
        %v5081 = vand.u32 %v347, 4294901760
        %5082 = vmatpush1.msra.mxu0 %v5081
        %v5083 = vand.u32 %v350, 4294901760
        %5084 = vmatprep.subr.mxu0 %v5083
        %v5085 = vand.u32 %v349, 4294901760
        %5086 = vmatpush1.msra.mxu0 %v5085
        %v5087 = vand.u32 %v352, 4294901760
        %5088 = vmatprep.subr.mxu0 %v5087
        %v5089 = vand.u32 %v351, 4294901760
        %5090 = vmatpush1.msra.mxu0 %v5089
        %v5091 = vand.u32 %v354, 4294901760
        %5092 = vmatprep.subr.mxu0 %v5091
        %v5093 = vand.u32 %v353, 4294901760
        %5094 = vmatpush1.msra.mxu0 %v5093
        %v5095 = vand.u32 %v356, 4294901760
        %5096 = vmatprep.subr.mxu0 %v5095
        %v5097 = vand.u32 %v355, 4294901760
        %5098 = vmatpush1.msra.mxu0 %v5097
        %v5099 = vand.u32 %v358, 4294901760
        %5100 = vmatprep.subr.mxu0 %v5099
        %v5101 = vand.u32 %v357, 4294901760
        %5102 = vmatpush1.msra.mxu0 %v5101
        %v5103 = vand.u32 %v360, 4294901760
        %5104 = vmatprep.subr.mxu0 %v5103
        %v5105 = vand.u32 %v359, 4294901760
        %5106 = vmatpush1.msra.mxu0 %v5105
        %v5107 = vand.u32 %v362, 4294901760
        %5108 = vmatprep.subr.mxu0 %v5107
        %v5109 = vand.u32 %v361, 4294901760
        %5110 = vmatpush1.msra.mxu0 %v5109
        %v5111 = vand.u32 %v364, 4294901760
        %5112 = vmatprep.subr.mxu0 %v5111
        %v5113 = vand.u32 %v363, 4294901760
        %5114 = vmatpush1.msra.mxu0 %v5113
        %v5115 = vand.u32 %v366, 4294901760
        %5116 = vmatprep.subr.mxu0 %v5115
        %v5117 = vand.u32 %v365, 4294901760
        %5118 = vmatpush1.msra.mxu0 %v5117
        %v5119 = vand.u32 %v368, 4294901760
        %5120 = vmatprep.subr.mxu0 %v5119
        %v5121 = vand.u32 %v367, 4294901760
        %5122 = vmatpush1.msra.mxu0 %v5121
        %v5123 = vand.u32 %v370, 4294901760
        %5124 = vmatprep.subr.mxu0 %v5123
        %v5125 = vand.u32 %v369, 4294901760
        %5126 = vmatpush1.msra.mxu0 %v5125
        %v5127 = vand.u32 %v372, 4294901760
        %5128 = vmatprep.subr.mxu0 %v5127
        %v5129 = vand.u32 %v371, 4294901760
        %5130 = vmatpush1.msra.mxu0 %v5129
        %v5131 = vand.u32 %v374, 4294901760
        %5132 = vmatprep.subr.mxu0 %v5131
        %v5133 = vand.u32 %v373, 4294901760
        %5134 = vmatpush1.msra.mxu0 %v5133
        %v5135 = vand.u32 %v376, 4294901760
        %5136 = vmatprep.subr.mxu0 %v5135
        %v5137 = vand.u32 %v375, 4294901760
        %5138 = vmatpush1.msra.mxu0 %v5137
        %v5139 = vand.u32 %v378, 4294901760
        %5140 = vmatprep.subr.mxu0 %v5139
        %v5141 = vand.u32 %v377, 4294901760
        %5142 = vmatpush1.msra.mxu0 %v5141
        %v5143 = vand.u32 %v5014, 4294901760
        %v5144 = vsub.f32 %v5014, %v5143
        %v5145 = vand.u32 %v5144, 4294901760
        %v5146 = vsub.f32 %v5144, %v5145
        %v5147 = vand.u32 %v5146, 4294901760
        %5148 = vmatprep.mubr.f32.mxu0 %v5147
        %v5149 = vand.u32 %v5013, 4294901760
        %v5150 = vsub.f32 %v5013, %v5149
        %v5151 = vand.u32 %v5150, 4294901760
        %v5152 = vsub.f32 %v5150, %v5151
        %v5153 = vand.u32 %v5152, 4294901760
        %5154 = vmatmul.mubr.f32.gmra.mrb[0].mxu0 %v5153
        %v5155 = vpop.f32.mrb[0].mxu0
        %v5156 = vadd.f32 0.0, %v5155
        %v5157 = vpop.f32.mrb[0].mxu0
        %v5158 = vadd.f32 0.0, %v5157
        %5159 = vdwg.mxu0
        %v5160 = vand.u32 %v316, 4294901760
        %v5161 = vsub.f32 %v316, %v5160
        %v5162 = vand.u32 %v5161, 4294901760
        %v5163 = vsub.f32 %v5161, %v5162
        %v5164 = vand.u32 %v5163, 4294901760
        %5165 = vmatprep.subr.mxu0 %v5164
        %v5166 = vand.u32 %v315, 4294901760
        %v5167 = vsub.f32 %v315, %v5166
        %v5168 = vand.u32 %v5167, 4294901760
        %v5169 = vsub.f32 %v5167, %v5168
        %v5170 = vand.u32 %v5169, 4294901760
        %5171 = vmatpush1.msra.mxu0 %v5170
        %v5172 = vand.u32 %v318, 4294901760
        %v5173 = vsub.f32 %v318, %v5172
        %v5174 = vand.u32 %v5173, 4294901760
        %v5175 = vsub.f32 %v5173, %v5174
        %v5176 = vand.u32 %v5175, 4294901760
        %5177 = vmatprep.subr.mxu0 %v5176
        %v5178 = vand.u32 %v317, 4294901760
        %v5179 = vsub.f32 %v317, %v5178
        %v5180 = vand.u32 %v5179, 4294901760
        %v5181 = vsub.f32 %v5179, %v5180
        %v5182 = vand.u32 %v5181, 4294901760
        %5183 = vmatpush1.msra.mxu0 %v5182
        %v5184 = vand.u32 %v320, 4294901760
        %v5185 = vsub.f32 %v320, %v5184
        %v5186 = vand.u32 %v5185, 4294901760
        %v5187 = vsub.f32 %v5185, %v5186
        %v5188 = vand.u32 %v5187, 4294901760
        %5189 = vmatprep.subr.mxu0 %v5188
        %v5190 = vand.u32 %v319, 4294901760
        %v5191 = vsub.f32 %v319, %v5190
        %v5192 = vand.u32 %v5191, 4294901760
        %v5193 = vsub.f32 %v5191, %v5192
        %v5194 = vand.u32 %v5193, 4294901760
        %5195 = vmatpush1.msra.mxu0 %v5194
        %v5196 = vand.u32 %v322, 4294901760
        %v5197 = vsub.f32 %v322, %v5196
        %v5198 = vand.u32 %v5197, 4294901760
        %v5199 = vsub.f32 %v5197, %v5198
        %v5200 = vand.u32 %v5199, 4294901760
        %5201 = vmatprep.subr.mxu0 %v5200
        %v5202 = vand.u32 %v321, 4294901760
        %v5203 = vsub.f32 %v321, %v5202
        %v5204 = vand.u32 %v5203, 4294901760
        %v5205 = vsub.f32 %v5203, %v5204
        %v5206 = vand.u32 %v5205, 4294901760
        %5207 = vmatpush1.msra.mxu0 %v5206
        %v5208 = vand.u32 %v324, 4294901760
        %v5209 = vsub.f32 %v324, %v5208
        %v5210 = vand.u32 %v5209, 4294901760
        %v5211 = vsub.f32 %v5209, %v5210
        %v5212 = vand.u32 %v5211, 4294901760
        %5213 = vmatprep.subr.mxu0 %v5212
        %v5214 = vand.u32 %v323, 4294901760
        %v5215 = vsub.f32 %v323, %v5214
        %v5216 = vand.u32 %v5215, 4294901760
        %v5217 = vsub.f32 %v5215, %v5216
        %v5218 = vand.u32 %v5217, 4294901760
        %5219 = vmatpush1.msra.mxu0 %v5218
        %v5220 = vand.u32 %v326, 4294901760
        %v5221 = vsub.f32 %v326, %v5220
        %v5222 = vand.u32 %v5221, 4294901760
        %v5223 = vsub.f32 %v5221, %v5222
        %v5224 = vand.u32 %v5223, 4294901760
        %5225 = vmatprep.subr.mxu0 %v5224
        %v5226 = vand.u32 %v325, 4294901760
        %v5227 = vsub.f32 %v325, %v5226
        %v5228 = vand.u32 %v5227, 4294901760
        %v5229 = vsub.f32 %v5227, %v5228
        %v5230 = vand.u32 %v5229, 4294901760
        %5231 = vmatpush1.msra.mxu0 %v5230
        %v5232 = vand.u32 %v328, 4294901760
        %v5233 = vsub.f32 %v328, %v5232
        %v5234 = vand.u32 %v5233, 4294901760
        %v5235 = vsub.f32 %v5233, %v5234
        %v5236 = vand.u32 %v5235, 4294901760
        %5237 = vmatprep.subr.mxu0 %v5236
        %v5238 = vand.u32 %v327, 4294901760
        %v5239 = vsub.f32 %v327, %v5238
        %v5240 = vand.u32 %v5239, 4294901760
        %v5241 = vsub.f32 %v5239, %v5240
        %v5242 = vand.u32 %v5241, 4294901760
        %5243 = vmatpush1.msra.mxu0 %v5242
        %v5244 = vand.u32 %v330, 4294901760
        %v5245 = vsub.f32 %v330, %v5244
        %v5246 = vand.u32 %v5245, 4294901760
        %v5247 = vsub.f32 %v5245, %v5246
        %v5248 = vand.u32 %v5247, 4294901760
        %5249 = vmatprep.subr.mxu0 %v5248
        %v5250 = vand.u32 %v329, 4294901760
        %v5251 = vsub.f32 %v329, %v5250
        %v5252 = vand.u32 %v5251, 4294901760
        %v5253 = vsub.f32 %v5251, %v5252
        %v5254 = vand.u32 %v5253, 4294901760
        %5255 = vmatpush1.msra.mxu0 %v5254
        %v5256 = vand.u32 %v332, 4294901760
        %v5257 = vsub.f32 %v332, %v5256
        %v5258 = vand.u32 %v5257, 4294901760
        %v5259 = vsub.f32 %v5257, %v5258
        %v5260 = vand.u32 %v5259, 4294901760
        %5261 = vmatprep.subr.mxu0 %v5260
        %v5262 = vand.u32 %v331, 4294901760
        %v5263 = vsub.f32 %v331, %v5262
        %v5264 = vand.u32 %v5263, 4294901760
        %v5265 = vsub.f32 %v5263, %v5264
        %v5266 = vand.u32 %v5265, 4294901760
        %5267 = vmatpush1.msra.mxu0 %v5266
        %v5268 = vand.u32 %v334, 4294901760
        %v5269 = vsub.f32 %v334, %v5268
        %v5270 = vand.u32 %v5269, 4294901760
        %v5271 = vsub.f32 %v5269, %v5270
        %v5272 = vand.u32 %v5271, 4294901760
        %5273 = vmatprep.subr.mxu0 %v5272
        %v5274 = vand.u32 %v333, 4294901760
        %v5275 = vsub.f32 %v333, %v5274
        %v5276 = vand.u32 %v5275, 4294901760
        %v5277 = vsub.f32 %v5275, %v5276
        %v5278 = vand.u32 %v5277, 4294901760
        %5279 = vmatpush1.msra.mxu0 %v5278
        %v5280 = vand.u32 %v336, 4294901760
        %v5281 = vsub.f32 %v336, %v5280
        %v5282 = vand.u32 %v5281, 4294901760
        %v5283 = vsub.f32 %v5281, %v5282
        %v5284 = vand.u32 %v5283, 4294901760
        %5285 = vmatprep.subr.mxu0 %v5284
        %v5286 = vand.u32 %v335, 4294901760
        %v5287 = vsub.f32 %v335, %v5286
        %v5288 = vand.u32 %v5287, 4294901760
        %v5289 = vsub.f32 %v5287, %v5288
        %v5290 = vand.u32 %v5289, 4294901760
        %5291 = vmatpush1.msra.mxu0 %v5290
        %v5292 = vand.u32 %v338, 4294901760
        %v5293 = vsub.f32 %v338, %v5292
        %v5294 = vand.u32 %v5293, 4294901760
        %v5295 = vsub.f32 %v5293, %v5294
        %v5296 = vand.u32 %v5295, 4294901760
        %5297 = vmatprep.subr.mxu0 %v5296
        %v5298 = vand.u32 %v337, 4294901760
        %v5299 = vsub.f32 %v337, %v5298
        %v5300 = vand.u32 %v5299, 4294901760
        %v5301 = vsub.f32 %v5299, %v5300
        %v5302 = vand.u32 %v5301, 4294901760
        %5303 = vmatpush1.msra.mxu0 %v5302
        %v5304 = vand.u32 %v340, 4294901760
        %v5305 = vsub.f32 %v340, %v5304
        %v5306 = vand.u32 %v5305, 4294901760
        %v5307 = vsub.f32 %v5305, %v5306
        %v5308 = vand.u32 %v5307, 4294901760
        %5309 = vmatprep.subr.mxu0 %v5308
        %v5310 = vand.u32 %v339, 4294901760
        %v5311 = vsub.f32 %v339, %v5310
        %v5312 = vand.u32 %v5311, 4294901760
        %v5313 = vsub.f32 %v5311, %v5312
        %v5314 = vand.u32 %v5313, 4294901760
        %5315 = vmatpush1.msra.mxu0 %v5314
        %v5316 = vand.u32 %v342, 4294901760
        %v5317 = vsub.f32 %v342, %v5316
        %v5318 = vand.u32 %v5317, 4294901760
        %v5319 = vsub.f32 %v5317, %v5318
        %v5320 = vand.u32 %v5319, 4294901760
        %5321 = vmatprep.subr.mxu0 %v5320
        %v5322 = vand.u32 %v341, 4294901760
        %v5323 = vsub.f32 %v341, %v5322
        %v5324 = vand.u32 %v5323, 4294901760
        %v5325 = vsub.f32 %v5323, %v5324
        %v5326 = vand.u32 %v5325, 4294901760
        %5327 = vmatpush1.msra.mxu0 %v5326
        %v5328 = vand.u32 %v344, 4294901760
        %v5329 = vsub.f32 %v344, %v5328
        %v5330 = vand.u32 %v5329, 4294901760
        %v5331 = vsub.f32 %v5329, %v5330
        %v5332 = vand.u32 %v5331, 4294901760
        %5333 = vmatprep.subr.mxu0 %v5332
        %v5334 = vand.u32 %v343, 4294901760
        %v5335 = vsub.f32 %v343, %v5334
        %v5336 = vand.u32 %v5335, 4294901760
        %v5337 = vsub.f32 %v5335, %v5336
        %v5338 = vand.u32 %v5337, 4294901760
        %5339 = vmatpush1.msra.mxu0 %v5338
        %v5340 = vand.u32 %v346, 4294901760
        %v5341 = vsub.f32 %v346, %v5340
        %v5342 = vand.u32 %v5341, 4294901760
        %v5343 = vsub.f32 %v5341, %v5342
        %v5344 = vand.u32 %v5343, 4294901760
        %5345 = vmatprep.subr.mxu0 %v5344
        %v5346 = vand.u32 %v345, 4294901760
        %v5347 = vsub.f32 %v345, %v5346
        %v5348 = vand.u32 %v5347, 4294901760
        %v5349 = vsub.f32 %v5347, %v5348
        %v5350 = vand.u32 %v5349, 4294901760
        %5351 = vmatpush1.msra.mxu0 %v5350
        %v5352 = vand.u32 %v348, 4294901760
        %v5353 = vsub.f32 %v348, %v5352
        %v5354 = vand.u32 %v5353, 4294901760
        %v5355 = vsub.f32 %v5353, %v5354
        %v5356 = vand.u32 %v5355, 4294901760
        %5357 = vmatprep.subr.mxu0 %v5356
        %v5358 = vand.u32 %v347, 4294901760
        %v5359 = vsub.f32 %v347, %v5358
        %v5360 = vand.u32 %v5359, 4294901760
        %v5361 = vsub.f32 %v5359, %v5360
        %v5362 = vand.u32 %v5361, 4294901760
        %5363 = vmatpush1.msra.mxu0 %v5362
        %v5364 = vand.u32 %v350, 4294901760
        %v5365 = vsub.f32 %v350, %v5364
        %v5366 = vand.u32 %v5365, 4294901760
        %v5367 = vsub.f32 %v5365, %v5366
        %v5368 = vand.u32 %v5367, 4294901760
        %5369 = vmatprep.subr.mxu0 %v5368
        %v5370 = vand.u32 %v349, 4294901760
        %v5371 = vsub.f32 %v349, %v5370
        %v5372 = vand.u32 %v5371, 4294901760
        %v5373 = vsub.f32 %v5371, %v5372
        %v5374 = vand.u32 %v5373, 4294901760
        %5375 = vmatpush1.msra.mxu0 %v5374
        %v5376 = vand.u32 %v352, 4294901760
        %v5377 = vsub.f32 %v352, %v5376
        %v5378 = vand.u32 %v5377, 4294901760
        %v5379 = vsub.f32 %v5377, %v5378
        %v5380 = vand.u32 %v5379, 4294901760
        %5381 = vmatprep.subr.mxu0 %v5380
        %v5382 = vand.u32 %v351, 4294901760
        %v5383 = vsub.f32 %v351, %v5382
        %v5384 = vand.u32 %v5383, 4294901760
        %v5385 = vsub.f32 %v5383, %v5384
        %v5386 = vand.u32 %v5385, 4294901760
        %5387 = vmatpush1.msra.mxu0 %v5386
        %v5388 = vand.u32 %v354, 4294901760
        %v5389 = vsub.f32 %v354, %v5388
        %v5390 = vand.u32 %v5389, 4294901760
        %v5391 = vsub.f32 %v5389, %v5390
        %v5392 = vand.u32 %v5391, 4294901760
        %5393 = vmatprep.subr.mxu0 %v5392
        %v5394 = vand.u32 %v353, 4294901760
        %v5395 = vsub.f32 %v353, %v5394
        %v5396 = vand.u32 %v5395, 4294901760
        %v5397 = vsub.f32 %v5395, %v5396
        %v5398 = vand.u32 %v5397, 4294901760
        %5399 = vmatpush1.msra.mxu0 %v5398
        %v5400 = vand.u32 %v356, 4294901760
        %v5401 = vsub.f32 %v356, %v5400
        %v5402 = vand.u32 %v5401, 4294901760
        %v5403 = vsub.f32 %v5401, %v5402
        %v5404 = vand.u32 %v5403, 4294901760
        %5405 = vmatprep.subr.mxu0 %v5404
        %v5406 = vand.u32 %v355, 4294901760
        %v5407 = vsub.f32 %v355, %v5406
        %v5408 = vand.u32 %v5407, 4294901760
        %v5409 = vsub.f32 %v5407, %v5408
        %v5410 = vand.u32 %v5409, 4294901760
        %5411 = vmatpush1.msra.mxu0 %v5410
        %v5412 = vand.u32 %v358, 4294901760
        %v5413 = vsub.f32 %v358, %v5412
        %v5414 = vand.u32 %v5413, 4294901760
        %v5415 = vsub.f32 %v5413, %v5414
        %v5416 = vand.u32 %v5415, 4294901760
        %5417 = vmatprep.subr.mxu0 %v5416
        %v5418 = vand.u32 %v357, 4294901760
        %v5419 = vsub.f32 %v357, %v5418
        %v5420 = vand.u32 %v5419, 4294901760
        %v5421 = vsub.f32 %v5419, %v5420
        %v5422 = vand.u32 %v5421, 4294901760
        %5423 = vmatpush1.msra.mxu0 %v5422
        %v5424 = vand.u32 %v360, 4294901760
        %v5425 = vsub.f32 %v360, %v5424
        %v5426 = vand.u32 %v5425, 4294901760
        %v5427 = vsub.f32 %v5425, %v5426
        %v5428 = vand.u32 %v5427, 4294901760
        %5429 = vmatprep.subr.mxu0 %v5428
        %v5430 = vand.u32 %v359, 4294901760
        %v5431 = vsub.f32 %v359, %v5430
        %v5432 = vand.u32 %v5431, 4294901760
        %v5433 = vsub.f32 %v5431, %v5432
        %v5434 = vand.u32 %v5433, 4294901760
        %5435 = vmatpush1.msra.mxu0 %v5434
        %v5436 = vand.u32 %v362, 4294901760
        %v5437 = vsub.f32 %v362, %v5436
        %v5438 = vand.u32 %v5437, 4294901760
        %v5439 = vsub.f32 %v5437, %v5438
        %v5440 = vand.u32 %v5439, 4294901760
        %5441 = vmatprep.subr.mxu0 %v5440
        %v5442 = vand.u32 %v361, 4294901760
        %v5443 = vsub.f32 %v361, %v5442
        %v5444 = vand.u32 %v5443, 4294901760
        %v5445 = vsub.f32 %v5443, %v5444
        %v5446 = vand.u32 %v5445, 4294901760
        %5447 = vmatpush1.msra.mxu0 %v5446
        %v5448 = vand.u32 %v364, 4294901760
        %v5449 = vsub.f32 %v364, %v5448
        %v5450 = vand.u32 %v5449, 4294901760
        %v5451 = vsub.f32 %v5449, %v5450
        %v5452 = vand.u32 %v5451, 4294901760
        %5453 = vmatprep.subr.mxu0 %v5452
        %v5454 = vand.u32 %v363, 4294901760
        %v5455 = vsub.f32 %v363, %v5454
        %v5456 = vand.u32 %v5455, 4294901760
        %v5457 = vsub.f32 %v5455, %v5456
        %v5458 = vand.u32 %v5457, 4294901760
        %5459 = vmatpush1.msra.mxu0 %v5458
        %v5460 = vand.u32 %v366, 4294901760
        %v5461 = vsub.f32 %v366, %v5460
        %v5462 = vand.u32 %v5461, 4294901760
        %v5463 = vsub.f32 %v5461, %v5462
        %v5464 = vand.u32 %v5463, 4294901760
        %5465 = vmatprep.subr.mxu0 %v5464
        %v5466 = vand.u32 %v365, 4294901760
        %v5467 = vsub.f32 %v365, %v5466
        %v5468 = vand.u32 %v5467, 4294901760
        %v5469 = vsub.f32 %v5467, %v5468
        %v5470 = vand.u32 %v5469, 4294901760
        %5471 = vmatpush1.msra.mxu0 %v5470
        %v5472 = vand.u32 %v368, 4294901760
        %v5473 = vsub.f32 %v368, %v5472
        %v5474 = vand.u32 %v5473, 4294901760
        %v5475 = vsub.f32 %v5473, %v5474
        %v5476 = vand.u32 %v5475, 4294901760
        %5477 = vmatprep.subr.mxu0 %v5476
        %v5478 = vand.u32 %v367, 4294901760
        %v5479 = vsub.f32 %v367, %v5478
        %v5480 = vand.u32 %v5479, 4294901760
        %v5481 = vsub.f32 %v5479, %v5480
        %v5482 = vand.u32 %v5481, 4294901760
        %5483 = vmatpush1.msra.mxu0 %v5482
        %v5484 = vand.u32 %v370, 4294901760
        %v5485 = vsub.f32 %v370, %v5484
        %v5486 = vand.u32 %v5485, 4294901760
        %v5487 = vsub.f32 %v5485, %v5486
        %v5488 = vand.u32 %v5487, 4294901760
        %5489 = vmatprep.subr.mxu0 %v5488
        %v5490 = vand.u32 %v369, 4294901760
        %v5491 = vsub.f32 %v369, %v5490
        %v5492 = vand.u32 %v5491, 4294901760
        %v5493 = vsub.f32 %v5491, %v5492
        %v5494 = vand.u32 %v5493, 4294901760
        %5495 = vmatpush1.msra.mxu0 %v5494
        %v5496 = vand.u32 %v372, 4294901760
        %v5497 = vsub.f32 %v372, %v5496
        %v5498 = vand.u32 %v5497, 4294901760
        %v5499 = vsub.f32 %v5497, %v5498
        %v5500 = vand.u32 %v5499, 4294901760
        %5501 = vmatprep.subr.mxu0 %v5500
        %v5502 = vand.u32 %v371, 4294901760
        %v5503 = vsub.f32 %v371, %v5502
        %v5504 = vand.u32 %v5503, 4294901760
        %v5505 = vsub.f32 %v5503, %v5504
        %v5506 = vand.u32 %v5505, 4294901760
        %5507 = vmatpush1.msra.mxu0 %v5506
        %v5508 = vand.u32 %v374, 4294901760
        %v5509 = vsub.f32 %v374, %v5508
        %v5510 = vand.u32 %v5509, 4294901760
        %v5511 = vsub.f32 %v5509, %v5510
        %v5512 = vand.u32 %v5511, 4294901760
        %5513 = vmatprep.subr.mxu0 %v5512
        %v5514 = vand.u32 %v373, 4294901760
        %v5515 = vsub.f32 %v373, %v5514
        %v5516 = vand.u32 %v5515, 4294901760
        %v5517 = vsub.f32 %v5515, %v5516
        %v5518 = vand.u32 %v5517, 4294901760
        %5519 = vmatpush1.msra.mxu0 %v5518
        %v5520 = vand.u32 %v376, 4294901760
        %v5521 = vsub.f32 %v376, %v5520
        %v5522 = vand.u32 %v5521, 4294901760
        %v5523 = vsub.f32 %v5521, %v5522
        %v5524 = vand.u32 %v5523, 4294901760
        %5525 = vmatprep.subr.mxu0 %v5524
        %v5526 = vand.u32 %v375, 4294901760
        %v5527 = vsub.f32 %v375, %v5526
        %v5528 = vand.u32 %v5527, 4294901760
        %v5529 = vsub.f32 %v5527, %v5528
        %v5530 = vand.u32 %v5529, 4294901760
        %5531 = vmatpush1.msra.mxu0 %v5530
        %v5532 = vand.u32 %v378, 4294901760
        %v5533 = vsub.f32 %v378, %v5532
        %v5534 = vand.u32 %v5533, 4294901760
        %v5535 = vsub.f32 %v5533, %v5534
        %v5536 = vand.u32 %v5535, 4294901760
        %5537 = vmatprep.subr.mxu0 %v5536
        %v5538 = vand.u32 %v377, 4294901760
        %v5539 = vsub.f32 %v377, %v5538
        %v5540 = vand.u32 %v5539, 4294901760
        %v5541 = vsub.f32 %v5539, %v5540
        %v5542 = vand.u32 %v5541, 4294901760
        %5543 = vmatpush1.msra.mxu0 %v5542
        %v5544 = vand.u32 %v5014, 4294901760
        %5545 = vmatprep.mubr.f32.mxu0 %v5544
        %v5546 = vand.u32 %v5013, 4294901760
        %5547 = vmatmul.mubr.f32.gmra.mrb[0].mxu0 %v5546
        %v5548 = vpop.f32.mrb[0].mxu0
        %v5549 = vadd.f32 %v5156, %v5548
        %v5550 = vpop.f32.mrb[0].mxu0
        %v5551 = vadd.f32 %v5158, %v5550
        %5552 = vdwg.mxu0
        %v5553 = vand.u32 %v316, 4294901760
        %v5554 = vsub.f32 %v316, %v5553
        %5555 = vmatprep.subr.mxu0 %v5554
        %v5556 = vand.u32 %v315, 4294901760
        %v5557 = vsub.f32 %v315, %v5556
        %5558 = vmatpush1.msra.mxu0 %v5557
        %v5559 = vand.u32 %v318, 4294901760
        %v5560 = vsub.f32 %v318, %v5559
        %5561 = vmatprep.subr.mxu0 %v5560
        %v5562 = vand.u32 %v317, 4294901760
        %v5563 = vsub.f32 %v317, %v5562
        %5564 = vmatpush1.msra.mxu0 %v5563
        %v5565 = vand.u32 %v320, 4294901760
        %v5566 = vsub.f32 %v320, %v5565
        %5567 = vmatprep.subr.mxu0 %v5566
        %v5568 = vand.u32 %v319, 4294901760
        %v5569 = vsub.f32 %v319, %v5568
        %5570 = vmatpush1.msra.mxu0 %v5569
        %v5571 = vand.u32 %v322, 4294901760
        %v5572 = vsub.f32 %v322, %v5571
        %5573 = vmatprep.subr.mxu0 %v5572
        %v5574 = vand.u32 %v321, 4294901760
        %v5575 = vsub.f32 %v321, %v5574
        %5576 = vmatpush1.msra.mxu0 %v5575
        %v5577 = vand.u32 %v324, 4294901760
        %v5578 = vsub.f32 %v324, %v5577
        %5579 = vmatprep.subr.mxu0 %v5578
        %v5580 = vand.u32 %v323, 4294901760
        %v5581 = vsub.f32 %v323, %v5580
        %5582 = vmatpush1.msra.mxu0 %v5581
        %v5583 = vand.u32 %v326, 4294901760
        %v5584 = vsub.f32 %v326, %v5583
        %5585 = vmatprep.subr.mxu0 %v5584
        %v5586 = vand.u32 %v325, 4294901760
        %v5587 = vsub.f32 %v325, %v5586
        %5588 = vmatpush1.msra.mxu0 %v5587
        %v5589 = vand.u32 %v328, 4294901760
        %v5590 = vsub.f32 %v328, %v5589
        %5591 = vmatprep.subr.mxu0 %v5590
        %v5592 = vand.u32 %v327, 4294901760
        %v5593 = vsub.f32 %v327, %v5592
        %5594 = vmatpush1.msra.mxu0 %v5593
        %v5595 = vand.u32 %v330, 4294901760
        %v5596 = vsub.f32 %v330, %v5595
        %5597 = vmatprep.subr.mxu0 %v5596
        %v5598 = vand.u32 %v329, 4294901760
        %v5599 = vsub.f32 %v329, %v5598
        %5600 = vmatpush1.msra.mxu0 %v5599
        %v5601 = vand.u32 %v332, 4294901760
        %v5602 = vsub.f32 %v332, %v5601
        %5603 = vmatprep.subr.mxu0 %v5602
        %v5604 = vand.u32 %v331, 4294901760
        %v5605 = vsub.f32 %v331, %v5604
        %5606 = vmatpush1.msra.mxu0 %v5605
        %v5607 = vand.u32 %v334, 4294901760
        %v5608 = vsub.f32 %v334, %v5607
        %5609 = vmatprep.subr.mxu0 %v5608
        %v5610 = vand.u32 %v333, 4294901760
        %v5611 = vsub.f32 %v333, %v5610
        %5612 = vmatpush1.msra.mxu0 %v5611
        %v5613 = vand.u32 %v336, 4294901760
        %v5614 = vsub.f32 %v336, %v5613
        %5615 = vmatprep.subr.mxu0 %v5614
        %v5616 = vand.u32 %v335, 4294901760
        %v5617 = vsub.f32 %v335, %v5616
        %5618 = vmatpush1.msra.mxu0 %v5617
        %v5619 = vand.u32 %v338, 4294901760
        %v5620 = vsub.f32 %v338, %v5619
        %5621 = vmatprep.subr.mxu0 %v5620
        %v5622 = vand.u32 %v337, 4294901760
        %v5623 = vsub.f32 %v337, %v5622
        %5624 = vmatpush1.msra.mxu0 %v5623
        %v5625 = vand.u32 %v340, 4294901760
        %v5626 = vsub.f32 %v340, %v5625
        %5627 = vmatprep.subr.mxu0 %v5626
        %v5628 = vand.u32 %v339, 4294901760
        %v5629 = vsub.f32 %v339, %v5628
        %5630 = vmatpush1.msra.mxu0 %v5629
        %v5631 = vand.u32 %v342, 4294901760
        %v5632 = vsub.f32 %v342, %v5631
        %5633 = vmatprep.subr.mxu0 %v5632
        %v5634 = vand.u32 %v341, 4294901760
        %v5635 = vsub.f32 %v341, %v5634
        %5636 = vmatpush1.msra.mxu0 %v5635
        %v5637 = vand.u32 %v344, 4294901760
        %v5638 = vsub.f32 %v344, %v5637
        %5639 = vmatprep.subr.mxu0 %v5638
        %v5640 = vand.u32 %v343, 4294901760
        %v5641 = vsub.f32 %v343, %v5640
        %5642 = vmatpush1.msra.mxu0 %v5641
        %v5643 = vand.u32 %v346, 4294901760
        %v5644 = vsub.f32 %v346, %v5643
        %5645 = vmatprep.subr.mxu0 %v5644
        %v5646 = vand.u32 %v345, 4294901760
        %v5647 = vsub.f32 %v345, %v5646
        %5648 = vmatpush1.msra.mxu0 %v5647
        %v5649 = vand.u32 %v348, 4294901760
        %v5650 = vsub.f32 %v348, %v5649
        %5651 = vmatprep.subr.mxu0 %v5650
        %v5652 = vand.u32 %v347, 4294901760
        %v5653 = vsub.f32 %v347, %v5652
        %5654 = vmatpush1.msra.mxu0 %v5653
        %v5655 = vand.u32 %v350, 4294901760
        %v5656 = vsub.f32 %v350, %v5655
        %5657 = vmatprep.subr.mxu0 %v5656
        %v5658 = vand.u32 %v349, 4294901760
        %v5659 = vsub.f32 %v349, %v5658
        %5660 = vmatpush1.msra.mxu0 %v5659
        %v5661 = vand.u32 %v352, 4294901760
        %v5662 = vsub.f32 %v352, %v5661
        %5663 = vmatprep.subr.mxu0 %v5662
        %v5664 = vand.u32 %v351, 4294901760
        %v5665 = vsub.f32 %v351, %v5664
        %5666 = vmatpush1.msra.mxu0 %v5665
        %v5667 = vand.u32 %v354, 4294901760
        %v5668 = vsub.f32 %v354, %v5667
        %5669 = vmatprep.subr.mxu0 %v5668
        %v5670 = vand.u32 %v353, 4294901760
        %v5671 = vsub.f32 %v353, %v5670
        %5672 = vmatpush1.msra.mxu0 %v5671
        %v5673 = vand.u32 %v356, 4294901760
        %v5674 = vsub.f32 %v356, %v5673
        %5675 = vmatprep.subr.mxu0 %v5674
        %v5676 = vand.u32 %v355, 4294901760
        %v5677 = vsub.f32 %v355, %v5676
        %5678 = vmatpush1.msra.mxu0 %v5677
        %v5679 = vand.u32 %v358, 4294901760
        %v5680 = vsub.f32 %v358, %v5679
        %5681 = vmatprep.subr.mxu0 %v5680
        %v5682 = vand.u32 %v357, 4294901760
        %v5683 = vsub.f32 %v357, %v5682
        %5684 = vmatpush1.msra.mxu0 %v5683
        %v5685 = vand.u32 %v360, 4294901760
        %v5686 = vsub.f32 %v360, %v5685
        %5687 = vmatprep.subr.mxu0 %v5686
        %v5688 = vand.u32 %v359, 4294901760
        %v5689 = vsub.f32 %v359, %v5688
        %5690 = vmatpush1.msra.mxu0 %v5689
        %v5691 = vand.u32 %v362, 4294901760
        %v5692 = vsub.f32 %v362, %v5691
        %5693 = vmatprep.subr.mxu0 %v5692
        %v5694 = vand.u32 %v361, 4294901760
        %v5695 = vsub.f32 %v361, %v5694
        %5696 = vmatpush1.msra.mxu0 %v5695
        %v5697 = vand.u32 %v364, 4294901760
        %v5698 = vsub.f32 %v364, %v5697
        %5699 = vmatprep.subr.mxu0 %v5698
        %v5700 = vand.u32 %v363, 4294901760
        %v5701 = vsub.f32 %v363, %v5700
        %5702 = vmatpush1.msra.mxu0 %v5701
        %v5703 = vand.u32 %v366, 4294901760
        %v5704 = vsub.f32 %v366, %v5703
        %5705 = vmatprep.subr.mxu0 %v5704
        %v5706 = vand.u32 %v365, 4294901760
        %v5707 = vsub.f32 %v365, %v5706
        %5708 = vmatpush1.msra.mxu0 %v5707
        %v5709 = vand.u32 %v368, 4294901760
        %v5710 = vsub.f32 %v368, %v5709
        %5711 = vmatprep.subr.mxu0 %v5710
        %v5712 = vand.u32 %v367, 4294901760
        %v5713 = vsub.f32 %v367, %v5712
        %5714 = vmatpush1.msra.mxu0 %v5713
        %v5715 = vand.u32 %v370, 4294901760
        %v5716 = vsub.f32 %v370, %v5715
        %5717 = vmatprep.subr.mxu0 %v5716
        %v5718 = vand.u32 %v369, 4294901760
        %v5719 = vsub.f32 %v369, %v5718
        %5720 = vmatpush1.msra.mxu0 %v5719
        %v5721 = vand.u32 %v372, 4294901760
        %v5722 = vsub.f32 %v372, %v5721
        %5723 = vmatprep.subr.mxu0 %v5722
        %v5724 = vand.u32 %v371, 4294901760
        %v5725 = vsub.f32 %v371, %v5724
        %5726 = vmatpush1.msra.mxu0 %v5725
        %v5727 = vand.u32 %v374, 4294901760
        %v5728 = vsub.f32 %v374, %v5727
        %5729 = vmatprep.subr.mxu0 %v5728
        %v5730 = vand.u32 %v373, 4294901760
        %v5731 = vsub.f32 %v373, %v5730
        %5732 = vmatpush1.msra.mxu0 %v5731
        %v5733 = vand.u32 %v376, 4294901760
        %v5734 = vsub.f32 %v376, %v5733
        %5735 = vmatprep.subr.mxu0 %v5734
        %v5736 = vand.u32 %v375, 4294901760
        %v5737 = vsub.f32 %v375, %v5736
        %5738 = vmatpush1.msra.mxu0 %v5737
        %v5739 = vand.u32 %v378, 4294901760
        %v5740 = vsub.f32 %v378, %v5739
        %5741 = vmatprep.subr.mxu0 %v5740
        %v5742 = vand.u32 %v377, 4294901760
        %v5743 = vsub.f32 %v377, %v5742
        %5744 = vmatpush1.msra.mxu0 %v5743
        %v5745 = vand.u32 %v5014, 4294901760
        %v5746 = vsub.f32 %v5014, %v5745
        %5747 = vmatprep.mubr.f32.mxu0 %v5746
        %v5748 = vand.u32 %v5013, 4294901760
        %v5749 = vsub.f32 %v5013, %v5748
        %5750 = vmatmul.mubr.f32.gmra.mrb[0].mxu0 %v5749
        %v5751 = vpop.f32.mrb[0].mxu0
        %v5752 = vadd.f32 %v5549, %v5751
        %v5753 = vpop.f32.mrb[0].mxu0
        %v5754 = vadd.f32 %v5551, %v5753
        %5755 = vdwg.mxu0
        %v5756 = vand.u32 %v316, 4294901760
        %5757 = vmatprep.subr.mxu0 %v5756
        %v5758 = vand.u32 %v315, 4294901760
        %5759 = vmatpush1.msra.mxu0 %v5758
        %v5760 = vand.u32 %v318, 4294901760
        %5761 = vmatprep.subr.mxu0 %v5760
        %v5762 = vand.u32 %v317, 4294901760
        %5763 = vmatpush1.msra.mxu0 %v5762
        %v5764 = vand.u32 %v320, 4294901760
        %5765 = vmatprep.subr.mxu0 %v5764
        %v5766 = vand.u32 %v319, 4294901760
        %5767 = vmatpush1.msra.mxu0 %v5766
        %v5768 = vand.u32 %v322, 4294901760
        %5769 = vmatprep.subr.mxu0 %v5768
        %v5770 = vand.u32 %v321, 4294901760
        %5771 = vmatpush1.msra.mxu0 %v5770
        %v5772 = vand.u32 %v324, 4294901760
        %5773 = vmatprep.subr.mxu0 %v5772
        %v5774 = vand.u32 %v323, 4294901760
        %5775 = vmatpush1.msra.mxu0 %v5774
        %v5776 = vand.u32 %v326, 4294901760
        %5777 = vmatprep.subr.mxu0 %v5776
        %v5778 = vand.u32 %v325, 4294901760
        %5779 = vmatpush1.msra.mxu0 %v5778
        %v5780 = vand.u32 %v328, 4294901760
        %5781 = vmatprep.subr.mxu0 %v5780
        %v5782 = vand.u32 %v327, 4294901760
        %5783 = vmatpush1.msra.mxu0 %v5782
        %v5784 = vand.u32 %v330, 4294901760
        %5785 = vmatprep.subr.mxu0 %v5784
        %v5786 = vand.u32 %v329, 4294901760
        %5787 = vmatpush1.msra.mxu0 %v5786
        %v5788 = vand.u32 %v332, 4294901760
        %5789 = vmatprep.subr.mxu0 %v5788
        %v5790 = vand.u32 %v331, 4294901760
        %5791 = vmatpush1.msra.mxu0 %v5790
        %v5792 = vand.u32 %v334, 4294901760
        %5793 = vmatprep.subr.mxu0 %v5792
        %v5794 = vand.u32 %v333, 4294901760
        %5795 = vmatpush1.msra.mxu0 %v5794
        %v5796 = vand.u32 %v336, 4294901760
        %5797 = vmatprep.subr.mxu0 %v5796
        %v5798 = vand.u32 %v335, 4294901760
        %5799 = vmatpush1.msra.mxu0 %v5798
        %v5800 = vand.u32 %v338, 4294901760
        %5801 = vmatprep.subr.mxu0 %v5800
        %v5802 = vand.u32 %v337, 4294901760
        %5803 = vmatpush1.msra.mxu0 %v5802
        %v5804 = vand.u32 %v340, 4294901760
        %5805 = vmatprep.subr.mxu0 %v5804
        %v5806 = vand.u32 %v339, 4294901760
        %5807 = vmatpush1.msra.mxu0 %v5806
        %v5808 = vand.u32 %v342, 4294901760
        %5809 = vmatprep.subr.mxu0 %v5808
        %v5810 = vand.u32 %v341, 4294901760
        %5811 = vmatpush1.msra.mxu0 %v5810
        %v5812 = vand.u32 %v344, 4294901760
        %5813 = vmatprep.subr.mxu0 %v5812
        %v5814 = vand.u32 %v343, 4294901760
        %5815 = vmatpush1.msra.mxu0 %v5814
        %v5816 = vand.u32 %v346, 4294901760
        %5817 = vmatprep.subr.mxu0 %v5816
        %v5818 = vand.u32 %v345, 4294901760
        %5819 = vmatpush1.msra.mxu0 %v5818
        %v5820 = vand.u32 %v348, 4294901760
        %5821 = vmatprep.subr.mxu0 %v5820
        %v5822 = vand.u32 %v347, 4294901760
        %5823 = vmatpush1.msra.mxu0 %v5822
        %v5824 = vand.u32 %v350, 4294901760
        %5825 = vmatprep.subr.mxu0 %v5824
        %v5826 = vand.u32 %v349, 4294901760
        %5827 = vmatpush1.msra.mxu0 %v5826
        %v5828 = vand.u32 %v352, 4294901760
        %5829 = vmatprep.subr.mxu0 %v5828
        %v5830 = vand.u32 %v351, 4294901760
        %5831 = vmatpush1.msra.mxu0 %v5830
        %v5832 = vand.u32 %v354, 4294901760
        %5833 = vmatprep.subr.mxu0 %v5832
        %v5834 = vand.u32 %v353, 4294901760
        %5835 = vmatpush1.msra.mxu0 %v5834
        %v5836 = vand.u32 %v356, 4294901760
        %5837 = vmatprep.subr.mxu0 %v5836
        %v5838 = vand.u32 %v355, 4294901760
        %5839 = vmatpush1.msra.mxu0 %v5838
        %v5840 = vand.u32 %v358, 4294901760
        %5841 = vmatprep.subr.mxu0 %v5840
        %v5842 = vand.u32 %v357, 4294901760
        %5843 = vmatpush1.msra.mxu0 %v5842
        %v5844 = vand.u32 %v360, 4294901760
        %5845 = vmatprep.subr.mxu0 %v5844
        %v5846 = vand.u32 %v359, 4294901760
        %5847 = vmatpush1.msra.mxu0 %v5846
        %v5848 = vand.u32 %v362, 4294901760
        %5849 = vmatprep.subr.mxu0 %v5848
        %v5850 = vand.u32 %v361, 4294901760
        %5851 = vmatpush1.msra.mxu0 %v5850
        %v5852 = vand.u32 %v364, 4294901760
        %5853 = vmatprep.subr.mxu0 %v5852
        %v5854 = vand.u32 %v363, 4294901760
        %5855 = vmatpush1.msra.mxu0 %v5854
        %v5856 = vand.u32 %v366, 4294901760
        %5857 = vmatprep.subr.mxu0 %v5856
        %v5858 = vand.u32 %v365, 4294901760
        %5859 = vmatpush1.msra.mxu0 %v5858
        %v5860 = vand.u32 %v368, 4294901760
        %5861 = vmatprep.subr.mxu0 %v5860
        %v5862 = vand.u32 %v367, 4294901760
        %5863 = vmatpush1.msra.mxu0 %v5862
        %v5864 = vand.u32 %v370, 4294901760
        %5865 = vmatprep.subr.mxu0 %v5864
        %v5866 = vand.u32 %v369, 4294901760
        %5867 = vmatpush1.msra.mxu0 %v5866
        %v5868 = vand.u32 %v372, 4294901760
        %5869 = vmatprep.subr.mxu0 %v5868
        %v5870 = vand.u32 %v371, 4294901760
        %5871 = vmatpush1.msra.mxu0 %v5870
        %v5872 = vand.u32 %v374, 4294901760
        %5873 = vmatprep.subr.mxu0 %v5872
        %v5874 = vand.u32 %v373, 4294901760
        %5875 = vmatpush1.msra.mxu0 %v5874
        %v5876 = vand.u32 %v376, 4294901760
        %5877 = vmatprep.subr.mxu0 %v5876
        %v5878 = vand.u32 %v375, 4294901760
        %5879 = vmatpush1.msra.mxu0 %v5878
        %v5880 = vand.u32 %v378, 4294901760
        %5881 = vmatprep.subr.mxu0 %v5880
        %v5882 = vand.u32 %v377, 4294901760
        %5883 = vmatpush1.msra.mxu0 %v5882
        %v5884 = vand.u32 %v5014, 4294901760
        %v5885 = vsub.f32 %v5014, %v5884
        %v5886 = vand.u32 %v5885, 4294901760
        %5887 = vmatprep.mubr.f32.mxu0 %v5886
        %v5888 = vand.u32 %v5013, 4294901760
        %v5889 = vsub.f32 %v5013, %v5888
        %v5890 = vand.u32 %v5889, 4294901760
        %5891 = vmatmul.mubr.f32.gmra.mrb[0].mxu0 %v5890
        %v5892 = vpop.f32.mrb[0].mxu0
        %v5893 = vadd.f32 %v5752, %v5892
        %v5894 = vpop.f32.mrb[0].mxu0
        %v5895 = vadd.f32 %v5754, %v5894
        %5896 = vdwg.mxu0
        %v5897 = vand.u32 %v316, 4294901760
        %v5898 = vsub.f32 %v316, %v5897
        %v5899 = vand.u32 %v5898, 4294901760
        %5900 = vmatprep.subr.mxu0 %v5899
        %v5901 = vand.u32 %v315, 4294901760
        %v5902 = vsub.f32 %v315, %v5901
        %v5903 = vand.u32 %v5902, 4294901760
        %5904 = vmatpush1.msra.mxu0 %v5903
        %v5905 = vand.u32 %v318, 4294901760
        %v5906 = vsub.f32 %v318, %v5905
        %v5907 = vand.u32 %v5906, 4294901760
        %5908 = vmatprep.subr.mxu0 %v5907
        %v5909 = vand.u32 %v317, 4294901760
        %v5910 = vsub.f32 %v317, %v5909
        %v5911 = vand.u32 %v5910, 4294901760
        %5912 = vmatpush1.msra.mxu0 %v5911
        %v5913 = vand.u32 %v320, 4294901760
        %v5914 = vsub.f32 %v320, %v5913
        %v5915 = vand.u32 %v5914, 4294901760
        %5916 = vmatprep.subr.mxu0 %v5915
        %v5917 = vand.u32 %v319, 4294901760
        %v5918 = vsub.f32 %v319, %v5917
        %v5919 = vand.u32 %v5918, 4294901760
        %5920 = vmatpush1.msra.mxu0 %v5919
        %v5921 = vand.u32 %v322, 4294901760
        %v5922 = vsub.f32 %v322, %v5921
        %v5923 = vand.u32 %v5922, 4294901760
        %5924 = vmatprep.subr.mxu0 %v5923
        %v5925 = vand.u32 %v321, 4294901760
        %v5926 = vsub.f32 %v321, %v5925
        %v5927 = vand.u32 %v5926, 4294901760
        %5928 = vmatpush1.msra.mxu0 %v5927
        %v5929 = vand.u32 %v324, 4294901760
        %v5930 = vsub.f32 %v324, %v5929
        %v5931 = vand.u32 %v5930, 4294901760
        %5932 = vmatprep.subr.mxu0 %v5931
        %v5933 = vand.u32 %v323, 4294901760
        %v5934 = vsub.f32 %v323, %v5933
        %v5935 = vand.u32 %v5934, 4294901760
        %5936 = vmatpush1.msra.mxu0 %v5935
        %v5937 = vand.u32 %v326, 4294901760
        %v5938 = vsub.f32 %v326, %v5937
        %v5939 = vand.u32 %v5938, 4294901760
        %5940 = vmatprep.subr.mxu0 %v5939
        %v5941 = vand.u32 %v325, 4294901760
        %v5942 = vsub.f32 %v325, %v5941
        %v5943 = vand.u32 %v5942, 4294901760
        %5944 = vmatpush1.msra.mxu0 %v5943
        %v5945 = vand.u32 %v328, 4294901760
        %v5946 = vsub.f32 %v328, %v5945
        %v5947 = vand.u32 %v5946, 4294901760
        %5948 = vmatprep.subr.mxu0 %v5947
        %v5949 = vand.u32 %v327, 4294901760
        %v5950 = vsub.f32 %v327, %v5949
        %v5951 = vand.u32 %v5950, 4294901760
        %5952 = vmatpush1.msra.mxu0 %v5951
        %v5953 = vand.u32 %v330, 4294901760
        %v5954 = vsub.f32 %v330, %v5953
        %v5955 = vand.u32 %v5954, 4294901760
        %5956 = vmatprep.subr.mxu0 %v5955
        %v5957 = vand.u32 %v329, 4294901760
        %v5958 = vsub.f32 %v329, %v5957
        %v5959 = vand.u32 %v5958, 4294901760
        %5960 = vmatpush1.msra.mxu0 %v5959
        %v5961 = vand.u32 %v332, 4294901760
        %v5962 = vsub.f32 %v332, %v5961
        %v5963 = vand.u32 %v5962, 4294901760
        %5964 = vmatprep.subr.mxu0 %v5963
        %v5965 = vand.u32 %v331, 4294901760
        %v5966 = vsub.f32 %v331, %v5965
        %v5967 = vand.u32 %v5966, 4294901760
        %5968 = vmatpush1.msra.mxu0 %v5967
        %v5969 = vand.u32 %v334, 4294901760
        %v5970 = vsub.f32 %v334, %v5969
        %v5971 = vand.u32 %v5970, 4294901760
        %5972 = vmatprep.subr.mxu0 %v5971
        %v5973 = vand.u32 %v333, 4294901760
        %v5974 = vsub.f32 %v333, %v5973
        %v5975 = vand.u32 %v5974, 4294901760
        %5976 = vmatpush1.msra.mxu0 %v5975
        %v5977 = vand.u32 %v336, 4294901760
        %v5978 = vsub.f32 %v336, %v5977
        %v5979 = vand.u32 %v5978, 4294901760
        %5980 = vmatprep.subr.mxu0 %v5979
        %v5981 = vand.u32 %v335, 4294901760
        %v5982 = vsub.f32 %v335, %v5981
        %v5983 = vand.u32 %v5982, 4294901760
        %5984 = vmatpush1.msra.mxu0 %v5983
        %v5985 = vand.u32 %v338, 4294901760
        %v5986 = vsub.f32 %v338, %v5985
        %v5987 = vand.u32 %v5986, 4294901760
        %5988 = vmatprep.subr.mxu0 %v5987
        %v5989 = vand.u32 %v337, 4294901760
        %v5990 = vsub.f32 %v337, %v5989
        %v5991 = vand.u32 %v5990, 4294901760
        %5992 = vmatpush1.msra.mxu0 %v5991
        %v5993 = vand.u32 %v340, 4294901760
        %v5994 = vsub.f32 %v340, %v5993
        %v5995 = vand.u32 %v5994, 4294901760
        %5996 = vmatprep.subr.mxu0 %v5995
        %v5997 = vand.u32 %v339, 4294901760
        %v5998 = vsub.f32 %v339, %v5997
        %v5999 = vand.u32 %v5998, 4294901760
        %6000 = vmatpush1.msra.mxu0 %v5999
        %v6001 = vand.u32 %v342, 4294901760
        %v6002 = vsub.f32 %v342, %v6001
        %v6003 = vand.u32 %v6002, 4294901760
        %6004 = vmatprep.subr.mxu0 %v6003
        %v6005 = vand.u32 %v341, 4294901760
        %v6006 = vsub.f32 %v341, %v6005
        %v6007 = vand.u32 %v6006, 4294901760
        %6008 = vmatpush1.msra.mxu0 %v6007
        %v6009 = vand.u32 %v344, 4294901760
        %v6010 = vsub.f32 %v344, %v6009
        %v6011 = vand.u32 %v6010, 4294901760
        %6012 = vmatprep.subr.mxu0 %v6011
        %v6013 = vand.u32 %v343, 4294901760
        %v6014 = vsub.f32 %v343, %v6013
        %v6015 = vand.u32 %v6014, 4294901760
        %6016 = vmatpush1.msra.mxu0 %v6015
        %v6017 = vand.u32 %v346, 4294901760
        %v6018 = vsub.f32 %v346, %v6017
        %v6019 = vand.u32 %v6018, 4294901760
        %6020 = vmatprep.subr.mxu0 %v6019
        %v6021 = vand.u32 %v345, 4294901760
        %v6022 = vsub.f32 %v345, %v6021
        %v6023 = vand.u32 %v6022, 4294901760
        %6024 = vmatpush1.msra.mxu0 %v6023
        %v6025 = vand.u32 %v348, 4294901760
        %v6026 = vsub.f32 %v348, %v6025
        %v6027 = vand.u32 %v6026, 4294901760
        %6028 = vmatprep.subr.mxu0 %v6027
        %v6029 = vand.u32 %v347, 4294901760
        %v6030 = vsub.f32 %v347, %v6029
        %v6031 = vand.u32 %v6030, 4294901760
        %6032 = vmatpush1.msra.mxu0 %v6031
        %v6033 = vand.u32 %v350, 4294901760
        %v6034 = vsub.f32 %v350, %v6033
        %v6035 = vand.u32 %v6034, 4294901760
        %6036 = vmatprep.subr.mxu0 %v6035
        %v6037 = vand.u32 %v349, 4294901760
        %v6038 = vsub.f32 %v349, %v6037
        %v6039 = vand.u32 %v6038, 4294901760
        %6040 = vmatpush1.msra.mxu0 %v6039
        %v6041 = vand.u32 %v352, 4294901760
        %v6042 = vsub.f32 %v352, %v6041
        %v6043 = vand.u32 %v6042, 4294901760
        %6044 = vmatprep.subr.mxu0 %v6043
        %v6045 = vand.u32 %v351, 4294901760
        %v6046 = vsub.f32 %v351, %v6045
        %v6047 = vand.u32 %v6046, 4294901760
        %6048 = vmatpush1.msra.mxu0 %v6047
        %v6049 = vand.u32 %v354, 4294901760
        %v6050 = vsub.f32 %v354, %v6049
        %v6051 = vand.u32 %v6050, 4294901760
        %6052 = vmatprep.subr.mxu0 %v6051
        %v6053 = vand.u32 %v353, 4294901760
        %v6054 = vsub.f32 %v353, %v6053
        %v6055 = vand.u32 %v6054, 4294901760
        %6056 = vmatpush1.msra.mxu0 %v6055
        %v6057 = vand.u32 %v356, 4294901760
        %v6058 = vsub.f32 %v356, %v6057
        %v6059 = vand.u32 %v6058, 4294901760
        %6060 = vmatprep.subr.mxu0 %v6059
        %v6061 = vand.u32 %v355, 4294901760
        %v6062 = vsub.f32 %v355, %v6061
        %v6063 = vand.u32 %v6062, 4294901760
        %6064 = vmatpush1.msra.mxu0 %v6063
        %v6065 = vand.u32 %v358, 4294901760
        %v6066 = vsub.f32 %v358, %v6065
        %v6067 = vand.u32 %v6066, 4294901760
        %6068 = vmatprep.subr.mxu0 %v6067
        %v6069 = vand.u32 %v357, 4294901760
        %v6070 = vsub.f32 %v357, %v6069
        %v6071 = vand.u32 %v6070, 4294901760
        %6072 = vmatpush1.msra.mxu0 %v6071
        %v6073 = vand.u32 %v360, 4294901760
        %v6074 = vsub.f32 %v360, %v6073
        %v6075 = vand.u32 %v6074, 4294901760
        %6076 = vmatprep.subr.mxu0 %v6075
        %v6077 = vand.u32 %v359, 4294901760
        %v6078 = vsub.f32 %v359, %v6077
        %v6079 = vand.u32 %v6078, 4294901760
        %6080 = vmatpush1.msra.mxu0 %v6079
        %v6081 = vand.u32 %v362, 4294901760
        %v6082 = vsub.f32 %v362, %v6081
        %v6083 = vand.u32 %v6082, 4294901760
        %6084 = vmatprep.subr.mxu0 %v6083
        %v6085 = vand.u32 %v361, 4294901760
        %v6086 = vsub.f32 %v361, %v6085
        %v6087 = vand.u32 %v6086, 4294901760
        %6088 = vmatpush1.msra.mxu0 %v6087
        %v6089 = vand.u32 %v364, 4294901760
        %v6090 = vsub.f32 %v364, %v6089
        %v6091 = vand.u32 %v6090, 4294901760
        %6092 = vmatprep.subr.mxu0 %v6091
        %v6093 = vand.u32 %v363, 4294901760
        %v6094 = vsub.f32 %v363, %v6093
        %v6095 = vand.u32 %v6094, 4294901760
        %6096 = vmatpush1.msra.mxu0 %v6095
        %v6097 = vand.u32 %v366, 4294901760
        %v6098 = vsub.f32 %v366, %v6097
        %v6099 = vand.u32 %v6098, 4294901760
        %6100 = vmatprep.subr.mxu0 %v6099
        %v6101 = vand.u32 %v365, 4294901760
        %v6102 = vsub.f32 %v365, %v6101
        %v6103 = vand.u32 %v6102, 4294901760
        %6104 = vmatpush1.msra.mxu0 %v6103
        %v6105 = vand.u32 %v368, 4294901760
        %v6106 = vsub.f32 %v368, %v6105
        %v6107 = vand.u32 %v6106, 4294901760
        %6108 = vmatprep.subr.mxu0 %v6107
        %v6109 = vand.u32 %v367, 4294901760
        %v6110 = vsub.f32 %v367, %v6109
        %v6111 = vand.u32 %v6110, 4294901760
        %6112 = vmatpush1.msra.mxu0 %v6111
        %v6113 = vand.u32 %v370, 4294901760
        %v6114 = vsub.f32 %v370, %v6113
        %v6115 = vand.u32 %v6114, 4294901760
        %6116 = vmatprep.subr.mxu0 %v6115
        %v6117 = vand.u32 %v369, 4294901760
        %v6118 = vsub.f32 %v369, %v6117
        %v6119 = vand.u32 %v6118, 4294901760
        %6120 = vmatpush1.msra.mxu0 %v6119
        %v6121 = vand.u32 %v372, 4294901760
        %v6122 = vsub.f32 %v372, %v6121
        %v6123 = vand.u32 %v6122, 4294901760
        %6124 = vmatprep.subr.mxu0 %v6123
        %v6125 = vand.u32 %v371, 4294901760
        %v6126 = vsub.f32 %v371, %v6125
        %v6127 = vand.u32 %v6126, 4294901760
        %6128 = vmatpush1.msra.mxu0 %v6127
        %v6129 = vand.u32 %v374, 4294901760
        %v6130 = vsub.f32 %v374, %v6129
        %v6131 = vand.u32 %v6130, 4294901760
        %6132 = vmatprep.subr.mxu0 %v6131
        %v6133 = vand.u32 %v373, 4294901760
        %v6134 = vsub.f32 %v373, %v6133
        %v6135 = vand.u32 %v6134, 4294901760
        %6136 = vmatpush1.msra.mxu0 %v6135
        %v6137 = vand.u32 %v376, 4294901760
        %v6138 = vsub.f32 %v376, %v6137
        %v6139 = vand.u32 %v6138, 4294901760
        %6140 = vmatprep.subr.mxu0 %v6139
        %v6141 = vand.u32 %v375, 4294901760
        %v6142 = vsub.f32 %v375, %v6141
        %v6143 = vand.u32 %v6142, 4294901760
        %6144 = vmatpush1.msra.mxu0 %v6143
        %v6145 = vand.u32 %v378, 4294901760
        %v6146 = vsub.f32 %v378, %v6145
        %v6147 = vand.u32 %v6146, 4294901760
        %6148 = vmatprep.subr.mxu0 %v6147
        %v6149 = vand.u32 %v377, 4294901760
        %v6150 = vsub.f32 %v377, %v6149
        %v6151 = vand.u32 %v6150, 4294901760
        %6152 = vmatpush1.msra.mxu0 %v6151
        %v6153 = vand.u32 %v5014, 4294901760
        %6154 = vmatprep.mubr.f32.mxu0 %v6153
        %v6155 = vand.u32 %v5013, 4294901760
        %6156 = vmatmul.mubr.f32.gmra.mrb[0].mxu0 %v6155
        %v6157 = vpop.f32.mrb[0].mxu0
        %v6158 = vadd.f32 %v5893, %v6157
        %v6159 = vpop.f32.mrb[0].mxu0
        %v6160 = vadd.f32 %v5895, %v6159
        %6161 = vdwg.mxu0
        %v6162 = vand.u32 %v316, 4294901760
        %6163 = vmatprep.subr.mxu0 %v6162
        %v6164 = vand.u32 %v315, 4294901760
        %6165 = vmatpush1.msra.mxu0 %v6164
        %v6166 = vand.u32 %v318, 4294901760
        %6167 = vmatprep.subr.mxu0 %v6166
        %v6168 = vand.u32 %v317, 4294901760
        %6169 = vmatpush1.msra.mxu0 %v6168
        %v6170 = vand.u32 %v320, 4294901760
        %6171 = vmatprep.subr.mxu0 %v6170
        %v6172 = vand.u32 %v319, 4294901760
        %6173 = vmatpush1.msra.mxu0 %v6172
        %v6174 = vand.u32 %v322, 4294901760
        %6175 = vmatprep.subr.mxu0 %v6174
        %v6176 = vand.u32 %v321, 4294901760
        %6177 = vmatpush1.msra.mxu0 %v6176
        %v6178 = vand.u32 %v324, 4294901760
        %6179 = vmatprep.subr.mxu0 %v6178
        %v6180 = vand.u32 %v323, 4294901760
        %6181 = vmatpush1.msra.mxu0 %v6180
        %v6182 = vand.u32 %v326, 4294901760
        %6183 = vmatprep.subr.mxu0 %v6182
        %v6184 = vand.u32 %v325, 4294901760
        %6185 = vmatpush1.msra.mxu0 %v6184
        %v6186 = vand.u32 %v328, 4294901760
        %6187 = vmatprep.subr.mxu0 %v6186
        %v6188 = vand.u32 %v327, 4294901760
        %6189 = vmatpush1.msra.mxu0 %v6188
        %v6190 = vand.u32 %v330, 4294901760
        %6191 = vmatprep.subr.mxu0 %v6190
        %v6192 = vand.u32 %v329, 4294901760
        %6193 = vmatpush1.msra.mxu0 %v6192
        %v6194 = vand.u32 %v332, 4294901760
        %6195 = vmatprep.subr.mxu0 %v6194
        %v6196 = vand.u32 %v331, 4294901760
        %6197 = vmatpush1.msra.mxu0 %v6196
        %v6198 = vand.u32 %v334, 4294901760
        %6199 = vmatprep.subr.mxu0 %v6198
        %v6200 = vand.u32 %v333, 4294901760
        %6201 = vmatpush1.msra.mxu0 %v6200
        %v6202 = vand.u32 %v336, 4294901760
        %6203 = vmatprep.subr.mxu0 %v6202
        %v6204 = vand.u32 %v335, 4294901760
        %6205 = vmatpush1.msra.mxu0 %v6204
        %v6206 = vand.u32 %v338, 4294901760
        %6207 = vmatprep.subr.mxu0 %v6206
        %v6208 = vand.u32 %v337, 4294901760
        %6209 = vmatpush1.msra.mxu0 %v6208
        %v6210 = vand.u32 %v340, 4294901760
        %6211 = vmatprep.subr.mxu0 %v6210
        %v6212 = vand.u32 %v339, 4294901760
        %6213 = vmatpush1.msra.mxu0 %v6212
        %v6214 = vand.u32 %v342, 4294901760
        %6215 = vmatprep.subr.mxu0 %v6214
        %v6216 = vand.u32 %v341, 4294901760
        %6217 = vmatpush1.msra.mxu0 %v6216
        %v6218 = vand.u32 %v344, 4294901760
        %6219 = vmatprep.subr.mxu0 %v6218
        %v6220 = vand.u32 %v343, 4294901760
        %6221 = vmatpush1.msra.mxu0 %v6220
        %v6222 = vand.u32 %v346, 4294901760
        %6223 = vmatprep.subr.mxu0 %v6222
        %v6224 = vand.u32 %v345, 4294901760
        %6225 = vmatpush1.msra.mxu0 %v6224
        %v6226 = vand.u32 %v348, 4294901760
        %6227 = vmatprep.subr.mxu0 %v6226
        %v6228 = vand.u32 %v347, 4294901760
        %6229 = vmatpush1.msra.mxu0 %v6228
        %v6230 = vand.u32 %v350, 4294901760
        %6231 = vmatprep.subr.mxu0 %v6230
        %v6232 = vand.u32 %v349, 4294901760
        %6233 = vmatpush1.msra.mxu0 %v6232
        %v6234 = vand.u32 %v352, 4294901760
        %6235 = vmatprep.subr.mxu0 %v6234
        %v6236 = vand.u32 %v351, 4294901760
        %6237 = vmatpush1.msra.mxu0 %v6236
        %v6238 = vand.u32 %v354, 4294901760
        %6239 = vmatprep.subr.mxu0 %v6238
        %v6240 = vand.u32 %v353, 4294901760
        %6241 = vmatpush1.msra.mxu0 %v6240
        %v6242 = vand.u32 %v356, 4294901760
        %6243 = vmatprep.subr.mxu0 %v6242
        %v6244 = vand.u32 %v355, 4294901760
        %6245 = vmatpush1.msra.mxu0 %v6244
        %v6246 = vand.u32 %v358, 4294901760
        %6247 = vmatprep.subr.mxu0 %v6246
        %v6248 = vand.u32 %v357, 4294901760
        %6249 = vmatpush1.msra.mxu0 %v6248
        %v6250 = vand.u32 %v360, 4294901760
        %6251 = vmatprep.subr.mxu0 %v6250
        %v6252 = vand.u32 %v359, 4294901760
        %6253 = vmatpush1.msra.mxu0 %v6252
        %v6254 = vand.u32 %v362, 4294901760
        %6255 = vmatprep.subr.mxu0 %v6254
        %v6256 = vand.u32 %v361, 4294901760
        %6257 = vmatpush1.msra.mxu0 %v6256
        %v6258 = vand.u32 %v364, 4294901760
        %6259 = vmatprep.subr.mxu0 %v6258
        %v6260 = vand.u32 %v363, 4294901760
        %6261 = vmatpush1.msra.mxu0 %v6260
        %v6262 = vand.u32 %v366, 4294901760
        %6263 = vmatprep.subr.mxu0 %v6262
        %v6264 = vand.u32 %v365, 4294901760
        %6265 = vmatpush1.msra.mxu0 %v6264
        %v6266 = vand.u32 %v368, 4294901760
        %6267 = vmatprep.subr.mxu0 %v6266
        %v6268 = vand.u32 %v367, 4294901760
        %6269 = vmatpush1.msra.mxu0 %v6268
        %v6270 = vand.u32 %v370, 4294901760
        %6271 = vmatprep.subr.mxu0 %v6270
        %v6272 = vand.u32 %v369, 4294901760
        %6273 = vmatpush1.msra.mxu0 %v6272
        %v6274 = vand.u32 %v372, 4294901760
        %6275 = vmatprep.subr.mxu0 %v6274
        %v6276 = vand.u32 %v371, 4294901760
        %6277 = vmatpush1.msra.mxu0 %v6276
        %v6278 = vand.u32 %v374, 4294901760
        %6279 = vmatprep.subr.mxu0 %v6278
        %v6280 = vand.u32 %v373, 4294901760
        %6281 = vmatpush1.msra.mxu0 %v6280
        %v6282 = vand.u32 %v376, 4294901760
        %6283 = vmatprep.subr.mxu0 %v6282
        %v6284 = vand.u32 %v375, 4294901760
        %6285 = vmatpush1.msra.mxu0 %v6284
        %v6286 = vand.u32 %v378, 4294901760
        %6287 = vmatprep.subr.mxu0 %v6286
        %v6288 = vand.u32 %v377, 4294901760
        %6289 = vmatpush1.msra.mxu0 %v6288
        %v6290 = vand.u32 %v5014, 4294901760
        %6291 = vmatprep.mubr.f32.mxu0 %v6290
        %v6292 = vand.u32 %v5013, 4294901760
        %6293 = vmatmul.mubr.f32.gmra.mrb[0].mxu0 %v6292
        %v6294 = vpop.f32.mrb[0].mxu0
        %v6295 = vadd.f32 %v6158, %v6294
        %v6296 = vpop.f32.mrb[0].mxu0
        %v6297 = vadd.f32 %v6160, %v6296
        %6298 = vdwg.mxu0
        %v6299 = vsub.f32 %v4902, %v6295
        %v6300 = vsub.f32 %v4904, %v6297
        %v6301 = vmul.f32 %v6299, 1.442695
        %v6302 = vpow.pop %v6301
        %v6303 = vmul.f32 %v6300, 1.442695
        %v6304 = vpow.pop %v6303
        %v6305 = vand.u32 %v316, 4294901760
        %6306 = vmatprep.subr.mxu0 %v6305
        %v6307 = vand.u32 %v315, 4294901760
        %6308 = vmatpush1.msra.mxu0 %v6307
        %v6309 = vand.u32 %v318, 4294901760
        %6310 = vmatprep.subr.mxu0 %v6309
        %v6311 = vand.u32 %v317, 4294901760
        %6312 = vmatpush1.msra.mxu0 %v6311
        %v6313 = vand.u32 %v320, 4294901760
        %6314 = vmatprep.subr.mxu0 %v6313
        %v6315 = vand.u32 %v319, 4294901760
        %6316 = vmatpush1.msra.mxu0 %v6315
        %v6317 = vand.u32 %v322, 4294901760
        %6318 = vmatprep.subr.mxu0 %v6317
        %v6319 = vand.u32 %v321, 4294901760
        %6320 = vmatpush1.msra.mxu0 %v6319
        %v6321 = vand.u32 %v324, 4294901760
        %6322 = vmatprep.subr.mxu0 %v6321
        %v6323 = vand.u32 %v323, 4294901760
        %6324 = vmatpush1.msra.mxu0 %v6323
        %v6325 = vand.u32 %v326, 4294901760
        %6326 = vmatprep.subr.mxu0 %v6325
        %v6327 = vand.u32 %v325, 4294901760
        %6328 = vmatpush1.msra.mxu0 %v6327
        %v6329 = vand.u32 %v328, 4294901760
        %6330 = vmatprep.subr.mxu0 %v6329
        %v6331 = vand.u32 %v327, 4294901760
        %6332 = vmatpush1.msra.mxu0 %v6331
        %v6333 = vand.u32 %v330, 4294901760
        %6334 = vmatprep.subr.mxu0 %v6333
        %v6335 = vand.u32 %v329, 4294901760
        %6336 = vmatpush1.msra.mxu0 %v6335
        %v6337 = vand.u32 %v332, 4294901760
        %6338 = vmatprep.subr.mxu0 %v6337
        %v6339 = vand.u32 %v331, 4294901760
        %6340 = vmatpush1.msra.mxu0 %v6339
        %v6341 = vand.u32 %v334, 4294901760
        %6342 = vmatprep.subr.mxu0 %v6341
        %v6343 = vand.u32 %v333, 4294901760
        %6344 = vmatpush1.msra.mxu0 %v6343
        %v6345 = vand.u32 %v336, 4294901760
        %6346 = vmatprep.subr.mxu0 %v6345
        %v6347 = vand.u32 %v335, 4294901760
        %6348 = vmatpush1.msra.mxu0 %v6347
        %v6349 = vand.u32 %v338, 4294901760
        %6350 = vmatprep.subr.mxu0 %v6349
        %v6351 = vand.u32 %v337, 4294901760
        %6352 = vmatpush1.msra.mxu0 %v6351
        %v6353 = vand.u32 %v340, 4294901760
        %6354 = vmatprep.subr.mxu0 %v6353
        %v6355 = vand.u32 %v339, 4294901760
        %6356 = vmatpush1.msra.mxu0 %v6355
        %v6357 = vand.u32 %v342, 4294901760
        %6358 = vmatprep.subr.mxu0 %v6357
        %v6359 = vand.u32 %v341, 4294901760
        %6360 = vmatpush1.msra.mxu0 %v6359
        %v6361 = vand.u32 %v344, 4294901760
        %6362 = vmatprep.subr.mxu0 %v6361
        %v6363 = vand.u32 %v343, 4294901760
        %6364 = vmatpush1.msra.mxu0 %v6363
        %v6365 = vand.u32 %v346, 4294901760
        %6366 = vmatprep.subr.mxu0 %v6365
        %v6367 = vand.u32 %v345, 4294901760
        %6368 = vmatpush1.msra.mxu0 %v6367
        %v6369 = vand.u32 %v348, 4294901760
        %6370 = vmatprep.subr.mxu0 %v6369
        %v6371 = vand.u32 %v347, 4294901760
        %6372 = vmatpush1.msra.mxu0 %v6371
        %v6373 = vand.u32 %v350, 4294901760
        %6374 = vmatprep.subr.mxu0 %v6373
        %v6375 = vand.u32 %v349, 4294901760
        %6376 = vmatpush1.msra.mxu0 %v6375
        %v6377 = vand.u32 %v352, 4294901760
        %6378 = vmatprep.subr.mxu0 %v6377
        %v6379 = vand.u32 %v351, 4294901760
        %6380 = vmatpush1.msra.mxu0 %v6379
        %v6381 = vand.u32 %v354, 4294901760
        %6382 = vmatprep.subr.mxu0 %v6381
        %v6383 = vand.u32 %v353, 4294901760
        %6384 = vmatpush1.msra.mxu0 %v6383
        %v6385 = vand.u32 %v356, 4294901760
        %6386 = vmatprep.subr.mxu0 %v6385
        %v6387 = vand.u32 %v355, 4294901760
        %6388 = vmatpush1.msra.mxu0 %v6387
        %v6389 = vand.u32 %v358, 4294901760
        %6390 = vmatprep.subr.mxu0 %v6389
        %v6391 = vand.u32 %v357, 4294901760
        %6392 = vmatpush1.msra.mxu0 %v6391
        %v6393 = vand.u32 %v360, 4294901760
        %6394 = vmatprep.subr.mxu0 %v6393
        %v6395 = vand.u32 %v359, 4294901760
        %6396 = vmatpush1.msra.mxu0 %v6395
        %v6397 = vand.u32 %v362, 4294901760
        %6398 = vmatprep.subr.mxu0 %v6397
        %v6399 = vand.u32 %v361, 4294901760
        %6400 = vmatpush1.msra.mxu0 %v6399
        %v6401 = vand.u32 %v364, 4294901760
        %6402 = vmatprep.subr.mxu0 %v6401
        %v6403 = vand.u32 %v363, 4294901760
        %6404 = vmatpush1.msra.mxu0 %v6403
        %v6405 = vand.u32 %v366, 4294901760
        %6406 = vmatprep.subr.mxu0 %v6405
        %v6407 = vand.u32 %v365, 4294901760
        %6408 = vmatpush1.msra.mxu0 %v6407
        %v6409 = vand.u32 %v368, 4294901760
        %6410 = vmatprep.subr.mxu0 %v6409
        %v6411 = vand.u32 %v367, 4294901760
        %6412 = vmatpush1.msra.mxu0 %v6411
        %v6413 = vand.u32 %v370, 4294901760
        %6414 = vmatprep.subr.mxu0 %v6413
        %v6415 = vand.u32 %v369, 4294901760
        %6416 = vmatpush1.msra.mxu0 %v6415
        %v6417 = vand.u32 %v372, 4294901760
        %6418 = vmatprep.subr.mxu0 %v6417
        %v6419 = vand.u32 %v371, 4294901760
        %6420 = vmatpush1.msra.mxu0 %v6419
        %v6421 = vand.u32 %v374, 4294901760
        %6422 = vmatprep.subr.mxu0 %v6421
        %v6423 = vand.u32 %v373, 4294901760
        %6424 = vmatpush1.msra.mxu0 %v6423
        %v6425 = vand.u32 %v376, 4294901760
        %6426 = vmatprep.subr.mxu0 %v6425
        %v6427 = vand.u32 %v375, 4294901760
        %6428 = vmatpush1.msra.mxu0 %v6427
        %v6429 = vand.u32 %v378, 4294901760
        %6430 = vmatprep.subr.mxu0 %v6429
        %v6431 = vand.u32 %v377, 4294901760
        %6432 = vmatpush1.msra.mxu0 %v6431
        %v6433 = vand.u32 %v6304, 4294901760
        %v6434 = vsub.f32 %v6304, %v6433
        %v6435 = vand.u32 %v6434, 4294901760
        %v6436 = vsub.f32 %v6434, %v6435
        %v6437 = vand.u32 %v6436, 4294901760
        %6438 = vmatprep.mubr.f32.mxu0 %v6437
        %v6439 = vand.u32 %v6302, 4294901760
        %v6440 = vsub.f32 %v6302, %v6439
        %v6441 = vand.u32 %v6440, 4294901760
        %v6442 = vsub.f32 %v6440, %v6441
        %v6443 = vand.u32 %v6442, 4294901760
        %6444 = vmatmul.mubr.f32.gmra.mrb[0].mxu0 %v6443
        %v6445 = vpop.f32.mrb[0].mxu0
        %v6446 = vadd.f32 0.0, %v6445
        %v6447 = vpop.f32.mrb[0].mxu0
        %v6448 = vadd.f32 0.0, %v6447
        %6449 = vdwg.mxu0
        %v6450 = vand.u32 %v316, 4294901760
        %v6451 = vsub.f32 %v316, %v6450
        %v6452 = vand.u32 %v6451, 4294901760
        %v6453 = vsub.f32 %v6451, %v6452
        %v6454 = vand.u32 %v6453, 4294901760
        %6455 = vmatprep.subr.mxu0 %v6454
        %v6456 = vand.u32 %v315, 4294901760
        %v6457 = vsub.f32 %v315, %v6456
        %v6458 = vand.u32 %v6457, 4294901760
        %v6459 = vsub.f32 %v6457, %v6458
        %v6460 = vand.u32 %v6459, 4294901760
        %6461 = vmatpush1.msra.mxu0 %v6460
        %v6462 = vand.u32 %v318, 4294901760
        %v6463 = vsub.f32 %v318, %v6462
        %v6464 = vand.u32 %v6463, 4294901760
        %v6465 = vsub.f32 %v6463, %v6464
        %v6466 = vand.u32 %v6465, 4294901760
        %6467 = vmatprep.subr.mxu0 %v6466
        %v6468 = vand.u32 %v317, 4294901760
        %v6469 = vsub.f32 %v317, %v6468
        %v6470 = vand.u32 %v6469, 4294901760
        %v6471 = vsub.f32 %v6469, %v6470
        %v6472 = vand.u32 %v6471, 4294901760
        %6473 = vmatpush1.msra.mxu0 %v6472
        %v6474 = vand.u32 %v320, 4294901760
        %v6475 = vsub.f32 %v320, %v6474
        %v6476 = vand.u32 %v6475, 4294901760
        %v6477 = vsub.f32 %v6475, %v6476
        %v6478 = vand.u32 %v6477, 4294901760
        %6479 = vmatprep.subr.mxu0 %v6478
        %v6480 = vand.u32 %v319, 4294901760
        %v6481 = vsub.f32 %v319, %v6480
        %v6482 = vand.u32 %v6481, 4294901760
        %v6483 = vsub.f32 %v6481, %v6482
        %v6484 = vand.u32 %v6483, 4294901760
        %6485 = vmatpush1.msra.mxu0 %v6484
        %v6486 = vand.u32 %v322, 4294901760
        %v6487 = vsub.f32 %v322, %v6486
        %v6488 = vand.u32 %v6487, 4294901760
        %v6489 = vsub.f32 %v6487, %v6488
        %v6490 = vand.u32 %v6489, 4294901760
        %6491 = vmatprep.subr.mxu0 %v6490
        %v6492 = vand.u32 %v321, 4294901760
        %v6493 = vsub.f32 %v321, %v6492
        %v6494 = vand.u32 %v6493, 4294901760
        %v6495 = vsub.f32 %v6493, %v6494
        %v6496 = vand.u32 %v6495, 4294901760
        %6497 = vmatpush1.msra.mxu0 %v6496
        %v6498 = vand.u32 %v324, 4294901760
        %v6499 = vsub.f32 %v324, %v6498
        %v6500 = vand.u32 %v6499, 4294901760
        %v6501 = vsub.f32 %v6499, %v6500
        %v6502 = vand.u32 %v6501, 4294901760
        %6503 = vmatprep.subr.mxu0 %v6502
        %v6504 = vand.u32 %v323, 4294901760
        %v6505 = vsub.f32 %v323, %v6504
        %v6506 = vand.u32 %v6505, 4294901760
        %v6507 = vsub.f32 %v6505, %v6506
        %v6508 = vand.u32 %v6507, 4294901760
        %6509 = vmatpush1.msra.mxu0 %v6508
        %v6510 = vand.u32 %v326, 4294901760
        %v6511 = vsub.f32 %v326, %v6510
        %v6512 = vand.u32 %v6511, 4294901760
        %v6513 = vsub.f32 %v6511, %v6512
        %v6514 = vand.u32 %v6513, 4294901760
        %6515 = vmatprep.subr.mxu0 %v6514
        %v6516 = vand.u32 %v325, 4294901760
        %v6517 = vsub.f32 %v325, %v6516
        %v6518 = vand.u32 %v6517, 4294901760
        %v6519 = vsub.f32 %v6517, %v6518
        %v6520 = vand.u32 %v6519, 4294901760
        %6521 = vmatpush1.msra.mxu0 %v6520
        %v6522 = vand.u32 %v328, 4294901760
        %v6523 = vsub.f32 %v328, %v6522
        %v6524 = vand.u32 %v6523, 4294901760
        %v6525 = vsub.f32 %v6523, %v6524
        %v6526 = vand.u32 %v6525, 4294901760
        %6527 = vmatprep.subr.mxu0 %v6526
        %v6528 = vand.u32 %v327, 4294901760
        %v6529 = vsub.f32 %v327, %v6528
        %v6530 = vand.u32 %v6529, 4294901760
        %v6531 = vsub.f32 %v6529, %v6530
        %v6532 = vand.u32 %v6531, 4294901760
        %6533 = vmatpush1.msra.mxu0 %v6532
        %v6534 = vand.u32 %v330, 4294901760
        %v6535 = vsub.f32 %v330, %v6534
        %v6536 = vand.u32 %v6535, 4294901760
        %v6537 = vsub.f32 %v6535, %v6536
        %v6538 = vand.u32 %v6537, 4294901760
        %6539 = vmatprep.subr.mxu0 %v6538
        %v6540 = vand.u32 %v329, 4294901760
        %v6541 = vsub.f32 %v329, %v6540
        %v6542 = vand.u32 %v6541, 4294901760
        %v6543 = vsub.f32 %v6541, %v6542
        %v6544 = vand.u32 %v6543, 4294901760
        %6545 = vmatpush1.msra.mxu0 %v6544
        %v6546 = vand.u32 %v332, 4294901760
        %v6547 = vsub.f32 %v332, %v6546
        %v6548 = vand.u32 %v6547, 4294901760
        %v6549 = vsub.f32 %v6547, %v6548
        %v6550 = vand.u32 %v6549, 4294901760
        %6551 = vmatprep.subr.mxu0 %v6550
        %v6552 = vand.u32 %v331, 4294901760
        %v6553 = vsub.f32 %v331, %v6552
        %v6554 = vand.u32 %v6553, 4294901760
        %v6555 = vsub.f32 %v6553, %v6554
        %v6556 = vand.u32 %v6555, 4294901760
        %6557 = vmatpush1.msra.mxu0 %v6556
        %v6558 = vand.u32 %v334, 4294901760
        %v6559 = vsub.f32 %v334, %v6558
        %v6560 = vand.u32 %v6559, 4294901760
        %v6561 = vsub.f32 %v6559, %v6560
        %v6562 = vand.u32 %v6561, 4294901760
        %6563 = vmatprep.subr.mxu0 %v6562
        %v6564 = vand.u32 %v333, 4294901760
        %v6565 = vsub.f32 %v333, %v6564
        %v6566 = vand.u32 %v6565, 4294901760
        %v6567 = vsub.f32 %v6565, %v6566
        %v6568 = vand.u32 %v6567, 4294901760
        %6569 = vmatpush1.msra.mxu0 %v6568
        %v6570 = vand.u32 %v336, 4294901760
        %v6571 = vsub.f32 %v336, %v6570
        %v6572 = vand.u32 %v6571, 4294901760
        %v6573 = vsub.f32 %v6571, %v6572
        %v6574 = vand.u32 %v6573, 4294901760
        %6575 = vmatprep.subr.mxu0 %v6574
        %v6576 = vand.u32 %v335, 4294901760
        %v6577 = vsub.f32 %v335, %v6576
        %v6578 = vand.u32 %v6577, 4294901760
        %v6579 = vsub.f32 %v6577, %v6578
        %v6580 = vand.u32 %v6579, 4294901760
        %6581 = vmatpush1.msra.mxu0 %v6580
        %v6582 = vand.u32 %v338, 4294901760
        %v6583 = vsub.f32 %v338, %v6582
        %v6584 = vand.u32 %v6583, 4294901760
        %v6585 = vsub.f32 %v6583, %v6584
        %v6586 = vand.u32 %v6585, 4294901760
        %6587 = vmatprep.subr.mxu0 %v6586
        %v6588 = vand.u32 %v337, 4294901760
        %v6589 = vsub.f32 %v337, %v6588
        %v6590 = vand.u32 %v6589, 4294901760
        %v6591 = vsub.f32 %v6589, %v6590
        %v6592 = vand.u32 %v6591, 4294901760
        %6593 = vmatpush1.msra.mxu0 %v6592
        %v6594 = vand.u32 %v340, 4294901760
        %v6595 = vsub.f32 %v340, %v6594
        %v6596 = vand.u32 %v6595, 4294901760
        %v6597 = vsub.f32 %v6595, %v6596
        %v6598 = vand.u32 %v6597, 4294901760
        %6599 = vmatprep.subr.mxu0 %v6598
        %v6600 = vand.u32 %v339, 4294901760
        %v6601 = vsub.f32 %v339, %v6600
        %v6602 = vand.u32 %v6601, 4294901760
        %v6603 = vsub.f32 %v6601, %v6602
        %v6604 = vand.u32 %v6603, 4294901760
        %6605 = vmatpush1.msra.mxu0 %v6604
        %v6606 = vand.u32 %v342, 4294901760
        %v6607 = vsub.f32 %v342, %v6606
        %v6608 = vand.u32 %v6607, 4294901760
        %v6609 = vsub.f32 %v6607, %v6608
        %v6610 = vand.u32 %v6609, 4294901760
        %6611 = vmatprep.subr.mxu0 %v6610
        %v6612 = vand.u32 %v341, 4294901760
        %v6613 = vsub.f32 %v341, %v6612
        %v6614 = vand.u32 %v6613, 4294901760
        %v6615 = vsub.f32 %v6613, %v6614
        %v6616 = vand.u32 %v6615, 4294901760
        %6617 = vmatpush1.msra.mxu0 %v6616
        %v6618 = vand.u32 %v344, 4294901760
        %v6619 = vsub.f32 %v344, %v6618
        %v6620 = vand.u32 %v6619, 4294901760
        %v6621 = vsub.f32 %v6619, %v6620
        %v6622 = vand.u32 %v6621, 4294901760
        %6623 = vmatprep.subr.mxu0 %v6622
        %v6624 = vand.u32 %v343, 4294901760
        %v6625 = vsub.f32 %v343, %v6624
        %v6626 = vand.u32 %v6625, 4294901760
        %v6627 = vsub.f32 %v6625, %v6626
        %v6628 = vand.u32 %v6627, 4294901760
        %6629 = vmatpush1.msra.mxu0 %v6628
        %v6630 = vand.u32 %v346, 4294901760
        %v6631 = vsub.f32 %v346, %v6630
        %v6632 = vand.u32 %v6631, 4294901760
        %v6633 = vsub.f32 %v6631, %v6632
        %v6634 = vand.u32 %v6633, 4294901760
        %6635 = vmatprep.subr.mxu0 %v6634
        %v6636 = vand.u32 %v345, 4294901760
        %v6637 = vsub.f32 %v345, %v6636
        %v6638 = vand.u32 %v6637, 4294901760
        %v6639 = vsub.f32 %v6637, %v6638
        %v6640 = vand.u32 %v6639, 4294901760
        %6641 = vmatpush1.msra.mxu0 %v6640
        %v6642 = vand.u32 %v348, 4294901760
        %v6643 = vsub.f32 %v348, %v6642
        %v6644 = vand.u32 %v6643, 4294901760
        %v6645 = vsub.f32 %v6643, %v6644
        %v6646 = vand.u32 %v6645, 4294901760
        %6647 = vmatprep.subr.mxu0 %v6646
        %v6648 = vand.u32 %v347, 4294901760
        %v6649 = vsub.f32 %v347, %v6648
        %v6650 = vand.u32 %v6649, 4294901760
        %v6651 = vsub.f32 %v6649, %v6650
        %v6652 = vand.u32 %v6651, 4294901760
        %6653 = vmatpush1.msra.mxu0 %v6652
        %v6654 = vand.u32 %v350, 4294901760
        %v6655 = vsub.f32 %v350, %v6654
        %v6656 = vand.u32 %v6655, 4294901760
        %v6657 = vsub.f32 %v6655, %v6656
        %v6658 = vand.u32 %v6657, 4294901760
        %6659 = vmatprep.subr.mxu0 %v6658
        %v6660 = vand.u32 %v349, 4294901760
        %v6661 = vsub.f32 %v349, %v6660
        %v6662 = vand.u32 %v6661, 4294901760
        %v6663 = vsub.f32 %v6661, %v6662
        %v6664 = vand.u32 %v6663, 4294901760
        %6665 = vmatpush1.msra.mxu0 %v6664
        %v6666 = vand.u32 %v352, 4294901760
        %v6667 = vsub.f32 %v352, %v6666
        %v6668 = vand.u32 %v6667, 4294901760
        %v6669 = vsub.f32 %v6667, %v6668
        %v6670 = vand.u32 %v6669, 4294901760
        %6671 = vmatprep.subr.mxu0 %v6670
        %v6672 = vand.u32 %v351, 4294901760
        %v6673 = vsub.f32 %v351, %v6672
        %v6674 = vand.u32 %v6673, 4294901760
        %v6675 = vsub.f32 %v6673, %v6674
        %v6676 = vand.u32 %v6675, 4294901760
        %6677 = vmatpush1.msra.mxu0 %v6676
        %v6678 = vand.u32 %v354, 4294901760
        %v6679 = vsub.f32 %v354, %v6678
        %v6680 = vand.u32 %v6679, 4294901760
        %v6681 = vsub.f32 %v6679, %v6680
        %v6682 = vand.u32 %v6681, 4294901760
        %6683 = vmatprep.subr.mxu0 %v6682
        %v6684 = vand.u32 %v353, 4294901760
        %v6685 = vsub.f32 %v353, %v6684
        %v6686 = vand.u32 %v6685, 4294901760
        %v6687 = vsub.f32 %v6685, %v6686
        %v6688 = vand.u32 %v6687, 4294901760
        %6689 = vmatpush1.msra.mxu0 %v6688
        %v6690 = vand.u32 %v356, 4294901760
        %v6691 = vsub.f32 %v356, %v6690
        %v6692 = vand.u32 %v6691, 4294901760
        %v6693 = vsub.f32 %v6691, %v6692
        %v6694 = vand.u32 %v6693, 4294901760
        %6695 = vmatprep.subr.mxu0 %v6694
        %v6696 = vand.u32 %v355, 4294901760
        %v6697 = vsub.f32 %v355, %v6696
        %v6698 = vand.u32 %v6697, 4294901760
        %v6699 = vsub.f32 %v6697, %v6698
        %v6700 = vand.u32 %v6699, 4294901760
        %6701 = vmatpush1.msra.mxu0 %v6700
        %v6702 = vand.u32 %v358, 4294901760
        %v6703 = vsub.f32 %v358, %v6702
        %v6704 = vand.u32 %v6703, 4294901760
        %v6705 = vsub.f32 %v6703, %v6704
        %v6706 = vand.u32 %v6705, 4294901760
        %6707 = vmatprep.subr.mxu0 %v6706
        %v6708 = vand.u32 %v357, 4294901760
        %v6709 = vsub.f32 %v357, %v6708
        %v6710 = vand.u32 %v6709, 4294901760
        %v6711 = vsub.f32 %v6709, %v6710
        %v6712 = vand.u32 %v6711, 4294901760
        %6713 = vmatpush1.msra.mxu0 %v6712
        %v6714 = vand.u32 %v360, 4294901760
        %v6715 = vsub.f32 %v360, %v6714
        %v6716 = vand.u32 %v6715, 4294901760
        %v6717 = vsub.f32 %v6715, %v6716
        %v6718 = vand.u32 %v6717, 4294901760
        %6719 = vmatprep.subr.mxu0 %v6718
        %v6720 = vand.u32 %v359, 4294901760
        %v6721 = vsub.f32 %v359, %v6720
        %v6722 = vand.u32 %v6721, 4294901760
        %v6723 = vsub.f32 %v6721, %v6722
        %v6724 = vand.u32 %v6723, 4294901760
        %6725 = vmatpush1.msra.mxu0 %v6724
        %v6726 = vand.u32 %v362, 4294901760
        %v6727 = vsub.f32 %v362, %v6726
        %v6728 = vand.u32 %v6727, 4294901760
        %v6729 = vsub.f32 %v6727, %v6728
        %v6730 = vand.u32 %v6729, 4294901760
        %6731 = vmatprep.subr.mxu0 %v6730
        %v6732 = vand.u32 %v361, 4294901760
        %v6733 = vsub.f32 %v361, %v6732
        %v6734 = vand.u32 %v6733, 4294901760
        %v6735 = vsub.f32 %v6733, %v6734
        %v6736 = vand.u32 %v6735, 4294901760
        %6737 = vmatpush1.msra.mxu0 %v6736
        %v6738 = vand.u32 %v364, 4294901760
        %v6739 = vsub.f32 %v364, %v6738
        %v6740 = vand.u32 %v6739, 4294901760
        %v6741 = vsub.f32 %v6739, %v6740
        %v6742 = vand.u32 %v6741, 4294901760
        %6743 = vmatprep.subr.mxu0 %v6742
        %v6744 = vand.u32 %v363, 4294901760
        %v6745 = vsub.f32 %v363, %v6744
        %v6746 = vand.u32 %v6745, 4294901760
        %v6747 = vsub.f32 %v6745, %v6746
        %v6748 = vand.u32 %v6747, 4294901760
        %6749 = vmatpush1.msra.mxu0 %v6748
        %v6750 = vand.u32 %v366, 4294901760
        %v6751 = vsub.f32 %v366, %v6750
        %v6752 = vand.u32 %v6751, 4294901760
        %v6753 = vsub.f32 %v6751, %v6752
        %v6754 = vand.u32 %v6753, 4294901760
        %6755 = vmatprep.subr.mxu0 %v6754
        %v6756 = vand.u32 %v365, 4294901760
        %v6757 = vsub.f32 %v365, %v6756
        %v6758 = vand.u32 %v6757, 4294901760
        %v6759 = vsub.f32 %v6757, %v6758
        %v6760 = vand.u32 %v6759, 4294901760
        %6761 = vmatpush1.msra.mxu0 %v6760
        %v6762 = vand.u32 %v368, 4294901760
        %v6763 = vsub.f32 %v368, %v6762
        %v6764 = vand.u32 %v6763, 4294901760
        %v6765 = vsub.f32 %v6763, %v6764
        %v6766 = vand.u32 %v6765, 4294901760
        %6767 = vmatprep.subr.mxu0 %v6766
        %v6768 = vand.u32 %v367, 4294901760
        %v6769 = vsub.f32 %v367, %v6768
        %v6770 = vand.u32 %v6769, 4294901760
        %v6771 = vsub.f32 %v6769, %v6770
        %v6772 = vand.u32 %v6771, 4294901760
        %6773 = vmatpush1.msra.mxu0 %v6772
        %v6774 = vand.u32 %v370, 4294901760
        %v6775 = vsub.f32 %v370, %v6774
        %v6776 = vand.u32 %v6775, 4294901760
        %v6777 = vsub.f32 %v6775, %v6776
        %v6778 = vand.u32 %v6777, 4294901760
        %6779 = vmatprep.subr.mxu0 %v6778
        %v6780 = vand.u32 %v369, 4294901760
        %v6781 = vsub.f32 %v369, %v6780
        %v6782 = vand.u32 %v6781, 4294901760
        %v6783 = vsub.f32 %v6781, %v6782
        %v6784 = vand.u32 %v6783, 4294901760
        %6785 = vmatpush1.msra.mxu0 %v6784
        %v6786 = vand.u32 %v372, 4294901760
        %v6787 = vsub.f32 %v372, %v6786
        %v6788 = vand.u32 %v6787, 4294901760
        %v6789 = vsub.f32 %v6787, %v6788
        %v6790 = vand.u32 %v6789, 4294901760
        %6791 = vmatprep.subr.mxu0 %v6790
        %v6792 = vand.u32 %v371, 4294901760
        %v6793 = vsub.f32 %v371, %v6792
        %v6794 = vand.u32 %v6793, 4294901760
        %v6795 = vsub.f32 %v6793, %v6794
        %v6796 = vand.u32 %v6795, 4294901760
        %6797 = vmatpush1.msra.mxu0 %v6796
        %v6798 = vand.u32 %v374, 4294901760
        %v6799 = vsub.f32 %v374, %v6798
        %v6800 = vand.u32 %v6799, 4294901760
        %v6801 = vsub.f32 %v6799, %v6800
        %v6802 = vand.u32 %v6801, 4294901760
        %6803 = vmatprep.subr.mxu0 %v6802
        %v6804 = vand.u32 %v373, 4294901760
        %v6805 = vsub.f32 %v373, %v6804
        %v6806 = vand.u32 %v6805, 4294901760
        %v6807 = vsub.f32 %v6805, %v6806
        %v6808 = vand.u32 %v6807, 4294901760
        %6809 = vmatpush1.msra.mxu0 %v6808
        %v6810 = vand.u32 %v376, 4294901760
        %v6811 = vsub.f32 %v376, %v6810
        %v6812 = vand.u32 %v6811, 4294901760
        %v6813 = vsub.f32 %v6811, %v6812
        %v6814 = vand.u32 %v6813, 4294901760
        %6815 = vmatprep.subr.mxu0 %v6814
        %v6816 = vand.u32 %v375, 4294901760
        %v6817 = vsub.f32 %v375, %v6816
        %v6818 = vand.u32 %v6817, 4294901760
        %v6819 = vsub.f32 %v6817, %v6818
        %v6820 = vand.u32 %v6819, 4294901760
        %6821 = vmatpush1.msra.mxu0 %v6820
        %v6822 = vand.u32 %v378, 4294901760
        %v6823 = vsub.f32 %v378, %v6822
        %v6824 = vand.u32 %v6823, 4294901760
        %v6825 = vsub.f32 %v6823, %v6824
        %v6826 = vand.u32 %v6825, 4294901760
        %6827 = vmatprep.subr.mxu0 %v6826
        %v6828 = vand.u32 %v377, 4294901760
        %v6829 = vsub.f32 %v377, %v6828
        %v6830 = vand.u32 %v6829, 4294901760
        %v6831 = vsub.f32 %v6829, %v6830
        %v6832 = vand.u32 %v6831, 4294901760
        %6833 = vmatpush1.msra.mxu0 %v6832
        %v6834 = vand.u32 %v6304, 4294901760
        %6835 = vmatprep.mubr.f32.mxu0 %v6834
        %v6836 = vand.u32 %v6302, 4294901760
        %6837 = vmatmul.mubr.f32.gmra.mrb[0].mxu0 %v6836
        %v6838 = vpop.f32.mrb[0].mxu0
        %v6839 = vadd.f32 %v6446, %v6838
        %v6840 = vpop.f32.mrb[0].mxu0
        %v6841 = vadd.f32 %v6448, %v6840
        %6842 = vdwg.mxu0
        %v6843 = vand.u32 %v316, 4294901760
        %v6844 = vsub.f32 %v316, %v6843
        %6845 = vmatprep.subr.mxu0 %v6844
        %v6846 = vand.u32 %v315, 4294901760
        %v6847 = vsub.f32 %v315, %v6846
        %6848 = vmatpush1.msra.mxu0 %v6847
        %v6849 = vand.u32 %v318, 4294901760
        %v6850 = vsub.f32 %v318, %v6849
        %6851 = vmatprep.subr.mxu0 %v6850
        %v6852 = vand.u32 %v317, 4294901760
        %v6853 = vsub.f32 %v317, %v6852
        %6854 = vmatpush1.msra.mxu0 %v6853
        %v6855 = vand.u32 %v320, 4294901760
        %v6856 = vsub.f32 %v320, %v6855
        %6857 = vmatprep.subr.mxu0 %v6856
        %v6858 = vand.u32 %v319, 4294901760
        %v6859 = vsub.f32 %v319, %v6858
        %6860 = vmatpush1.msra.mxu0 %v6859
        %v6861 = vand.u32 %v322, 4294901760
        %v6862 = vsub.f32 %v322, %v6861
        %6863 = vmatprep.subr.mxu0 %v6862
        %v6864 = vand.u32 %v321, 4294901760
        %v6865 = vsub.f32 %v321, %v6864
        %6866 = vmatpush1.msra.mxu0 %v6865
        %v6867 = vand.u32 %v324, 4294901760
        %v6868 = vsub.f32 %v324, %v6867
        %6869 = vmatprep.subr.mxu0 %v6868
        %v6870 = vand.u32 %v323, 4294901760
        %v6871 = vsub.f32 %v323, %v6870
        %6872 = vmatpush1.msra.mxu0 %v6871
        %v6873 = vand.u32 %v326, 4294901760
        %v6874 = vsub.f32 %v326, %v6873
        %6875 = vmatprep.subr.mxu0 %v6874
        %v6876 = vand.u32 %v325, 4294901760
        %v6877 = vsub.f32 %v325, %v6876
        %6878 = vmatpush1.msra.mxu0 %v6877
        %v6879 = vand.u32 %v328, 4294901760
        %v6880 = vsub.f32 %v328, %v6879
        %6881 = vmatprep.subr.mxu0 %v6880
        %v6882 = vand.u32 %v327, 4294901760
        %v6883 = vsub.f32 %v327, %v6882
        %6884 = vmatpush1.msra.mxu0 %v6883
        %v6885 = vand.u32 %v330, 4294901760
        %v6886 = vsub.f32 %v330, %v6885
        %6887 = vmatprep.subr.mxu0 %v6886
        %v6888 = vand.u32 %v329, 4294901760
        %v6889 = vsub.f32 %v329, %v6888
        %6890 = vmatpush1.msra.mxu0 %v6889
        %v6891 = vand.u32 %v332, 4294901760
        %v6892 = vsub.f32 %v332, %v6891
        %6893 = vmatprep.subr.mxu0 %v6892
        %v6894 = vand.u32 %v331, 4294901760
        %v6895 = vsub.f32 %v331, %v6894
        %6896 = vmatpush1.msra.mxu0 %v6895
        %v6897 = vand.u32 %v334, 4294901760
        %v6898 = vsub.f32 %v334, %v6897
        %6899 = vmatprep.subr.mxu0 %v6898
        %v6900 = vand.u32 %v333, 4294901760
        %v6901 = vsub.f32 %v333, %v6900
        %6902 = vmatpush1.msra.mxu0 %v6901
        %v6903 = vand.u32 %v336, 4294901760
        %v6904 = vsub.f32 %v336, %v6903
        %6905 = vmatprep.subr.mxu0 %v6904
        %v6906 = vand.u32 %v335, 4294901760
        %v6907 = vsub.f32 %v335, %v6906
        %6908 = vmatpush1.msra.mxu0 %v6907
        %v6909 = vand.u32 %v338, 4294901760
        %v6910 = vsub.f32 %v338, %v6909
        %6911 = vmatprep.subr.mxu0 %v6910
        %v6912 = vand.u32 %v337, 4294901760
        %v6913 = vsub.f32 %v337, %v6912
        %6914 = vmatpush1.msra.mxu0 %v6913
        %v6915 = vand.u32 %v340, 4294901760
        %v6916 = vsub.f32 %v340, %v6915
        %6917 = vmatprep.subr.mxu0 %v6916
        %v6918 = vand.u32 %v339, 4294901760
        %v6919 = vsub.f32 %v339, %v6918
        %6920 = vmatpush1.msra.mxu0 %v6919
        %v6921 = vand.u32 %v342, 4294901760
        %v6922 = vsub.f32 %v342, %v6921
        %6923 = vmatprep.subr.mxu0 %v6922
        %v6924 = vand.u32 %v341, 4294901760
        %v6925 = vsub.f32 %v341, %v6924
        %6926 = vmatpush1.msra.mxu0 %v6925
        %v6927 = vand.u32 %v344, 4294901760
        %v6928 = vsub.f32 %v344, %v6927
        %6929 = vmatprep.subr.mxu0 %v6928
        %v6930 = vand.u32 %v343, 4294901760
        %v6931 = vsub.f32 %v343, %v6930
        %6932 = vmatpush1.msra.mxu0 %v6931
        %v6933 = vand.u32 %v346, 4294901760
        %v6934 = vsub.f32 %v346, %v6933
        %6935 = vmatprep.subr.mxu0 %v6934
        %v6936 = vand.u32 %v345, 4294901760
        %v6937 = vsub.f32 %v345, %v6936
        %6938 = vmatpush1.msra.mxu0 %v6937
        %v6939 = vand.u32 %v348, 4294901760
        %v6940 = vsub.f32 %v348, %v6939
        %6941 = vmatprep.subr.mxu0 %v6940
        %v6942 = vand.u32 %v347, 4294901760
        %v6943 = vsub.f32 %v347, %v6942
        %6944 = vmatpush1.msra.mxu0 %v6943
        %v6945 = vand.u32 %v350, 4294901760
        %v6946 = vsub.f32 %v350, %v6945
        %6947 = vmatprep.subr.mxu0 %v6946
        %v6948 = vand.u32 %v349, 4294901760
        %v6949 = vsub.f32 %v349, %v6948
        %6950 = vmatpush1.msra.mxu0 %v6949
        %v6951 = vand.u32 %v352, 4294901760
        %v6952 = vsub.f32 %v352, %v6951
        %6953 = vmatprep.subr.mxu0 %v6952
        %v6954 = vand.u32 %v351, 4294901760
        %v6955 = vsub.f32 %v351, %v6954
        %6956 = vmatpush1.msra.mxu0 %v6955
        %v6957 = vand.u32 %v354, 4294901760
        %v6958 = vsub.f32 %v354, %v6957
        %6959 = vmatprep.subr.mxu0 %v6958
        %v6960 = vand.u32 %v353, 4294901760
        %v6961 = vsub.f32 %v353, %v6960
        %6962 = vmatpush1.msra.mxu0 %v6961
        %v6963 = vand.u32 %v356, 4294901760
        %v6964 = vsub.f32 %v356, %v6963
        %6965 = vmatprep.subr.mxu0 %v6964
        %v6966 = vand.u32 %v355, 4294901760
        %v6967 = vsub.f32 %v355, %v6966
        %6968 = vmatpush1.msra.mxu0 %v6967
        %v6969 = vand.u32 %v358, 4294901760
        %v6970 = vsub.f32 %v358, %v6969
        %6971 = vmatprep.subr.mxu0 %v6970
        %v6972 = vand.u32 %v357, 4294901760
        %v6973 = vsub.f32 %v357, %v6972
        %6974 = vmatpush1.msra.mxu0 %v6973
        %v6975 = vand.u32 %v360, 4294901760
        %v6976 = vsub.f32 %v360, %v6975
        %6977 = vmatprep.subr.mxu0 %v6976
        %v6978 = vand.u32 %v359, 4294901760
        %v6979 = vsub.f32 %v359, %v6978
        %6980 = vmatpush1.msra.mxu0 %v6979
        %v6981 = vand.u32 %v362, 4294901760
        %v6982 = vsub.f32 %v362, %v6981
        %6983 = vmatprep.subr.mxu0 %v6982
        %v6984 = vand.u32 %v361, 4294901760
        %v6985 = vsub.f32 %v361, %v6984
        %6986 = vmatpush1.msra.mxu0 %v6985
        %v6987 = vand.u32 %v364, 4294901760
        %v6988 = vsub.f32 %v364, %v6987
        %6989 = vmatprep.subr.mxu0 %v6988
        %v6990 = vand.u32 %v363, 4294901760
        %v6991 = vsub.f32 %v363, %v6990
        %6992 = vmatpush1.msra.mxu0 %v6991
        %v6993 = vand.u32 %v366, 4294901760
        %v6994 = vsub.f32 %v366, %v6993
        %6995 = vmatprep.subr.mxu0 %v6994
        %v6996 = vand.u32 %v365, 4294901760
        %v6997 = vsub.f32 %v365, %v6996
        %6998 = vmatpush1.msra.mxu0 %v6997
        %v6999 = vand.u32 %v368, 4294901760
        %v7000 = vsub.f32 %v368, %v6999
        %7001 = vmatprep.subr.mxu0 %v7000
        %v7002 = vand.u32 %v367, 4294901760
        %v7003 = vsub.f32 %v367, %v7002
        %7004 = vmatpush1.msra.mxu0 %v7003
        %v7005 = vand.u32 %v370, 4294901760
        %v7006 = vsub.f32 %v370, %v7005
        %7007 = vmatprep.subr.mxu0 %v7006
        %v7008 = vand.u32 %v369, 4294901760
        %v7009 = vsub.f32 %v369, %v7008
        %7010 = vmatpush1.msra.mxu0 %v7009
        %v7011 = vand.u32 %v372, 4294901760
        %v7012 = vsub.f32 %v372, %v7011
        %7013 = vmatprep.subr.mxu0 %v7012
        %v7014 = vand.u32 %v371, 4294901760
        %v7015 = vsub.f32 %v371, %v7014
        %7016 = vmatpush1.msra.mxu0 %v7015
        %v7017 = vand.u32 %v374, 4294901760
        %v7018 = vsub.f32 %v374, %v7017
        %7019 = vmatprep.subr.mxu0 %v7018
        %v7020 = vand.u32 %v373, 4294901760
        %v7021 = vsub.f32 %v373, %v7020
        %7022 = vmatpush1.msra.mxu0 %v7021
        %v7023 = vand.u32 %v376, 4294901760
        %v7024 = vsub.f32 %v376, %v7023
        %7025 = vmatprep.subr.mxu0 %v7024
        %v7026 = vand.u32 %v375, 4294901760
        %v7027 = vsub.f32 %v375, %v7026
        %7028 = vmatpush1.msra.mxu0 %v7027
        %v7029 = vand.u32 %v378, 4294901760
        %v7030 = vsub.f32 %v378, %v7029
        %7031 = vmatprep.subr.mxu0 %v7030
        %v7032 = vand.u32 %v377, 4294901760
        %v7033 = vsub.f32 %v377, %v7032
        %7034 = vmatpush1.msra.mxu0 %v7033
        %v7035 = vand.u32 %v6304, 4294901760
        %v7036 = vsub.f32 %v6304, %v7035
        %7037 = vmatprep.mubr.f32.mxu0 %v7036
        %v7038 = vand.u32 %v6302, 4294901760
        %v7039 = vsub.f32 %v6302, %v7038
        %7040 = vmatmul.mubr.f32.gmra.mrb[0].mxu0 %v7039
        %v7041 = vpop.f32.mrb[0].mxu0
        %v7042 = vadd.f32 %v6839, %v7041
        %v7043 = vpop.f32.mrb[0].mxu0
        %v7044 = vadd.f32 %v6841, %v7043
        %7045 = vdwg.mxu0
        %v7046 = vand.u32 %v316, 4294901760
        %7047 = vmatprep.subr.mxu0 %v7046
        %v7048 = vand.u32 %v315, 4294901760
        %7049 = vmatpush1.msra.mxu0 %v7048
        %v7050 = vand.u32 %v318, 4294901760
        %7051 = vmatprep.subr.mxu0 %v7050
        %v7052 = vand.u32 %v317, 4294901760
        %7053 = vmatpush1.msra.mxu0 %v7052
        %v7054 = vand.u32 %v320, 4294901760
        %7055 = vmatprep.subr.mxu0 %v7054
        %v7056 = vand.u32 %v319, 4294901760
        %7057 = vmatpush1.msra.mxu0 %v7056
        %v7058 = vand.u32 %v322, 4294901760
        %7059 = vmatprep.subr.mxu0 %v7058
        %v7060 = vand.u32 %v321, 4294901760
        %7061 = vmatpush1.msra.mxu0 %v7060
        %v7062 = vand.u32 %v324, 4294901760
        %7063 = vmatprep.subr.mxu0 %v7062
        %v7064 = vand.u32 %v323, 4294901760
        %7065 = vmatpush1.msra.mxu0 %v7064
        %v7066 = vand.u32 %v326, 4294901760
        %7067 = vmatprep.subr.mxu0 %v7066
        %v7068 = vand.u32 %v325, 4294901760
        %7069 = vmatpush1.msra.mxu0 %v7068
        %v7070 = vand.u32 %v328, 4294901760
        %7071 = vmatprep.subr.mxu0 %v7070
        %v7072 = vand.u32 %v327, 4294901760
        %7073 = vmatpush1.msra.mxu0 %v7072
        %v7074 = vand.u32 %v330, 4294901760
        %7075 = vmatprep.subr.mxu0 %v7074
        %v7076 = vand.u32 %v329, 4294901760
        %7077 = vmatpush1.msra.mxu0 %v7076
        %v7078 = vand.u32 %v332, 4294901760
        %7079 = vmatprep.subr.mxu0 %v7078
        %v7080 = vand.u32 %v331, 4294901760
        %7081 = vmatpush1.msra.mxu0 %v7080
        %v7082 = vand.u32 %v334, 4294901760
        %7083 = vmatprep.subr.mxu0 %v7082
        %v7084 = vand.u32 %v333, 4294901760
        %7085 = vmatpush1.msra.mxu0 %v7084
        %v7086 = vand.u32 %v336, 4294901760
        %7087 = vmatprep.subr.mxu0 %v7086
        %v7088 = vand.u32 %v335, 4294901760
        %7089 = vmatpush1.msra.mxu0 %v7088
        %v7090 = vand.u32 %v338, 4294901760
        %7091 = vmatprep.subr.mxu0 %v7090
        %v7092 = vand.u32 %v337, 4294901760
        %7093 = vmatpush1.msra.mxu0 %v7092
        %v7094 = vand.u32 %v340, 4294901760
        %7095 = vmatprep.subr.mxu0 %v7094
        %v7096 = vand.u32 %v339, 4294901760
        %7097 = vmatpush1.msra.mxu0 %v7096
        %v7098 = vand.u32 %v342, 4294901760
        %7099 = vmatprep.subr.mxu0 %v7098
        %v7100 = vand.u32 %v341, 4294901760
        %7101 = vmatpush1.msra.mxu0 %v7100
        %v7102 = vand.u32 %v344, 4294901760
        %7103 = vmatprep.subr.mxu0 %v7102
        %v7104 = vand.u32 %v343, 4294901760
        %7105 = vmatpush1.msra.mxu0 %v7104
        %v7106 = vand.u32 %v346, 4294901760
        %7107 = vmatprep.subr.mxu0 %v7106
        %v7108 = vand.u32 %v345, 4294901760
        %7109 = vmatpush1.msra.mxu0 %v7108
        %v7110 = vand.u32 %v348, 4294901760
        %7111 = vmatprep.subr.mxu0 %v7110
        %v7112 = vand.u32 %v347, 4294901760
        %7113 = vmatpush1.msra.mxu0 %v7112
        %v7114 = vand.u32 %v350, 4294901760
        %7115 = vmatprep.subr.mxu0 %v7114
        %v7116 = vand.u32 %v349, 4294901760
        %7117 = vmatpush1.msra.mxu0 %v7116
        %v7118 = vand.u32 %v352, 4294901760
        %7119 = vmatprep.subr.mxu0 %v7118
        %v7120 = vand.u32 %v351, 4294901760
        %7121 = vmatpush1.msra.mxu0 %v7120
        %v7122 = vand.u32 %v354, 4294901760
        %7123 = vmatprep.subr.mxu0 %v7122
        %v7124 = vand.u32 %v353, 4294901760
        %7125 = vmatpush1.msra.mxu0 %v7124
        %v7126 = vand.u32 %v356, 4294901760
        %7127 = vmatprep.subr.mxu0 %v7126
        %v7128 = vand.u32 %v355, 4294901760
        %7129 = vmatpush1.msra.mxu0 %v7128
        %v7130 = vand.u32 %v358, 4294901760
        %7131 = vmatprep.subr.mxu0 %v7130
        %v7132 = vand.u32 %v357, 4294901760
        %7133 = vmatpush1.msra.mxu0 %v7132
        %v7134 = vand.u32 %v360, 4294901760
        %7135 = vmatprep.subr.mxu0 %v7134
        %v7136 = vand.u32 %v359, 4294901760
        %7137 = vmatpush1.msra.mxu0 %v7136
        %v7138 = vand.u32 %v362, 4294901760
        %7139 = vmatprep.subr.mxu0 %v7138
        %v7140 = vand.u32 %v361, 4294901760
        %7141 = vmatpush1.msra.mxu0 %v7140
        %v7142 = vand.u32 %v364, 4294901760
        %7143 = vmatprep.subr.mxu0 %v7142
        %v7144 = vand.u32 %v363, 4294901760
        %7145 = vmatpush1.msra.mxu0 %v7144
        %v7146 = vand.u32 %v366, 4294901760
        %7147 = vmatprep.subr.mxu0 %v7146
        %v7148 = vand.u32 %v365, 4294901760
        %7149 = vmatpush1.msra.mxu0 %v7148
        %v7150 = vand.u32 %v368, 4294901760
        %7151 = vmatprep.subr.mxu0 %v7150
        %v7152 = vand.u32 %v367, 4294901760
        %7153 = vmatpush1.msra.mxu0 %v7152
        %v7154 = vand.u32 %v370, 4294901760
        %7155 = vmatprep.subr.mxu0 %v7154
        %v7156 = vand.u32 %v369, 4294901760
        %7157 = vmatpush1.msra.mxu0 %v7156
        %v7158 = vand.u32 %v372, 4294901760
        %7159 = vmatprep.subr.mxu0 %v7158
        %v7160 = vand.u32 %v371, 4294901760
        %7161 = vmatpush1.msra.mxu0 %v7160
        %v7162 = vand.u32 %v374, 4294901760
        %7163 = vmatprep.subr.mxu0 %v7162
        %v7164 = vand.u32 %v373, 4294901760
        %7165 = vmatpush1.msra.mxu0 %v7164
        %v7166 = vand.u32 %v376, 4294901760
        %7167 = vmatprep.subr.mxu0 %v7166
        %v7168 = vand.u32 %v375, 4294901760
        %7169 = vmatpush1.msra.mxu0 %v7168
        %v7170 = vand.u32 %v378, 4294901760
        %7171 = vmatprep.subr.mxu0 %v7170
        %v7172 = vand.u32 %v377, 4294901760
        %7173 = vmatpush1.msra.mxu0 %v7172
        %v7174 = vand.u32 %v6304, 4294901760
        %v7175 = vsub.f32 %v6304, %v7174
        %v7176 = vand.u32 %v7175, 4294901760
        %7177 = vmatprep.mubr.f32.mxu0 %v7176
        %v7178 = vand.u32 %v6302, 4294901760
        %v7179 = vsub.f32 %v6302, %v7178
        %v7180 = vand.u32 %v7179, 4294901760
        %7181 = vmatmul.mubr.f32.gmra.mrb[0].mxu0 %v7180
        %v7182 = vpop.f32.mrb[0].mxu0
        %v7183 = vadd.f32 %v7042, %v7182
        %v7184 = vpop.f32.mrb[0].mxu0
        %v7185 = vadd.f32 %v7044, %v7184
        %7186 = vdwg.mxu0
        %v7187 = vand.u32 %v316, 4294901760
        %v7188 = vsub.f32 %v316, %v7187
        %v7189 = vand.u32 %v7188, 4294901760
        %7190 = vmatprep.subr.mxu0 %v7189
        %v7191 = vand.u32 %v315, 4294901760
        %v7192 = vsub.f32 %v315, %v7191
        %v7193 = vand.u32 %v7192, 4294901760
        %7194 = vmatpush1.msra.mxu0 %v7193
        %v7195 = vand.u32 %v318, 4294901760
        %v7196 = vsub.f32 %v318, %v7195
        %v7197 = vand.u32 %v7196, 4294901760
        %7198 = vmatprep.subr.mxu0 %v7197
        %v7199 = vand.u32 %v317, 4294901760
        %v7200 = vsub.f32 %v317, %v7199
        %v7201 = vand.u32 %v7200, 4294901760
        %7202 = vmatpush1.msra.mxu0 %v7201
        %v7203 = vand.u32 %v320, 4294901760
        %v7204 = vsub.f32 %v320, %v7203
        %v7205 = vand.u32 %v7204, 4294901760
        %7206 = vmatprep.subr.mxu0 %v7205
        %v7207 = vand.u32 %v319, 4294901760
        %v7208 = vsub.f32 %v319, %v7207
        %v7209 = vand.u32 %v7208, 4294901760
        %7210 = vmatpush1.msra.mxu0 %v7209
        %v7211 = vand.u32 %v322, 4294901760
        %v7212 = vsub.f32 %v322, %v7211
        %v7213 = vand.u32 %v7212, 4294901760
        %7214 = vmatprep.subr.mxu0 %v7213
        %v7215 = vand.u32 %v321, 4294901760
        %v7216 = vsub.f32 %v321, %v7215
        %v7217 = vand.u32 %v7216, 4294901760
        %7218 = vmatpush1.msra.mxu0 %v7217
        %v7219 = vand.u32 %v324, 4294901760
        %v7220 = vsub.f32 %v324, %v7219
        %v7221 = vand.u32 %v7220, 4294901760
        %7222 = vmatprep.subr.mxu0 %v7221
        %v7223 = vand.u32 %v323, 4294901760
        %v7224 = vsub.f32 %v323, %v7223
        %v7225 = vand.u32 %v7224, 4294901760
        %7226 = vmatpush1.msra.mxu0 %v7225
        %v7227 = vand.u32 %v326, 4294901760
        %v7228 = vsub.f32 %v326, %v7227
        %v7229 = vand.u32 %v7228, 4294901760
        %7230 = vmatprep.subr.mxu0 %v7229
        %v7231 = vand.u32 %v325, 4294901760
        %v7232 = vsub.f32 %v325, %v7231
        %v7233 = vand.u32 %v7232, 4294901760
        %7234 = vmatpush1.msra.mxu0 %v7233
        %v7235 = vand.u32 %v328, 4294901760
        %v7236 = vsub.f32 %v328, %v7235
        %v7237 = vand.u32 %v7236, 4294901760
        %7238 = vmatprep.subr.mxu0 %v7237
        %v7239 = vand.u32 %v327, 4294901760
        %v7240 = vsub.f32 %v327, %v7239
        %v7241 = vand.u32 %v7240, 4294901760
        %7242 = vmatpush1.msra.mxu0 %v7241
        %v7243 = vand.u32 %v330, 4294901760
        %v7244 = vsub.f32 %v330, %v7243
        %v7245 = vand.u32 %v7244, 4294901760
        %7246 = vmatprep.subr.mxu0 %v7245
        %v7247 = vand.u32 %v329, 4294901760
        %v7248 = vsub.f32 %v329, %v7247
        %v7249 = vand.u32 %v7248, 4294901760
        %7250 = vmatpush1.msra.mxu0 %v7249
        %v7251 = vand.u32 %v332, 4294901760
        %v7252 = vsub.f32 %v332, %v7251
        %v7253 = vand.u32 %v7252, 4294901760
        %7254 = vmatprep.subr.mxu0 %v7253
        %v7255 = vand.u32 %v331, 4294901760
        %v7256 = vsub.f32 %v331, %v7255
        %v7257 = vand.u32 %v7256, 4294901760
        %7258 = vmatpush1.msra.mxu0 %v7257
        %v7259 = vand.u32 %v334, 4294901760
        %v7260 = vsub.f32 %v334, %v7259
        %v7261 = vand.u32 %v7260, 4294901760
        %7262 = vmatprep.subr.mxu0 %v7261
        %v7263 = vand.u32 %v333, 4294901760
        %v7264 = vsub.f32 %v333, %v7263
        %v7265 = vand.u32 %v7264, 4294901760
        %7266 = vmatpush1.msra.mxu0 %v7265
        %v7267 = vand.u32 %v336, 4294901760
        %v7268 = vsub.f32 %v336, %v7267
        %v7269 = vand.u32 %v7268, 4294901760
        %7270 = vmatprep.subr.mxu0 %v7269
        %v7271 = vand.u32 %v335, 4294901760
        %v7272 = vsub.f32 %v335, %v7271
        %v7273 = vand.u32 %v7272, 4294901760
        %7274 = vmatpush1.msra.mxu0 %v7273
        %v7275 = vand.u32 %v338, 4294901760
        %v7276 = vsub.f32 %v338, %v7275
        %v7277 = vand.u32 %v7276, 4294901760
        %7278 = vmatprep.subr.mxu0 %v7277
        %v7279 = vand.u32 %v337, 4294901760
        %v7280 = vsub.f32 %v337, %v7279
        %v7281 = vand.u32 %v7280, 4294901760
        %7282 = vmatpush1.msra.mxu0 %v7281
        %v7283 = vand.u32 %v340, 4294901760
        %v7284 = vsub.f32 %v340, %v7283
        %v7285 = vand.u32 %v7284, 4294901760
        %7286 = vmatprep.subr.mxu0 %v7285
        %v7287 = vand.u32 %v339, 4294901760
        %v7288 = vsub.f32 %v339, %v7287
        %v7289 = vand.u32 %v7288, 4294901760
        %7290 = vmatpush1.msra.mxu0 %v7289
        %v7291 = vand.u32 %v342, 4294901760
        %v7292 = vsub.f32 %v342, %v7291
        %v7293 = vand.u32 %v7292, 4294901760
        %7294 = vmatprep.subr.mxu0 %v7293
        %v7295 = vand.u32 %v341, 4294901760
        %v7296 = vsub.f32 %v341, %v7295
        %v7297 = vand.u32 %v7296, 4294901760
        %7298 = vmatpush1.msra.mxu0 %v7297
        %v7299 = vand.u32 %v344, 4294901760
        %v7300 = vsub.f32 %v344, %v7299
        %v7301 = vand.u32 %v7300, 4294901760
        %7302 = vmatprep.subr.mxu0 %v7301
        %v7303 = vand.u32 %v343, 4294901760
        %v7304 = vsub.f32 %v343, %v7303
        %v7305 = vand.u32 %v7304, 4294901760
        %7306 = vmatpush1.msra.mxu0 %v7305
        %v7307 = vand.u32 %v346, 4294901760
        %v7308 = vsub.f32 %v346, %v7307
        %v7309 = vand.u32 %v7308, 4294901760
        %7310 = vmatprep.subr.mxu0 %v7309
        %v7311 = vand.u32 %v345, 4294901760
        %v7312 = vsub.f32 %v345, %v7311
        %v7313 = vand.u32 %v7312, 4294901760
        %7314 = vmatpush1.msra.mxu0 %v7313
        %v7315 = vand.u32 %v348, 4294901760
        %v7316 = vsub.f32 %v348, %v7315
        %v7317 = vand.u32 %v7316, 4294901760
        %7318 = vmatprep.subr.mxu0 %v7317
        %v7319 = vand.u32 %v347, 4294901760
        %v7320 = vsub.f32 %v347, %v7319
        %v7321 = vand.u32 %v7320, 4294901760
        %7322 = vmatpush1.msra.mxu0 %v7321
        %v7323 = vand.u32 %v350, 4294901760
        %v7324 = vsub.f32 %v350, %v7323
        %v7325 = vand.u32 %v7324, 4294901760
        %7326 = vmatprep.subr.mxu0 %v7325
        %v7327 = vand.u32 %v349, 4294901760
        %v7328 = vsub.f32 %v349, %v7327
        %v7329 = vand.u32 %v7328, 4294901760
        %7330 = vmatpush1.msra.mxu0 %v7329
        %v7331 = vand.u32 %v352, 4294901760
        %v7332 = vsub.f32 %v352, %v7331
        %v7333 = vand.u32 %v7332, 4294901760
        %7334 = vmatprep.subr.mxu0 %v7333
        %v7335 = vand.u32 %v351, 4294901760
        %v7336 = vsub.f32 %v351, %v7335
        %v7337 = vand.u32 %v7336, 4294901760
        %7338 = vmatpush1.msra.mxu0 %v7337
        %v7339 = vand.u32 %v354, 4294901760
        %v7340 = vsub.f32 %v354, %v7339
        %v7341 = vand.u32 %v7340, 4294901760
        %7342 = vmatprep.subr.mxu0 %v7341
        %v7343 = vand.u32 %v353, 4294901760
        %v7344 = vsub.f32 %v353, %v7343
        %v7345 = vand.u32 %v7344, 4294901760
        %7346 = vmatpush1.msra.mxu0 %v7345
        %v7347 = vand.u32 %v356, 4294901760
        %v7348 = vsub.f32 %v356, %v7347
        %v7349 = vand.u32 %v7348, 4294901760
        %7350 = vmatprep.subr.mxu0 %v7349
        %v7351 = vand.u32 %v355, 4294901760
        %v7352 = vsub.f32 %v355, %v7351
        %v7353 = vand.u32 %v7352, 4294901760
        %7354 = vmatpush1.msra.mxu0 %v7353
        %v7355 = vand.u32 %v358, 4294901760
        %v7356 = vsub.f32 %v358, %v7355
        %v7357 = vand.u32 %v7356, 4294901760
        %7358 = vmatprep.subr.mxu0 %v7357
        %v7359 = vand.u32 %v357, 4294901760
        %v7360 = vsub.f32 %v357, %v7359
        %v7361 = vand.u32 %v7360, 4294901760
        %7362 = vmatpush1.msra.mxu0 %v7361
        %v7363 = vand.u32 %v360, 4294901760
        %v7364 = vsub.f32 %v360, %v7363
        %v7365 = vand.u32 %v7364, 4294901760
        %7366 = vmatprep.subr.mxu0 %v7365
        %v7367 = vand.u32 %v359, 4294901760
        %v7368 = vsub.f32 %v359, %v7367
        %v7369 = vand.u32 %v7368, 4294901760
        %7370 = vmatpush1.msra.mxu0 %v7369
        %v7371 = vand.u32 %v362, 4294901760
        %v7372 = vsub.f32 %v362, %v7371
        %v7373 = vand.u32 %v7372, 4294901760
        %7374 = vmatprep.subr.mxu0 %v7373
        %v7375 = vand.u32 %v361, 4294901760
        %v7376 = vsub.f32 %v361, %v7375
        %v7377 = vand.u32 %v7376, 4294901760
        %7378 = vmatpush1.msra.mxu0 %v7377
        %v7379 = vand.u32 %v364, 4294901760
        %v7380 = vsub.f32 %v364, %v7379
        %v7381 = vand.u32 %v7380, 4294901760
        %7382 = vmatprep.subr.mxu0 %v7381
        %v7383 = vand.u32 %v363, 4294901760
        %v7384 = vsub.f32 %v363, %v7383
        %v7385 = vand.u32 %v7384, 4294901760
        %7386 = vmatpush1.msra.mxu0 %v7385
        %v7387 = vand.u32 %v366, 4294901760
        %v7388 = vsub.f32 %v366, %v7387
        %v7389 = vand.u32 %v7388, 4294901760
        %7390 = vmatprep.subr.mxu0 %v7389
        %v7391 = vand.u32 %v365, 4294901760
        %v7392 = vsub.f32 %v365, %v7391
        %v7393 = vand.u32 %v7392, 4294901760
        %7394 = vmatpush1.msra.mxu0 %v7393
        %v7395 = vand.u32 %v368, 4294901760
        %v7396 = vsub.f32 %v368, %v7395
        %v7397 = vand.u32 %v7396, 4294901760
        %7398 = vmatprep.subr.mxu0 %v7397
        %v7399 = vand.u32 %v367, 4294901760
        %v7400 = vsub.f32 %v367, %v7399
        %v7401 = vand.u32 %v7400, 4294901760
        %7402 = vmatpush1.msra.mxu0 %v7401
        %v7403 = vand.u32 %v370, 4294901760
        %v7404 = vsub.f32 %v370, %v7403
        %v7405 = vand.u32 %v7404, 4294901760
        %7406 = vmatprep.subr.mxu0 %v7405
        %v7407 = vand.u32 %v369, 4294901760
        %v7408 = vsub.f32 %v369, %v7407
        %v7409 = vand.u32 %v7408, 4294901760
        %7410 = vmatpush1.msra.mxu0 %v7409
        %v7411 = vand.u32 %v372, 4294901760
        %v7412 = vsub.f32 %v372, %v7411
        %v7413 = vand.u32 %v7412, 4294901760
        %7414 = vmatprep.subr.mxu0 %v7413
        %v7415 = vand.u32 %v371, 4294901760
        %v7416 = vsub.f32 %v371, %v7415
        %v7417 = vand.u32 %v7416, 4294901760
        %7418 = vmatpush1.msra.mxu0 %v7417
        %v7419 = vand.u32 %v374, 4294901760
        %v7420 = vsub.f32 %v374, %v7419
        %v7421 = vand.u32 %v7420, 4294901760
        %7422 = vmatprep.subr.mxu0 %v7421
        %v7423 = vand.u32 %v373, 4294901760
        %v7424 = vsub.f32 %v373, %v7423
        %v7425 = vand.u32 %v7424, 4294901760
        %7426 = vmatpush1.msra.mxu0 %v7425
        %v7427 = vand.u32 %v376, 4294901760
        %v7428 = vsub.f32 %v376, %v7427
        %v7429 = vand.u32 %v7428, 4294901760
        %7430 = vmatprep.subr.mxu0 %v7429
        %v7431 = vand.u32 %v375, 4294901760
        %v7432 = vsub.f32 %v375, %v7431
        %v7433 = vand.u32 %v7432, 4294901760
        %7434 = vmatpush1.msra.mxu0 %v7433
        %v7435 = vand.u32 %v378, 4294901760
        %v7436 = vsub.f32 %v378, %v7435
        %v7437 = vand.u32 %v7436, 4294901760
        %7438 = vmatprep.subr.mxu0 %v7437
        %v7439 = vand.u32 %v377, 4294901760
        %v7440 = vsub.f32 %v377, %v7439
        %v7441 = vand.u32 %v7440, 4294901760
        %7442 = vmatpush1.msra.mxu0 %v7441
        %v7443 = vand.u32 %v6304, 4294901760
        %7444 = vmatprep.mubr.f32.mxu0 %v7443
        %v7445 = vand.u32 %v6302, 4294901760
        %7446 = vmatmul.mubr.f32.gmra.mrb[0].mxu0 %v7445
        %v7447 = vpop.f32.mrb[0].mxu0
        %v7448 = vadd.f32 %v7183, %v7447
        %v7449 = vpop.f32.mrb[0].mxu0
        %v7450 = vadd.f32 %v7185, %v7449
        %7451 = vdwg.mxu0
        %v7452 = vand.u32 %v316, 4294901760
        %7453 = vmatprep.subr.mxu0 %v7452
        %v7454 = vand.u32 %v315, 4294901760
        %7455 = vmatpush1.msra.mxu0 %v7454
        %v7456 = vand.u32 %v318, 4294901760
        %7457 = vmatprep.subr.mxu0 %v7456
        %v7458 = vand.u32 %v317, 4294901760
        %7459 = vmatpush1.msra.mxu0 %v7458
        %v7460 = vand.u32 %v320, 4294901760
        %7461 = vmatprep.subr.mxu0 %v7460
        %v7462 = vand.u32 %v319, 4294901760
        %7463 = vmatpush1.msra.mxu0 %v7462
        %v7464 = vand.u32 %v322, 4294901760
        %7465 = vmatprep.subr.mxu0 %v7464
        %v7466 = vand.u32 %v321, 4294901760
        %7467 = vmatpush1.msra.mxu0 %v7466
        %v7468 = vand.u32 %v324, 4294901760
        %7469 = vmatprep.subr.mxu0 %v7468
        %v7470 = vand.u32 %v323, 4294901760
        %7471 = vmatpush1.msra.mxu0 %v7470
        %v7472 = vand.u32 %v326, 4294901760
        %7473 = vmatprep.subr.mxu0 %v7472
        %v7474 = vand.u32 %v325, 4294901760
        %7475 = vmatpush1.msra.mxu0 %v7474
        %v7476 = vand.u32 %v328, 4294901760
        %7477 = vmatprep.subr.mxu0 %v7476
        %v7478 = vand.u32 %v327, 4294901760
        %7479 = vmatpush1.msra.mxu0 %v7478
        %v7480 = vand.u32 %v330, 4294901760
        %7481 = vmatprep.subr.mxu0 %v7480
        %v7482 = vand.u32 %v329, 4294901760
        %7483 = vmatpush1.msra.mxu0 %v7482
        %v7484 = vand.u32 %v332, 4294901760
        %7485 = vmatprep.subr.mxu0 %v7484
        %v7486 = vand.u32 %v331, 4294901760
        %7487 = vmatpush1.msra.mxu0 %v7486
        %v7488 = vand.u32 %v334, 4294901760
        %7489 = vmatprep.subr.mxu0 %v7488
        %v7490 = vand.u32 %v333, 4294901760
        %7491 = vmatpush1.msra.mxu0 %v7490
        %v7492 = vand.u32 %v336, 4294901760
        %7493 = vmatprep.subr.mxu0 %v7492
        %v7494 = vand.u32 %v335, 4294901760
        %7495 = vmatpush1.msra.mxu0 %v7494
        %v7496 = vand.u32 %v338, 4294901760
        %7497 = vmatprep.subr.mxu0 %v7496
        %v7498 = vand.u32 %v337, 4294901760
        %7499 = vmatpush1.msra.mxu0 %v7498
        %v7500 = vand.u32 %v340, 4294901760
        %7501 = vmatprep.subr.mxu0 %v7500
        %v7502 = vand.u32 %v339, 4294901760
        %7503 = vmatpush1.msra.mxu0 %v7502
        %v7504 = vand.u32 %v342, 4294901760
        %7505 = vmatprep.subr.mxu0 %v7504
        %v7506 = vand.u32 %v341, 4294901760
        %7507 = vmatpush1.msra.mxu0 %v7506
        %v7508 = vand.u32 %v344, 4294901760
        %7509 = vmatprep.subr.mxu0 %v7508
        %v7510 = vand.u32 %v343, 4294901760
        %7511 = vmatpush1.msra.mxu0 %v7510
        %v7512 = vand.u32 %v346, 4294901760
        %7513 = vmatprep.subr.mxu0 %v7512
        %v7514 = vand.u32 %v345, 4294901760
        %7515 = vmatpush1.msra.mxu0 %v7514
        %v7516 = vand.u32 %v348, 4294901760
        %7517 = vmatprep.subr.mxu0 %v7516
        %v7518 = vand.u32 %v347, 4294901760
        %7519 = vmatpush1.msra.mxu0 %v7518
        %v7520 = vand.u32 %v350, 4294901760
        %7521 = vmatprep.subr.mxu0 %v7520
        %v7522 = vand.u32 %v349, 4294901760
        %7523 = vmatpush1.msra.mxu0 %v7522
        %v7524 = vand.u32 %v352, 4294901760
        %7525 = vmatprep.subr.mxu0 %v7524
        %v7526 = vand.u32 %v351, 4294901760
        %7527 = vmatpush1.msra.mxu0 %v7526
        %v7528 = vand.u32 %v354, 4294901760
        %7529 = vmatprep.subr.mxu0 %v7528
        %v7530 = vand.u32 %v353, 4294901760
        %7531 = vmatpush1.msra.mxu0 %v7530
        %v7532 = vand.u32 %v356, 4294901760
        %7533 = vmatprep.subr.mxu0 %v7532
        %v7534 = vand.u32 %v355, 4294901760
        %7535 = vmatpush1.msra.mxu0 %v7534
        %v7536 = vand.u32 %v358, 4294901760
        %7537 = vmatprep.subr.mxu0 %v7536
        %v7538 = vand.u32 %v357, 4294901760
        %7539 = vmatpush1.msra.mxu0 %v7538
        %v7540 = vand.u32 %v360, 4294901760
        %7541 = vmatprep.subr.mxu0 %v7540
        %v7542 = vand.u32 %v359, 4294901760
        %7543 = vmatpush1.msra.mxu0 %v7542
        %v7544 = vand.u32 %v362, 4294901760
        %7545 = vmatprep.subr.mxu0 %v7544
        %v7546 = vand.u32 %v361, 4294901760
        %7547 = vmatpush1.msra.mxu0 %v7546
        %v7548 = vand.u32 %v364, 4294901760
        %7549 = vmatprep.subr.mxu0 %v7548
        %v7550 = vand.u32 %v363, 4294901760
        %7551 = vmatpush1.msra.mxu0 %v7550
        %v7552 = vand.u32 %v366, 4294901760
        %7553 = vmatprep.subr.mxu0 %v7552
        %v7554 = vand.u32 %v365, 4294901760
        %7555 = vmatpush1.msra.mxu0 %v7554
        %v7556 = vand.u32 %v368, 4294901760
        %7557 = vmatprep.subr.mxu0 %v7556
        %v7558 = vand.u32 %v367, 4294901760
        %7559 = vmatpush1.msra.mxu0 %v7558
        %v7560 = vand.u32 %v370, 4294901760
        %7561 = vmatprep.subr.mxu0 %v7560
        %v7562 = vand.u32 %v369, 4294901760
        %7563 = vmatpush1.msra.mxu0 %v7562
        %v7564 = vand.u32 %v372, 4294901760
        %7565 = vmatprep.subr.mxu0 %v7564
        %v7566 = vand.u32 %v371, 4294901760
        %7567 = vmatpush1.msra.mxu0 %v7566
        %v7568 = vand.u32 %v374, 4294901760
        %7569 = vmatprep.subr.mxu0 %v7568
        %v7570 = vand.u32 %v373, 4294901760
        %7571 = vmatpush1.msra.mxu0 %v7570
        %v7572 = vand.u32 %v376, 4294901760
        %7573 = vmatprep.subr.mxu0 %v7572
        %v7574 = vand.u32 %v375, 4294901760
        %7575 = vmatpush1.msra.mxu0 %v7574
        %v7576 = vand.u32 %v378, 4294901760
        %7577 = vmatprep.subr.mxu0 %v7576
        %v7578 = vand.u32 %v377, 4294901760
        %7579 = vmatpush1.msra.mxu0 %v7578
        %v7580 = vand.u32 %v6304, 4294901760
        %7581 = vmatprep.mubr.f32.mxu0 %v7580
        %v7582 = vand.u32 %v6302, 4294901760
        %7583 = vmatmul.mubr.f32.gmra.mrb[0].mxu0 %v7582
        %v7584 = vpop.f32.mrb[0].mxu0
        %v7585 = vadd.f32 %v7448, %v7584
        %v7586 = vpop.f32.mrb[0].mxu0
        %v7587 = vadd.f32 %v7450, %v7586
        %7588 = vdwg.mxu0
        %v7589 = vrcp.pop %v7585
        %v7590 = vrcp.pop %v7587
        %v7591 = vmul.f32 %v7585, %v7589
        %v7592 = vmul.f32 %v7587, %v7590
        %v7593 = vsub.f32 2.0, %v7591
        %v7594 = vsub.f32 2.0, %v7592
        %v7595 = vmul.f32 %v7589, %v7593
        %v7596 = vmul.f32 %v7590, %v7594
        %v7597 = vmul.f32 %v6302, %v7595
        %v7598 = vmul.f32 %v6304, %v7596
        %v7599 = vmul.f32 %v7597, %v1141
        %v7600 = vmul.f32 %v7598, %v1142
        %7601 = vst [vmem:[%s296] sm:$0xff] %v7599
        %7602 = vst [vmem:[%s296 + $0x8] sm:$0xff] %v7600
        %s7603 = sand.u32 %s163, 1
        %s7604 = scalar_lea.sflag [#allocation4], %s7603
        %s7605 = sand.u32 %s163, 1
        %s7606 = smul.addr %s7605, 16
        %s7607 = scalar_lea.vmem [#allocation8], %s7606
        // Predicated region
        $region57: #{tpu_custom_call.1} parent=43 // pred_check
          %p7608 = pneg %p173
        $region58: #{tpu_custom_call.1} parent=43 // pred_check_branch
          %7610 = sbr.rel (%p7608) target = $region60
        $region59: #{tpu_custom_call.1} parent=43 // pred_region
          %s7612 = ssub.s32 256, 256
          %7613 = vsyncadd %s7604, %s7612
          %s7614 = smul.addr %s24, 2
          %s7615 = smul.addr %s7614, 128
          %s7616 = scalar_lea.hbm %s6, %s7615
          %s7618 = sshll.u32 %s7607, 4
          %s7619 = int_to_ptr.vmem [resolvable:$true] %s7618
          %7621 = dma.vmem_to_hbm [thread:$0]  %s7619, 256, %s7616, %s7604
        $region60: #{tpu_custom_call.1} parent=43 // pred_fallthru
          _
      $region44: #{tpu_custom_call.1} parent=5 // pred_fallthru
        _
      %p7622 = scmp.le.s32.totalorder 2, %s19
      // Predicated region
      $region61: #{tpu_custom_call.1} parent=5 // pred_check
        %p7623 = pneg %p7622
      $region62: #{tpu_custom_call.1} parent=5 // pred_check_branch
        %7625 = sbr.rel (%p7623) target = $region64
      $region63: #{tpu_custom_call.1} parent=5 // pred_region
        %s7626 = ssub.s32 %s19, 2
        // Predicated region
        $region65: #{tpu_custom_call.1} parent=63 // pred_check
          %p7627 = pneg %p179
        $region66: #{tpu_custom_call.1} parent=63 // pred_check_branch
          %7629 = sbr.rel (%p7627) target = $region68
        $region67: #{tpu_custom_call.1} parent=63 // pred_region
          %s7630 = sand.u32 %s164, 1
          %s7631 = scalar_lea.sflag [#allocation4], %s7630
          %s7632 = sand.u32 %s164, 1
          %s7633 = smul.addr %s7632, 16
          %s7634 = scalar_lea.vmem [#allocation8], %s7633
          %7635 = dma.done %s7631, 256
        $region68: #{tpu_custom_call.1} parent=63 // pred_fallthru
          _
      $region64: #{tpu_custom_call.1} parent=5 // pred_fallthru
        _
    $region6: #{tpu_custom_call.1} parent=1 // loop_footer
      %s23 = sadd.s32 1, %s19
    $region7: #{tpu_custom_call.1} parent=1 // loop_footer_branch
      %18 = sbr.rel target = $region3
    $region8: #{tpu_custom_call.1} parent=1 // loop_exit
      _
    %7636 = vsyncpa [#allocation3], 1
    %s7637 = scalar_lea.sflag [#allocation3], 1
    %7638 = vsyncpa %s7637, 1
    %7639 = vsyncpa [#allocation6], 1
    %7640 = vsyncpa [#allocation4], 1
    %s7641 = scalar_lea.sflag [#allocation4], 1
    %7642 = vsyncpa %s7641, 1

</llo_original>
